<compile_context>
chip_gen: v6e
topology: v6e:2x2x1
jax: 0.10.0
libtpu: 0.0.40
codegen_flags: <defaults>
</compile_context>

<pallas_src>
import math
import functools

import jax
import jax.numpy as jnp
from jax.experimental import pallas as pl
from jax.experimental.pallas import tpu as pltpu

NEG_INF = -1e30  # additive causal-mask value (stands in for float('-inf'))


# ---------------------------------------------------------------------------
# Tiling helpers
# ---------------------------------------------------------------------------
def _tile(dim, target, align, min_blocks=1):
    """Largest multiple of `align` that divides `dim`, is <= target, and yields
    at least `min_blocks` blocks; otherwise fall back to the full dim
    (full-extent blocks are always legal)."""
    t = (min(target, dim) // align) * align
    while t >= align:
        if dim % t == 0 and dim // t >= min_blocks:
            return t
        t -= align
    return dim


def _pad_cols(w, b, align=128):
    """Pad the output dim of (w, b) up to a multiple of `align` so weight tiles
    stay bounded and lane-dense (e.g. non-128-multiple vocab sizes)."""
    n = w.shape[1]
    n_pad = -(-n // align) * align
    if n_pad != n:
        w = jnp.pad(w, ((0, 0), (0, n_pad - n)))
        b = jnp.pad(b, (0, n_pad - n))
    return w, b, n, n_pad


# ---------------------------------------------------------------------------
# Tiled linear (matmul + bias [+ ReLU]) kernel -- bf16 in, f32 accumulate
# ---------------------------------------------------------------------------
def _linear_kernel(x_ref, w_ref, b_ref, o_ref, acc_ref, *, relu):
    k = pl.program_id(2)
    prod = jnp.dot(x_ref[...], w_ref[...], preferred_element_type=jnp.float32)

    @pl.when(k == 0)
    def _():
        acc_ref[...] = prod          # direct write: no zero-init + add

    @pl.when(k > 0)
    def _():
        acc_ref[...] += prod

    @pl.when(k == pl.num_programs(2) - 1)
    def _():
        y = acc_ref[...] + b_ref[...]
        if relu:
            y = jnp.maximum(y, 0.0)
        o_ref[...] = y.astype(o_ref.dtype)


def linear(x, w, b, relu=False, out_dtype=jnp.bfloat16, *, tm=256, tn=512, tk=512):
    # x: [M, K] bf16, w: [K, N] bf16 (pre-transposed vs. torch), b: [N] f32
    x = x.astype(jnp.bfloat16)
    w = w.astype(jnp.bfloat16)
    b = b.astype(jnp.float32)
    w, b, n_orig, n_pad = _pad_cols(w, b)

    M, K = x.shape
    N = n_pad
    tm = _tile(M, tm, 8, min_blocks=2)     # >=2 row blocks feeds both v7x TCs
    tn = _tile(N, tn, 128)
    tk = _tile(K, tk, 128)
    grid = (M // tm, N // tn, K // tk)

    out = pl.pallas_call(
        functools.partial(_linear_kernel, relu=relu),
        out_shape=jax.ShapeDtypeStruct((M, N), out_dtype),
        grid=grid,
        in_specs=[
            pl.BlockSpec((tm, tk), lambda i, j, k: (i, k)),
            pl.BlockSpec((tk, tn), lambda i, j, k: (k, j)),
            pl.BlockSpec((1, tn), lambda i, j, k: (0, j)),
        ],
        out_specs=pl.BlockSpec((tm, tn), lambda i, j, k: (i, j)),
        scratch_shapes=[pltpu.VMEM((tm, tn), jnp.float32)],
        compiler_params=pltpu.CompilerParams(
            dimension_semantics=("parallel", "parallel", "arbitrary")),
    )(x, w, b.reshape(1, N))
    if n_pad != n_orig:
        out = out[:, :n_orig]
    return out


# ---------------------------------------------------------------------------
# Fused matmul + bias + residual + LayerNorm kernel
# ---------------------------------------------------------------------------
def _matmul_res_ln_kernel(x_ref, w_ref, b_ref, r_ref, g_ref, beta_ref,
                          o_ref, acc_ref, *, eps):
    k = pl.program_id(1)
    prod = jnp.dot(x_ref[...], w_ref[...], preferred_element_type=jnp.float32)

    @pl.when(k == 0)
    def _():
        acc_ref[...] = prod

    @pl.when(k > 0)
    def _():
        acc_ref[...] += prod

    @pl.when(k == pl.num_programs(1) - 1)
    def _():
        z = acc_ref[...] + b_ref[...] + r_ref[...].astype(jnp.float32)
        mean = jnp.mean(z, axis=-1, keepdims=True)
        var = jnp.mean(jnp.square(z - mean), axis=-1, keepdims=True)
        zn = (z - mean) * jax.lax.rsqrt(var + eps)
        o_ref[...] = (zn * g_ref[...] + beta_ref[...]).astype(o_ref.dtype)


def matmul_res_ln(x, w, b, residual, gamma, beta, eps=1e-5, *, tm=128, tk=512):
    # y = LayerNorm(x @ w + b + residual); N (= d_model) stays one block so the
    # LN reduction is in-kernel. tm=128/tk=512 keeps per-step VMEM v7x-safe.
    x = x.astype(jnp.bfloat16)
    w = w.astype(jnp.bfloat16)
    M, K = x.shape
    N = w.shape[1]
    assert N % 128 == 0, "d_model must be a multiple of 128"
    tm = _tile(M, tm, 8, min_blocks=2)
    tk = _tile(K, tk, 128)
    grid = (M // tm, K // tk)
    return pl.pallas_call(
        functools.partial(_matmul_res_ln_kernel, eps=eps),
        out_shape=jax.ShapeDtypeStruct((M, N), jnp.bfloat16),
        grid=grid,
        in_specs=[
            pl.BlockSpec((tm, tk), lambda i, k: (i, k)),
            pl.BlockSpec((tk, N), lambda i, k: (k, 0)),
            pl.BlockSpec((1, N), lambda i, k: (0, 0)),
            pl.BlockSpec((tm, N), lambda i, k: (i, 0)),
            pl.BlockSpec((1, N), lambda i, k: (0, 0)),
            pl.BlockSpec((1, N), lambda i, k: (0, 0)),
        ],
        out_specs=pl.BlockSpec((tm, N), lambda i, k: (i, 0)),
        scratch_shapes=[pltpu.VMEM((tm, N), jnp.float32)],
        compiler_params=pltpu.CompilerParams(
            dimension_semantics=("parallel", "arbitrary")),
    )(x, w, b.astype(jnp.float32).reshape(1, N),
      residual.astype(jnp.bfloat16),
      gamma.astype(jnp.float32).reshape(1, N),
      beta.astype(jnp.float32).reshape(1, N))


# ---------------------------------------------------------------------------
# Multi-head attention kernel: grid=(B,), lane-dense (S, D) blocks
# ---------------------------------------------------------------------------
def _mha_kernel(q_ref, k_ref, v_ref, o_ref, *, num_heads, scale, causal):
    # q_ref: (Sq, D), k_ref/v_ref: (Sk, D), all bf16; o_ref: (Sq, D) bf16.
    q = q_ref[...]
    k = k_ref[...]
    v = v_ref[...]
    Sq, D = q.shape
    Sk = k.shape[0]
    Dh = D // num_heads

    mask = None
    if causal:
        # one 2-D mask shared across heads (not O(H*Sq*Sk) iota work)
        row = jax.lax.broadcasted_iota(jnp.int32, (Sq, Sk), 0)
        col = jax.lax.broadcasted_iota(jnp.int32, (Sq, Sk), 1)
        mask = col > row

    contract_last = (((1,), (1,)), ((), ()))
    outs = []
    # TODO(synk): for long sequences convert to a flash-style online-softmax
    # with an Sk-tiled grid axis; full (Sq, Sk) scores fit VMEM at these sizes.
    for h in range(num_heads):
        lo = h * Dh
        qh = q[:, lo:lo + Dh] * scale          # fold softmax scale into q (Sq*Dh, not Sq*Sk)
        kh = k[:, lo:lo + Dh]
        vh = v[:, lo:lo + Dh]
        s = jax.lax.dot_general(qh, kh, contract_last,
                                preferred_element_type=jnp.float32)
        if causal:
            s = jnp.where(mask, NEG_INF, s)
        mx = jnp.max(s, axis=-1, keepdims=True)
        p = jnp.exp(s - mx)
        denom = jnp.sum(p, axis=-1, keepdims=True)
        p = p * pl.reciprocal(denom, approx=True)   # EUP slot; ~1e-4 rel err, fine for bf16 path
        outs.append(jnp.dot(p.astype(vh.dtype), vh,
                            preferred_element_type=jnp.float32))
    o_ref[...] = jnp.concatenate(outs, axis=-1).astype(o_ref.dtype)


def _attention_call(arrays, in_specs, B, Sq, D, num_heads, causal):
    scale = 1.0 / math.sqrt(D // num_heads)
    return pl.pallas_call(
        functools.partial(_mha_kernel, num_heads=num_heads,
                          scale=scale, causal=causal),
        out_shape=jax.ShapeDtypeStruct((B * Sq, D), jnp.bfloat16),
        grid=(B,),
        in_specs=in_specs,
        out_specs=pl.BlockSpec((Sq, D), lambda b: (b, 0)),
        compiler_params=pltpu.CompilerParams(
            dimension_semantics=("parallel",)),
    )(*arrays)


def self_attention(qkv, B, S, D, num_heads, causal=False):
    # qkv: [B*S, 3D] bf16 (batch-major rows). Q/K/V are column blocks 0/1/2 --
    # the head split/merge is pure index_map addressing, no transposes.
    assert S % 8 == 0 and D % 128 == 0
    in_specs = [
        pl.BlockSpec((S, D), lambda b: (b, 0)),   # Q
        pl.BlockSpec((S, D), lambda b: (b, 1)),   # K
        pl.BlockSpec((S, D), lambda b: (b, 2)),   # V
    ]
    return _attention_call((qkv, qkv, qkv), in_specs, B, S, D, num_heads, causal)


def cross_attention(q, kv, B, Sq, Sk, D, num_heads):
    # q: [B*Sq, D] bf16; kv: [B*Sk, 2D] bf16 (K = col block 0, V = col block 1).
    assert Sq % 8 == 0 and Sk % 8 == 0 and D % 128 == 0
    in_specs = [
        pl.BlockSpec((Sq, D), lambda b: (b, 0)),  # Q
        pl.BlockSpec((Sk, D), lambda b: (b, 0)),  # K
        pl.BlockSpec((Sk, D), lambda b: (b, 1)),  # V
    ]
    return _attention_call((q, kv, kv), in_specs, B, Sq, D, num_heads, False)


# ---------------------------------------------------------------------------
# Layer composition (activations stay batch-major bf16 [B*S, D])
# ---------------------------------------------------------------------------
def encoder_layer(x, p, num_heads, B, S, D):
    qkv = linear(x, p["attn"]["wqkv"], p["attn"]["bqkv"])             # [B*S, 3D]
    attn = self_attention(qkv, B, S, D, num_heads, causal=False)      # [B*S, D]
    x1 = matmul_res_ln(attn, p["attn"]["wo"], p["attn"]["bo"], x,
                       p["ln1_g"], p["ln1_b"])
    h = linear(x1, p["w1"], p["b1"], relu=True)
    x2 = matmul_res_ln(h, p["w2"], p["b2"], x1, p["ln2_g"], p["ln2_b"])
    return x2


def decoder_layer(x, enc_out, p, num_heads, B, S_tgt, S_src, D):
    qkv = linear(x, p["masked_attn"]["wqkv"], p["masked_attn"]["bqkv"])
    a1 = self_attention(qkv, B, S_tgt, D, num_heads, causal=True)
    x1 = matmul_res_ln(a1, p["masked_attn"]["wo"], p["masked_attn"]["bo"], x,
                       p["ln1_g"], p["ln1_b"])
    q = linear(x1, p["attn"]["wq"], p["attn"]["bq"])                  # [B*S_tgt, D]
    kv = linear(enc_out, p["attn"]["wkv"], p["attn"]["bkv"])          # [B*S_src, 2D]
    a2 = cross_attention(q, kv, B, S_tgt, S_src, D, num_heads)
    x2 = matmul_res_ln(a2, p["attn"]["wo"], p["attn"]["bo"], x1,
                       p["ln2_g"], p["ln2_b"])
    h = linear(x2, p["w1"], p["b1"], relu=True)
    x3 = matmul_res_ln(h, p["w2"], p["b2"], x2, p["ln3_g"], p["ln3_b"])
    return x3


def make_pe(d_model, max_len=512):
    position = jnp.arange(max_len, dtype=jnp.float32)[:, None]
    div_term = jnp.exp(jnp.arange(0, d_model, 2, dtype=jnp.float32)
                       * (-math.log(10000.0) / d_model))
    pe = jnp.zeros((max_len, 1, d_model), jnp.float32)
    pe = pe.at[:, 0, 0::2].set(jnp.sin(position * div_term))
    pe = pe.at[:, 0, 1::2].set(jnp.cos(position * div_term))
    return pe


def transformer_forward(src, tgt, params, num_heads):
    emb = params["embedding"]
    pe = params["pe"]
    D = emb.shape[1]

    # embedding lookup + positional encoding (glue), then batch-major bf16
    # TODO(synk): nn.Dropout(p=0.1) implemented as identity (eval-mode semantics)
    S_src, B = src.shape
    x = jnp.take(emb, src, axis=0) + pe[:S_src]                       # [S, B, D] f32
    x = x.transpose(1, 0, 2).reshape(B * S_src, D).astype(jnp.bfloat16)
    for lp in params["enc_layers"]:
        x = encoder_layer(x, lp, num_heads, B, S_src, D)
    enc_out = x                                                       # [B*S_src, D]

    S_tgt = tgt.shape[0]
    y = jnp.take(emb, tgt, axis=0) + pe[:S_tgt]
    y = y.transpose(1, 0, 2).reshape(B * S_tgt, D).astype(jnp.bfloat16)
    for lp in params["dec_layers"]:
        y = decoder_layer(y, enc_out, lp, num_heads, B, S_tgt, S_src, D)

    # vocab projection: lane-dense tiles (N padded to 128 inside linear), f32 logits
    logits = linear(y, params["out_w"], params["out_b"], out_dtype=jnp.float32)
    V = params["out_w"].shape[1]
    return logits.reshape(B, S_tgt, V).transpose(1, 0, 2)             # [S_tgt, B, V]


# ---------------------------------------------------------------------------
# Parameter init (weights stored bf16; biases / LN params / embedding f32)
# ---------------------------------------------------------------------------
def init_params(key, d_model, num_heads, num_layers, vocab_size):
    keys = iter(jax.random.split(key, 1024))

    def dense(din, dout, scale=0.05):
        w = (jax.random.normal(next(keys), (din, dout), jnp.float32) * scale)
        b = jax.random.normal(next(keys), (dout,), jnp.float32) * scale
        return w.astype(jnp.bfloat16), b

    def mha_self_p():
        wq, bq = dense(d_model, d_model)
        wk, bk = dense(d_model, d_model)
        wv, bv = dense(d_model, d_model)
        wo, bo = dense(d_model, d_model)
        return {"wqkv": jnp.concatenate([wq, wk, wv], axis=1),
                "bqkv": jnp.concatenate([bq, bk, bv]),
                "wo": wo, "bo": bo}

    def mha_cross_p():
        wq, bq = dense(d_model, d_model)
        wk, bk = dense(d_model, d_model)
        wv, bv = dense(d_model, d_model)
        wo, bo = dense(d_model, d_model)
        return {"wq": wq, "bq": bq,
                "wkv": jnp.concatenate([wk, wv], axis=1),
                "bkv": jnp.concatenate([bk, bv]),
                "wo": wo, "bo": bo}

    ones = lambda: jnp.ones((d_model,), jnp.float32)
    zeros = lambda: jnp.zeros((d_model,), jnp.float32)

    def enc_layer_p():
        w1, b1 = dense(d_model, 4 * d_model)
        w2, b2 = dense(4 * d_model, d_model)
        return {"attn": mha_self_p(),
                "ln1_g": ones(), "ln1_b": zeros(),
                "w1": w1, "b1": b1, "w2": w2, "b2": b2,
                "ln2_g": ones(), "ln2_b": zeros()}

    def dec_layer_p():
        w1, b1 = dense(d_model, 4 * d_model)
        w2, b2 = dense(4 * d_model, d_model)
        return {"masked_attn": mha_self_p(), "attn": mha_cross_p(),
                "ln1_g": ones(), "ln1_b": zeros(),
                "ln2_g": ones(), "ln2_b": zeros(),
                "ln3_g": ones(), "ln3_b": zeros(),
                "w1": w1, "b1": b1, "w2": w2, "b2": b2}

    embedding = jax.random.normal(next(keys), (vocab_size, d_model), jnp.float32)
    enc_layers = [enc_layer_p() for _ in range(num_layers)]
    dec_layers = [dec_layer_p() for _ in range(num_layers)]
    out_w, out_b = dense(d_model, vocab_size)
    return {"embedding": embedding, "pe": make_pe(d_model),
            "enc_layers": enc_layers, "dec_layers": dec_layers,
            "out_w": out_w, "out_b": out_b}


if __name__ == "__main__":
    # Small but lane-friendly demo shapes (d_model = 128 -> full 128-lane vregs).
    d_model, num_heads, num_layers, vocab_size = 128, 4, 2, 256
    S_src, S_tgt, B = 16, 16, 2

    key = jax.random.PRNGKey(0)
    pk, sk, tk_ = jax.random.split(key, 3)
    params = init_params(pk, d_model, num_heads, num_layers, vocab_size)

    src = jax.random.randint(sk, (S_src, B), 0, vocab_size, dtype=jnp.int32)
    tgt = jax.random.randint(tk_, (S_tgt, B), 0, vocab_size, dtype=jnp.int32)

    fwd = jax.jit(functools.partial(transformer_forward, num_heads=num_heads))
    logits = fwd(src, tgt, params)
    jax.block_until_ready(logits)
    assert logits.shape == (S_tgt, B, vocab_size)
    assert bool(jnp.all(jnp.isfinite(logits)))
    print("KERNEL_OK")
</pallas_src>

<mosaic_0001>
module attributes {stable_mosaic.version = 11 : i64} {
  func.func @_linear_kernel(%arg0: i32, %arg1: i32, %arg2: i32, %arg3: memref<16x128xbf16, #tpu.memory_space<vmem>>, %arg4: memref<128x384xbf16, #tpu.memory_space<vmem>>, %arg5: memref<1x384xf32, #tpu.memory_space<vmem>>, %arg6: memref<16x384xbf16, #tpu.memory_space<vmem>>, %arg7: memref<16x384xf32, #tpu.memory_space<vmem>>) attributes {dimension_semantics = [#tpu.dimension_semantics<parallel>, #tpu.dimension_semantics<parallel>, #tpu.dimension_semantics<arbitrary>], iteration_bounds = array<i64: 2, 1, 1>, scalar_prefetch = 0 : i64, scratch_operands = 1 : i64, tpu.core_type = #tpu.core_type<tc>, window_params = [{transform_indices = @transform_0, window_bounds = array<i64: 16, 128>}, {transform_indices = @transform_1, window_bounds = array<i64: 128, 384>}, {transform_indices = @transform_2, window_bounds = array<i64: 1, 384>}, {transform_indices = @transform_3, window_bounds = array<i64: 16, 384>}]} {
    %c0 = arith.constant 0 : index
    %c0_0 = arith.constant 0 : index
    %0 = vector.load %arg3[%c0, %c0_0] : memref<16x128xbf16, #tpu.memory_space<vmem>>, vector<16x128xbf16>
    %c0_1 = arith.constant 0 : index
    %c0_2 = arith.constant 0 : index
    %1 = vector.load %arg4[%c0_1, %c0_2] : memref<128x384xbf16, #tpu.memory_space<vmem>>, vector<128x384xbf16>
    %cst = arith.constant dense<0.000000e+00> : vector<16x384xf32>
    %2 = tpu.matmul %0, %1, %cst {dimension_numbers = #tpu.dot_dimension_numbers<[1], [0], [0], [1], [0, 0, 1, 1], [], []>} : vector<16x128xbf16>, vector<128x384xbf16>, vector<16x384xf32> -> vector<16x384xf32>
    %c0_i32 = arith.constant 0 : i32
    %3 = arith.cmpi eq, %arg2, %c0_i32 : i32
    %4 = arith.extui %3 : i1 to i32
    %c0_i32_3 = arith.constant 0 : i32
    %5 = arith.cmpi ne, %4, %c0_i32_3 : i32
    scf.if %5 {
      %c0_8 = arith.constant 0 : index
      %c0_9 = arith.constant 0 : index
      %12 = vector.load %arg7[%c0_8, %c0_9] : memref<16x384xf32, #tpu.memory_space<vmem>>, vector<16x384xf32>
      tpu.vector_store %arg7[%c0_8, %c0_9], %2 {strides = array<i32>} : memref<16x384xf32, #tpu.memory_space<vmem>>, vector<16x384xf32>,
    } else {
    }
    %c0_i32_4 = arith.constant 0 : i32
    %6 = arith.cmpi sgt, %arg2, %c0_i32_4 : i32
    %7 = arith.extui %6 : i1 to i32
    %c0_i32_5 = arith.constant 0 : i32
    %8 = arith.cmpi ne, %7, %c0_i32_5 : i32
    scf.if %8 {
      %c0_8 = arith.constant 0 : index
      %c0_9 = arith.constant 0 : index
      %12 = vector.load %arg7[%c0_8, %c0_9] : memref<16x384xf32, #tpu.memory_space<vmem>>, vector<16x384xf32>
      %13 = arith.addf %12, %2 : vector<16x384xf32>
      %c0_10 = arith.constant 0 : index
      %c0_11 = arith.constant 0 : index
      %14 = vector.load %arg7[%c0_10, %c0_11] : memref<16x384xf32, #tpu.memory_space<vmem>>, vector<16x384xf32>
      tpu.vector_store %arg7[%c0_10, %c0_11], %13 {strides = array<i32>} : memref<16x384xf32, #tpu.memory_space<vmem>>, vector<16x384xf32>,
    } else {
    }
    %c0_i32_6 = arith.constant 0 : i32
    %9 = arith.cmpi eq, %arg2, %c0_i32_6 : i32
    %10 = arith.extui %9 : i1 to i32
    %c0_i32_7 = arith.constant 0 : i32
    %11 = arith.cmpi ne, %10, %c0_i32_7 : i32
    scf.if %11 {
      %c0_8 = arith.constant 0 : index
      %c0_9 = arith.constant 0 : index
      %12 = vector.load %arg7[%c0_8, %c0_9] : memref<16x384xf32, #tpu.memory_space<vmem>>, vector<16x384xf32>
      %c0_10 = arith.constant 0 : index
      %c0_11 = arith.constant 0 : index
      %13 = vector.load %arg5[%c0_10, %c0_11] : memref<1x384xf32, #tpu.memory_space<vmem>>, vector<1x384xf32>
      %14 = vector.broadcast %13 : vector<1x384xf32> to vector<16x384xf32>
      %15 = arith.addf %12, %14 : vector<16x384xf32>
      %16 = arith.truncf %15 : vector<16x384xf32> to vector<16x384xbf16>
      %c0_12 = arith.constant 0 : index
      %c0_13 = arith.constant 0 : index
      %17 = vector.load %arg6[%c0_12, %c0_13] : memref<16x384xbf16, #tpu.memory_space<vmem>>, vector<16x384xbf16>
      tpu.vector_store %arg6[%c0_12, %c0_13], %16 {strides = array<i32>} : memref<16x384xbf16, #tpu.memory_space<vmem>>, vector<16x384xbf16>,
    } else {
    }
    return
  }
  func.func @transform_0(%arg0: i32, %arg1: i32, %arg2: i32) -> (i32, i32) {
    %c0_i32 = arith.constant 0 : i32
    return %arg0, %arg2 : i32, i32
  }
  func.func @transform_1(%arg0: i32, %arg1: i32, %arg2: i32) -> (i32, i32) {
    %c0_i32 = arith.constant 0 : i32
    return %arg2, %arg1 : i32, i32
  }
  func.func @transform_2(%arg0: i32, %arg1: i32, %arg2: i32) -> (i32, i32) {
    %c0_i32 = arith.constant 0 : i32
    %c0_i32_0 = arith.constant 0 : i32
    return %c0_i32, %arg1 : i32, i32
  }
  func.func @transform_3(%arg0: i32, %arg1: i32, %arg2: i32) -> (i32, i32) {
    %c0_i32 = arith.constant 0 : i32
    return %arg0, %arg1 : i32, i32
  }
}

module attributes {stable_mosaic.version = 11 : i64} {
  func.func @_mha_kernel(%arg0: i32, %arg1: memref<16x128xbf16, #tpu.memory_space<vmem>>, %arg2: memref<16x128xbf16, #tpu.memory_space<vmem>>, %arg3: memref<16x128xbf16, #tpu.memory_space<vmem>>, %arg4: memref<16x128xbf16, #tpu.memory_space<vmem>>) attributes {dimension_semantics = [#tpu.dimension_semantics<parallel>], iteration_bounds = array<i64: 2>, scalar_prefetch = 0 : i64, scratch_operands = 0 : i64, tpu.core_type = #tpu.core_type<tc>, window_params = [{transform_indices = @transform_0, window_bounds = array<i64: 16, 128>}, {transform_indices = @transform_1, window_bounds = array<i64: 16, 128>}, {transform_indices = @transform_2, window_bounds = array<i64: 16, 128>}, {transform_indices = @transform_3, window_bounds = array<i64: 16, 128>}]} {
    %c0 = arith.constant 0 : index
    %c0_0 = arith.constant 0 : index
    %0 = vector.load %arg1[%c0, %c0_0] : memref<16x128xbf16, #tpu.memory_space<vmem>>, vector<16x128xbf16>
    %c0_1 = arith.constant 0 : index
    %c0_2 = arith.constant 0 : index
    %1 = vector.load %arg2[%c0_1, %c0_2] : memref<16x128xbf16, #tpu.memory_space<vmem>>, vector<16x128xbf16>
    %c0_3 = arith.constant 0 : index
    %c0_4 = arith.constant 0 : index
    %2 = vector.load %arg3[%c0_3, %c0_4] : memref<16x128xbf16, #tpu.memory_space<vmem>>, vector<16x128xbf16>
    %3 = vector.extract_strided_slice %0 {offsets = [0, 0], sizes = [16, 32], strides = [1, 1]} : vector<16x128xbf16> to vector<16x32xbf16>
    %cst = arith.constant 1.767580e-01 : bf16
    %4 = vector.broadcast %cst : bf16 to vector<16x32xbf16>
    %5 = arith.mulf %3, %4 : vector<16x32xbf16>
    %6 = vector.extract_strided_slice %1 {offsets = [0, 0], sizes = [16, 32], strides = [1, 1]} : vector<16x128xbf16> to vector<16x32xbf16>
    %7 = vector.extract_strided_slice %2 {offsets = [0, 0], sizes = [16, 32], strides = [1, 1]} : vector<16x128xbf16> to vector<16x32xbf16>
    %cst_5 = arith.constant dense<0.000000e+00> : vector<16x16xf32>
    %8 = tpu.matmul %5, %6, %cst_5 {dimension_numbers = #tpu.dot_dimension_numbers<[1], [1], [0], [0], [0, 0, 1, 0], [], []>} : vector<16x32xbf16>, vector<16x32xbf16>, vector<16x16xf32> -> vector<16x16xf32>
    %cst_6 = arith.constant dense<0xFF800000> : vector<16xf32>
    %9 = vector.multi_reduction <maximumf>, %8, %cst_6 [1] : vector<16x16xf32> to vector<16xf32>
    %10 = vector.shape_cast %9 : vector<16xf32> to vector<16x1xf32>
    %11 = vector.broadcast %10 : vector<16x1xf32> to vector<16x16xf32>
    %12 = arith.subf %8, %11 : vector<16x16xf32>
    %13 = math.exp %12 : vector<16x16xf32>
    %cst_7 = arith.constant dense<0.000000e+00> : vector<16xf32>
    %14 = vector.multi_reduction <add>, %13, %cst_7 [1] : vector<16x16xf32> to vector<16xf32>
    %15 = vector.shape_cast %14 : vector<16xf32> to vector<16x1xf32>
    %16 = tpu.reciprocal %15 {approx = true} : vector<16x1xf32> -> vector<16x1xf32>
    %17 = vector.broadcast %16 : vector<16x1xf32> to vector<16x16xf32>
    %18 = arith.mulf %13, %17 : vector<16x16xf32>
    %19 = arith.truncf %18 : vector<16x16xf32> to vector<16x16xbf16>
    %cst_8 = arith.constant dense<0.000000e+00> : vector<16x32xf32>
    %20 = tpu.matmul %19, %7, %cst_8 {dimension_numbers = #tpu.dot_dimension_numbers<[1], [0], [0], [1], [0, 0, 1, 1], [], []>} : vector<16x16xbf16>, vector<16x32xbf16>, vector<16x32xf32> -> vector<16x32xf32>
    %21 = vector.extract_strided_slice %0 {offsets = [0, 32], sizes = [16, 32], strides = [1, 1]} : vector<16x128xbf16> to vector<16x32xbf16>
    %cst_9 = arith.constant 1.767580e-01 : bf16
    %22 = vector.broadcast %cst_9 : bf16 to vector<16x32xbf16>
    %23 = arith.mulf %21, %22 : vector<16x32xbf16>
    %24 = vector.extract_strided_slice %1 {offsets = [0, 32], sizes = [16, 32], strides = [1, 1]} : vector<16x128xbf16> to vector<16x32xbf16>
    %25 = vector.extract_strided_slice %2 {offsets = [0, 32], sizes = [16, 32], strides = [1, 1]} : vector<16x128xbf16> to vector<16x32xbf16>
    %cst_10 = arith.constant dense<0.000000e+00> : vector<16x16xf32>
    %26 = tpu.matmul %23, %24, %cst_10 {dimension_numbers = #tpu.dot_dimension_numbers<[1], [1], [0], [0], [0, 0, 1, 0], [], []>} : vector<16x32xbf16>, vector<16x32xbf16>, vector<16x16xf32> -> vector<16x16xf32>
    %cst_11 = arith.constant dense<0xFF800000> : vector<16xf32>
    %27 = vector.multi_reduction <maximumf>, %26, %cst_11 [1] : vector<16x16xf32> to vector<16xf32>
    %28 = vector.shape_cast %27 : vector<16xf32> to vector<16x1xf32>
    %29 = vector.broadcast %28 : vector<16x1xf32> to vector<16x16xf32>
    %30 = arith.subf %26, %29 : vector<16x16xf32>
    %31 = math.exp %30 : vector<16x16xf32>
    %cst_12 = arith.constant dense<0.000000e+00> : vector<16xf32>
    %32 = vector.multi_reduction <add>, %31, %cst_12 [1] : vector<16x16xf32> to vector<16xf32>
    %33 = vector.shape_cast %32 : vector<16xf32> to vector<16x1xf32>
    %34 = tpu.reciprocal %33 {approx = true} : vector<16x1xf32> -> vector<16x1xf32>
    %35 = vector.broadcast %34 : vector<16x1xf32> to vector<16x16xf32>
    %36 = arith.mulf %31, %35 : vector<16x16xf32>
    %37 = arith.truncf %36 : vector<16x16xf32> to vector<16x16xbf16>
    %cst_13 = arith.constant dense<0.000000e+00> : vector<16x32xf32>
    %38 = tpu.matmul %37, %25, %cst_13 {dimension_numbers = #tpu.dot_dimension_numbers<[1], [0], [0], [1], [0, 0, 1, 1], [], []>} : vector<16x16xbf16>, vector<16x32xbf16>, vector<16x32xf32> -> vector<16x32xf32>
    %39 = vector.extract_strided_slice %0 {offsets = [0, 64], sizes = [16, 32], strides = [1, 1]} : vector<16x128xbf16> to vector<16x32xbf16>
    %cst_14 = arith.constant 1.767580e-01 : bf16
    %40 = vector.broadcast %cst_14 : bf16 to vector<16x32xbf16>
    %41 = arith.mulf %39, %40 : vector<16x32xbf16>
    %42 = vector.extract_strided_slice %1 {offsets = [0, 64], sizes = [16, 32], strides = [1, 1]} : vector<16x128xbf16> to vector<16x32xbf16>
    %43 = vector.extract_strided_slice %2 {offsets = [0, 64], sizes = [16, 32], strides = [1, 1]} : vector<16x128xbf16> to vector<16x32xbf16>
    %cst_15 = arith.constant dense<0.000000e+00> : vector<16x16xf32>
    %44 = tpu.matmul %41, %42, %cst_15 {dimension_numbers = #tpu.dot_dimension_numbers<[1], [1], [0], [0], [0, 0, 1, 0], [], []>} : vector<16x32xbf16>, vector<16x32xbf16>, vector<16x16xf32> -> vector<16x16xf32>
    %cst_16 = arith.constant dense<0xFF800000> : vector<16xf32>
    %45 = vector.multi_reduction <maximumf>, %44, %cst_16 [1] : vector<16x16xf32> to vector<16xf32>
    %46 = vector.shape_cast %45 : vector<16xf32> to vector<16x1xf32>
    %47 = vector.broadcast %46 : vector<16x1xf32> to vector<16x16xf32>
    %48 = arith.subf %44, %47 : vector<16x16xf32>
    %49 = math.exp %48 : vector<16x16xf32>
    %cst_17 = arith.constant dense<0.000000e+00> : vector<16xf32>
    %50 = vector.multi_reduction <add>, %49, %cst_17 [1] : vector<16x16xf32> to vector<16xf32>
    %51 = vector.shape_cast %50 : vector<16xf32> to vector<16x1xf32>
    %52 = tpu.reciprocal %51 {approx = true} : vector<16x1xf32> -> vector<16x1xf32>
    %53 = vector.broadcast %52 : vector<16x1xf32> to vector<16x16xf32>
    %54 = arith.mulf %49, %53 : vector<16x16xf32>
    %55 = arith.truncf %54 : vector<16x16xf32> to vector<16x16xbf16>
    %cst_18 = arith.constant dense<0.000000e+00> : vector<16x32xf32>
    %56 = tpu.matmul %55, %43, %cst_18 {dimension_numbers = #tpu.dot_dimension_numbers<[1], [0], [0], [1], [0, 0, 1, 1], [], []>} : vector<16x16xbf16>, vector<16x32xbf16>, vector<16x32xf32> -> vector<16x32xf32>
    %57 = vector.extract_strided_slice %0 {offsets = [0, 96], sizes = [16, 32], strides = [1, 1]} : vector<16x128xbf16> to vector<16x32xbf16>
    %cst_19 = arith.constant 1.767580e-01 : bf16
    %58 = vector.broadcast %cst_19 : bf16 to vector<16x32xbf16>
    %59 = arith.mulf %57, %58 : vector<16x32xbf16>
    %60 = vector.extract_strided_slice %1 {offsets = [0, 96], sizes = [16, 32], strides = [1, 1]} : vector<16x128xbf16> to vector<16x32xbf16>
    %61 = vector.extract_strided_slice %2 {offsets = [0, 96], sizes = [16, 32], strides = [1, 1]} : vector<16x128xbf16> to vector<16x32xbf16>
    %cst_20 = arith.constant dense<0.000000e+00> : vector<16x16xf32>
    %62 = tpu.matmul %59, %60, %cst_20 {dimension_numbers = #tpu.dot_dimension_numbers<[1], [1], [0], [0], [0, 0, 1, 0], [], []>} : vector<16x32xbf16>, vector<16x32xbf16>, vector<16x16xf32> -> vector<16x16xf32>
    %cst_21 = arith.constant dense<0xFF800000> : vector<16xf32>
    %63 = vector.multi_reduction <maximumf>, %62, %cst_21 [1] : vector<16x16xf32> to vector<16xf32>
    %64 = vector.shape_cast %63 : vector<16xf32> to vector<16x1xf32>
    %65 = vector.broadcast %64 : vector<16x1xf32> to vector<16x16xf32>
    %66 = arith.subf %62, %65 : vector<16x16xf32>
    %67 = math.exp %66 : vector<16x16xf32>
    %cst_22 = arith.constant dense<0.000000e+00> : vector<16xf32>
    %68 = vector.multi_reduction <add>, %67, %cst_22 [1] : vector<16x16xf32> to vector<16xf32>
    %69 = vector.shape_cast %68 : vector<16xf32> to vector<16x1xf32>
    %70 = tpu.reciprocal %69 {approx = true} : vector<16x1xf32> -> vector<16x1xf32>
    %71 = vector.broadcast %70 : vector<16x1xf32> to vector<16x16xf32>
    %72 = arith.mulf %67, %71 : vector<16x16xf32>
    %73 = arith.truncf %72 : vector<16x16xf32> to vector<16x16xbf16>
    %cst_23 = arith.constant dense<0.000000e+00> : vector<16x32xf32>
    %74 = tpu.matmul %73, %61, %cst_23 {dimension_numbers = #tpu.dot_dimension_numbers<[1], [0], [0], [1], [0, 0, 1, 1], [], []>} : vector<16x16xbf16>, vector<16x32xbf16>, vector<16x32xf32> -> vector<16x32xf32>
    %75 = tpu.concatenate %20, %38, %56, %74 in 1 : vector<16x32xf32>, vector<16x32xf32>, vector<16x32xf32>, vector<16x32xf32> -> vector<16x128xf32>
    %76 = arith.truncf %75 : vector<16x128xf32> to vector<16x128xbf16>
    %c0_24 = arith.constant 0 : index
    %c0_25 = arith.constant 0 : index
    %77 = vector.load %arg4[%c0_24, %c0_25] : memref<16x128xbf16, #tpu.memory_space<vmem>>, vector<16x128xbf16>
    tpu.vector_store %arg4[%c0_24, %c0_25], %76 {strides = array<i32>} : memref<16x128xbf16, #tpu.memory_space<vmem>>, vector<16x128xbf16>,
    return
  }
  func.func @transform_0(%arg0: i32) -> (i32, i32) {
    %c0_i32 = arith.constant 0 : i32
    %c0_i32_0 = arith.constant 0 : i32
    return %arg0, %c0_i32 : i32, i32
  }
  func.func @transform_1(%arg0: i32) -> (i32, i32) {
    %c1_i32 = arith.constant 1 : i32
    %c0_i32 = arith.constant 0 : i32
    return %arg0, %c1_i32 : i32, i32
  }
  func.func @transform_2(%arg0: i32) -> (i32, i32) {
    %c2_i32 = arith.constant 2 : i32
    %c0_i32 = arith.constant 0 : i32
    return %arg0, %c2_i32 : i32, i32
  }
  func.func @transform_3(%arg0: i32) -> (i32, i32) {
    %c0_i32 = arith.constant 0 : i32
    %c0_i32_0 = arith.constant 0 : i32
    return %arg0, %c0_i32 : i32, i32
  }
}

module attributes {stable_mosaic.version = 11 : i64} {
  func.func @_matmul_res_ln_kernel(%arg0: i32, %arg1: i32, %arg2: memref<16x128xbf16, #tpu.memory_space<vmem>>, %arg3: memref<128x128xbf16, #tpu.memory_space<vmem>>, %arg4: memref<1x128xf32, #tpu.memory_space<vmem>>, %arg5: memref<16x128xbf16, #tpu.memory_space<vmem>>, %arg6: memref<1x128xf32, #tpu.memory_space<vmem>>, %arg7: memref<1x128xf32, #tpu.memory_space<vmem>>, %arg8: memref<16x128xbf16, #tpu.memory_space<vmem>>, %arg9: memref<16x128xf32, #tpu.memory_space<vmem>>) attributes {dimension_semantics = [#tpu.dimension_semantics<parallel>, #tpu.dimension_semantics<arbitrary>], iteration_bounds = array<i64: 2, 1>, scalar_prefetch = 0 : i64, scratch_operands = 1 : i64, tpu.core_type = #tpu.core_type<tc>, window_params = [{transform_indices = @transform_0, window_bounds = array<i64: 16, 128>}, {transform_indices = @transform_1, window_bounds = array<i64: 128, 128>}, {pipeline_mode = #tpu.pipeline_mode<synchronous>, transform_indices = @transform_2, window_bounds = array<i64: 1, 128>}, {transform_indices = @transform_3, window_bounds = array<i64: 16, 128>}, {pipeline_mode = #tpu.pipeline_mode<synchronous>, transform_indices = @transform_4, window_bounds = array<i64: 1, 128>}, {pipeline_mode = #tpu.pipeline_mode<synchronous>, transform_indices = @transform_5, window_bounds = array<i64: 1, 128>}, {transform_indices = @transform_6, window_bounds = array<i64: 16, 128>}]} {
    %c0 = arith.constant 0 : index
    %c0_0 = arith.constant 0 : index
    %0 = vector.load %arg2[%c0, %c0_0] : memref<16x128xbf16, #tpu.memory_space<vmem>>, vector<16x128xbf16>
    %c0_1 = arith.constant 0 : index
    %c0_2 = arith.constant 0 : index
    %1 = vector.load %arg3[%c0_1, %c0_2] : memref<128x128xbf16, #tpu.memory_space<vmem>>, vector<128x128xbf16>
    %cst = arith.constant dense<0.000000e+00> : vector<16x128xf32>
    %2 = tpu.matmul %0, %1, %cst {dimension_numbers = #tpu.dot_dimension_numbers<[1], [0], [0], [1], [0, 0, 1, 1], [], []>} : vector<16x128xbf16>, vector<128x128xbf16>, vector<16x128xf32> -> vector<16x128xf32>
    %c0_i32 = arith.constant 0 : i32
    %3 = arith.cmpi eq, %arg1, %c0_i32 : i32
    %4 = arith.extui %3 : i1 to i32
    %c0_i32_3 = arith.constant 0 : i32
    %5 = arith.cmpi ne, %4, %c0_i32_3 : i32
    scf.if %5 {
      %c0_8 = arith.constant 0 : index
      %c0_9 = arith.constant 0 : index
      %12 = vector.load %arg9[%c0_8, %c0_9] : memref<16x128xf32, #tpu.memory_space<vmem>>, vector<16x128xf32>
      tpu.vector_store %arg9[%c0_8, %c0_9], %2 {strides = array<i32>} : memref<16x128xf32, #tpu.memory_space<vmem>>, vector<16x128xf32>,
    } else {
    }
    %c0_i32_4 = arith.constant 0 : i32
    %6 = arith.cmpi sgt, %arg1, %c0_i32_4 : i32
    %7 = arith.extui %6 : i1 to i32
    %c0_i32_5 = arith.constant 0 : i32
    %8 = arith.cmpi ne, %7, %c0_i32_5 : i32
    scf.if %8 {
      %c0_8 = arith.constant 0 : index
      %c0_9 = arith.constant 0 : index
      %12 = vector.load %arg9[%c0_8, %c0_9] : memref<16x128xf32, #tpu.memory_space<vmem>>, vector<16x128xf32>
      %13 = arith.addf %12, %2 : vector<16x128xf32>
      %c0_10 = arith.constant 0 : index
      %c0_11 = arith.constant 0 : index
      %14 = vector.load %arg9[%c0_10, %c0_11] : memref<16x128xf32, #tpu.memory_space<vmem>>, vector<16x128xf32>
      tpu.vector_store %arg9[%c0_10, %c0_11], %13 {strides = array<i32>} : memref<16x128xf32, #tpu.memory_space<vmem>>, vector<16x128xf32>,
    } else {
    }
    %c0_i32_6 = arith.constant 0 : i32
    %9 = arith.cmpi eq, %arg1, %c0_i32_6 : i32
    %10 = arith.extui %9 : i1 to i32
    %c0_i32_7 = arith.constant 0 : i32
    %11 = arith.cmpi ne, %10, %c0_i32_7 : i32
    scf.if %11 {
      %c0_8 = arith.constant 0 : index
      %c0_9 = arith.constant 0 : index
      %12 = vector.load %arg9[%c0_8, %c0_9] : memref<16x128xf32, #tpu.memory_space<vmem>>, vector<16x128xf32>
      %c0_10 = arith.constant 0 : index
      %c0_11 = arith.constant 0 : index
      %13 = vector.load %arg4[%c0_10, %c0_11] : memref<1x128xf32, #tpu.memory_space<vmem>>, vector<1x128xf32>
      %14 = vector.broadcast %13 : vector<1x128xf32> to vector<16x128xf32>
      %15 = arith.addf %12, %14 : vector<16x128xf32>
      %c0_12 = arith.constant 0 : index
      %c0_13 = arith.constant 0 : index
      %16 = vector.load %arg5[%c0_12, %c0_13] : memref<16x128xbf16, #tpu.memory_space<vmem>>, vector<16x128xbf16>
      %17 = arith.extf %16 : vector<16x128xbf16> to vector<16x128xf32>
      %18 = arith.addf %15, %17 : vector<16x128xf32>
      %cst_14 = arith.constant dense<0.000000e+00> : vector<16xf32>
      %19 = vector.multi_reduction <add>, %18, %cst_14 [1] : vector<16x128xf32> to vector<16xf32>
      %20 = vector.shape_cast %19 : vector<16xf32> to vector<16x1xf32>
      %cst_15 = arith.constant 1.280000e+02 : f32
      %21 = vector.broadcast %cst_15 : f32 to vector<16x1xf32>
      %22 = arith.divf %20, %21 : vector<16x1xf32>
      %23 = vector.broadcast %22 : vector<16x1xf32> to vector<16x128xf32>
      %24 = arith.subf %18, %23 : vector<16x128xf32>
      %25 = arith.mulf %24, %24 : vector<16x128xf32>
      %cst_16 = arith.constant dense<0.000000e+00> : vector<16xf32>
      %26 = vector.multi_reduction <add>, %25, %cst_16 [1] : vector<16x128xf32> to vector<16xf32>
      %27 = vector.shape_cast %26 : vector<16xf32> to vector<16x1xf32>
      %cst_17 = arith.constant 1.280000e+02 : f32
      %28 = vector.broadcast %cst_17 : f32 to vector<16x1xf32>
      %29 = arith.divf %27, %28 : vector<16x1xf32>
      %30 = vector.broadcast %22 : vector<16x1xf32> to vector<16x128xf32>
      %31 = arith.subf %18, %30 : vector<16x128xf32>
      %cst_18 = arith.constant 9.99999974E-6 : f32
      %32 = vector.broadcast %cst_18 : f32 to vector<16x1xf32>
      %33 = arith.addf %29, %32 : vector<16x1xf32>
      %34 = math.rsqrt %33 : vector<16x1xf32>
      %35 = vector.broadcast %34 : vector<16x1xf32> to vector<16x128xf32>
      %36 = arith.mulf %31, %35 : vector<16x128xf32>
      %c0_19 = arith.constant 0 : index
      %c0_20 = arith.constant 0 : index
      %37 = vector.load %arg6[%c0_19, %c0_20] : memref<1x128xf32, #tpu.memory_space<vmem>>, vector<1x128xf32>
      %38 = vector.broadcast %37 : vector<1x128xf32> to vector<16x128xf32>
      %39 = arith.mulf %36, %38 : vector<16x128xf32>
      %c0_21 = arith.constant 0 : index
      %c0_22 = arith.constant 0 : index
      %40 = vector.load %arg7[%c0_21, %c0_22] : memref<1x128xf32, #tpu.memory_space<vmem>>, vector<1x128xf32>
      %41 = vector.broadcast %40 : vector<1x128xf32> to vector<16x128xf32>
      %42 = arith.addf %39, %41 : vector<16x128xf32>
      %43 = arith.truncf %42 : vector<16x128xf32> to vector<16x128xbf16>
      %c0_23 = arith.constant 0 : index
      %c0_24 = arith.constant 0 : index
      %44 = vector.load %arg8[%c0_23, %c0_24] : memref<16x128xbf16, #tpu.memory_space<vmem>>, vector<16x128xbf16>
      tpu.vector_store %arg8[%c0_23, %c0_24], %43 {strides = array<i32>} : memref<16x128xbf16, #tpu.memory_space<vmem>>, vector<16x128xbf16>,
    } else {
    }
    return
  }
  func.func @transform_0(%arg0: i32, %arg1: i32) -> (i32, i32) {
    %c0_i32 = arith.constant 0 : i32
    return %arg0, %arg1 : i32, i32
  }
  func.func @transform_1(%arg0: i32, %arg1: i32) -> (i32, i32) {
    %c0_i32 = arith.constant 0 : i32
    %c0_i32_0 = arith.constant 0 : i32
    return %arg1, %c0_i32 : i32, i32
  }
  func.func @transform_2(%arg0: i32, %arg1: i32) -> (i32, i32) {
    %c0_i32 = arith.constant 0 : i32
    %c0_i32_0 = arith.constant 0 : i32
    %c0_i32_1 = arith.constant 0 : i32
    return %c0_i32, %c0_i32_0 : i32, i32
  }
  func.func @transform_3(%arg0: i32, %arg1: i32) -> (i32, i32) {
    %c0_i32 = arith.constant 0 : i32
    %c0_i32_0 = arith.constant 0 : i32
    return %arg0, %c0_i32 : i32, i32
  }
  func.func @transform_4(%arg0: i32, %arg1: i32) -> (i32, i32) {
    %c0_i32 = arith.constant 0 : i32
    %c0_i32_0 = arith.constant 0 : i32
    %c0_i32_1 = arith.constant 0 : i32
    return %c0_i32, %c0_i32_0 : i32, i32
  }
  func.func @transform_5(%arg0: i32, %arg1: i32) -> (i32, i32) {
    %c0_i32 = arith.constant 0 : i32
    %c0_i32_0 = arith.constant 0 : i32
    %c0_i32_1 = arith.constant 0 : i32
    return %c0_i32, %c0_i32_0 : i32, i32
  }
  func.func @transform_6(%arg0: i32, %arg1: i32) -> (i32, i32) {
    %c0_i32 = arith.constant 0 : i32
    %c0_i32_0 = arith.constant 0 : i32
    return %arg0, %c0_i32 : i32, i32
  }
}

module attributes {stable_mosaic.version = 11 : i64} {
  func.func @_linear_kernel(%arg0: i32, %arg1: i32, %arg2: i32, %arg3: memref<16x128xbf16, #tpu.memory_space<vmem>>, %arg4: memref<128x512xbf16, #tpu.memory_space<vmem>>, %arg5: memref<1x512xf32, #tpu.memory_space<vmem>>, %arg6: memref<16x512xbf16, #tpu.memory_space<vmem>>, %arg7: memref<16x512xf32, #tpu.memory_space<vmem>>) attributes {dimension_semantics = [#tpu.dimension_semantics<parallel>, #tpu.dimension_semantics<parallel>, #tpu.dimension_semantics<arbitrary>], iteration_bounds = array<i64: 2, 1, 1>, scalar_prefetch = 0 : i64, scratch_operands = 1 : i64, tpu.core_type = #tpu.core_type<tc>, window_params = [{transform_indices = @transform_0, window_bounds = array<i64: 16, 128>}, {transform_indices = @transform_1, window_bounds = array<i64: 128, 512>}, {transform_indices = @transform_2, window_bounds = array<i64: 1, 512>}, {transform_indices = @transform_3, window_bounds = array<i64: 16, 512>}]} {
    %c0 = arith.constant 0 : index
    %c0_0 = arith.constant 0 : index
    %0 = vector.load %arg3[%c0, %c0_0] : memref<16x128xbf16, #tpu.memory_space<vmem>>, vector<16x128xbf16>
    %c0_1 = arith.constant 0 : index
    %c0_2 = arith.constant 0 : index
    %1 = vector.load %arg4[%c0_1, %c0_2] : memref<128x512xbf16, #tpu.memory_space<vmem>>, vector<128x512xbf16>
    %cst = arith.constant dense<0.000000e+00> : vector<16x512xf32>
    %2 = tpu.matmul %0, %1, %cst {dimension_numbers = #tpu.dot_dimension_numbers<[1], [0], [0], [1], [0, 0, 1, 1], [], []>} : vector<16x128xbf16>, vector<128x512xbf16>, vector<16x512xf32> -> vector<16x512xf32>
    %c0_i32 = arith.constant 0 : i32
    %3 = arith.cmpi eq, %arg2, %c0_i32 : i32
    %4 = arith.extui %3 : i1 to i32
    %c0_i32_3 = arith.constant 0 : i32
    %5 = arith.cmpi ne, %4, %c0_i32_3 : i32
    scf.if %5 {
      %c0_8 = arith.constant 0 : index
      %c0_9 = arith.constant 0 : index
      %12 = vector.load %arg7[%c0_8, %c0_9] : memref<16x512xf32, #tpu.memory_space<vmem>>, vector<16x512xf32>
      tpu.vector_store %arg7[%c0_8, %c0_9], %2 {strides = array<i32>} : memref<16x512xf32, #tpu.memory_space<vmem>>, vector<16x512xf32>,
    } else {
    }
    %c0_i32_4 = arith.constant 0 : i32
    %6 = arith.cmpi sgt, %arg2, %c0_i32_4 : i32
    %7 = arith.extui %6 : i1 to i32
    %c0_i32_5 = arith.constant 0 : i32
    %8 = arith.cmpi ne, %7, %c0_i32_5 : i32
    scf.if %8 {
      %c0_8 = arith.constant 0 : index
      %c0_9 = arith.constant 0 : index
      %12 = vector.load %arg7[%c0_8, %c0_9] : memref<16x512xf32, #tpu.memory_space<vmem>>, vector<16x512xf32>
      %13 = arith.addf %12, %2 : vector<16x512xf32>
      %c0_10 = arith.constant 0 : index
      %c0_11 = arith.constant 0 : index
      %14 = vector.load %arg7[%c0_10, %c0_11] : memref<16x512xf32, #tpu.memory_space<vmem>>, vector<16x512xf32>
      tpu.vector_store %arg7[%c0_10, %c0_11], %13 {strides = array<i32>} : memref<16x512xf32, #tpu.memory_space<vmem>>, vector<16x512xf32>,
    } else {
    }
    %c0_i32_6 = arith.constant 0 : i32
    %9 = arith.cmpi eq, %arg2, %c0_i32_6 : i32
    %10 = arith.extui %9 : i1 to i32
    %c0_i32_7 = arith.constant 0 : i32
    %11 = arith.cmpi ne, %10, %c0_i32_7 : i32
    scf.if %11 {
      %c0_8 = arith.constant 0 : index
      %c0_9 = arith.constant 0 : index
      %12 = vector.load %arg7[%c0_8, %c0_9] : memref<16x512xf32, #tpu.memory_space<vmem>>, vector<16x512xf32>
      %c0_10 = arith.constant 0 : index
      %c0_11 = arith.constant 0 : index
      %13 = vector.load %arg5[%c0_10, %c0_11] : memref<1x512xf32, #tpu.memory_space<vmem>>, vector<1x512xf32>
      %14 = vector.broadcast %13 : vector<1x512xf32> to vector<16x512xf32>
      %15 = arith.addf %12, %14 : vector<16x512xf32>
      %cst_12 = arith.constant 0.000000e+00 : f32
      %16 = vector.broadcast %cst_12 : f32 to vector<16x512xf32>
      %17 = arith.maximumf %15, %16 : vector<16x512xf32>
      %18 = arith.truncf %17 : vector<16x512xf32> to vector<16x512xbf16>
      %c0_13 = arith.constant 0 : index
      %c0_14 = arith.constant 0 : index
      %19 = vector.load %arg6[%c0_13, %c0_14] : memref<16x512xbf16, #tpu.memory_space<vmem>>, vector<16x512xbf16>
      tpu.vector_store %arg6[%c0_13, %c0_14], %18 {strides = array<i32>} : memref<16x512xbf16, #tpu.memory_space<vmem>>, vector<16x512xbf16>,
    } else {
    }
    return
  }
  func.func @transform_0(%arg0: i32, %arg1: i32, %arg2: i32) -> (i32, i32) {
    %c0_i32 = arith.constant 0 : i32
    return %arg0, %arg2 : i32, i32
  }
  func.func @transform_1(%arg0: i32, %arg1: i32, %arg2: i32) -> (i32, i32) {
    %c0_i32 = arith.constant 0 : i32
    return %arg2, %arg1 : i32, i32
  }
  func.func @transform_2(%arg0: i32, %arg1: i32, %arg2: i32) -> (i32, i32) {
    %c0_i32 = arith.constant 0 : i32
    %c0_i32_0 = arith.constant 0 : i32
    return %c0_i32, %arg1 : i32, i32
  }
  func.func @transform_3(%arg0: i32, %arg1: i32, %arg2: i32) -> (i32, i32) {
    %c0_i32 = arith.constant 0 : i32
    return %arg0, %arg1 : i32, i32
  }
}

module attributes {stable_mosaic.version = 11 : i64} {
  func.func @_linear_kernel(%arg0: i32, %arg1: i32, %arg2: i32, %arg3: memref<16x128xbf16, #tpu.memory_space<vmem>>, %arg4: memref<128x256xbf16, #tpu.memory_space<vmem>>, %arg5: memref<1x256xf32, #tpu.memory_space<vmem>>, %arg6: memref<16x256xbf16, #tpu.memory_space<vmem>>, %arg7: memref<16x256xf32, #tpu.memory_space<vmem>>) attributes {dimension_semantics = [#tpu.dimension_semantics<parallel>, #tpu.dimension_semantics<parallel>, #tpu.dimension_semantics<arbitrary>], iteration_bounds = array<i64: 2, 1, 1>, scalar_prefetch = 0 : i64, scratch_operands = 1 : i64, tpu.core_type = #tpu.core_type<tc>, window_params = [{transform_indices = @transform_0, window_bounds = array<i64: 16, 128>}, {transform_indices = @transform_1, window_bounds = array<i64: 128, 256>}, {transform_indices = @transform_2, window_bounds = array<i64: 1, 256>}, {transform_indices = @transform_3, window_bounds = array<i64: 16, 256>}]} {
    %c0 = arith.constant 0 : index
    %c0_0 = arith.constant 0 : index
    %0 = vector.load %arg3[%c0, %c0_0] : memref<16x128xbf16, #tpu.memory_space<vmem>>, vector<16x128xbf16>
    %c0_1 = arith.constant 0 : index
    %c0_2 = arith.constant 0 : index
    %1 = vector.load %arg4[%c0_1, %c0_2] : memref<128x256xbf16, #tpu.memory_space<vmem>>, vector<128x256xbf16>
    %cst = arith.constant dense<0.000000e+00> : vector<16x256xf32>
    %2 = tpu.matmul %0, %1, %cst {dimension_numbers = #tpu.dot_dimension_numbers<[1], [0], [0], [1], [0, 0, 1, 1], [], []>} : vector<16x128xbf16>, vector<128x256xbf16>, vector<16x256xf32> -> vector<16x256xf32>
    %c0_i32 = arith.constant 0 : i32
    %3 = arith.cmpi eq, %arg2, %c0_i32 : i32
    %4 = arith.extui %3 : i1 to i32
    %c0_i32_3 = arith.constant 0 : i32
    %5 = arith.cmpi ne, %4, %c0_i32_3 : i32
    scf.if %5 {
      %c0_8 = arith.constant 0 : index
      %c0_9 = arith.constant 0 : index
      %12 = vector.load %arg7[%c0_8, %c0_9] : memref<16x256xf32, #tpu.memory_space<vmem>>, vector<16x256xf32>
      tpu.vector_store %arg7[%c0_8, %c0_9], %2 {strides = array<i32>} : memref<16x256xf32, #tpu.memory_space<vmem>>, vector<16x256xf32>,
    } else {
    }
    %c0_i32_4 = arith.constant 0 : i32
    %6 = arith.cmpi sgt, %arg2, %c0_i32_4 : i32
    %7 = arith.extui %6 : i1 to i32
    %c0_i32_5 = arith.constant 0 : i32
    %8 = arith.cmpi ne, %7, %c0_i32_5 : i32
    scf.if %8 {
      %c0_8 = arith.constant 0 : index
      %c0_9 = arith.constant 0 : index
      %12 = vector.load %arg7[%c0_8, %c0_9] : memref<16x256xf32, #tpu.memory_space<vmem>>, vector<16x256xf32>
      %13 = arith.addf %12, %2 : vector<16x256xf32>
      %c0_10 = arith.constant 0 : index
      %c0_11 = arith.constant 0 : index
      %14 = vector.load %arg7[%c0_10, %c0_11] : memref<16x256xf32, #tpu.memory_space<vmem>>, vector<16x256xf32>
      tpu.vector_store %arg7[%c0_10, %c0_11], %13 {strides = array<i32>} : memref<16x256xf32, #tpu.memory_space<vmem>>, vector<16x256xf32>,
    } else {
    }
    %c0_i32_6 = arith.constant 0 : i32
    %9 = arith.cmpi eq, %arg2, %c0_i32_6 : i32
    %10 = arith.extui %9 : i1 to i32
    %c0_i32_7 = arith.constant 0 : i32
    %11 = arith.cmpi ne, %10, %c0_i32_7 : i32
    scf.if %11 {
      %c0_8 = arith.constant 0 : index
      %c0_9 = arith.constant 0 : index
      %12 = vector.load %arg7[%c0_8, %c0_9] : memref<16x256xf32, #tpu.memory_space<vmem>>, vector<16x256xf32>
      %c0_10 = arith.constant 0 : index
      %c0_11 = arith.constant 0 : index
      %13 = vector.load %arg5[%c0_10, %c0_11] : memref<1x256xf32, #tpu.memory_space<vmem>>, vector<1x256xf32>
      %14 = vector.broadcast %13 : vector<1x256xf32> to vector<16x256xf32>
      %15 = arith.addf %12, %14 : vector<16x256xf32>
      %16 = arith.truncf %15 : vector<16x256xf32> to vector<16x256xbf16>
      %c0_12 = arith.constant 0 : index
      %c0_13 = arith.constant 0 : index
      %17 = vector.load %arg6[%c0_12, %c0_13] : memref<16x256xbf16, #tpu.memory_space<vmem>>, vector<16x256xbf16>
      tpu.vector_store %arg6[%c0_12, %c0_13], %16 {strides = array<i32>} : memref<16x256xbf16, #tpu.memory_space<vmem>>, vector<16x256xbf16>,
    } else {
    }
    return
  }
  func.func @transform_0(%arg0: i32, %arg1: i32, %arg2: i32) -> (i32, i32) {
    %c0_i32 = arith.constant 0 : i32
    return %arg0, %arg2 : i32, i32
  }
  func.func @transform_1(%arg0: i32, %arg1: i32, %arg2: i32) -> (i32, i32) {
    %c0_i32 = arith.constant 0 : i32
    return %arg2, %arg1 : i32, i32
  }
  func.func @transform_2(%arg0: i32, %arg1: i32, %arg2: i32) -> (i32, i32) {
    %c0_i32 = arith.constant 0 : i32
    %c0_i32_0 = arith.constant 0 : i32
    return %c0_i32, %arg1 : i32, i32
  }
  func.func @transform_3(%arg0: i32, %arg1: i32, %arg2: i32) -> (i32, i32) {
    %c0_i32 = arith.constant 0 : i32
    return %arg0, %arg1 : i32, i32
  }
}

module attributes {stable_mosaic.version = 11 : i64} {
  func.func @_matmul_res_ln_kernel(%arg0: i32, %arg1: i32, %arg2: memref<16x512xbf16, #tpu.memory_space<vmem>>, %arg3: memref<512x128xbf16, #tpu.memory_space<vmem>>, %arg4: memref<1x128xf32, #tpu.memory_space<vmem>>, %arg5: memref<16x128xbf16, #tpu.memory_space<vmem>>, %arg6: memref<1x128xf32, #tpu.memory_space<vmem>>, %arg7: memref<1x128xf32, #tpu.memory_space<vmem>>, %arg8: memref<16x128xbf16, #tpu.memory_space<vmem>>, %arg9: memref<16x128xf32, #tpu.memory_space<vmem>>) attributes {dimension_semantics = [#tpu.dimension_semantics<parallel>, #tpu.dimension_semantics<arbitrary>], iteration_bounds = array<i64: 2, 1>, scalar_prefetch = 0 : i64, scratch_operands = 1 : i64, tpu.core_type = #tpu.core_type<tc>, window_params = [{transform_indices = @transform_0, window_bounds = array<i64: 16, 512>}, {transform_indices = @transform_1, window_bounds = array<i64: 512, 128>}, {pipeline_mode = #tpu.pipeline_mode<synchronous>, transform_indices = @transform_2, window_bounds = array<i64: 1, 128>}, {transform_indices = @transform_3, window_bounds = array<i64: 16, 128>}, {pipeline_mode = #tpu.pipeline_mode<synchronous>, transform_indices = @transform_4, window_bounds = array<i64: 1, 128>}, {pipeline_mode = #tpu.pipeline_mode<synchronous>, transform_indices = @transform_5, window_bounds = array<i64: 1, 128>}, {transform_indices = @transform_6, window_bounds = array<i64: 16, 128>}]} {
    %c0 = arith.constant 0 : index
    %c0_0 = arith.constant 0 : index
    %0 = vector.load %arg2[%c0, %c0_0] : memref<16x512xbf16, #tpu.memory_space<vmem>>, vector<16x512xbf16>
    %c0_1 = arith.constant 0 : index
    %c0_2 = arith.constant 0 : index
    %1 = vector.load %arg3[%c0_1, %c0_2] : memref<512x128xbf16, #tpu.memory_space<vmem>>, vector<512x128xbf16>
    %cst = arith.constant dense<0.000000e+00> : vector<16x128xf32>
    %2 = tpu.matmul %0, %1, %cst {dimension_numbers = #tpu.dot_dimension_numbers<[1], [0], [0], [1], [0, 0, 1, 1], [], []>} : vector<16x512xbf16>, vector<512x128xbf16>, vector<16x128xf32> -> vector<16x128xf32>
    %c0_i32 = arith.constant 0 : i32
    %3 = arith.cmpi eq, %arg1, %c0_i32 : i32
    %4 = arith.extui %3 : i1 to i32
    %c0_i32_3 = arith.constant 0 : i32
    %5 = arith.cmpi ne, %4, %c0_i32_3 : i32
    scf.if %5 {
      %c0_8 = arith.constant 0 : index
      %c0_9 = arith.constant 0 : index
      %12 = vector.load %arg9[%c0_8, %c0_9] : memref<16x128xf32, #tpu.memory_space<vmem>>, vector<16x128xf32>
      tpu.vector_store %arg9[%c0_8, %c0_9], %2 {strides = array<i32>} : memref<16x128xf32, #tpu.memory_space<vmem>>, vector<16x128xf32>,
    } else {
    }
    %c0_i32_4 = arith.constant 0 : i32
    %6 = arith.cmpi sgt, %arg1, %c0_i32_4 : i32
    %7 = arith.extui %6 : i1 to i32
    %c0_i32_5 = arith.constant 0 : i32
    %8 = arith.cmpi ne, %7, %c0_i32_5 : i32
    scf.if %8 {
      %c0_8 = arith.constant 0 : index
      %c0_9 = arith.constant 0 : index
      %12 = vector.load %arg9[%c0_8, %c0_9] : memref<16x128xf32, #tpu.memory_space<vmem>>, vector<16x128xf32>
      %13 = arith.addf %12, %2 : vector<16x128xf32>
      %c0_10 = arith.constant 0 : index
      %c0_11 = arith.constant 0 : index
      %14 = vector.load %arg9[%c0_10, %c0_11] : memref<16x128xf32, #tpu.memory_space<vmem>>, vector<16x128xf32>
      tpu.vector_store %arg9[%c0_10, %c0_11], %13 {strides = array<i32>} : memref<16x128xf32, #tpu.memory_space<vmem>>, vector<16x128xf32>,
    } else {
    }
    %c0_i32_6 = arith.constant 0 : i32
    %9 = arith.cmpi eq, %arg1, %c0_i32_6 : i32
    %10 = arith.extui %9 : i1 to i32
    %c0_i32_7 = arith.constant 0 : i32
    %11 = arith.cmpi ne, %10, %c0_i32_7 : i32
    scf.if %11 {
      %c0_8 = arith.constant 0 : index
      %c0_9 = arith.constant 0 : index
      %12 = vector.load %arg9[%c0_8, %c0_9] : memref<16x128xf32, #tpu.memory_space<vmem>>, vector<16x128xf32>
      %c0_10 = arith.constant 0 : index
      %c0_11 = arith.constant 0 : index
      %13 = vector.load %arg4[%c0_10, %c0_11] : memref<1x128xf32, #tpu.memory_space<vmem>>, vector<1x128xf32>
      %14 = vector.broadcast %13 : vector<1x128xf32> to vector<16x128xf32>
      %15 = arith.addf %12, %14 : vector<16x128xf32>
      %c0_12 = arith.constant 0 : index
      %c0_13 = arith.constant 0 : index
      %16 = vector.load %arg5[%c0_12, %c0_13] : memref<16x128xbf16, #tpu.memory_space<vmem>>, vector<16x128xbf16>
      %17 = arith.extf %16 : vector<16x128xbf16> to vector<16x128xf32>
      %18 = arith.addf %15, %17 : vector<16x128xf32>
      %cst_14 = arith.constant dense<0.000000e+00> : vector<16xf32>
      %19 = vector.multi_reduction <add>, %18, %cst_14 [1] : vector<16x128xf32> to vector<16xf32>
      %20 = vector.shape_cast %19 : vector<16xf32> to vector<16x1xf32>
      %cst_15 = arith.constant 1.280000e+02 : f32
      %21 = vector.broadcast %cst_15 : f32 to vector<16x1xf32>
      %22 = arith.divf %20, %21 : vector<16x1xf32>
      %23 = vector.broadcast %22 : vector<16x1xf32> to vector<16x128xf32>
      %24 = arith.subf %18, %23 : vector<16x128xf32>
      %25 = arith.mulf %24, %24 : vector<16x128xf32>
      %cst_16 = arith.constant dense<0.000000e+00> : vector<16xf32>
      %26 = vector.multi_reduction <add>, %25, %cst_16 [1] : vector<16x128xf32> to vector<16xf32>
      %27 = vector.shape_cast %26 : vector<16xf32> to vector<16x1xf32>
      %cst_17 = arith.constant 1.280000e+02 : f32
      %28 = vector.broadcast %cst_17 : f32 to vector<16x1xf32>
      %29 = arith.divf %27, %28 : vector<16x1xf32>
      %30 = vector.broadcast %22 : vector<16x1xf32> to vector<16x128xf32>
      %31 = arith.subf %18, %30 : vector<16x128xf32>
      %cst_18 = arith.constant 9.99999974E-6 : f32
      %32 = vector.broadcast %cst_18 : f32 to vector<16x1xf32>
      %33 = arith.addf %29, %32 : vector<16x1xf32>
      %34 = math.rsqrt %33 : vector<16x1xf32>
      %35 = vector.broadcast %34 : vector<16x1xf32> to vector<16x128xf32>
      %36 = arith.mulf %31, %35 : vector<16x128xf32>
      %c0_19 = arith.constant 0 : index
      %c0_20 = arith.constant 0 : index
      %37 = vector.load %arg6[%c0_19, %c0_20] : memref<1x128xf32, #tpu.memory_space<vmem>>, vector<1x128xf32>
      %38 = vector.broadcast %37 : vector<1x128xf32> to vector<16x128xf32>
      %39 = arith.mulf %36, %38 : vector<16x128xf32>
      %c0_21 = arith.constant 0 : index
      %c0_22 = arith.constant 0 : index
      %40 = vector.load %arg7[%c0_21, %c0_22] : memref<1x128xf32, #tpu.memory_space<vmem>>, vector<1x128xf32>
      %41 = vector.broadcast %40 : vector<1x128xf32> to vector<16x128xf32>
      %42 = arith.addf %39, %41 : vector<16x128xf32>
      %43 = arith.truncf %42 : vector<16x128xf32> to vector<16x128xbf16>
      %c0_23 = arith.constant 0 : index
      %c0_24 = arith.constant 0 : index
      %44 = vector.load %arg8[%c0_23, %c0_24] : memref<16x128xbf16, #tpu.memory_space<vmem>>, vector<16x128xbf16>
      tpu.vector_store %arg8[%c0_23, %c0_24], %43 {strides = array<i32>} : memref<16x128xbf16, #tpu.memory_space<vmem>>, vector<16x128xbf16>,
    } else {
    }
    return
  }
  func.func @transform_0(%arg0: i32, %arg1: i32) -> (i32, i32) {
    %c0_i32 = arith.constant 0 : i32
    return %arg0, %arg1 : i32, i32
  }
  func.func @transform_1(%arg0: i32, %arg1: i32) -> (i32, i32) {
    %c0_i32 = arith.constant 0 : i32
    %c0_i32_0 = arith.constant 0 : i32
    return %arg1, %c0_i32 : i32, i32
  }
  func.func @transform_2(%arg0: i32, %arg1: i32) -> (i32, i32) {
    %c0_i32 = arith.constant 0 : i32
    %c0_i32_0 = arith.constant 0 : i32
    %c0_i32_1 = arith.constant 0 : i32
    return %c0_i32, %c0_i32_0 : i32, i32
  }
  func.func @transform_3(%arg0: i32, %arg1: i32) -> (i32, i32) {
    %c0_i32 = arith.constant 0 : i32
    %c0_i32_0 = arith.constant 0 : i32
    return %arg0, %c0_i32 : i32, i32
  }
  func.func @transform_4(%arg0: i32, %arg1: i32) -> (i32, i32) {
    %c0_i32 = arith.constant 0 : i32
    %c0_i32_0 = arith.constant 0 : i32
    %c0_i32_1 = arith.constant 0 : i32
    return %c0_i32, %c0_i32_0 : i32, i32
  }
  func.func @transform_5(%arg0: i32, %arg1: i32) -> (i32, i32) {
    %c0_i32 = arith.constant 0 : i32
    %c0_i32_0 = arith.constant 0 : i32
    %c0_i32_1 = arith.constant 0 : i32
    return %c0_i32, %c0_i32_0 : i32, i32
  }
  func.func @transform_6(%arg0: i32, %arg1: i32) -> (i32, i32) {
    %c0_i32 = arith.constant 0 : i32
    %c0_i32_0 = arith.constant 0 : i32
    return %arg0, %c0_i32 : i32, i32
  }
}

module attributes {stable_mosaic.version = 11 : i64} {
  func.func @_linear_kernel(%arg0: i32, %arg1: i32, %arg2: i32, %arg3: memref<16x128xbf16, #tpu.memory_space<vmem>>, %arg4: memref<128x128xbf16, #tpu.memory_space<vmem>>, %arg5: memref<1x128xf32, #tpu.memory_space<vmem>>, %arg6: memref<16x128xbf16, #tpu.memory_space<vmem>>, %arg7: memref<16x128xf32, #tpu.memory_space<vmem>>) attributes {dimension_semantics = [#tpu.dimension_semantics<parallel>, #tpu.dimension_semantics<parallel>, #tpu.dimension_semantics<arbitrary>], iteration_bounds = array<i64: 2, 1, 1>, scalar_prefetch = 0 : i64, scratch_operands = 1 : i64, tpu.core_type = #tpu.core_type<tc>, window_params = [{transform_indices = @transform_0, window_bounds = array<i64: 16, 128>}, {transform_indices = @transform_1, window_bounds = array<i64: 128, 128>}, {transform_indices = @transform_2, window_bounds = array<i64: 1, 128>}, {transform_indices = @transform_3, window_bounds = array<i64: 16, 128>}]} {
    %c0 = arith.constant 0 : index
    %c0_0 = arith.constant 0 : index
    %0 = vector.load %arg3[%c0, %c0_0] : memref<16x128xbf16, #tpu.memory_space<vmem>>, vector<16x128xbf16>
    %c0_1 = arith.constant 0 : index
    %c0_2 = arith.constant 0 : index
    %1 = vector.load %arg4[%c0_1, %c0_2] : memref<128x128xbf16, #tpu.memory_space<vmem>>, vector<128x128xbf16>
    %cst = arith.constant dense<0.000000e+00> : vector<16x128xf32>
    %2 = tpu.matmul %0, %1, %cst {dimension_numbers = #tpu.dot_dimension_numbers<[1], [0], [0], [1], [0, 0, 1, 1], [], []>} : vector<16x128xbf16>, vector<128x128xbf16>, vector<16x128xf32> -> vector<16x128xf32>
    %c0_i32 = arith.constant 0 : i32
    %3 = arith.cmpi eq, %arg2, %c0_i32 : i32
    %4 = arith.extui %3 : i1 to i32
    %c0_i32_3 = arith.constant 0 : i32
    %5 = arith.cmpi ne, %4, %c0_i32_3 : i32
    scf.if %5 {
      %c0_8 = arith.constant 0 : index
      %c0_9 = arith.constant 0 : index
      %12 = vector.load %arg7[%c0_8, %c0_9] : memref<16x128xf32, #tpu.memory_space<vmem>>, vector<16x128xf32>
      tpu.vector_store %arg7[%c0_8, %c0_9], %2 {strides = array<i32>} : memref<16x128xf32, #tpu.memory_space<vmem>>, vector<16x128xf32>,
    } else {
    }
    %c0_i32_4 = arith.constant 0 : i32
    %6 = arith.cmpi sgt, %arg2, %c0_i32_4 : i32
    %7 = arith.extui %6 : i1 to i32
    %c0_i32_5 = arith.constant 0 : i32
    %8 = arith.cmpi ne, %7, %c0_i32_5 : i32
    scf.if %8 {
      %c0_8 = arith.constant 0 : index
      %c0_9 = arith.constant 0 : index
      %12 = vector.load %arg7[%c0_8, %c0_9] : memref<16x128xf32, #tpu.memory_space<vmem>>, vector<16x128xf32>
      %13 = arith.addf %12, %2 : vector<16x128xf32>
      %c0_10 = arith.constant 0 : index
      %c0_11 = arith.constant 0 : index
      %14 = vector.load %arg7[%c0_10, %c0_11] : memref<16x128xf32, #tpu.memory_space<vmem>>, vector<16x128xf32>
      tpu.vector_store %arg7[%c0_10, %c0_11], %13 {strides = array<i32>} : memref<16x128xf32, #tpu.memory_space<vmem>>, vector<16x128xf32>,
    } else {
    }
    %c0_i32_6 = arith.constant 0 : i32
    %9 = arith.cmpi eq, %arg2, %c0_i32_6 : i32
    %10 = arith.extui %9 : i1 to i32
    %c0_i32_7 = arith.constant 0 : i32
    %11 = arith.cmpi ne, %10, %c0_i32_7 : i32
    scf.if %11 {
      %c0_8 = arith.constant 0 : index
      %c0_9 = arith.constant 0 : index
      %12 = vector.load %arg7[%c0_8, %c0_9] : memref<16x128xf32, #tpu.memory_space<vmem>>, vector<16x128xf32>
      %c0_10 = arith.constant 0 : index
      %c0_11 = arith.constant 0 : index
      %13 = vector.load %arg5[%c0_10, %c0_11] : memref<1x128xf32, #tpu.memory_space<vmem>>, vector<1x128xf32>
      %14 = vector.broadcast %13 : vector<1x128xf32> to vector<16x128xf32>
      %15 = arith.addf %12, %14 : vector<16x128xf32>
      %16 = arith.truncf %15 : vector<16x128xf32> to vector<16x128xbf16>
      %c0_12 = arith.constant 0 : index
      %c0_13 = arith.constant 0 : index
      %17 = vector.load %arg6[%c0_12, %c0_13] : memref<16x128xbf16, #tpu.memory_space<vmem>>, vector<16x128xbf16>
      tpu.vector_store %arg6[%c0_12, %c0_13], %16 {strides = array<i32>} : memref<16x128xbf16, #tpu.memory_space<vmem>>, vector<16x128xbf16>,
    } else {
    }
    return
  }
  func.func @transform_0(%arg0: i32, %arg1: i32, %arg2: i32) -> (i32, i32) {
    %c0_i32 = arith.constant 0 : i32
    return %arg0, %arg2 : i32, i32
  }
  func.func @transform_1(%arg0: i32, %arg1: i32, %arg2: i32) -> (i32, i32) {
    %c0_i32 = arith.constant 0 : i32
    return %arg2, %arg1 : i32, i32
  }
  func.func @transform_2(%arg0: i32, %arg1: i32, %arg2: i32) -> (i32, i32) {
    %c0_i32 = arith.constant 0 : i32
    %c0_i32_0 = arith.constant 0 : i32
    return %c0_i32, %arg1 : i32, i32
  }
  func.func @transform_3(%arg0: i32, %arg1: i32, %arg2: i32) -> (i32, i32) {
    %c0_i32 = arith.constant 0 : i32
    return %arg0, %arg1 : i32, i32
  }
}

module attributes {stable_mosaic.version = 11 : i64} {
  func.func @_mha_kernel(%arg0: i32, %arg1: memref<16x128xbf16, #tpu.memory_space<vmem>>, %arg2: memref<16x128xbf16, #tpu.memory_space<vmem>>, %arg3: memref<16x128xbf16, #tpu.memory_space<vmem>>, %arg4: memref<16x128xbf16, #tpu.memory_space<vmem>>) attributes {dimension_semantics = [#tpu.dimension_semantics<parallel>], iteration_bounds = array<i64: 2>, scalar_prefetch = 0 : i64, scratch_operands = 0 : i64, tpu.core_type = #tpu.core_type<tc>, window_params = [{transform_indices = @transform_0, window_bounds = array<i64: 16, 128>}, {transform_indices = @transform_1, window_bounds = array<i64: 16, 128>}, {transform_indices = @transform_2, window_bounds = array<i64: 16, 128>}, {transform_indices = @transform_3, window_bounds = array<i64: 16, 128>}]} {
    %c0 = arith.constant 0 : index
    %c0_0 = arith.constant 0 : index
    %0 = vector.load %arg1[%c0, %c0_0] : memref<16x128xbf16, #tpu.memory_space<vmem>>, vector<16x128xbf16>
    %c0_1 = arith.constant 0 : index
    %c0_2 = arith.constant 0 : index
    %1 = vector.load %arg2[%c0_1, %c0_2] : memref<16x128xbf16, #tpu.memory_space<vmem>>, vector<16x128xbf16>
    %c0_3 = arith.constant 0 : index
    %c0_4 = arith.constant 0 : index
    %2 = vector.load %arg3[%c0_3, %c0_4] : memref<16x128xbf16, #tpu.memory_space<vmem>>, vector<16x128xbf16>
    %3 = tpu.iota {dimensions = array<i32: 0>} : vector<16x16xi32>
    %4 = tpu.iota {dimensions = array<i32: 1>} : vector<16x16xi32>
    %5 = arith.cmpi sgt, %4, %3 : vector<16x16xi32>
    %6 = vector.extract_strided_slice %0 {offsets = [0, 0], sizes = [16, 32], strides = [1, 1]} : vector<16x128xbf16> to vector<16x32xbf16>
    %cst = arith.constant 1.767580e-01 : bf16
    %7 = vector.broadcast %cst : bf16 to vector<16x32xbf16>
    %8 = arith.mulf %6, %7 : vector<16x32xbf16>
    %9 = vector.extract_strided_slice %1 {offsets = [0, 0], sizes = [16, 32], strides = [1, 1]} : vector<16x128xbf16> to vector<16x32xbf16>
    %10 = vector.extract_strided_slice %2 {offsets = [0, 0], sizes = [16, 32], strides = [1, 1]} : vector<16x128xbf16> to vector<16x32xbf16>
    %cst_5 = arith.constant dense<0.000000e+00> : vector<16x16xf32>
    %11 = tpu.matmul %8, %9, %cst_5 {dimension_numbers = #tpu.dot_dimension_numbers<[1], [1], [0], [0], [0, 0, 1, 0], [], []>} : vector<16x32xbf16>, vector<16x32xbf16>, vector<16x16xf32> -> vector<16x16xf32>
    %cst_6 = arith.constant -1.000000e+30 : f32
    %12 = vector.broadcast %cst_6 : f32 to vector<16x16xf32>
    %13 = arith.select %5, %12, %11 : vector<16x16xi1>, vector<16x16xf32>
    %cst_7 = arith.constant dense<0xFF800000> : vector<16xf32>
    %14 = vector.multi_reduction <maximumf>, %13, %cst_7 [1] : vector<16x16xf32> to vector<16xf32>
    %15 = vector.shape_cast %14 : vector<16xf32> to vector<16x1xf32>
    %16 = vector.broadcast %15 : vector<16x1xf32> to vector<16x16xf32>
    %17 = arith.subf %13, %16 : vector<16x16xf32>
    %18 = math.exp %17 : vector<16x16xf32>
    %cst_8 = arith.constant dense<0.000000e+00> : vector<16xf32>
    %19 = vector.multi_reduction <add>, %18, %cst_8 [1] : vector<16x16xf32> to vector<16xf32>
    %20 = vector.shape_cast %19 : vector<16xf32> to vector<16x1xf32>
    %21 = tpu.reciprocal %20 {approx = true} : vector<16x1xf32> -> vector<16x1xf32>
    %22 = vector.broadcast %21 : vector<16x1xf32> to vector<16x16xf32>
    %23 = arith.mulf %18, %22 : vector<16x16xf32>
    %24 = arith.truncf %23 : vector<16x16xf32> to vector<16x16xbf16>
    %cst_9 = arith.constant dense<0.000000e+00> : vector<16x32xf32>
    %25 = tpu.matmul %24, %10, %cst_9 {dimension_numbers = #tpu.dot_dimension_numbers<[1], [0], [0], [1], [0, 0, 1, 1], [], []>} : vector<16x16xbf16>, vector<16x32xbf16>, vector<16x32xf32> -> vector<16x32xf32>
    %26 = vector.extract_strided_slice %0 {offsets = [0, 32], sizes = [16, 32], strides = [1, 1]} : vector<16x128xbf16> to vector<16x32xbf16>
    %cst_10 = arith.constant 1.767580e-01 : bf16
    %27 = vector.broadcast %cst_10 : bf16 to vector<16x32xbf16>
    %28 = arith.mulf %26, %27 : vector<16x32xbf16>
    %29 = vector.extract_strided_slice %1 {offsets = [0, 32], sizes = [16, 32], strides = [1, 1]} : vector<16x128xbf16> to vector<16x32xbf16>
    %30 = vector.extract_strided_slice %2 {offsets = [0, 32], sizes = [16, 32], strides = [1, 1]} : vector<16x128xbf16> to vector<16x32xbf16>
    %cst_11 = arith.constant dense<0.000000e+00> : vector<16x16xf32>
    %31 = tpu.matmul %28, %29, %cst_11 {dimension_numbers = #tpu.dot_dimension_numbers<[1], [1], [0], [0], [0, 0, 1, 0], [], []>} : vector<16x32xbf16>, vector<16x32xbf16>, vector<16x16xf32> -> vector<16x16xf32>
    %cst_12 = arith.constant -1.000000e+30 : f32
    %32 = vector.broadcast %cst_12 : f32 to vector<16x16xf32>
    %33 = arith.select %5, %32, %31 : vector<16x16xi1>, vector<16x16xf32>
    %cst_13 = arith.constant dense<0xFF800000> : vector<16xf32>
    %34 = vector.multi_reduction <maximumf>, %33, %cst_13 [1] : vector<16x16xf32> to vector<16xf32>
    %35 = vector.shape_cast %34 : vector<16xf32> to vector<16x1xf32>
    %36 = vector.broadcast %35 : vector<16x1xf32> to vector<16x16xf32>
    %37 = arith.subf %33, %36 : vector<16x16xf32>
    %38 = math.exp %37 : vector<16x16xf32>
    %cst_14 = arith.constant dense<0.000000e+00> : vector<16xf32>
    %39 = vector.multi_reduction <add>, %38, %cst_14 [1] : vector<16x16xf32> to vector<16xf32>
    %40 = vector.shape_cast %39 : vector<16xf32> to vector<16x1xf32>
    %41 = tpu.reciprocal %40 {approx = true} : vector<16x1xf32> -> vector<16x1xf32>
    %42 = vector.broadcast %41 : vector<16x1xf32> to vector<16x16xf32>
    %43 = arith.mulf %38, %42 : vector<16x16xf32>
    %44 = arith.truncf %43 : vector<16x16xf32> to vector<16x16xbf16>
    %cst_15 = arith.constant dense<0.000000e+00> : vector<16x32xf32>
    %45 = tpu.matmul %44, %30, %cst_15 {dimension_numbers = #tpu.dot_dimension_numbers<[1], [0], [0], [1], [0, 0, 1, 1], [], []>} : vector<16x16xbf16>, vector<16x32xbf16>, vector<16x32xf32> -> vector<16x32xf32>
    %46 = vector.extract_strided_slice %0 {offsets = [0, 64], sizes = [16, 32], strides = [1, 1]} : vector<16x128xbf16> to vector<16x32xbf16>
    %cst_16 = arith.constant 1.767580e-01 : bf16
    %47 = vector.broadcast %cst_16 : bf16 to vector<16x32xbf16>
    %48 = arith.mulf %46, %47 : vector<16x32xbf16>
    %49 = vector.extract_strided_slice %1 {offsets = [0, 64], sizes = [16, 32], strides = [1, 1]} : vector<16x128xbf16> to vector<16x32xbf16>
    %50 = vector.extract_strided_slice %2 {offsets = [0, 64], sizes = [16, 32], strides = [1, 1]} : vector<16x128xbf16> to vector<16x32xbf16>
    %cst_17 = arith.constant dense<0.000000e+00> : vector<16x16xf32>
    %51 = tpu.matmul %48, %49, %cst_17 {dimension_numbers = #tpu.dot_dimension_numbers<[1], [1], [0], [0], [0, 0, 1, 0], [], []>} : vector<16x32xbf16>, vector<16x32xbf16>, vector<16x16xf32> -> vector<16x16xf32>
    %cst_18 = arith.constant -1.000000e+30 : f32
    %52 = vector.broadcast %cst_18 : f32 to vector<16x16xf32>
    %53 = arith.select %5, %52, %51 : vector<16x16xi1>, vector<16x16xf32>
    %cst_19 = arith.constant dense<0xFF800000> : vector<16xf32>
    %54 = vector.multi_reduction <maximumf>, %53, %cst_19 [1] : vector<16x16xf32> to vector<16xf32>
    %55 = vector.shape_cast %54 : vector<16xf32> to vector<16x1xf32>
    %56 = vector.broadcast %55 : vector<16x1xf32> to vector<16x16xf32>
    %57 = arith.subf %53, %56 : vector<16x16xf32>
    %58 = math.exp %57 : vector<16x16xf32>
    %cst_20 = arith.constant dense<0.000000e+00> : vector<16xf32>
    %59 = vector.multi_reduction <add>, %58, %cst_20 [1] : vector<16x16xf32> to vector<16xf32>
    %60 = vector.shape_cast %59 : vector<16xf32> to vector<16x1xf32>
    %61 = tpu.reciprocal %60 {approx = true} : vector<16x1xf32> -> vector<16x1xf32>
    %62 = vector.broadcast %61 : vector<16x1xf32> to vector<16x16xf32>
    %63 = arith.mulf %58, %62 : vector<16x16xf32>
    %64 = arith.truncf %63 : vector<16x16xf32> to vector<16x16xbf16>
    %cst_21 = arith.constant dense<0.000000e+00> : vector<16x32xf32>
    %65 = tpu.matmul %64, %50, %cst_21 {dimension_numbers = #tpu.dot_dimension_numbers<[1], [0], [0], [1], [0, 0, 1, 1], [], []>} : vector<16x16xbf16>, vector<16x32xbf16>, vector<16x32xf32> -> vector<16x32xf32>
    %66 = vector.extract_strided_slice %0 {offsets = [0, 96], sizes = [16, 32], strides = [1, 1]} : vector<16x128xbf16> to vector<16x32xbf16>
    %cst_22 = arith.constant 1.767580e-01 : bf16
    %67 = vector.broadcast %cst_22 : bf16 to vector<16x32xbf16>
    %68 = arith.mulf %66, %67 : vector<16x32xbf16>
    %69 = vector.extract_strided_slice %1 {offsets = [0, 96], sizes = [16, 32], strides = [1, 1]} : vector<16x128xbf16> to vector<16x32xbf16>
    %70 = vector.extract_strided_slice %2 {offsets = [0, 96], sizes = [16, 32], strides = [1, 1]} : vector<16x128xbf16> to vector<16x32xbf16>
    %cst_23 = arith.constant dense<0.000000e+00> : vector<16x16xf32>
    %71 = tpu.matmul %68, %69, %cst_23 {dimension_numbers = #tpu.dot_dimension_numbers<[1], [1], [0], [0], [0, 0, 1, 0], [], []>} : vector<16x32xbf16>, vector<16x32xbf16>, vector<16x16xf32> -> vector<16x16xf32>
    %cst_24 = arith.constant -1.000000e+30 : f32
    %72 = vector.broadcast %cst_24 : f32 to vector<16x16xf32>
    %73 = arith.select %5, %72, %71 : vector<16x16xi1>, vector<16x16xf32>
    %cst_25 = arith.constant dense<0xFF800000> : vector<16xf32>
    %74 = vector.multi_reduction <maximumf>, %73, %cst_25 [1] : vector<16x16xf32> to vector<16xf32>
    %75 = vector.shape_cast %74 : vector<16xf32> to vector<16x1xf32>
    %76 = vector.broadcast %75 : vector<16x1xf32> to vector<16x16xf32>
    %77 = arith.subf %73, %76 : vector<16x16xf32>
    %78 = math.exp %77 : vector<16x16xf32>
    %cst_26 = arith.constant dense<0.000000e+00> : vector<16xf32>
    %79 = vector.multi_reduction <add>, %78, %cst_26 [1] : vector<16x16xf32> to vector<16xf32>
    %80 = vector.shape_cast %79 : vector<16xf32> to vector<16x1xf32>
    %81 = tpu.reciprocal %80 {approx = true} : vector<16x1xf32> -> vector<16x1xf32>
    %82 = vector.broadcast %81 : vector<16x1xf32> to vector<16x16xf32>
    %83 = arith.mulf %78, %82 : vector<16x16xf32>
    %84 = arith.truncf %83 : vector<16x16xf32> to vector<16x16xbf16>
    %cst_27 = arith.constant dense<0.000000e+00> : vector<16x32xf32>
    %85 = tpu.matmul %84, %70, %cst_27 {dimension_numbers = #tpu.dot_dimension_numbers<[1], [0], [0], [1], [0, 0, 1, 1], [], []>} : vector<16x16xbf16>, vector<16x32xbf16>, vector<16x32xf32> -> vector<16x32xf32>
    %86 = tpu.concatenate %25, %45, %65, %85 in 1 : vector<16x32xf32>, vector<16x32xf32>, vector<16x32xf32>, vector<16x32xf32> -> vector<16x128xf32>
    %87 = arith.truncf %86 : vector<16x128xf32> to vector<16x128xbf16>
    %c0_28 = arith.constant 0 : index
    %c0_29 = arith.constant 0 : index
    %88 = vector.load %arg4[%c0_28, %c0_29] : memref<16x128xbf16, #tpu.memory_space<vmem>>, vector<16x128xbf16>
    tpu.vector_store %arg4[%c0_28, %c0_29], %87 {strides = array<i32>} : memref<16x128xbf16, #tpu.memory_space<vmem>>, vector<16x128xbf16>,
    return
  }
  func.func @transform_0(%arg0: i32) -> (i32, i32) {
    %c0_i32 = arith.constant 0 : i32
    %c0_i32_0 = arith.constant 0 : i32
    return %arg0, %c0_i32 : i32, i32
  }
  func.func @transform_1(%arg0: i32) -> (i32, i32) {
    %c1_i32 = arith.constant 1 : i32
    %c0_i32 = arith.constant 0 : i32
    return %arg0, %c1_i32 : i32, i32
  }
  func.func @transform_2(%arg0: i32) -> (i32, i32) {
    %c2_i32 = arith.constant 2 : i32
    %c0_i32 = arith.constant 0 : i32
    return %arg0, %c2_i32 : i32, i32
  }
  func.func @transform_3(%arg0: i32) -> (i32, i32) {
    %c0_i32 = arith.constant 0 : i32
    %c0_i32_0 = arith.constant 0 : i32
    return %arg0, %c0_i32 : i32, i32
  }
}

module attributes {stable_mosaic.version = 11 : i64} {
  func.func @_mha_kernel(%arg0: i32, %arg1: memref<16x128xbf16, #tpu.memory_space<vmem>>, %arg2: memref<16x128xbf16, #tpu.memory_space<vmem>>, %arg3: memref<16x128xbf16, #tpu.memory_space<vmem>>, %arg4: memref<16x128xbf16, #tpu.memory_space<vmem>>) attributes {dimension_semantics = [#tpu.dimension_semantics<parallel>], iteration_bounds = array<i64: 2>, scalar_prefetch = 0 : i64, scratch_operands = 0 : i64, tpu.core_type = #tpu.core_type<tc>, window_params = [{transform_indices = @transform_0, window_bounds = array<i64: 16, 128>}, {transform_indices = @transform_1, window_bounds = array<i64: 16, 128>}, {transform_indices = @transform_2, window_bounds = array<i64: 16, 128>}, {transform_indices = @transform_3, window_bounds = array<i64: 16, 128>}]} {
    %c0 = arith.constant 0 : index
    %c0_0 = arith.constant 0 : index
    %0 = vector.load %arg1[%c0, %c0_0] : memref<16x128xbf16, #tpu.memory_space<vmem>>, vector<16x128xbf16>
    %c0_1 = arith.constant 0 : index
    %c0_2 = arith.constant 0 : index
    %1 = vector.load %arg2[%c0_1, %c0_2] : memref<16x128xbf16, #tpu.memory_space<vmem>>, vector<16x128xbf16>
    %c0_3 = arith.constant 0 : index
    %c0_4 = arith.constant 0 : index
    %2 = vector.load %arg3[%c0_3, %c0_4] : memref<16x128xbf16, #tpu.memory_space<vmem>>, vector<16x128xbf16>
    %3 = vector.extract_strided_slice %0 {offsets = [0, 0], sizes = [16, 32], strides = [1, 1]} : vector<16x128xbf16> to vector<16x32xbf16>
    %cst = arith.constant 1.767580e-01 : bf16
    %4 = vector.broadcast %cst : bf16 to vector<16x32xbf16>
    %5 = arith.mulf %3, %4 : vector<16x32xbf16>
    %6 = vector.extract_strided_slice %1 {offsets = [0, 0], sizes = [16, 32], strides = [1, 1]} : vector<16x128xbf16> to vector<16x32xbf16>
    %7 = vector.extract_strided_slice %2 {offsets = [0, 0], sizes = [16, 32], strides = [1, 1]} : vector<16x128xbf16> to vector<16x32xbf16>
    %cst_5 = arith.constant dense<0.000000e+00> : vector<16x16xf32>
    %8 = tpu.matmul %5, %6, %cst_5 {dimension_numbers = #tpu.dot_dimension_numbers<[1], [1], [0], [0], [0, 0, 1, 0], [], []>} : vector<16x32xbf16>, vector<16x32xbf16>, vector<16x16xf32> -> vector<16x16xf32>
    %cst_6 = arith.constant dense<0xFF800000> : vector<16xf32>
    %9 = vector.multi_reduction <maximumf>, %8, %cst_6 [1] : vector<16x16xf32> to vector<16xf32>
    %10 = vector.shape_cast %9 : vector<16xf32> to vector<16x1xf32>
    %11 = vector.broadcast %10 : vector<16x1xf32> to vector<16x16xf32>
    %12 = arith.subf %8, %11 : vector<16x16xf32>
    %13 = math.exp %12 : vector<16x16xf32>
    %cst_7 = arith.constant dense<0.000000e+00> : vector<16xf32>
    %14 = vector.multi_reduction <add>, %13, %cst_7 [1] : vector<16x16xf32> to vector<16xf32>
    %15 = vector.shape_cast %14 : vector<16xf32> to vector<16x1xf32>
    %16 = tpu.reciprocal %15 {approx = true} : vector<16x1xf32> -> vector<16x1xf32>
    %17 = vector.broadcast %16 : vector<16x1xf32> to vector<16x16xf32>
    %18 = arith.mulf %13, %17 : vector<16x16xf32>
    %19 = arith.truncf %18 : vector<16x16xf32> to vector<16x16xbf16>
    %cst_8 = arith.constant dense<0.000000e+00> : vector<16x32xf32>
    %20 = tpu.matmul %19, %7, %cst_8 {dimension_numbers = #tpu.dot_dimension_numbers<[1], [0], [0], [1], [0, 0, 1, 1], [], []>} : vector<16x16xbf16>, vector<16x32xbf16>, vector<16x32xf32> -> vector<16x32xf32>
    %21 = vector.extract_strided_slice %0 {offsets = [0, 32], sizes = [16, 32], strides = [1, 1]} : vector<16x128xbf16> to vector<16x32xbf16>
    %cst_9 = arith.constant 1.767580e-01 : bf16
    %22 = vector.broadcast %cst_9 : bf16 to vector<16x32xbf16>
    %23 = arith.mulf %21, %22 : vector<16x32xbf16>
    %24 = vector.extract_strided_slice %1 {offsets = [0, 32], sizes = [16, 32], strides = [1, 1]} : vector<16x128xbf16> to vector<16x32xbf16>
    %25 = vector.extract_strided_slice %2 {offsets = [0, 32], sizes = [16, 32], strides = [1, 1]} : vector<16x128xbf16> to vector<16x32xbf16>
    %cst_10 = arith.constant dense<0.000000e+00> : vector<16x16xf32>
    %26 = tpu.matmul %23, %24, %cst_10 {dimension_numbers = #tpu.dot_dimension_numbers<[1], [1], [0], [0], [0, 0, 1, 0], [], []>} : vector<16x32xbf16>, vector<16x32xbf16>, vector<16x16xf32> -> vector<16x16xf32>
    %cst_11 = arith.constant dense<0xFF800000> : vector<16xf32>
    %27 = vector.multi_reduction <maximumf>, %26, %cst_11 [1] : vector<16x16xf32> to vector<16xf32>
    %28 = vector.shape_cast %27 : vector<16xf32> to vector<16x1xf32>
    %29 = vector.broadcast %28 : vector<16x1xf32> to vector<16x16xf32>
    %30 = arith.subf %26, %29 : vector<16x16xf32>
    %31 = math.exp %30 : vector<16x16xf32>
    %cst_12 = arith.constant dense<0.000000e+00> : vector<16xf32>
    %32 = vector.multi_reduction <add>, %31, %cst_12 [1] : vector<16x16xf32> to vector<16xf32>
    %33 = vector.shape_cast %32 : vector<16xf32> to vector<16x1xf32>
    %34 = tpu.reciprocal %33 {approx = true} : vector<16x1xf32> -> vector<16x1xf32>
    %35 = vector.broadcast %34 : vector<16x1xf32> to vector<16x16xf32>
    %36 = arith.mulf %31, %35 : vector<16x16xf32>
    %37 = arith.truncf %36 : vector<16x16xf32> to vector<16x16xbf16>
    %cst_13 = arith.constant dense<0.000000e+00> : vector<16x32xf32>
    %38 = tpu.matmul %37, %25, %cst_13 {dimension_numbers = #tpu.dot_dimension_numbers<[1], [0], [0], [1], [0, 0, 1, 1], [], []>} : vector<16x16xbf16>, vector<16x32xbf16>, vector<16x32xf32> -> vector<16x32xf32>
    %39 = vector.extract_strided_slice %0 {offsets = [0, 64], sizes = [16, 32], strides = [1, 1]} : vector<16x128xbf16> to vector<16x32xbf16>
    %cst_14 = arith.constant 1.767580e-01 : bf16
    %40 = vector.broadcast %cst_14 : bf16 to vector<16x32xbf16>
    %41 = arith.mulf %39, %40 : vector<16x32xbf16>
    %42 = vector.extract_strided_slice %1 {offsets = [0, 64], sizes = [16, 32], strides = [1, 1]} : vector<16x128xbf16> to vector<16x32xbf16>
    %43 = vector.extract_strided_slice %2 {offsets = [0, 64], sizes = [16, 32], strides = [1, 1]} : vector<16x128xbf16> to vector<16x32xbf16>
    %cst_15 = arith.constant dense<0.000000e+00> : vector<16x16xf32>
    %44 = tpu.matmul %41, %42, %cst_15 {dimension_numbers = #tpu.dot_dimension_numbers<[1], [1], [0], [0], [0, 0, 1, 0], [], []>} : vector<16x32xbf16>, vector<16x32xbf16>, vector<16x16xf32> -> vector<16x16xf32>
    %cst_16 = arith.constant dense<0xFF800000> : vector<16xf32>
    %45 = vector.multi_reduction <maximumf>, %44, %cst_16 [1] : vector<16x16xf32> to vector<16xf32>
    %46 = vector.shape_cast %45 : vector<16xf32> to vector<16x1xf32>
    %47 = vector.broadcast %46 : vector<16x1xf32> to vector<16x16xf32>
    %48 = arith.subf %44, %47 : vector<16x16xf32>
    %49 = math.exp %48 : vector<16x16xf32>
    %cst_17 = arith.constant dense<0.000000e+00> : vector<16xf32>
    %50 = vector.multi_reduction <add>, %49, %cst_17 [1] : vector<16x16xf32> to vector<16xf32>
    %51 = vector.shape_cast %50 : vector<16xf32> to vector<16x1xf32>
    %52 = tpu.reciprocal %51 {approx = true} : vector<16x1xf32> -> vector<16x1xf32>
    %53 = vector.broadcast %52 : vector<16x1xf32> to vector<16x16xf32>
    %54 = arith.mulf %49, %53 : vector<16x16xf32>
    %55 = arith.truncf %54 : vector<16x16xf32> to vector<16x16xbf16>
    %cst_18 = arith.constant dense<0.000000e+00> : vector<16x32xf32>
    %56 = tpu.matmul %55, %43, %cst_18 {dimension_numbers = #tpu.dot_dimension_numbers<[1], [0], [0], [1], [0, 0, 1, 1], [], []>} : vector<16x16xbf16>, vector<16x32xbf16>, vector<16x32xf32> -> vector<16x32xf32>
    %57 = vector.extract_strided_slice %0 {offsets = [0, 96], sizes = [16, 32], strides = [1, 1]} : vector<16x128xbf16> to vector<16x32xbf16>
    %cst_19 = arith.constant 1.767580e-01 : bf16
    %58 = vector.broadcast %cst_19 : bf16 to vector<16x32xbf16>
    %59 = arith.mulf %57, %58 : vector<16x32xbf16>
    %60 = vector.extract_strided_slice %1 {offsets = [0, 96], sizes = [16, 32], strides = [1, 1]} : vector<16x128xbf16> to vector<16x32xbf16>
    %61 = vector.extract_strided_slice %2 {offsets = [0, 96], sizes = [16, 32], strides = [1, 1]} : vector<16x128xbf16> to vector<16x32xbf16>
    %cst_20 = arith.constant dense<0.000000e+00> : vector<16x16xf32>
    %62 = tpu.matmul %59, %60, %cst_20 {dimension_numbers = #tpu.dot_dimension_numbers<[1], [1], [0], [0], [0, 0, 1, 0], [], []>} : vector<16x32xbf16>, vector<16x32xbf16>, vector<16x16xf32> -> vector<16x16xf32>
    %cst_21 = arith.constant dense<0xFF800000> : vector<16xf32>
    %63 = vector.multi_reduction <maximumf>, %62, %cst_21 [1] : vector<16x16xf32> to vector<16xf32>
    %64 = vector.shape_cast %63 : vector<16xf32> to vector<16x1xf32>
    %65 = vector.broadcast %64 : vector<16x1xf32> to vector<16x16xf32>
    %66 = arith.subf %62, %65 : vector<16x16xf32>
    %67 = math.exp %66 : vector<16x16xf32>
    %cst_22 = arith.constant dense<0.000000e+00> : vector<16xf32>
    %68 = vector.multi_reduction <add>, %67, %cst_22 [1] : vector<16x16xf32> to vector<16xf32>
    %69 = vector.shape_cast %68 : vector<16xf32> to vector<16x1xf32>
    %70 = tpu.reciprocal %69 {approx = true} : vector<16x1xf32> -> vector<16x1xf32>
    %71 = vector.broadcast %70 : vector<16x1xf32> to vector<16x16xf32>
    %72 = arith.mulf %67, %71 : vector<16x16xf32>
    %73 = arith.truncf %72 : vector<16x16xf32> to vector<16x16xbf16>
    %cst_23 = arith.constant dense<0.000000e+00> : vector<16x32xf32>
    %74 = tpu.matmul %73, %61, %cst_23 {dimension_numbers = #tpu.dot_dimension_numbers<[1], [0], [0], [1], [0, 0, 1, 1], [], []>} : vector<16x16xbf16>, vector<16x32xbf16>, vector<16x32xf32> -> vector<16x32xf32>
    %75 = tpu.concatenate %20, %38, %56, %74 in 1 : vector<16x32xf32>, vector<16x32xf32>, vector<16x32xf32>, vector<16x32xf32> -> vector<16x128xf32>
    %76 = arith.truncf %75 : vector<16x128xf32> to vector<16x128xbf16>
    %c0_24 = arith.constant 0 : index
    %c0_25 = arith.constant 0 : index
    %77 = vector.load %arg4[%c0_24, %c0_25] : memref<16x128xbf16, #tpu.memory_space<vmem>>, vector<16x128xbf16>
    tpu.vector_store %arg4[%c0_24, %c0_25], %76 {strides = array<i32>} : memref<16x128xbf16, #tpu.memory_space<vmem>>, vector<16x128xbf16>,
    return
  }
  func.func @transform_0(%arg0: i32) -> (i32, i32) {
    %c0_i32 = arith.constant 0 : i32
    %c0_i32_0 = arith.constant 0 : i32
    return %arg0, %c0_i32 : i32, i32
  }
  func.func @transform_1(%arg0: i32) -> (i32, i32) {
    %c0_i32 = arith.constant 0 : i32
    %c0_i32_0 = arith.constant 0 : i32
    return %arg0, %c0_i32 : i32, i32
  }
  func.func @transform_2(%arg0: i32) -> (i32, i32) {
    %c1_i32 = arith.constant 1 : i32
    %c0_i32 = arith.constant 0 : i32
    return %arg0, %c1_i32 : i32, i32
  }
  func.func @transform_3(%arg0: i32) -> (i32, i32) {
    %c0_i32 = arith.constant 0 : i32
    %c0_i32_0 = arith.constant 0 : i32
    return %arg0, %c0_i32 : i32, i32
  }
}

module attributes {stable_mosaic.version = 11 : i64} {
  func.func @_linear_kernel(%arg0: i32, %arg1: i32, %arg2: i32, %arg3: memref<16x128xbf16, #tpu.memory_space<vmem>>, %arg4: memref<128x256xbf16, #tpu.memory_space<vmem>>, %arg5: memref<1x256xf32, #tpu.memory_space<vmem>>, %arg6: memref<16x256xf32, #tpu.memory_space<vmem>>, %arg7: memref<16x256xf32, #tpu.memory_space<vmem>>) attributes {dimension_semantics = [#tpu.dimension_semantics<parallel>, #tpu.dimension_semantics<parallel>, #tpu.dimension_semantics<arbitrary>], iteration_bounds = array<i64: 2, 1, 1>, scalar_prefetch = 0 : i64, scratch_operands = 1 : i64, tpu.core_type = #tpu.core_type<tc>, window_params = [{transform_indices = @transform_0, window_bounds = array<i64: 16, 128>}, {transform_indices = @transform_1, window_bounds = array<i64: 128, 256>}, {transform_indices = @transform_2, window_bounds = array<i64: 1, 256>}, {transform_indices = @transform_3, window_bounds = array<i64: 16, 256>}]} {
    %c0 = arith.constant 0 : index
    %c0_0 = arith.constant 0 : index
    %0 = vector.load %arg3[%c0, %c0_0] : memref<16x128xbf16, #tpu.memory_space<vmem>>, vector<16x128xbf16>
    %c0_1 = arith.constant 0 : index
    %c0_2 = arith.constant 0 : index
    %1 = vector.load %arg4[%c0_1, %c0_2] : memref<128x256xbf16, #tpu.memory_space<vmem>>, vector<128x256xbf16>
    %cst = arith.constant dense<0.000000e+00> : vector<16x256xf32>
    %2 = tpu.matmul %0, %1, %cst {dimension_numbers = #tpu.dot_dimension_numbers<[1], [0], [0], [1], [0, 0, 1, 1], [], []>} : vector<16x128xbf16>, vector<128x256xbf16>, vector<16x256xf32> -> vector<16x256xf32>
    %c0_i32 = arith.constant 0 : i32
    %3 = arith.cmpi eq, %arg2, %c0_i32 : i32
    %4 = arith.extui %3 : i1 to i32
    %c0_i32_3 = arith.constant 0 : i32
    %5 = arith.cmpi ne, %4, %c0_i32_3 : i32
    scf.if %5 {
      %c0_8 = arith.constant 0 : index
      %c0_9 = arith.constant 0 : index
      %12 = vector.load %arg7[%c0_8, %c0_9] : memref<16x256xf32, #tpu.memory_space<vmem>>, vector<16x256xf32>
      tpu.vector_store %arg7[%c0_8, %c0_9], %2 {strides = array<i32>} : memref<16x256xf32, #tpu.memory_space<vmem>>, vector<16x256xf32>,
    } else {
    }
    %c0_i32_4 = arith.constant 0 : i32
    %6 = arith.cmpi sgt, %arg2, %c0_i32_4 : i32
    %7 = arith.extui %6 : i1 to i32
    %c0_i32_5 = arith.constant 0 : i32
    %8 = arith.cmpi ne, %7, %c0_i32_5 : i32
    scf.if %8 {
      %c0_8 = arith.constant 0 : index
      %c0_9 = arith.constant 0 : index
      %12 = vector.load %arg7[%c0_8, %c0_9] : memref<16x256xf32, #tpu.memory_space<vmem>>, vector<16x256xf32>
      %13 = arith.addf %12, %2 : vector<16x256xf32>
      %c0_10 = arith.constant 0 : index
      %c0_11 = arith.constant 0 : index
      %14 = vector.load %arg7[%c0_10, %c0_11] : memref<16x256xf32, #tpu.memory_space<vmem>>, vector<16x256xf32>
      tpu.vector_store %arg7[%c0_10, %c0_11], %13 {strides = array<i32>} : memref<16x256xf32, #tpu.memory_space<vmem>>, vector<16x256xf32>,
    } else {
    }
    %c0_i32_6 = arith.constant 0 : i32
    %9 = arith.cmpi eq, %arg2, %c0_i32_6 : i32
    %10 = arith.extui %9 : i1 to i32
    %c0_i32_7 = arith.constant 0 : i32
    %11 = arith.cmpi ne, %10, %c0_i32_7 : i32
    scf.if %11 {
      %c0_8 = arith.constant 0 : index
      %c0_9 = arith.constant 0 : index
      %12 = vector.load %arg7[%c0_8, %c0_9] : memref<16x256xf32, #tpu.memory_space<vmem>>, vector<16x256xf32>
      %c0_10 = arith.constant 0 : index
      %c0_11 = arith.constant 0 : index
      %13 = vector.load %arg5[%c0_10, %c0_11] : memref<1x256xf32, #tpu.memory_space<vmem>>, vector<1x256xf32>
      %14 = vector.broadcast %13 : vector<1x256xf32> to vector<16x256xf32>
      %15 = arith.addf %12, %14 : vector<16x256xf32>
      %c0_12 = arith.constant 0 : index
      %c0_13 = arith.constant 0 : index
      %16 = vector.load %arg6[%c0_12, %c0_13] : memref<16x256xf32, #tpu.memory_space<vmem>>, vector<16x256xf32>
      tpu.vector_store %arg6[%c0_12, %c0_13], %15 {strides = array<i32>} : memref<16x256xf32, #tpu.memory_space<vmem>>, vector<16x256xf32>,
    } else {
    }
    return
  }
  func.func @transform_0(%arg0: i32, %arg1: i32, %arg2: i32) -> (i32, i32) {
    %c0_i32 = arith.constant 0 : i32
    return %arg0, %arg2 : i32, i32
  }
  func.func @transform_1(%arg0: i32, %arg1: i32, %arg2: i32) -> (i32, i32) {
    %c0_i32 = arith.constant 0 : i32
    return %arg2, %arg1 : i32, i32
  }
  func.func @transform_2(%arg0: i32, %arg1: i32, %arg2: i32) -> (i32, i32) {
    %c0_i32 = arith.constant 0 : i32
    %c0_i32_0 = arith.constant 0 : i32
    return %c0_i32, %arg1 : i32, i32
  }
  func.func @transform_3(%arg0: i32, %arg1: i32, %arg2: i32) -> (i32, i32) {
    %c0_i32 = arith.constant 0 : i32
    return %arg0, %arg1 : i32, i32
  }
}

</mosaic_0001>

<llo_original>
// kernel: transformer_forward.31
$region0: #{transformer_forward.31}
  #allocation0 [shape = 'u32[]', space=smem, size = 0x4, offset = 0x4, fixed_abs, tag = 'smem constant byte address 0x4 - core index']
  #allocation1 [shape = 'u32[144,128]{1,0:T(1,128)}', space=vmem, size = 0x12000, scoped, tag = 'internal scratch']
  #allocation2 [shape = 'f32[16,128]{1,0:T(8,128)}', space=vmem, size = 0x2000, scoped, tag = 'scratch operand']
  %s0 = inlined_call_operand.vmem [shape: bf16[32,128], index: 0, kind: input, shape index: {}]
  %s1 = inlined_call_operand.vmem [shape: bf16[128,128], index: 1, kind: input, shape index: {}]
  %s2 = inlined_call_operand.vmem [shape: f32[1,128], index: 2, kind: input, shape index: {}]
  %s3 = inlined_call_operand.vmem [shape: bf16[32,128], index: 3, kind: input, shape index: {}]
  %s4 = inlined_call_operand.vmem [shape: f32[1,128], index: 4, kind: input, shape index: {}]
  %s5 = inlined_call_operand.vmem [shape: f32[1,128], index: 5, kind: input, shape index: {}]
  %s6 = inlined_call_operand.vmem [shape: bf16[32,128], index: 6, kind: output, shape index: {}]
  %s7 = sld [smem:[#allocation0]]
  $region69: #{transformer_forward.31} parent=0
    _
  %s9 = ssub.s32 1, %s7
  %s10 = scalar_select 0, %s9, %s7
  loop: start=0, step=1, limit=4
  $region2: #{transformer_forward.31} parent=0 // loop_pre_header
    _
  $region3: #{transformer_forward.31} parent=0 // loop_header
    %s12 = sphi 0, %s16
    %p13 = scmp.ge.s32.totalorder %s12, 4
    %s19 = sphi 0, %s31
    %s20 = sphi 0, %s27
    %s21 = sphi 0, %s19
    %s22 = sphi 0, %s20
    %s23 = sphi 0, %s21
    %s24 = sphi 0, %s22
    %s36 = sphi 0, %s38
    %s39 = sphi 0, %s36
    %s40 = sphi 0, %s39
    %s56 = sphi 0, %s40
    %s62 = sphi 0, %s64
    %s65 = sphi 0, %s62
    %s66 = sphi 0, %s65
    %s82 = sphi 0, %s66
    %s86 = sphi 0, %s86
    %s88 = sphi 0, %s86
    %s89 = sphi 0, %s88
    %s103 = sphi 0, %s89
    %s109 = sphi 0, %s111
    %s112 = sphi 0, %s109
    %s113 = sphi 0, %s112
    %s129 = sphi 0, %s113
    %s133 = sphi 0, %s133
    %s135 = sphi 0, %s133
    %s136 = sphi 0, %s135
    %s150 = sphi 0, %s136
    %s154 = sphi 0, %s154
    %s156 = sphi 0, %s154
    %s157 = sphi 0, %s156
    %s171 = sphi 0, %s157
    %s177 = sphi 0, %s179
    %s180 = sphi 0, %s177
    %s181 = sphi 0, %s180
    %s197 = sphi 0, %s181
  $region4: #{transformer_forward.31} parent=0 // loop_header_branch
    %15 = sbr.rel (%p13) target = $region8
  $region5: #{transformer_forward.31} parent=0 // loop_body
    %s17 = ssub.s32 %s12, 1
    %s18 = ssub.s32 %s12, 2
    %s25 = sadd.s32 1, %s20
    %p26 = scmp.ge.s32.totalorder %s25, 1
    %s27 = scalar_select %p26, 0, %s25
    %s28 = sadd.s32 1, %s19
    %s29 = scalar_select %p26, %s28, %s19
    %p30 = scmp.ge.s32.totalorder %s29, 2
    %s31 = scalar_select %p30, 0, %s29
    %s32 = ssub.s32 %s19, %s31
    %s33 = ssub.s32 %s20, %s27
    %s34 = sor.u32 %s32, %s33
    %p35 = scmp.eq.s32.totalorder %s34, 0
    %s37 = sadd.s32 %s36, 1
    %s38 = scalar_select %p35, %s36, %s37
    %p41 = pneg %p35
    %p42 = scmp.eq.s32.totalorder %s12, 1
    %p43 = por %p41, %p42
    %p44 = scmp.ne.s32.totalorder %s36, %s39
    %p45 = scmp.eq.s32.totalorder %s12, 0
    %p46 = por %p44, %p45
    %p47 = scmp.ne.s32.totalorder %s36, %s39
    %p48 = scmp.eq.s32.totalorder %s17, 1
    %p49 = por %p47, %p48
    %p50 = scmp.ne.s32.totalorder %s39, %s40
    %p51 = scmp.eq.s32.totalorder %s17, 0
    %p52 = por %p50, %p51
    %p53 = scmp.ne.s32.totalorder %s39, %s40
    %p54 = scmp.eq.s32.totalorder %s18, 1
    %p55 = por %p53, %p54
    %p57 = scmp.ne.s32.totalorder %s40, %s56
    %p58 = scmp.eq.s32.totalorder %s18, 0
    %p59 = por %p57, %p58
    %s60 = ssub.s32 %s20, %s27
    %p61 = scmp.eq.s32.totalorder %s60, 0
    %s63 = sadd.s32 %s62, 1
    %s64 = scalar_select %p61, %s62, %s63
    %p67 = pneg %p61
    %p68 = scmp.eq.s32.totalorder %s12, 1
    %p69 = por %p67, %p68
    %p70 = scmp.ne.s32.totalorder %s62, %s65
    %p71 = scmp.eq.s32.totalorder %s12, 0
    %p72 = por %p70, %p71
    %p73 = scmp.ne.s32.totalorder %s62, %s65
    %p74 = scmp.eq.s32.totalorder %s17, 1
    %p75 = por %p73, %p74
    %p76 = scmp.ne.s32.totalorder %s65, %s66
    %p77 = scmp.eq.s32.totalorder %s17, 0
    %p78 = por %p76, %p77
    %p79 = scmp.ne.s32.totalorder %s65, %s66
    %p80 = scmp.eq.s32.totalorder %s18, 1
    %p81 = por %p79, %p80
    %p83 = scmp.ne.s32.totalorder %s66, %s82
    %p84 = scmp.eq.s32.totalorder %s18, 0
    %p85 = por %p83, %p84
    %s87 = sadd.s32 %s86, 1
    %p90 = scmp.eq.s32.totalorder %s12, 1
    %p91 = scmp.ne.s32.totalorder %s86, %s88
    %p92 = scmp.eq.s32.totalorder %s12, 0
    %p93 = por %p91, %p92
    %p94 = scmp.ne.s32.totalorder %s86, %s88
    %p95 = scmp.eq.s32.totalorder %s17, 1
    %p96 = por %p94, %p95
    %p97 = scmp.ne.s32.totalorder %s88, %s89
    %p98 = scmp.eq.s32.totalorder %s17, 0
    %p99 = por %p97, %p98
    %p100 = scmp.ne.s32.totalorder %s88, %s89
    %p101 = scmp.eq.s32.totalorder %s18, 1
    %p102 = por %p100, %p101
    %p104 = scmp.ne.s32.totalorder %s89, %s103
    %p105 = scmp.eq.s32.totalorder %s18, 0
    %p106 = por %p104, %p105
    %s107 = ssub.s32 %s19, %s31
    %p108 = scmp.eq.s32.totalorder %s107, 0
    %s110 = sadd.s32 %s109, 1
    %s111 = scalar_select %p108, %s109, %s110
    %p114 = pneg %p108
    %p115 = scmp.eq.s32.totalorder %s12, 1
    %p116 = por %p114, %p115
    %p117 = scmp.ne.s32.totalorder %s109, %s112
    %p118 = scmp.eq.s32.totalorder %s12, 0
    %p119 = por %p117, %p118
    %p120 = scmp.ne.s32.totalorder %s109, %s112
    %p121 = scmp.eq.s32.totalorder %s17, 1
    %p122 = por %p120, %p121
    %p123 = scmp.ne.s32.totalorder %s112, %s113
    %p124 = scmp.eq.s32.totalorder %s17, 0
    %p125 = por %p123, %p124
    %p126 = scmp.ne.s32.totalorder %s112, %s113
    %p127 = scmp.eq.s32.totalorder %s18, 1
    %p128 = por %p126, %p127
    %p130 = scmp.ne.s32.totalorder %s113, %s129
    %p131 = scmp.eq.s32.totalorder %s18, 0
    %p132 = por %p130, %p131
    %s134 = sadd.s32 %s133, 1
    %p137 = scmp.eq.s32.totalorder %s12, 1
    %p138 = scmp.ne.s32.totalorder %s133, %s135
    %p139 = scmp.eq.s32.totalorder %s12, 0
    %p140 = por %p138, %p139
    %p141 = scmp.ne.s32.totalorder %s133, %s135
    %p142 = scmp.eq.s32.totalorder %s17, 1
    %p143 = por %p141, %p142
    %p144 = scmp.ne.s32.totalorder %s135, %s136
    %p145 = scmp.eq.s32.totalorder %s17, 0
    %p146 = por %p144, %p145
    %p147 = scmp.ne.s32.totalorder %s135, %s136
    %p148 = scmp.eq.s32.totalorder %s18, 1
    %p149 = por %p147, %p148
    %p151 = scmp.ne.s32.totalorder %s136, %s150
    %p152 = scmp.eq.s32.totalorder %s18, 0
    %p153 = por %p151, %p152
    %s155 = sadd.s32 %s154, 1
    %p158 = scmp.eq.s32.totalorder %s12, 1
    %p159 = scmp.ne.s32.totalorder %s154, %s156
    %p160 = scmp.eq.s32.totalorder %s12, 0
    %p161 = por %p159, %p160
    %p162 = scmp.ne.s32.totalorder %s154, %s156
    %p163 = scmp.eq.s32.totalorder %s17, 1
    %p164 = por %p162, %p163
    %p165 = scmp.ne.s32.totalorder %s156, %s157
    %p166 = scmp.eq.s32.totalorder %s17, 0
    %p167 = por %p165, %p166
    %p168 = scmp.ne.s32.totalorder %s156, %s157
    %p169 = scmp.eq.s32.totalorder %s18, 1
    %p170 = por %p168, %p169
    %p172 = scmp.ne.s32.totalorder %s157, %s171
    %p173 = scmp.eq.s32.totalorder %s18, 0
    %p174 = por %p172, %p173
    %s175 = ssub.s32 %s19, %s31
    %p176 = scmp.eq.s32.totalorder %s175, 0
    %s178 = sadd.s32 %s177, 1
    %s179 = scalar_select %p176, %s177, %s178
    %p182 = pneg %p176
    %p183 = scmp.eq.s32.totalorder %s12, 1
    %p184 = por %p182, %p183
    %p185 = scmp.ne.s32.totalorder %s177, %s180
    %p186 = scmp.eq.s32.totalorder %s12, 0
    %p187 = por %p185, %p186
    %p188 = scmp.ne.s32.totalorder %s177, %s180
    %p189 = scmp.eq.s32.totalorder %s17, 1
    %p190 = por %p188, %p189
    %p191 = scmp.ne.s32.totalorder %s180, %s181
    %p192 = scmp.eq.s32.totalorder %s17, 0
    %p193 = por %p191, %p192
    %p194 = scmp.ne.s32.totalorder %s180, %s181
    %p195 = scmp.eq.s32.totalorder %s18, 1
    %p196 = por %p194, %p195
    %p198 = scmp.ne.s32.totalorder %s181, %s197
    %p199 = scmp.eq.s32.totalorder %s18, 0
    %p200 = por %p198, %p199
    %p201 = scmp.le.s32.totalorder 1, %s12
    %p202 = scmp.lt.s32.totalorder %s12, 3
    %p203 = pnand %p201, %p202
    %p204 = pneg %p203
    // Predicated region
    $region9: #{transformer_forward.31} parent=5 // pred_check
      _
    $region10: #{transformer_forward.31} parent=5 // pred_check_branch
      %206 = sbr.rel (%p203) target = $region12
    $region11: #{transformer_forward.31} parent=5 // pred_region
      %s207 = ssub.s32 %s12, 1
      // Predicated region
      $region13: #{transformer_forward.31} parent=11 // pred_check
        %p208 = pneg %p78
      $region14: #{transformer_forward.31} parent=11 // pred_check_branch
        %210 = sbr.rel (%p208) target = $region16
      $region15: #{transformer_forward.31} parent=11 // pred_region
        %s211 = smul.u32 16, %s22
        %p212 = scmp.lt.s32.totalorder %s211, 15
        %s213 = scalar_select %p212, %s211, 15
        %s214 = smul.addr %s213, 4
        %s215 = scalar_lea.vmem %s1, %s214
        %s216 = smul.u32 16, %s22
      $region16: #{transformer_forward.31} parent=11 // pred_fallthru
        _
      // Predicated region
      $region17: #{transformer_forward.31} parent=11 // pred_check
        %p217 = pneg %p99
      $region18: #{transformer_forward.31} parent=11 // pred_check_branch
        %219 = sbr.rel (%p217) target = $region20
      $region19: #{transformer_forward.31} parent=11 // pred_region
        _
      $region20: #{transformer_forward.31} parent=11 // pred_fallthru
        _
      // Predicated region
      $region21: #{transformer_forward.31} parent=11 // pred_check
        %p220 = pneg %p146
      $region22: #{transformer_forward.31} parent=11 // pred_check_branch
        %222 = sbr.rel (%p220) target = $region24
      $region23: #{transformer_forward.31} parent=11 // pred_region
        _
      $region24: #{transformer_forward.31} parent=11 // pred_fallthru
        _
      // Predicated region
      $region25: #{transformer_forward.31} parent=11 // pred_check
        %p223 = pneg %p167
      $region26: #{transformer_forward.31} parent=11 // pred_check_branch
        %225 = sbr.rel (%p223) target = $region28
      $region27: #{transformer_forward.31} parent=11 // pred_region
        _
      $region28: #{transformer_forward.31} parent=11 // pred_fallthru
        _
    $region12: #{transformer_forward.31} parent=5 // pred_fallthru
      _
    %p226 = scmp.lt.s32.totalorder %s12, 2
    // Predicated region
    $region29: #{transformer_forward.31} parent=5 // pred_check
      %p227 = pneg %p226
    $region30: #{transformer_forward.31} parent=5 // pred_check_branch
      %229 = sbr.rel (%p227) target = $region32
    $region31: #{transformer_forward.31} parent=5 // pred_region
      // Predicated region
      $region33: #{transformer_forward.31} parent=31 // pred_check
        %p230 = pneg %p46
      $region34: #{transformer_forward.31} parent=31 // pred_check_branch
        %232 = sbr.rel (%p230) target = $region36
      $region35: #{transformer_forward.31} parent=31 // pred_region
        %s233 = smul.u32 2, %s19
        %p234 = scmp.lt.s32.totalorder %s233, 3
        %s235 = scalar_select %p234, %s233, 3
        %p236 = scmp.lt.s32.totalorder %s20, 0
        %s237 = scalar_select %p236, %s20, 0
        %s238 = sadd.s32 %s237, %s235
        %s239 = smul.addr %s238, 4
        %s240 = scalar_lea.vmem %s0, %s239
        %s241 = smul.u32 2, %s19
      $region36: #{transformer_forward.31} parent=31 // pred_fallthru
        _
      // Predicated region
      $region37: #{transformer_forward.31} parent=31 // pred_check
        %p242 = pneg %p119
      $region38: #{transformer_forward.31} parent=31 // pred_check_branch
        %244 = sbr.rel (%p242) target = $region40
      $region39: #{transformer_forward.31} parent=31 // pred_region
        %s245 = smul.u32 2, %s19
        %p246 = scmp.lt.s32.totalorder %s245, 3
        %s247 = scalar_select %p246, %s245, 3
        %s248 = smul.addr %s247, 4
        %s249 = scalar_lea.vmem %s3, %s248
        %s250 = smul.u32 2, %s19
      $region40: #{transformer_forward.31} parent=31 // pred_fallthru
        _
    $region32: #{transformer_forward.31} parent=5 // pred_fallthru
      _
    %p251 = scmp.le.s32.totalorder 1, %s12
    %p252 = scmp.lt.s32.totalorder %s12, 3
    %p253 = pnand %p251, %p252
    %p254 = pneg %p253
    // Predicated region
    $region41: #{transformer_forward.31} parent=5 // pred_check
      _
    $region42: #{transformer_forward.31} parent=5 // pred_check_branch
      %256 = sbr.rel (%p253) target = $region44
    $region43: #{transformer_forward.31} parent=5 // pred_region
      %s257 = ssub.s32 %s12, 1
      %s258 = smul.u32 2, %s21
      %p259 = scmp.lt.s32.totalorder %s258, 3
      %s260 = scalar_select %p259, %s258, 3
      %p261 = scmp.lt.s32.totalorder %s22, 0
      %s262 = scalar_select %p261, %s22, 0
      %s263 = sadd.s32 %s262, %s260
      %s264 = smul.addr %s263, 4
      %s265 = scalar_lea.vmem %s0, %s264
      %p266 = pneg %p52
      %p267 = pneg %p49
      %s268 = smul.u32 16, %s22
      %p269 = scmp.lt.s32.totalorder %s268, 15
      %s270 = scalar_select %p269, %s268, 15
      %s271 = smul.addr %s270, 4
      %s272 = scalar_lea.vmem %s1, %s271
      %p273 = pneg %p78
      %p274 = pneg %p75
      %p275 = pneg %p99
      %p276 = pneg %p96
      %s277 = smul.u32 2, %s21
      %p278 = scmp.lt.s32.totalorder %s277, 3
      %s279 = scalar_select %p278, %s277, 3
      %s280 = smul.addr %s279, 4
      %s281 = scalar_lea.vmem %s3, %s280
      %p282 = pneg %p125
      %p283 = pneg %p122
      %p284 = pneg %p146
      %p285 = pneg %p143
      %p286 = pneg %p167
      %p287 = pneg %p164
      %p288 = pneg %p193
      %p289 = pneg %p190
      %s290 = smul.u32 2, %s21
      %p291 = scmp.lt.s32.totalorder %s290, 3
      %s292 = scalar_select %p291, %s290, 3
      %s293 = smul.addr %s292, 4
      %s294 = scalar_lea.vmem %s6, %s293
      %s295 = smul.u32 2, %s21
      %p296 = scmp.lt.s32.totalorder %s295, 3
      %s297 = scalar_select %p296, %s295, 3
      %p298 = scmp.lt.s32.totalorder %s22, 0
      %s299 = scalar_select %p298, %s22, 0
      %s300 = sadd.s32 %s299, %s297
      %s301 = smul.addr %s300, 4
      %s302 = scalar_lea.vmem %s0, %s301
      %s303 = smul.u32 2, %s21
      %s304 = smul.u32 16, %s22
      %p305 = scmp.lt.s32.totalorder %s304, 15
      %s306 = scalar_select %p305, %s304, 15
      %s307 = smul.addr %s306, 4
      %s308 = scalar_lea.vmem %s1, %s307
      %s309 = smul.u32 16, %s22
      %s310 = smul.u32 2, %s21
      %p311 = scmp.lt.s32.totalorder %s310, 3
      %s312 = scalar_select %p311, %s310, 3
      %s313 = smul.addr %s312, 4
      %s314 = scalar_lea.vmem %s3, %s313
      %s315 = smul.u32 2, %s21
      %s316 = smul.u32 2, %s21
      %p317 = scmp.lt.s32.totalorder %s316, 3
      %s318 = scalar_select %p317, %s316, 3
      %s319 = smul.addr %s318, 4
      %s320 = scalar_lea.vmem %s6, %s319
      %s321 = smul.u32 2, %s21
      %v323 = vld [vmem:[%s302] sm:$0xf]
      %v324 = vld [vmem:[%s302 + $0x4] sm:$0xf]
      %v325 = vld [vmem:[%s308] sm:$0xf]
      %v326 = vld [vmem:[%s308 + $0x4] sm:$0xf]
      %v327 = vld [vmem:[%s308 + $0x8] sm:$0xf]
      %v328 = vld [vmem:[%s308 + $0xc] sm:$0xf]
      %v329 = vld [vmem:[%s308 + $0x10] sm:$0xf]
      %v330 = vld [vmem:[%s308 + $0x14] sm:$0xf]
      %v331 = vld [vmem:[%s308 + $0x18] sm:$0xf]
      %v332 = vld [vmem:[%s308 + $0x1c] sm:$0xf]
      %v333 = vld [vmem:[%s308 + $0x20] sm:$0xf]
      %v334 = vld [vmem:[%s308 + $0x24] sm:$0xf]
      %v335 = vld [vmem:[%s308 + $0x28] sm:$0xf]
      %v336 = vld [vmem:[%s308 + $0x2c] sm:$0xf]
      %v337 = vld [vmem:[%s308 + $0x30] sm:$0xf]
      %v338 = vld [vmem:[%s308 + $0x34] sm:$0xf]
      %v339 = vld [vmem:[%s308 + $0x38] sm:$0xf]
      %v340 = vld [vmem:[%s308 + $0x3c] sm:$0xf]
      %v343 = vunpack.c.l.b16 %v323
      %v344 = vunpack.c.l.b16 %v324
      %v345 = vpack.c.b16 %v344, %v343
      %v363 = vunpack.c.l.b16 %v325
      %v364 = vunpack.c.l.b16 %v326
      %v365 = vunpack.c.l.b16 %v327
      %v366 = vunpack.c.l.b16 %v328
      %v367 = vunpack.c.l.b16 %v329
      %v368 = vunpack.c.l.b16 %v330
      %v369 = vunpack.c.l.b16 %v331
      %v370 = vunpack.c.l.b16 %v332
      %v371 = vunpack.c.l.b16 %v333
      %v372 = vunpack.c.l.b16 %v334
      %v373 = vunpack.c.l.b16 %v335
      %v374 = vunpack.c.l.b16 %v336
      %v375 = vunpack.c.l.b16 %v337
      %v376 = vunpack.c.l.b16 %v338
      %v377 = vunpack.c.l.b16 %v339
      %v378 = vunpack.c.l.b16 %v340
      %v379 = vpack.c.b16 %v364, %v363
      %v380 = vpack.c.b16 %v366, %v365
      %v381 = vpack.c.b16 %v368, %v367
      %v382 = vpack.c.b16 %v370, %v369
      %v383 = vpack.c.b16 %v372, %v371
      %v384 = vpack.c.b16 %v374, %v373
      %v385 = vpack.c.b16 %v376, %v375
      %v386 = vpack.c.b16 %v378, %v377
      %395 = vmatprep.subr.bf16.mxu0 0
      %396 = vmatpush1.bf16.msra.mxu0 %v386
      %397 = vmatprep.subr.bf16.mxu0 0
      %398 = vmatpush1.bf16.msra.mxu0 %v385
      %399 = vmatprep.subr.bf16.mxu0 0
      %400 = vmatpush1.bf16.msra.mxu0 %v384
      %401 = vmatprep.subr.bf16.mxu0 0
      %402 = vmatpush1.bf16.msra.mxu0 %v383
      %403 = vmatprep.subr.bf16.mxu0 0
      %404 = vmatpush1.bf16.msra.mxu0 %v382
      %405 = vmatprep.subr.bf16.mxu0 0
      %406 = vmatpush1.bf16.msra.mxu0 %v381
      %407 = vmatprep.subr.bf16.mxu0 0
      %408 = vmatpush1.bf16.msra.mxu0 %v380
      %409 = vmatprep.subr.bf16.mxu0 0
      %410 = vmatpush1.bf16.msra.mxu0 %v379
      %411 = vmatprep.subr.bf16.mxu0 0
      %412 = vmatpush2.bf16.msra.mxu0 0
      %413 = vmatprep.subr.bf16.mxu0 0
      %414 = vmatpush2.bf16.msra.mxu0 0
      %415 = vmatprep.subr.bf16.mxu0 0
      %416 = vmatpush2.bf16.msra.mxu0 0
      %417 = vmatprep.subr.bf16.mxu0 0
      %418 = vmatpush2.bf16.msra.mxu0 0
      %419 = vmatprep.subr.bf16.mxu0 0
      %420 = vmatpush2.bf16.msra.mxu0 0
      %421 = vmatprep.subr.bf16.mxu0 0
      %422 = vmatpush2.bf16.msra.mxu0 0
      %423 = vmatprep.subr.bf16.mxu0 0
      %424 = vmatpush2.bf16.msra.mxu0 0
      %425 = vmatprep.subr.bf16.mxu0 0
      %426 = vmatpush2.bf16.msra.mxu0 0
      %427 = vmatprep.mubr.bf16.mxu0 0
      %428 = vmatmul.mubr.bf16.gmra.mxu0 %v345
      %v429 = vpop.f32.mrf.mxu0
      %v430 = vadd.f32 0.0, %v429
      %v431 = vpop.f32.mrf.mxu0
      %v432 = vpop.f32.mrf.mxu0
      %v433 = vadd.f32 0.0, %v432
      %v434 = vpop.f32.mrf.mxu0
      %435 = vdwg.mxu0
      %p436 = scmp.eq.s32.totalorder %s22, 0
      // Predicated region
      $region45: #{transformer_forward.31} parent=43 // pred_check
        %p437 = pneg %p436
      $region46: #{transformer_forward.31} parent=43 // pred_check_branch
        %439 = sbr.rel (%p437) target = $region48
      $region47: #{transformer_forward.31} parent=43 // pred_region
        %440 = vst [vmem:[#allocation2] sm:$0xff] %v430
        %441 = vst [vmem:[#allocation2 + $0x8] sm:$0xff] %v433
      $region48: #{transformer_forward.31} parent=43 // pred_fallthru
        _
      %p442 = scmp.gt.s32.totalorder %s22, 0
      // Predicated region
      $region49: #{transformer_forward.31} parent=43 // pred_check
        %p443 = pneg %p442
      $region50: #{transformer_forward.31} parent=43 // pred_check_branch
        %445 = sbr.rel (%p443) target = $region52
      $region51: #{transformer_forward.31} parent=43 // pred_region
        %v446 = vld [vmem:[#allocation2] sm:$0xff]
        %v447 = vld [vmem:[#allocation2 + $0x8] sm:$0xff]
        %v448 = vadd.f32 %v446, %v430
        %v449 = vadd.f32 %v447, %v433
        %450 = vst [vmem:[#allocation2] sm:$0xff] %v448
        %451 = vst [vmem:[#allocation2 + $0x8] sm:$0xff] %v449
      $region52: #{transformer_forward.31} parent=43 // pred_fallthru
        _
      // Predicated region
      $region53: #{transformer_forward.31} parent=43 // pred_check
        %p452 = pneg %p436
      $region54: #{transformer_forward.31} parent=43 // pred_check_branch
        %454 = sbr.rel (%p452) target = $region56
      $region55: #{transformer_forward.31} parent=43 // pred_region
        %v455 = vld [vmem:[#allocation2] sm:$0xff]
        %v456 = vld [vmem:[#allocation2 + $0x8] sm:$0xff]
        %v457 = vld [vmem:[%s2] sm:$0x1]
        %v459 = vlaneseq
        %v460 = vshrl.u32 %v459, 7
        %v461 = vsub.s32 0, %v460
        %v462 = vrot.slane %v457, %v461
        %v464 = vadd.f32 %v455, %v462
        %v465 = vadd.f32 %v456, %v462
        %v466 = vld [vmem:[%s314] sm:$0xf]
        %v467 = vld [vmem:[%s314 + $0x4] sm:$0xf]
        %v468 = vunpack.c.l.bf16 %v466
        %v469 = vunpack.c.l.bf16 %v467
        %v470 = vadd.f32 %v464, %v468
        %v471 = vadd.f32 %v465, %v469
        %472 = vadd.xlane.f32.xlu0 %v470
        %v473 = vpop.xlane.xlu0 %472
        %474 = vadd.xlane.f32.xlu0 %v471
        %v475 = vpop.xlane.xlu0 %474
        %v476 = vrcp.pop 128.0
        %v477 = vmul.f32 %v473, %v476
        %v478 = vmul.f32 %v475, %v476
        %v479 = vsub.f32 %v470, %v477
        %v480 = vsub.f32 %v471, %v478
        %v481 = vmul.f32 %v479, %v479
        %v482 = vmul.f32 %v480, %v480
        %483 = vadd.xlane.f32.xlu0 %v481
        %v484 = vpop.xlane.xlu0 %483
        %485 = vadd.xlane.f32.xlu0 %v482
        %v486 = vpop.xlane.xlu0 %485
        %v487 = vmul.f32 %v484, %v476
        %v488 = vmul.f32 %v486, %v476
        %v489 = vadd.f32 %v487, 1e-05
        %v490 = vadd.f32 %v488, 1e-05
        %v491 = vrsqrt.pop %v489
        %v492 = vrsqrt.pop %v490
        %v493 = vmul.f32 %v479, %v491
        %v494 = vmul.f32 %v480, %v492
        %v495 = vld [vmem:[%s4] sm:$0x1]
        %v497 = vlaneseq
        %v498 = vshrl.u32 %v497, 7
        %v499 = vsub.s32 0, %v498
        %v500 = vrot.slane %v495, %v499
        %v502 = vmul.f32 %v493, %v500
        %v503 = vmul.f32 %v494, %v500
        %v504 = vld [vmem:[%s5] sm:$0x1]
        %v506 = vlaneseq
        %v507 = vshrl.u32 %v506, 7
        %v508 = vsub.s32 0, %v507
        %v509 = vrot.slane %v504, %v508
        %v511 = vadd.f32 %v502, %v509
        %v512 = vadd.f32 %v503, %v509
        %v513 = vpack.c.bf16 %v512, %v511
        %v515 = vunpack.c.l.b16 %v513
        %v516 = vunpack.c.h.b16 %v513
        %v517 = vpack.c.b16 %v515, %v515
        %v518 = vpack.c.b16 %v516, %v516
        %521 = vst [vmem:[%s320] sm:$0xf] %v517
        %522 = vst [vmem:[%s320 + $0x4] sm:$0xf] %v518
      $region56: #{transformer_forward.31} parent=43 // pred_fallthru
        _
      %s523 = smul.u32 2, %s21
      %p524 = scmp.lt.s32.totalorder %s523, 3
      %s525 = scalar_select %p524, %s523, 3
      %s526 = smul.addr %s525, 4
      %s527 = scalar_lea.vmem %s6, %s526
      // Predicated region
      $region57: #{transformer_forward.31} parent=43 // pred_check
        %p528 = pneg %p190
      $region58: #{transformer_forward.31} parent=43 // pred_check_branch
        %530 = sbr.rel (%p528) target = $region60
      $region59: #{transformer_forward.31} parent=43 // pred_region
        %s531 = smul.u32 2, %s21
      $region60: #{transformer_forward.31} parent=43 // pred_fallthru
        _
    $region44: #{transformer_forward.31} parent=5 // pred_fallthru
      _
    %p532 = scmp.le.s32.totalorder 2, %s12
    // Predicated region
    $region61: #{transformer_forward.31} parent=5 // pred_check
      %p533 = pneg %p532
    $region62: #{transformer_forward.31} parent=5 // pred_check_branch
      %535 = sbr.rel (%p533) target = $region64
    $region63: #{transformer_forward.31} parent=5 // pred_region
      %s536 = ssub.s32 %s12, 2
      // Predicated region
      $region65: #{transformer_forward.31} parent=63 // pred_check
        %p537 = pneg %p196
      $region66: #{transformer_forward.31} parent=63 // pred_check_branch
        %539 = sbr.rel (%p537) target = $region68
      $region67: #{transformer_forward.31} parent=63 // pred_region
        %s540 = smul.u32 2, %s23
        %p541 = scmp.lt.s32.totalorder %s540, 3
        %s542 = scalar_select %p541, %s540, 3
        %s543 = smul.addr %s542, 4
        %s544 = scalar_lea.vmem %s6, %s543
      $region68: #{transformer_forward.31} parent=63 // pred_fallthru
        _
    $region64: #{transformer_forward.31} parent=5 // pred_fallthru
      _
  $region6: #{transformer_forward.31} parent=0 // loop_footer
    %s16 = sadd.s32 1, %s12
  $region7: #{transformer_forward.31} parent=0 // loop_footer_branch
    %11 = sbr.rel target = $region3
  $region8: #{transformer_forward.31} parent=0 // loop_exit
    _

// kernel: transformer_forward.29
$region0: #{transformer_forward.29}
  #allocation0 [shape = 'u32[]', space=smem, size = 0x4, offset = 0x4, fixed_abs, tag = 'smem constant byte address 0x4 - core index']
  #allocation1 [shape = 'u32[144,128]{1,0:T(1,128)}', space=vmem, size = 0x12000, scoped, tag = 'internal scratch']
  #allocation2 [shape = 'f32[16,384]{1,0:T(8,128)}', space=vmem, size = 0x6000, scoped, tag = 'scratch operand']
  %s0 = inlined_call_operand.vmem [shape: bf16[32,128], index: 0, kind: input, shape index: {}]
  %s1 = inlined_call_operand.vmem [shape: bf16[128,384], index: 1, kind: input, shape index: {}]
  %s2 = inlined_call_operand.vmem [shape: f32[1,384], index: 2, kind: input, shape index: {}]
  %s3 = inlined_call_operand.vmem [shape: bf16[32,384], index: 3, kind: output, shape index: {}]
  %s4 = sld [smem:[#allocation0]]
  $region57: #{transformer_forward.29} parent=0
    _
  %s6 = ssub.s32 1, %s4
  %s7 = scalar_select 0, %s6, %s4
  loop: start=0, step=1, limit=4
  $region2: #{transformer_forward.29} parent=0 // loop_pre_header
    _
  $region3: #{transformer_forward.29} parent=0 // loop_header
    %s9 = sphi 0, %s13
    %p10 = scmp.ge.s32.totalorder %s9, 4
    %s16 = sphi 0, %s35
    %s17 = sphi 0, %s31
    %s18 = sphi 0, %s27
    %s19 = sphi 0, %s16
    %s20 = sphi 0, %s17
    %s21 = sphi 0, %s18
    %s22 = sphi 0, %s19
    %s23 = sphi 0, %s20
    %s24 = sphi 0, %s21
    %s40 = sphi 0, %s42
    %s43 = sphi 0, %s40
    %s44 = sphi 0, %s43
    %s60 = sphi 0, %s44
    %s68 = sphi 0, %s70
    %s71 = sphi 0, %s68
    %s72 = sphi 0, %s71
    %s88 = sphi 0, %s72
    %s94 = sphi 0, %s96
    %s97 = sphi 0, %s94
    %s98 = sphi 0, %s97
    %s114 = sphi 0, %s98
    %s122 = sphi 0, %s124
    %s125 = sphi 0, %s122
    %s126 = sphi 0, %s125
    %s142 = sphi 0, %s126
  $region4: #{transformer_forward.29} parent=0 // loop_header_branch
    %12 = sbr.rel (%p10) target = $region8
  $region5: #{transformer_forward.29} parent=0 // loop_body
    %s14 = ssub.s32 %s9, 1
    %s15 = ssub.s32 %s9, 2
    %s25 = sadd.s32 1, %s18
    %p26 = scmp.ge.s32.totalorder %s25, 1
    %s27 = scalar_select %p26, 0, %s25
    %s28 = sadd.s32 1, %s17
    %s29 = scalar_select %p26, %s28, %s17
    %p30 = scmp.ge.s32.totalorder %s29, 1
    %s31 = scalar_select %p30, 0, %s29
    %s32 = sadd.s32 1, %s16
    %s33 = scalar_select %p30, %s32, %s16
    %p34 = scmp.ge.s32.totalorder %s33, 2
    %s35 = scalar_select %p34, 0, %s33
    %s36 = ssub.s32 %s16, %s35
    %s37 = ssub.s32 %s18, %s27
    %s38 = sor.u32 %s36, %s37
    %p39 = scmp.eq.s32.totalorder %s38, 0
    %s41 = sadd.s32 %s40, 1
    %s42 = scalar_select %p39, %s40, %s41
    %p45 = pneg %p39
    %p46 = scmp.eq.s32.totalorder %s9, 1
    %p47 = por %p45, %p46
    %p48 = scmp.ne.s32.totalorder %s40, %s43
    %p49 = scmp.eq.s32.totalorder %s9, 0
    %p50 = por %p48, %p49
    %p51 = scmp.ne.s32.totalorder %s40, %s43
    %p52 = scmp.eq.s32.totalorder %s14, 1
    %p53 = por %p51, %p52
    %p54 = scmp.ne.s32.totalorder %s43, %s44
    %p55 = scmp.eq.s32.totalorder %s14, 0
    %p56 = por %p54, %p55
    %p57 = scmp.ne.s32.totalorder %s43, %s44
    %p58 = scmp.eq.s32.totalorder %s15, 1
    %p59 = por %p57, %p58
    %p61 = scmp.ne.s32.totalorder %s44, %s60
    %p62 = scmp.eq.s32.totalorder %s15, 0
    %p63 = por %p61, %p62
    %s64 = ssub.s32 %s18, %s27
    %s65 = ssub.s32 %s17, %s31
    %s66 = sor.u32 %s64, %s65
    %p67 = scmp.eq.s32.totalorder %s66, 0
    %s69 = sadd.s32 %s68, 1
    %s70 = scalar_select %p67, %s68, %s69
    %p73 = pneg %p67
    %p74 = scmp.eq.s32.totalorder %s9, 1
    %p75 = por %p73, %p74
    %p76 = scmp.ne.s32.totalorder %s68, %s71
    %p77 = scmp.eq.s32.totalorder %s9, 0
    %p78 = por %p76, %p77
    %p79 = scmp.ne.s32.totalorder %s68, %s71
    %p80 = scmp.eq.s32.totalorder %s14, 1
    %p81 = por %p79, %p80
    %p82 = scmp.ne.s32.totalorder %s71, %s72
    %p83 = scmp.eq.s32.totalorder %s14, 0
    %p84 = por %p82, %p83
    %p85 = scmp.ne.s32.totalorder %s71, %s72
    %p86 = scmp.eq.s32.totalorder %s15, 1
    %p87 = por %p85, %p86
    %p89 = scmp.ne.s32.totalorder %s72, %s88
    %p90 = scmp.eq.s32.totalorder %s15, 0
    %p91 = por %p89, %p90
    %s92 = ssub.s32 %s17, %s31
    %p93 = scmp.eq.s32.totalorder %s92, 0
    %s95 = sadd.s32 %s94, 1
    %s96 = scalar_select %p93, %s94, %s95
    %p99 = pneg %p93
    %p100 = scmp.eq.s32.totalorder %s9, 1
    %p101 = por %p99, %p100
    %p102 = scmp.ne.s32.totalorder %s94, %s97
    %p103 = scmp.eq.s32.totalorder %s9, 0
    %p104 = por %p102, %p103
    %p105 = scmp.ne.s32.totalorder %s94, %s97
    %p106 = scmp.eq.s32.totalorder %s14, 1
    %p107 = por %p105, %p106
    %p108 = scmp.ne.s32.totalorder %s97, %s98
    %p109 = scmp.eq.s32.totalorder %s14, 0
    %p110 = por %p108, %p109
    %p111 = scmp.ne.s32.totalorder %s97, %s98
    %p112 = scmp.eq.s32.totalorder %s15, 1
    %p113 = por %p111, %p112
    %p115 = scmp.ne.s32.totalorder %s98, %s114
    %p116 = scmp.eq.s32.totalorder %s15, 0
    %p117 = por %p115, %p116
    %s118 = ssub.s32 %s16, %s35
    %s119 = ssub.s32 %s17, %s31
    %s120 = sor.u32 %s118, %s119
    %p121 = scmp.eq.s32.totalorder %s120, 0
    %s123 = sadd.s32 %s122, 1
    %s124 = scalar_select %p121, %s122, %s123
    %p127 = pneg %p121
    %p128 = scmp.eq.s32.totalorder %s9, 1
    %p129 = por %p127, %p128
    %p130 = scmp.ne.s32.totalorder %s122, %s125
    %p131 = scmp.eq.s32.totalorder %s9, 0
    %p132 = por %p130, %p131
    %p133 = scmp.ne.s32.totalorder %s122, %s125
    %p134 = scmp.eq.s32.totalorder %s14, 1
    %p135 = por %p133, %p134
    %p136 = scmp.ne.s32.totalorder %s125, %s126
    %p137 = scmp.eq.s32.totalorder %s14, 0
    %p138 = por %p136, %p137
    %p139 = scmp.ne.s32.totalorder %s125, %s126
    %p140 = scmp.eq.s32.totalorder %s15, 1
    %p141 = por %p139, %p140
    %p143 = scmp.ne.s32.totalorder %s126, %s142
    %p144 = scmp.eq.s32.totalorder %s15, 0
    %p145 = por %p143, %p144
    %p146 = scmp.le.s32.totalorder 1, %s9
    %p147 = scmp.lt.s32.totalorder %s9, 3
    %p148 = pnand %p146, %p147
    %p149 = pneg %p148
    // Predicated region
    $region9: #{transformer_forward.29} parent=5 // pred_check
      _
    $region10: #{transformer_forward.29} parent=5 // pred_check_branch
      %151 = sbr.rel (%p148) target = $region12
    $region11: #{transformer_forward.29} parent=5 // pred_region
      %s152 = ssub.s32 %s9, 1
      // Predicated region
      $region13: #{transformer_forward.29} parent=11 // pred_check
        %p153 = pneg %p84
      $region14: #{transformer_forward.29} parent=11 // pred_check_branch
        %155 = sbr.rel (%p153) target = $region16
      $region15: #{transformer_forward.29} parent=11 // pred_region
        %s156 = smul.u32 16, %s21
        %s157 = smul.u32 3, %s20
        %p158 = scmp.lt.s32.totalorder %s156, 15
        %s159 = scalar_select %p158, %s156, 15
        %p160 = scmp.lt.s32.totalorder %s157, 2
        %s161 = scalar_select %p160, %s157, 2
        %s162 = smul.addr %s159, 3
        %s163 = sadd.s32 %s161, %s162
        %s164 = smul.addr %s163, 4
        %s165 = scalar_lea.vmem %s1, %s164
        %s166 = smul.u32 16, %s21
        %s167 = smul.u32 3, %s20
      $region16: #{transformer_forward.29} parent=11 // pred_fallthru
        _
      // Predicated region
      $region17: #{transformer_forward.29} parent=11 // pred_check
        %p168 = pneg %p110
      $region18: #{transformer_forward.29} parent=11 // pred_check_branch
        %170 = sbr.rel (%p168) target = $region20
      $region19: #{transformer_forward.29} parent=11 // pred_region
        %s171 = smul.u32 3, %s20
        %p172 = scmp.lt.s32.totalorder %s171, 2
        %s173 = scalar_select %p172, %s171, 2
        %s174 = scalar_lea.vmem %s2, %s173
        %s175 = smul.u32 3, %s20
      $region20: #{transformer_forward.29} parent=11 // pred_fallthru
        _
    $region12: #{transformer_forward.29} parent=5 // pred_fallthru
      _
    %p176 = scmp.lt.s32.totalorder %s9, 2
    // Predicated region
    $region21: #{transformer_forward.29} parent=5 // pred_check
      %p177 = pneg %p176
    $region22: #{transformer_forward.29} parent=5 // pred_check_branch
      %179 = sbr.rel (%p177) target = $region24
    $region23: #{transformer_forward.29} parent=5 // pred_region
      // Predicated region
      $region25: #{transformer_forward.29} parent=23 // pred_check
        %p180 = pneg %p50
      $region26: #{transformer_forward.29} parent=23 // pred_check_branch
        %182 = sbr.rel (%p180) target = $region28
      $region27: #{transformer_forward.29} parent=23 // pred_region
        %s183 = smul.u32 2, %s16
        %p184 = scmp.lt.s32.totalorder %s183, 3
        %s185 = scalar_select %p184, %s183, 3
        %p186 = scmp.lt.s32.totalorder %s18, 0
        %s187 = scalar_select %p186, %s18, 0
        %s188 = sadd.s32 %s187, %s185
        %s189 = smul.addr %s188, 4
        %s190 = scalar_lea.vmem %s0, %s189
        %s191 = smul.u32 2, %s16
      $region28: #{transformer_forward.29} parent=23 // pred_fallthru
        _
    $region24: #{transformer_forward.29} parent=5 // pred_fallthru
      _
    %p192 = scmp.le.s32.totalorder 1, %s9
    %p193 = scmp.lt.s32.totalorder %s9, 3
    %p194 = pnand %p192, %p193
    %p195 = pneg %p194
    // Predicated region
    $region29: #{transformer_forward.29} parent=5 // pred_check
      _
    $region30: #{transformer_forward.29} parent=5 // pred_check_branch
      %197 = sbr.rel (%p194) target = $region32
    $region31: #{transformer_forward.29} parent=5 // pred_region
      %s198 = ssub.s32 %s9, 1
      %s199 = smul.u32 2, %s19
      %p200 = scmp.lt.s32.totalorder %s199, 3
      %s201 = scalar_select %p200, %s199, 3
      %p202 = scmp.lt.s32.totalorder %s21, 0
      %s203 = scalar_select %p202, %s21, 0
      %s204 = sadd.s32 %s203, %s201
      %s205 = smul.addr %s204, 4
      %s206 = scalar_lea.vmem %s0, %s205
      %p207 = pneg %p56
      %p208 = pneg %p53
      %s209 = smul.u32 16, %s21
      %s210 = smul.u32 3, %s20
      %p211 = scmp.lt.s32.totalorder %s209, 15
      %s212 = scalar_select %p211, %s209, 15
      %p213 = scmp.lt.s32.totalorder %s210, 2
      %s214 = scalar_select %p213, %s210, 2
      %s215 = smul.addr %s212, 3
      %s216 = sadd.s32 %s214, %s215
      %s217 = smul.addr %s216, 4
      %s218 = scalar_lea.vmem %s1, %s217
      %p219 = pneg %p84
      %p220 = pneg %p81
      %s221 = smul.u32 3, %s20
      %p222 = scmp.lt.s32.totalorder %s221, 2
      %s223 = scalar_select %p222, %s221, 2
      %s224 = scalar_lea.vmem %s2, %s223
      %p225 = pneg %p110
      %p226 = pneg %p107
      %p227 = pneg %p138
      %p228 = pneg %p135
      %s229 = smul.u32 2, %s19
      %s230 = smul.u32 3, %s20
      %p231 = scmp.lt.s32.totalorder %s229, 3
      %s232 = scalar_select %p231, %s229, 3
      %p233 = scmp.lt.s32.totalorder %s230, 2
      %s234 = scalar_select %p233, %s230, 2
      %s235 = smul.addr %s232, 3
      %s236 = sadd.s32 %s234, %s235
      %s237 = smul.addr %s236, 4
      %s238 = scalar_lea.vmem %s3, %s237
      %s239 = smul.u32 2, %s19
      %p240 = scmp.lt.s32.totalorder %s239, 3
      %s241 = scalar_select %p240, %s239, 3
      %p242 = scmp.lt.s32.totalorder %s21, 0
      %s243 = scalar_select %p242, %s21, 0
      %s244 = sadd.s32 %s243, %s241
      %s245 = smul.addr %s244, 4
      %s246 = scalar_lea.vmem %s0, %s245
      %s247 = smul.u32 2, %s19
      %s248 = smul.u32 16, %s21
      %s249 = smul.u32 3, %s20
      %p250 = scmp.lt.s32.totalorder %s248, 15
      %s251 = scalar_select %p250, %s248, 15
      %p252 = scmp.lt.s32.totalorder %s249, 2
      %s253 = scalar_select %p252, %s249, 2
      %s254 = smul.addr %s251, 3
      %s255 = sadd.s32 %s253, %s254
      %s256 = smul.addr %s255, 4
      %s257 = scalar_lea.vmem %s1, %s256
      %s258 = smul.u32 16, %s21
      %s259 = smul.u32 3, %s20
      %s260 = smul.u32 3, %s20
      %p261 = scmp.lt.s32.totalorder %s260, 2
      %s262 = scalar_select %p261, %s260, 2
      %s263 = scalar_lea.vmem %s2, %s262
      %s264 = smul.u32 3, %s20
      %s265 = smul.u32 2, %s19
      %s266 = smul.u32 3, %s20
      %p267 = scmp.lt.s32.totalorder %s265, 3
      %s268 = scalar_select %p267, %s265, 3
      %p269 = scmp.lt.s32.totalorder %s266, 2
      %s270 = scalar_select %p269, %s266, 2
      %s271 = smul.addr %s268, 3
      %s272 = sadd.s32 %s270, %s271
      %s273 = smul.addr %s272, 4
      %s274 = scalar_lea.vmem %s3, %s273
      %s275 = smul.u32 2, %s19
      %s276 = smul.u32 3, %s20
      %v278 = vld [vmem:[%s246] sm:$0xf]
      %v279 = vld [vmem:[%s246 + $0x4] sm:$0xf]
      %v280 = vld [vmem:[%s257] sm:$0xff]
      %v281 = vld [vmem:[%s257 + $0x8] sm:$0xf]
      %v282 = vld [vmem:[%s257 + $0xc] sm:$0xff]
      %v283 = vld [vmem:[%s257 + $0x14] sm:$0xf]
      %v284 = vld [vmem:[%s257 + $0x18] sm:$0xff]
      %v285 = vld [vmem:[%s257 + $0x20] sm:$0xf]
      %v286 = vld [vmem:[%s257 + $0x24] sm:$0xff]
      %v287 = vld [vmem:[%s257 + $0x2c] sm:$0xf]
      %v288 = vld [vmem:[%s257 + $0x30] sm:$0xff]
      %v289 = vld [vmem:[%s257 + $0x38] sm:$0xf]
      %v290 = vld [vmem:[%s257 + $0x3c] sm:$0xff]
      %v291 = vld [vmem:[%s257 + $0x44] sm:$0xf]
      %v292 = vld [vmem:[%s257 + $0x48] sm:$0xff]
      %v293 = vld [vmem:[%s257 + $0x50] sm:$0xf]
      %v294 = vld [vmem:[%s257 + $0x54] sm:$0xff]
      %v295 = vld [vmem:[%s257 + $0x5c] sm:$0xf]
      %v296 = vld [vmem:[%s257 + $0x60] sm:$0xff]
      %v297 = vld [vmem:[%s257 + $0x68] sm:$0xf]
      %v298 = vld [vmem:[%s257 + $0x6c] sm:$0xff]
      %v299 = vld [vmem:[%s257 + $0x74] sm:$0xf]
      %v300 = vld [vmem:[%s257 + $0x78] sm:$0xff]
      %v301 = vld [vmem:[%s257 + $0x80] sm:$0xf]
      %v302 = vld [vmem:[%s257 + $0x84] sm:$0xff]
      %v303 = vld [vmem:[%s257 + $0x8c] sm:$0xf]
      %v304 = vld [vmem:[%s257 + $0x90] sm:$0xff]
      %v305 = vld [vmem:[%s257 + $0x98] sm:$0xf]
      %v306 = vld [vmem:[%s257 + $0x9c] sm:$0xff]
      %v307 = vld [vmem:[%s257 + $0xa4] sm:$0xf]
      %v308 = vld [vmem:[%s257 + $0xa8] sm:$0xff]
      %v309 = vld [vmem:[%s257 + $0xb0] sm:$0xf]
      %v310 = vld [vmem:[%s257 + $0xb4] sm:$0xff]
      %v311 = vld [vmem:[%s257 + $0xbc] sm:$0xf]
      %v314 = vunpack.c.l.b16 %v278
      %v315 = vunpack.c.l.b16 %v279
      %v316 = vpack.c.b16 %v315, %v314
      %v350 = vunpack.c.l.b16 %v280
      %v351 = vunpack.c.h.b16 %v280
      %v352 = vunpack.c.l.b16 %v281
      %v353 = vunpack.c.l.b16 %v282
      %v354 = vunpack.c.h.b16 %v282
      %v355 = vunpack.c.l.b16 %v283
      %v356 = vunpack.c.l.b16 %v284
      %v357 = vunpack.c.h.b16 %v284
      %v358 = vunpack.c.l.b16 %v285
      %v359 = vunpack.c.l.b16 %v286
      %v360 = vunpack.c.h.b16 %v286
      %v361 = vunpack.c.l.b16 %v287
      %v362 = vunpack.c.l.b16 %v288
      %v363 = vunpack.c.h.b16 %v288
      %v364 = vunpack.c.l.b16 %v289
      %v365 = vunpack.c.l.b16 %v290
      %v366 = vunpack.c.h.b16 %v290
      %v367 = vunpack.c.l.b16 %v291
      %v368 = vunpack.c.l.b16 %v292
      %v369 = vunpack.c.h.b16 %v292
      %v370 = vunpack.c.l.b16 %v293
      %v371 = vunpack.c.l.b16 %v294
      %v372 = vunpack.c.h.b16 %v294
      %v373 = vunpack.c.l.b16 %v295
      %v374 = vunpack.c.l.b16 %v296
      %v375 = vunpack.c.h.b16 %v296
      %v376 = vunpack.c.l.b16 %v297
      %v377 = vunpack.c.l.b16 %v298
      %v378 = vunpack.c.h.b16 %v298
      %v379 = vunpack.c.l.b16 %v299
      %v380 = vunpack.c.l.b16 %v300
      %v381 = vunpack.c.h.b16 %v300
      %v382 = vunpack.c.l.b16 %v301
      %v383 = vunpack.c.l.b16 %v302
      %v384 = vunpack.c.h.b16 %v302
      %v385 = vunpack.c.l.b16 %v303
      %v386 = vunpack.c.l.b16 %v304
      %v387 = vunpack.c.h.b16 %v304
      %v388 = vunpack.c.l.b16 %v305
      %v389 = vunpack.c.l.b16 %v306
      %v390 = vunpack.c.h.b16 %v306
      %v391 = vunpack.c.l.b16 %v307
      %v392 = vunpack.c.l.b16 %v308
      %v393 = vunpack.c.h.b16 %v308
      %v394 = vunpack.c.l.b16 %v309
      %v395 = vunpack.c.l.b16 %v310
      %v396 = vunpack.c.h.b16 %v310
      %v397 = vunpack.c.l.b16 %v311
      %v398 = vpack.c.b16 %v353, %v350
      %v399 = vpack.c.b16 %v354, %v351
      %v400 = vpack.c.b16 %v355, %v352
      %v401 = vpack.c.b16 %v359, %v356
      %v402 = vpack.c.b16 %v360, %v357
      %v403 = vpack.c.b16 %v361, %v358
      %v404 = vpack.c.b16 %v365, %v362
      %v405 = vpack.c.b16 %v366, %v363
      %v406 = vpack.c.b16 %v367, %v364
      %v407 = vpack.c.b16 %v371, %v368
      %v408 = vpack.c.b16 %v372, %v369
      %v409 = vpack.c.b16 %v373, %v370
      %v410 = vpack.c.b16 %v377, %v374
      %v411 = vpack.c.b16 %v378, %v375
      %v412 = vpack.c.b16 %v379, %v376
      %v413 = vpack.c.b16 %v383, %v380
      %v414 = vpack.c.b16 %v384, %v381
      %v415 = vpack.c.b16 %v385, %v382
      %v416 = vpack.c.b16 %v389, %v386
      %v417 = vpack.c.b16 %v390, %v387
      %v418 = vpack.c.b16 %v391, %v388
      %v419 = vpack.c.b16 %v395, %v392
      %v420 = vpack.c.b16 %v396, %v393
      %v421 = vpack.c.b16 %v397, %v394
      %446 = vmatprep.subr.bf16.mxu0 %v420
      %447 = vmatpush1.bf16.msra.mxu0 %v419
      %448 = vmatprep.subr.bf16.mxu0 %v417
      %449 = vmatpush1.bf16.msra.mxu0 %v416
      %450 = vmatprep.subr.bf16.mxu0 %v414
      %451 = vmatpush1.bf16.msra.mxu0 %v413
      %452 = vmatprep.subr.bf16.mxu0 %v411
      %453 = vmatpush1.bf16.msra.mxu0 %v410
      %454 = vmatprep.subr.bf16.mxu0 %v408
      %455 = vmatpush1.bf16.msra.mxu0 %v407
      %456 = vmatprep.subr.bf16.mxu0 %v405
      %457 = vmatpush1.bf16.msra.mxu0 %v404
      %458 = vmatprep.subr.bf16.mxu0 %v402
      %459 = vmatpush1.bf16.msra.mxu0 %v401
      %460 = vmatprep.subr.bf16.mxu0 %v399
      %461 = vmatpush1.bf16.msra.mxu0 %v398
      %462 = vmatprep.subr.bf16.mxu0 0
      %463 = vmatpush2.bf16.msra.mxu0 0
      %464 = vmatprep.subr.bf16.mxu0 0
      %465 = vmatpush2.bf16.msra.mxu0 0
      %466 = vmatprep.subr.bf16.mxu0 0
      %467 = vmatpush2.bf16.msra.mxu0 0
      %468 = vmatprep.subr.bf16.mxu0 0
      %469 = vmatpush2.bf16.msra.mxu0 0
      %470 = vmatprep.subr.bf16.mxu0 0
      %471 = vmatpush2.bf16.msra.mxu0 0
      %472 = vmatprep.subr.bf16.mxu0 0
      %473 = vmatpush2.bf16.msra.mxu0 0
      %474 = vmatprep.subr.bf16.mxu0 0
      %475 = vmatpush2.bf16.msra.mxu0 0
      %476 = vmatprep.subr.bf16.mxu0 0
      %477 = vmatpush2.bf16.msra.mxu0 0
      %478 = vmatprep.mubr.bf16.mxu0 0
      %479 = vmatmul.mubr.bf16.gmra.mxu0 %v316
      %v480 = vpop.f32.mrf.mxu0
      %v481 = vadd.f32 0.0, %v480
      %v482 = vpop.f32.mrf.mxu0
      %v483 = vadd.f32 0.0, %v482
      %v484 = vpop.f32.mrf.mxu0
      %v485 = vadd.f32 0.0, %v484
      %v486 = vpop.f32.mrf.mxu0
      %v487 = vadd.f32 0.0, %v486
      %488 = vdwg.mxu0
      %489 = vmatprep.subr.bf16.mxu0 0
      %490 = vmatpush1.bf16.msra.mxu0 %v421
      %491 = vmatprep.subr.bf16.mxu0 0
      %492 = vmatpush1.bf16.msra.mxu0 %v418
      %493 = vmatprep.subr.bf16.mxu0 0
      %494 = vmatpush1.bf16.msra.mxu0 %v415
      %495 = vmatprep.subr.bf16.mxu0 0
      %496 = vmatpush1.bf16.msra.mxu0 %v412
      %497 = vmatprep.subr.bf16.mxu0 0
      %498 = vmatpush1.bf16.msra.mxu0 %v409
      %499 = vmatprep.subr.bf16.mxu0 0
      %500 = vmatpush1.bf16.msra.mxu0 %v406
      %501 = vmatprep.subr.bf16.mxu0 0
      %502 = vmatpush1.bf16.msra.mxu0 %v403
      %503 = vmatprep.subr.bf16.mxu0 0
      %504 = vmatpush1.bf16.msra.mxu0 %v400
      %505 = vmatprep.subr.bf16.mxu0 0
      %506 = vmatpush2.bf16.msra.mxu0 0
      %507 = vmatprep.subr.bf16.mxu0 0
      %508 = vmatpush2.bf16.msra.mxu0 0
      %509 = vmatprep.subr.bf16.mxu0 0
      %510 = vmatpush2.bf16.msra.mxu0 0
      %511 = vmatprep.subr.bf16.mxu0 0
      %512 = vmatpush2.bf16.msra.mxu0 0
      %513 = vmatprep.subr.bf16.mxu0 0
      %514 = vmatpush2.bf16.msra.mxu0 0
      %515 = vmatprep.subr.bf16.mxu0 0
      %516 = vmatpush2.bf16.msra.mxu0 0
      %517 = vmatprep.subr.bf16.mxu0 0
      %518 = vmatpush2.bf16.msra.mxu0 0
      %519 = vmatprep.subr.bf16.mxu0 0
      %520 = vmatpush2.bf16.msra.mxu0 0
      %521 = vmatprep.mubr.bf16.mxu0 0
      %522 = vmatmul.mubr.bf16.gmra.mxu0 %v316
      %v523 = vpop.f32.mrf.mxu0
      %v524 = vadd.f32 0.0, %v523
      %v525 = vpop.f32.mrf.mxu0
      %v526 = vpop.f32.mrf.mxu0
      %v527 = vadd.f32 0.0, %v526
      %v528 = vpop.f32.mrf.mxu0
      %529 = vdwg.mxu0
      %p530 = scmp.eq.s32.totalorder %s21, 0
      // Predicated region
      $region33: #{transformer_forward.29} parent=31 // pred_check
        %p531 = pneg %p530
      $region34: #{transformer_forward.29} parent=31 // pred_check_branch
        %533 = sbr.rel (%p531) target = $region36
      $region35: #{transformer_forward.29} parent=31 // pred_region
        %534 = vst [vmem:[#allocation2] sm:$0xff] %v481
        %535 = vst [vmem:[#allocation2 + $0x8] sm:$0xff] %v483
        %536 = vst [vmem:[#allocation2 + $0x10] sm:$0xff] %v524
        %537 = vst [vmem:[#allocation2 + $0x18] sm:$0xff] %v485
        %538 = vst [vmem:[#allocation2 + $0x20] sm:$0xff] %v487
        %539 = vst [vmem:[#allocation2 + $0x28] sm:$0xff] %v527
      $region36: #{transformer_forward.29} parent=31 // pred_fallthru
        _
      %p540 = scmp.gt.s32.totalorder %s21, 0
      // Predicated region
      $region37: #{transformer_forward.29} parent=31 // pred_check
        %p541 = pneg %p540
      $region38: #{transformer_forward.29} parent=31 // pred_check_branch
        %543 = sbr.rel (%p541) target = $region40
      $region39: #{transformer_forward.29} parent=31 // pred_region
        %v544 = vld [vmem:[#allocation2] sm:$0xff]
        %v545 = vld [vmem:[#allocation2 + $0x8] sm:$0xff]
        %v546 = vld [vmem:[#allocation2 + $0x10] sm:$0xff]
        %v547 = vld [vmem:[#allocation2 + $0x18] sm:$0xff]
        %v548 = vld [vmem:[#allocation2 + $0x20] sm:$0xff]
        %v549 = vld [vmem:[#allocation2 + $0x28] sm:$0xff]
        %v550 = vadd.f32 %v544, %v481
        %v551 = vadd.f32 %v545, %v483
        %v552 = vadd.f32 %v546, %v524
        %v553 = vadd.f32 %v547, %v485
        %v554 = vadd.f32 %v548, %v487
        %v555 = vadd.f32 %v549, %v527
        %556 = vst [vmem:[#allocation2] sm:$0xff] %v550
        %557 = vst [vmem:[#allocation2 + $0x8] sm:$0xff] %v551
        %558 = vst [vmem:[#allocation2 + $0x10] sm:$0xff] %v552
        %559 = vst [vmem:[#allocation2 + $0x18] sm:$0xff] %v553
        %560 = vst [vmem:[#allocation2 + $0x20] sm:$0xff] %v554
        %561 = vst [vmem:[#allocation2 + $0x28] sm:$0xff] %v555
      $region40: #{transformer_forward.29} parent=31 // pred_fallthru
        _
      // Predicated region
      $region41: #{transformer_forward.29} parent=31 // pred_check
        %p562 = pneg %p530
      $region42: #{transformer_forward.29} parent=31 // pred_check_branch
        %564 = sbr.rel (%p562) target = $region44
      $region43: #{transformer_forward.29} parent=31 // pred_region
        %v565 = vld [vmem:[#allocation2] sm:$0xff]
        %v566 = vld [vmem:[#allocation2 + $0x8] sm:$0xff]
        %v567 = vld [vmem:[#allocation2 + $0x10] sm:$0xff]
        %v568 = vld [vmem:[#allocation2 + $0x18] sm:$0xff]
        %v569 = vld [vmem:[#allocation2 + $0x20] sm:$0xff]
        %v570 = vld [vmem:[#allocation2 + $0x28] sm:$0xff]
        %v571 = vld [vmem:[%s263] sm:$0x7]
        %v573 = vlaneseq
        %v574 = vshrl.u32 %v573, 7
        %v575 = vsub.s32 0, %v574
        %v576 = vrot.slane %v571, %v575
        %v577 = vlaneseq
        %v578 = vshrl.u32 %v577, 7
        %v579 = vsub.s32 1, %v578
        %v580 = vrot.slane %v571, %v579
        %v581 = vlaneseq
        %v582 = vshrl.u32 %v581, 7
        %v583 = vsub.s32 2, %v582
        %v584 = vrot.slane %v571, %v583
        %v588 = vadd.f32 %v565, %v576
        %v589 = vadd.f32 %v566, %v580
        %v590 = vadd.f32 %v567, %v584
        %v591 = vadd.f32 %v568, %v576
        %v592 = vadd.f32 %v569, %v580
        %v593 = vadd.f32 %v570, %v584
        %v594 = vpack.c.bf16 %v591, %v588
        %v595 = vpack.c.bf16 %v592, %v589
        %v596 = vpack.c.bf16 %v593, %v590
        %v600 = vunpack.c.l.b16 %v594
        %v601 = vunpack.c.l.b16 %v595
        %v602 = vunpack.c.l.b16 %v596
        %v603 = vunpack.c.h.b16 %v594
        %v604 = vunpack.c.h.b16 %v595
        %v605 = vunpack.c.h.b16 %v596
        %v606 = vpack.c.b16 %v601, %v600
        %v607 = vpack.c.b16 %v602, %v602
        %v608 = vpack.c.b16 %v604, %v603
        %v609 = vpack.c.b16 %v605, %v605
        %614 = vst [vmem:[%s274] sm:$0xff] %v606
        %615 = vst [vmem:[%s274 + $0x8] sm:$0xf] %v607
        %616 = vst [vmem:[%s274 + $0xc] sm:$0xff] %v608
        %617 = vst [vmem:[%s274 + $0x14] sm:$0xf] %v609
      $region44: #{transformer_forward.29} parent=31 // pred_fallthru
        _
      %s618 = smul.u32 2, %s19
      %s619 = smul.u32 3, %s20
      %p620 = scmp.lt.s32.totalorder %s618, 3
      %s621 = scalar_select %p620, %s618, 3
      %p622 = scmp.lt.s32.totalorder %s619, 2
      %s623 = scalar_select %p622, %s619, 2
      %s624 = smul.addr %s621, 3
      %s625 = sadd.s32 %s623, %s624
      %s626 = smul.addr %s625, 4
      %s627 = scalar_lea.vmem %s3, %s626
      // Predicated region
      $region45: #{transformer_forward.29} parent=31 // pred_check
        %p628 = pneg %p135
      $region46: #{transformer_forward.29} parent=31 // pred_check_branch
        %630 = sbr.rel (%p628) target = $region48
      $region47: #{transformer_forward.29} parent=31 // pred_region
        %s631 = smul.u32 2, %s19
        %s632 = smul.u32 3, %s20
      $region48: #{transformer_forward.29} parent=31 // pred_fallthru
        _
    $region32: #{transformer_forward.29} parent=5 // pred_fallthru
      _
    %p633 = scmp.le.s32.totalorder 2, %s9
    // Predicated region
    $region49: #{transformer_forward.29} parent=5 // pred_check
      %p634 = pneg %p633
    $region50: #{transformer_forward.29} parent=5 // pred_check_branch
      %636 = sbr.rel (%p634) target = $region52
    $region51: #{transformer_forward.29} parent=5 // pred_region
      %s637 = ssub.s32 %s9, 2
      // Predicated region
      $region53: #{transformer_forward.29} parent=51 // pred_check
        %p638 = pneg %p141
      $region54: #{transformer_forward.29} parent=51 // pred_check_branch
        %640 = sbr.rel (%p638) target = $region56
      $region55: #{transformer_forward.29} parent=51 // pred_region
        %s641 = smul.u32 2, %s22
        %s642 = smul.u32 3, %s23
        %p643 = scmp.lt.s32.totalorder %s641, 3
        %s644 = scalar_select %p643, %s641, 3
        %p645 = scmp.lt.s32.totalorder %s642, 2
        %s646 = scalar_select %p645, %s642, 2
        %s647 = smul.addr %s644, 3
        %s648 = sadd.s32 %s646, %s647
        %s649 = smul.addr %s648, 4
        %s650 = scalar_lea.vmem %s3, %s649
      $region56: #{transformer_forward.29} parent=51 // pred_fallthru
        _
    $region52: #{transformer_forward.29} parent=5 // pred_fallthru
      _
  $region6: #{transformer_forward.29} parent=0 // loop_footer
    %s13 = sadd.s32 1, %s9
  $region7: #{transformer_forward.29} parent=0 // loop_footer_branch
    %8 = sbr.rel target = $region3
  $region8: #{transformer_forward.29} parent=0 // loop_exit
    _

// kernel: transformer_forward.30
$region0: #{transformer_forward.30}
  #allocation0 [shape = 'u32[]', space=smem, size = 0x4, offset = 0x4, fixed_abs, tag = 'smem constant byte address 0x4 - core index']
  #allocation1 [shape = 'u32[144,128]{1,0:T(1,128)}', space=vmem, size = 0x12000, scoped, tag = 'internal scratch']
  %s0 = inlined_call_operand.vmem [shape: bf16[32,384], index: 0, kind: input, shape index: {}, may-alias: {0,1,2}]
  %s1 = inlined_call_operand.vmem [shape: bf16[32,384], index: 1, kind: input, shape index: {}, may-alias: {0,1,2}]
  %s2 = inlined_call_operand.vmem [shape: bf16[32,384], index: 2, kind: input, shape index: {}, may-alias: {0,1,2}]
  %s3 = inlined_call_operand.vmem [shape: bf16[32,128], index: 3, kind: output, shape index: {}]
  %s4 = sld [smem:[#allocation0]]
  $region168: #{transformer_forward.30} parent=0
    _
  %s6 = ssub.s32 1, %s4
  %s7 = scalar_select 0, %s6, %s4
  $region1: #{transformer_forward.30} parent=0
    #allocation2 [shape = 'u8[8192]{0}', space=vmem, size = 0x2000, scoped, tag = 'input window, operand 0']
    #allocation3 [shape = 'u8[8192]{0}', space=vmem, size = 0x2000, scoped, tag = 'input window, operand 1']
    #allocation4 [shape = 'u8[8192]{0}', space=vmem, size = 0x2000, scoped, tag = 'input window, operand 2']
    loop: start=0, step=1, limit=4
    $region2: #{transformer_forward.30} parent=1 // loop_pre_header
      _
    $region3: #{transformer_forward.30} parent=1 // loop_header
      %s9 = sphi 0, %s13
      %p10 = scmp.ge.s32.totalorder %s9, 4
      %s19 = sphi 0, %s21
      %s22 = sphi 0, %s19
      %s23 = sphi 0, %s22
      %s39 = sphi 0, %s23
      %s45 = sphi 0, %s47
      %s48 = sphi 0, %s45
      %s49 = sphi 0, %s48
      %s65 = sphi 0, %s49
      %s71 = sphi 0, %s73
      %s74 = sphi 0, %s71
      %s75 = sphi 0, %s74
      %s91 = sphi 0, %s75
      %s97 = sphi 0, %s99
      %s100 = sphi 0, %s97
      %s101 = sphi 0, %s100
      %s117 = sphi 0, %s101
    $region4: #{transformer_forward.30} parent=1 // loop_header_branch
      %12 = sbr.rel (%p10) target = $region8
    $region5: #{transformer_forward.30} parent=1 // loop_body
      %s14 = ssub.s32 %s9, 1
      %s15 = ssub.s32 %s9, 2
      %s16 = sadd.s32 %s9, 1
      %s17 = ssub.s32 %s9, %s16
      %p18 = scmp.eq.s32.totalorder %s17, 0
      %s20 = sadd.s32 %s19, 1
      %s21 = scalar_select %p18, %s19, %s20
      %p24 = pneg %p18
      %p25 = scmp.eq.s32.totalorder %s9, 1
      %p26 = por %p24, %p25
      %p27 = scmp.ne.s32.totalorder %s19, %s22
      %p28 = scmp.eq.s32.totalorder %s9, 0
      %p29 = por %p27, %p28
      %p30 = scmp.ne.s32.totalorder %s19, %s22
      %p31 = scmp.eq.s32.totalorder %s14, 1
      %p32 = por %p30, %p31
      %p33 = scmp.ne.s32.totalorder %s22, %s23
      %p34 = scmp.eq.s32.totalorder %s14, 0
      %p35 = por %p33, %p34
      %p36 = scmp.ne.s32.totalorder %s22, %s23
      %p37 = scmp.eq.s32.totalorder %s15, 1
      %p38 = por %p36, %p37
      %p40 = scmp.ne.s32.totalorder %s23, %s39
      %p41 = scmp.eq.s32.totalorder %s15, 0
      %p42 = por %p40, %p41
      %s43 = ssub.s32 %s9, %s16
      %p44 = scmp.eq.s32.totalorder %s43, 0
      %s46 = sadd.s32 %s45, 1
      %s47 = scalar_select %p44, %s45, %s46
      %p50 = pneg %p44
      %p51 = scmp.eq.s32.totalorder %s9, 1
      %p52 = por %p50, %p51
      %p53 = scmp.ne.s32.totalorder %s45, %s48
      %p54 = scmp.eq.s32.totalorder %s9, 0
      %p55 = por %p53, %p54
      %p56 = scmp.ne.s32.totalorder %s45, %s48
      %p57 = scmp.eq.s32.totalorder %s14, 1
      %p58 = por %p56, %p57
      %p59 = scmp.ne.s32.totalorder %s48, %s49
      %p60 = scmp.eq.s32.totalorder %s14, 0
      %p61 = por %p59, %p60
      %p62 = scmp.ne.s32.totalorder %s48, %s49
      %p63 = scmp.eq.s32.totalorder %s15, 1
      %p64 = por %p62, %p63
      %p66 = scmp.ne.s32.totalorder %s49, %s65
      %p67 = scmp.eq.s32.totalorder %s15, 0
      %p68 = por %p66, %p67
      %s69 = ssub.s32 %s9, %s16
      %p70 = scmp.eq.s32.totalorder %s69, 0
      %s72 = sadd.s32 %s71, 1
      %s73 = scalar_select %p70, %s71, %s72
      %p76 = pneg %p70
      %p77 = scmp.eq.s32.totalorder %s9, 1
      %p78 = por %p76, %p77
      %p79 = scmp.ne.s32.totalorder %s71, %s74
      %p80 = scmp.eq.s32.totalorder %s9, 0
      %p81 = por %p79, %p80
      %p82 = scmp.ne.s32.totalorder %s71, %s74
      %p83 = scmp.eq.s32.totalorder %s14, 1
      %p84 = por %p82, %p83
      %p85 = scmp.ne.s32.totalorder %s74, %s75
      %p86 = scmp.eq.s32.totalorder %s14, 0
      %p87 = por %p85, %p86
      %p88 = scmp.ne.s32.totalorder %s74, %s75
      %p89 = scmp.eq.s32.totalorder %s15, 1
      %p90 = por %p88, %p89
      %p92 = scmp.ne.s32.totalorder %s75, %s91
      %p93 = scmp.eq.s32.totalorder %s15, 0
      %p94 = por %p92, %p93
      %s95 = ssub.s32 %s9, %s16
      %p96 = scmp.eq.s32.totalorder %s95, 0
      %s98 = sadd.s32 %s97, 1
      %s99 = scalar_select %p96, %s97, %s98
      %p102 = pneg %p96
      %p103 = scmp.eq.s32.totalorder %s9, 1
      %p104 = por %p102, %p103
      %p105 = scmp.ne.s32.totalorder %s97, %s100
      %p106 = scmp.eq.s32.totalorder %s9, 0
      %p107 = por %p105, %p106
      %p108 = scmp.ne.s32.totalorder %s97, %s100
      %p109 = scmp.eq.s32.totalorder %s14, 1
      %p110 = por %p108, %p109
      %p111 = scmp.ne.s32.totalorder %s100, %s101
      %p112 = scmp.eq.s32.totalorder %s14, 0
      %p113 = por %p111, %p112
      %p114 = scmp.ne.s32.totalorder %s100, %s101
      %p115 = scmp.eq.s32.totalorder %s15, 1
      %p116 = por %p114, %p115
      %p118 = scmp.ne.s32.totalorder %s101, %s117
      %p119 = scmp.eq.s32.totalorder %s15, 0
      %p120 = por %p118, %p119
      %p121 = scmp.le.s32.totalorder 1, %s9
      %p122 = scmp.lt.s32.totalorder %s9, 3
      %p123 = pnand %p121, %p122
      %p124 = pneg %p123
      // Predicated region
      $region9: #{transformer_forward.30} parent=5 // pred_check
        _
      $region10: #{transformer_forward.30} parent=5 // pred_check_branch
        %126 = sbr.rel (%p123) target = $region12
      $region11: #{transformer_forward.30} parent=5 // pred_region
        %s127 = ssub.s32 %s9, 1
      $region12: #{transformer_forward.30} parent=5 // pred_fallthru
        _
      %p128 = scmp.lt.s32.totalorder %s9, 2
      // Predicated region
      $region13: #{transformer_forward.30} parent=5 // pred_check
        %p129 = pneg %p128
      $region14: #{transformer_forward.30} parent=5 // pred_check_branch
        %131 = sbr.rel (%p129) target = $region16
      $region15: #{transformer_forward.30} parent=5 // pred_region
        // Predicated region
        $region17: #{transformer_forward.30} parent=15 // pred_check
          %p132 = pneg %p29
        $region18: #{transformer_forward.30} parent=15 // pred_check_branch
          %134 = sbr.rel (%p132) target = $region20
        $region19: #{transformer_forward.30} parent=15 // pred_region
          %s135 = sand.u32 %s19, 1
          %s136 = sand.u32 %s19, 1
          %s137 = smul.addr %s136, 8
          %s138 = scalar_lea.vmem [#allocation2], %s137
          %s139 = smul.u32 2, %s9
          %s140 = smul.addr %s139, 3
          %s141 = smul.addr %s140, 4
          %s142 = scalar_lea.vmem %s0, %s141
          // Predicated region
          $region21: #{transformer_forward.30} parent=19 // pred_check
            _
          $region22: #{transformer_forward.30} parent=19 // pred_check_branch
            %144 = sbr.rel (0) target = $region24
          $region23: #{transformer_forward.30} parent=19 // pred_region
            // Predicated region
            $region25: #{transformer_forward.30} parent=23 // pred_check
              _
            $region26: #{transformer_forward.30} parent=23 // pred_check_branch
              %146 = sbr.rel target = $region28
            $region27: #{transformer_forward.30} parent=23 // pred_region
              // Predicated region
              $region40: #{transformer_forward.30} parent=27 // pred_check
                _
              $region41: #{transformer_forward.30} parent=27 // pred_check_branch
                %164 = sbr.rel (0) target = $region43
              $region42: #{transformer_forward.30} parent=27 // pred_region
                loop: start=0, step=1, limit=1
                $region44: #{transformer_forward.30} parent=42 // loop_pre_header
                  _
                $region45: #{transformer_forward.30} parent=42 // loop_header
                  %s166 = sphi 0, %s170
                  %p167 = scmp.ge.s32.totalorder %s166, 1
                  %s171 = sphi %s142, %s142
                  %s172 = sphi %s138, %s138
                $region46: #{transformer_forward.30} parent=42 // loop_header_branch
                  %169 = sbr.rel (%p167) target = $region50
                $region47: #{transformer_forward.30} parent=42 // loop_body
                  _
                $region48: #{transformer_forward.30} parent=42 // loop_footer
                  %s170 = sadd.s32 1, %s166
                $region49: #{transformer_forward.30} parent=42 // loop_footer_branch
                  %165 = sbr.rel target = $region45
                $region50: #{transformer_forward.30} parent=42 // loop_exit
                  _
                %s174 = ssub.s32 16, 1
                loop: start=0, step=1, limit=1
                $region51: #{transformer_forward.30} parent=42 // loop_pre_header
                  _
                $region52: #{transformer_forward.30} parent=42 // loop_header
                  %s176 = sphi 0, %s180
                  %p177 = scmp.ge.s32.totalorder %s176, 1
                  %s181 = sphi %s142, %s142
                  %s182 = sphi %s138, %s138
                $region53: #{transformer_forward.30} parent=42 // loop_header_branch
                  %179 = sbr.rel (%p177) target = $region57
                $region54: #{transformer_forward.30} parent=42 // loop_body
                  %v183 = vld [vmem:[%s181] sm:%s174]
                  %184 = vst [vmem:[%s182] sm:%s174] %v183
                  %v185 = vld [vmem:[%s181 + $0xc] sm:%s174]
                  %186 = vst [vmem:[%s182 + $0x4] sm:%s174] %v185
                $region55: #{transformer_forward.30} parent=42 // loop_footer
                  %s180 = sadd.s32 1, %s176
                $region56: #{transformer_forward.30} parent=42 // loop_footer_branch
                  %175 = sbr.rel target = $region52
                $region57: #{transformer_forward.30} parent=42 // loop_exit
                  _
              $region43: #{transformer_forward.30} parent=27 // pred_fallthru
                _
            $region28: #{transformer_forward.30} parent=23 // pred_fallthru
              _
            // Predicated region
            $region29: #{transformer_forward.30} parent=23 // pred_check
              _
            $region30: #{transformer_forward.30} parent=23 // pred_check_branch
              %148 = sbr.rel (0) target = $region32
            $region31: #{transformer_forward.30} parent=23 // pred_region
              %s150 = ssub.s32 16, 1
              loop: start=0, step=1, limit=1
              $region33: #{transformer_forward.30} parent=31 // loop_pre_header
                _
              $region34: #{transformer_forward.30} parent=31 // loop_header
                %s152 = sphi 0, %s156
                %p153 = scmp.ge.s32.totalorder %s152, 1
                %s157 = sphi %s142, %s142
                %s158 = sphi %s138, %s138
              $region35: #{transformer_forward.30} parent=31 // loop_header_branch
                %155 = sbr.rel (%p153) target = $region39
              $region36: #{transformer_forward.30} parent=31 // loop_body
                %v159 = vld [vmem:[%s157] sm:%s150]
                %160 = vst [vmem:[%s158] sm:%s150] %v159
                %v161 = vld [vmem:[%s157 + $0xc] sm:%s150]
                %162 = vst [vmem:[%s158 + $0x4] sm:%s150] %v161
              $region37: #{transformer_forward.30} parent=31 // loop_footer
                %s156 = sadd.s32 1, %s152
              $region38: #{transformer_forward.30} parent=31 // loop_footer_branch
                %151 = sbr.rel target = $region34
              $region39: #{transformer_forward.30} parent=31 // loop_exit
                _
            $region32: #{transformer_forward.30} parent=23 // pred_fallthru
              _
          $region24: #{transformer_forward.30} parent=19 // pred_fallthru
            _
          %187 = vnop
        $region20: #{transformer_forward.30} parent=15 // pred_fallthru
          _
        // Predicated region
        $region58: #{transformer_forward.30} parent=15 // pred_check
          %p188 = pneg %p55
        $region59: #{transformer_forward.30} parent=15 // pred_check_branch
          %190 = sbr.rel (%p188) target = $region61
        $region60: #{transformer_forward.30} parent=15 // pred_region
          %s191 = sand.u32 %s45, 1
          %s192 = sand.u32 %s45, 1
          %s193 = smul.addr %s192, 8
          %s194 = scalar_lea.vmem [#allocation3], %s193
          %s195 = smul.u32 2, %s9
          %s196 = smul.addr %s195, 3
          %s197 = sadd.s32 1, %s196
          %s198 = smul.addr %s197, 4
          %s199 = scalar_lea.vmem %s1, %s198
          // Predicated region
          $region62: #{transformer_forward.30} parent=60 // pred_check
            _
          $region63: #{transformer_forward.30} parent=60 // pred_check_branch
            %201 = sbr.rel (0) target = $region65
          $region64: #{transformer_forward.30} parent=60 // pred_region
            // Predicated region
            $region66: #{transformer_forward.30} parent=64 // pred_check
              _
            $region67: #{transformer_forward.30} parent=64 // pred_check_branch
              %203 = sbr.rel target = $region69
            $region68: #{transformer_forward.30} parent=64 // pred_region
              // Predicated region
              $region81: #{transformer_forward.30} parent=68 // pred_check
                _
              $region82: #{transformer_forward.30} parent=68 // pred_check_branch
                %221 = sbr.rel (0) target = $region84
              $region83: #{transformer_forward.30} parent=68 // pred_region
                loop: start=0, step=1, limit=1
                $region85: #{transformer_forward.30} parent=83 // loop_pre_header
                  _
                $region86: #{transformer_forward.30} parent=83 // loop_header
                  %s223 = sphi 0, %s227
                  %p224 = scmp.ge.s32.totalorder %s223, 1
                  %s228 = sphi %s199, %s199
                  %s229 = sphi %s194, %s194
                $region87: #{transformer_forward.30} parent=83 // loop_header_branch
                  %226 = sbr.rel (%p224) target = $region91
                $region88: #{transformer_forward.30} parent=83 // loop_body
                  _
                $region89: #{transformer_forward.30} parent=83 // loop_footer
                  %s227 = sadd.s32 1, %s223
                $region90: #{transformer_forward.30} parent=83 // loop_footer_branch
                  %222 = sbr.rel target = $region86
                $region91: #{transformer_forward.30} parent=83 // loop_exit
                  _
                %s231 = ssub.s32 16, 1
                loop: start=0, step=1, limit=1
                $region92: #{transformer_forward.30} parent=83 // loop_pre_header
                  _
                $region93: #{transformer_forward.30} parent=83 // loop_header
                  %s233 = sphi 0, %s237
                  %p234 = scmp.ge.s32.totalorder %s233, 1
                  %s238 = sphi %s199, %s199
                  %s239 = sphi %s194, %s194
                $region94: #{transformer_forward.30} parent=83 // loop_header_branch
                  %236 = sbr.rel (%p234) target = $region98
                $region95: #{transformer_forward.30} parent=83 // loop_body
                  %v240 = vld [vmem:[%s238] sm:%s231]
                  %241 = vst [vmem:[%s239] sm:%s231] %v240
                  %v242 = vld [vmem:[%s238 + $0xc] sm:%s231]
                  %243 = vst [vmem:[%s239 + $0x4] sm:%s231] %v242
                $region96: #{transformer_forward.30} parent=83 // loop_footer
                  %s237 = sadd.s32 1, %s233
                $region97: #{transformer_forward.30} parent=83 // loop_footer_branch
                  %232 = sbr.rel target = $region93
                $region98: #{transformer_forward.30} parent=83 // loop_exit
                  _
              $region84: #{transformer_forward.30} parent=68 // pred_fallthru
                _
            $region69: #{transformer_forward.30} parent=64 // pred_fallthru
              _
            // Predicated region
            $region70: #{transformer_forward.30} parent=64 // pred_check
              _
            $region71: #{transformer_forward.30} parent=64 // pred_check_branch
              %205 = sbr.rel (0) target = $region73
            $region72: #{transformer_forward.30} parent=64 // pred_region
              %s207 = ssub.s32 16, 1
              loop: start=0, step=1, limit=1
              $region74: #{transformer_forward.30} parent=72 // loop_pre_header
                _
              $region75: #{transformer_forward.30} parent=72 // loop_header
                %s209 = sphi 0, %s213
                %p210 = scmp.ge.s32.totalorder %s209, 1
                %s214 = sphi %s199, %s199
                %s215 = sphi %s194, %s194
              $region76: #{transformer_forward.30} parent=72 // loop_header_branch
                %212 = sbr.rel (%p210) target = $region80
              $region77: #{transformer_forward.30} parent=72 // loop_body
                %v216 = vld [vmem:[%s214] sm:%s207]
                %217 = vst [vmem:[%s215] sm:%s207] %v216
                %v218 = vld [vmem:[%s214 + $0xc] sm:%s207]
                %219 = vst [vmem:[%s215 + $0x4] sm:%s207] %v218
              $region78: #{transformer_forward.30} parent=72 // loop_footer
                %s213 = sadd.s32 1, %s209
              $region79: #{transformer_forward.30} parent=72 // loop_footer_branch
                %208 = sbr.rel target = $region75
              $region80: #{transformer_forward.30} parent=72 // loop_exit
                _
            $region73: #{transformer_forward.30} parent=64 // pred_fallthru
              _
          $region65: #{transformer_forward.30} parent=60 // pred_fallthru
            _
          %244 = vnop
        $region61: #{transformer_forward.30} parent=15 // pred_fallthru
          _
        // Predicated region
        $region99: #{transformer_forward.30} parent=15 // pred_check
          %p245 = pneg %p81
        $region100: #{transformer_forward.30} parent=15 // pred_check_branch
          %247 = sbr.rel (%p245) target = $region102
        $region101: #{transformer_forward.30} parent=15 // pred_region
          %s248 = sand.u32 %s71, 1
          %s249 = sand.u32 %s71, 1
          %s250 = smul.addr %s249, 8
          %s251 = scalar_lea.vmem [#allocation4], %s250
          %s252 = smul.u32 2, %s9
          %s253 = smul.addr %s252, 3
          %s254 = sadd.s32 2, %s253
          %s255 = smul.addr %s254, 4
          %s256 = scalar_lea.vmem %s2, %s255
          // Predicated region
          $region103: #{transformer_forward.30} parent=101 // pred_check
            _
          $region104: #{transformer_forward.30} parent=101 // pred_check_branch
            %258 = sbr.rel (0) target = $region106
          $region105: #{transformer_forward.30} parent=101 // pred_region
            // Predicated region
            $region107: #{transformer_forward.30} parent=105 // pred_check
              _
            $region108: #{transformer_forward.30} parent=105 // pred_check_branch
              %260 = sbr.rel target = $region110
            $region109: #{transformer_forward.30} parent=105 // pred_region
              // Predicated region
              $region122: #{transformer_forward.30} parent=109 // pred_check
                _
              $region123: #{transformer_forward.30} parent=109 // pred_check_branch
                %278 = sbr.rel (0) target = $region125
              $region124: #{transformer_forward.30} parent=109 // pred_region
                loop: start=0, step=1, limit=1
                $region126: #{transformer_forward.30} parent=124 // loop_pre_header
                  _
                $region127: #{transformer_forward.30} parent=124 // loop_header
                  %s280 = sphi 0, %s284
                  %p281 = scmp.ge.s32.totalorder %s280, 1
                  %s285 = sphi %s256, %s256
                  %s286 = sphi %s251, %s251
                $region128: #{transformer_forward.30} parent=124 // loop_header_branch
                  %283 = sbr.rel (%p281) target = $region132
                $region129: #{transformer_forward.30} parent=124 // loop_body
                  _
                $region130: #{transformer_forward.30} parent=124 // loop_footer
                  %s284 = sadd.s32 1, %s280
                $region131: #{transformer_forward.30} parent=124 // loop_footer_branch
                  %279 = sbr.rel target = $region127
                $region132: #{transformer_forward.30} parent=124 // loop_exit
                  _
                %s288 = ssub.s32 16, 1
                loop: start=0, step=1, limit=1
                $region133: #{transformer_forward.30} parent=124 // loop_pre_header
                  _
                $region134: #{transformer_forward.30} parent=124 // loop_header
                  %s290 = sphi 0, %s294
                  %p291 = scmp.ge.s32.totalorder %s290, 1
                  %s295 = sphi %s256, %s256
                  %s296 = sphi %s251, %s251
                $region135: #{transformer_forward.30} parent=124 // loop_header_branch
                  %293 = sbr.rel (%p291) target = $region139
                $region136: #{transformer_forward.30} parent=124 // loop_body
                  %v297 = vld [vmem:[%s295] sm:%s288]
                  %298 = vst [vmem:[%s296] sm:%s288] %v297
                  %v299 = vld [vmem:[%s295 + $0xc] sm:%s288]
                  %300 = vst [vmem:[%s296 + $0x4] sm:%s288] %v299
                $region137: #{transformer_forward.30} parent=124 // loop_footer
                  %s294 = sadd.s32 1, %s290
                $region138: #{transformer_forward.30} parent=124 // loop_footer_branch
                  %289 = sbr.rel target = $region134
                $region139: #{transformer_forward.30} parent=124 // loop_exit
                  _
              $region125: #{transformer_forward.30} parent=109 // pred_fallthru
                _
            $region110: #{transformer_forward.30} parent=105 // pred_fallthru
              _
            // Predicated region
            $region111: #{transformer_forward.30} parent=105 // pred_check
              _
            $region112: #{transformer_forward.30} parent=105 // pred_check_branch
              %262 = sbr.rel (0) target = $region114
            $region113: #{transformer_forward.30} parent=105 // pred_region
              %s264 = ssub.s32 16, 1
              loop: start=0, step=1, limit=1
              $region115: #{transformer_forward.30} parent=113 // loop_pre_header
                _
              $region116: #{transformer_forward.30} parent=113 // loop_header
                %s266 = sphi 0, %s270
                %p267 = scmp.ge.s32.totalorder %s266, 1
                %s271 = sphi %s256, %s256
                %s272 = sphi %s251, %s251
              $region117: #{transformer_forward.30} parent=113 // loop_header_branch
                %269 = sbr.rel (%p267) target = $region121
              $region118: #{transformer_forward.30} parent=113 // loop_body
                %v273 = vld [vmem:[%s271] sm:%s264]
                %274 = vst [vmem:[%s272] sm:%s264] %v273
                %v275 = vld [vmem:[%s271 + $0xc] sm:%s264]
                %276 = vst [vmem:[%s272 + $0x4] sm:%s264] %v275
              $region119: #{transformer_forward.30} parent=113 // loop_footer
                %s270 = sadd.s32 1, %s266
              $region120: #{transformer_forward.30} parent=113 // loop_footer_branch
                %265 = sbr.rel target = $region116
              $region121: #{transformer_forward.30} parent=113 // loop_exit
                _
            $region114: #{transformer_forward.30} parent=105 // pred_fallthru
              _
          $region106: #{transformer_forward.30} parent=101 // pred_fallthru
            _
          %301 = vnop
        $region102: #{transformer_forward.30} parent=15 // pred_fallthru
          _
      $region16: #{transformer_forward.30} parent=5 // pred_fallthru
        _
      %p302 = scmp.le.s32.totalorder 1, %s9
      %p303 = scmp.lt.s32.totalorder %s9, 3
      %p304 = pnand %p302, %p303
      %p305 = pneg %p304
      // Predicated region
      $region140: #{transformer_forward.30} parent=5 // pred_check
        _
      $region141: #{transformer_forward.30} parent=5 // pred_check_branch
        %307 = sbr.rel (%p304) target = $region143
      $region142: #{transformer_forward.30} parent=5 // pred_region
        %s308 = ssub.s32 %s9, 1
        %s309 = sand.u32 %s22, 1
        %s310 = sand.u32 %s22, 1
        %s311 = smul.addr %s310, 8
        %s312 = scalar_lea.vmem [#allocation2], %s311
        // Predicated region
        $region144: #{transformer_forward.30} parent=142 // pred_check
          %p313 = pneg %p35
        $region145: #{transformer_forward.30} parent=142 // pred_check_branch
          %315 = sbr.rel (%p313) target = $region147
        $region146: #{transformer_forward.30} parent=142 // pred_region
          _
        $region147: #{transformer_forward.30} parent=142 // pred_fallthru
          _
        %s316 = sand.u32 %s48, 1
        %s317 = sand.u32 %s48, 1
        %s318 = smul.addr %s317, 8
        %s319 = scalar_lea.vmem [#allocation3], %s318
        // Predicated region
        $region148: #{transformer_forward.30} parent=142 // pred_check
          %p320 = pneg %p61
        $region149: #{transformer_forward.30} parent=142 // pred_check_branch
          %322 = sbr.rel (%p320) target = $region151
        $region150: #{transformer_forward.30} parent=142 // pred_region
          _
        $region151: #{transformer_forward.30} parent=142 // pred_fallthru
          _
        %s323 = sand.u32 %s74, 1
        %s324 = sand.u32 %s74, 1
        %s325 = smul.addr %s324, 8
        %s326 = scalar_lea.vmem [#allocation4], %s325
        // Predicated region
        $region152: #{transformer_forward.30} parent=142 // pred_check
          %p327 = pneg %p87
        $region153: #{transformer_forward.30} parent=142 // pred_check_branch
          %329 = sbr.rel (%p327) target = $region155
        $region154: #{transformer_forward.30} parent=142 // pred_region
          _
        $region155: #{transformer_forward.30} parent=142 // pred_fallthru
          _
        %s330 = sand.u32 %s22, 1
        %s331 = sand.u32 %s22, 1
        %s332 = smul.addr %s331, 8
        %s333 = scalar_lea.vmem [#allocation2], %s332
        %p334 = pneg %p35
        %p335 = pneg %p32
        %s336 = sand.u32 %s48, 1
        %s337 = sand.u32 %s48, 1
        %s338 = smul.addr %s337, 8
        %s339 = scalar_lea.vmem [#allocation3], %s338
        %p340 = pneg %p61
        %p341 = pneg %p58
        %s342 = sand.u32 %s74, 1
        %s343 = sand.u32 %s74, 1
        %s344 = smul.addr %s343, 8
        %s345 = scalar_lea.vmem [#allocation4], %s344
        %p346 = pneg %p87
        %p347 = pneg %p84
        %p348 = pneg %p113
        %p349 = pneg %p110
        %s350 = smul.u32 2, %s14
        %p351 = scmp.lt.s32.totalorder %s350, 3
        %s352 = scalar_select %p351, %s350, 3
        %s353 = smul.addr %s352, 4
        %s354 = scalar_lea.vmem %s3, %s353
        %s355 = smul.u32 2, %s14
        %s356 = smul.u32 2, %s14
        %s357 = smul.u32 2, %s14
        %s358 = smul.u32 2, %s14
        %p359 = scmp.lt.s32.totalorder %s358, 3
        %s360 = scalar_select %p359, %s358, 3
        %s361 = smul.addr %s360, 4
        %s362 = scalar_lea.vmem %s3, %s361
        %s363 = smul.u32 2, %s14
        %v366 = vld [vmem:[%s312] sm:$0xf]
        %v367 = vld [vmem:[%s312 + $0x4] sm:$0xf]
        %v368 = vld [vmem:[%s319] sm:$0xf]
        %v369 = vld [vmem:[%s319 + $0x4] sm:$0xf]
        %v370 = vld [vmem:[%s326] sm:$0xf]
        %v371 = vld [vmem:[%s326 + $0x4] sm:$0xf]
        %v372 = vmul.bf16 %v366, 1043676725
        %v373 = vmul.bf16 %v367, 1043676725
        %v376 = vunpack.c.l.b16 %v372
        %v377 = vunpack.c.l.b16 %v373
        %v378 = vpack.c.b16 %v377, %v376
        %v381 = vunpack.c.l.b16 %v368
        %v382 = vunpack.c.l.b16 %v369
        %v383 = vpack.c.b16 %v382, %v381
        %vm384 = vcmask 261120
        %v386 = vsel %vm384, %v378, 0
        %v389 = vsel %vm384, %v383, 0
        %391 = vmatprep.subr.bf16.mxu0 0
        %392 = vmatpush1.bf16.xpose.msra.mxu0 0
        %393 = vmatprep.subr.bf16.mxu0 0
        %394 = vmatpush1.bf16.xpose.msra.mxu0 0
        %395 = vmatprep.subr.bf16.mxu0 0
        %396 = vmatpush1.bf16.xpose.msra.mxu0 0
        %397 = vmatprep.subr.bf16.mxu0 0
        %398 = vmatpush1.bf16.xpose.msra.mxu0 0
        %399 = vmatprep.subr.bf16.mxu0 0
        %400 = vmatpush1.bf16.xpose.msra.mxu0 0
        %401 = vmatprep.subr.bf16.mxu0 0
        %402 = vmatpush1.bf16.xpose.msra.mxu0 0
        %403 = vmatprep.subr.bf16.mxu0 0
        %404 = vmatpush1.bf16.xpose.msra.mxu0 0
        %405 = vmatprep.subr.bf16.mxu0 0
        %406 = vmatpush1.bf16.xpose.msra.mxu0 %v389
        %407 = vmatprep.subr.bf16.mxu0 0
        %408 = vmatpush2.bf16.xpose.msra.mxu0 0
        %409 = vmatprep.subr.bf16.mxu0 0
        %410 = vmatpush2.bf16.xpose.msra.mxu0 0
        %411 = vmatprep.subr.bf16.mxu0 0
        %412 = vmatpush2.bf16.xpose.msra.mxu0 0
        %413 = vmatprep.subr.bf16.mxu0 0
        %414 = vmatpush2.bf16.xpose.msra.mxu0 0
        %415 = vmatprep.subr.bf16.mxu0 0
        %416 = vmatpush2.bf16.xpose.msra.mxu0 0
        %417 = vmatprep.subr.bf16.mxu0 0
        %418 = vmatpush2.bf16.xpose.msra.mxu0 0
        %419 = vmatprep.subr.bf16.mxu0 0
        %420 = vmatpush2.bf16.xpose.msra.mxu0 0
        %421 = vmatprep.subr.bf16.mxu0 0
        %422 = vmatpush2.bf16.xpose.msra.mxu0 0
        %423 = vmatprep.mubr.bf16.mxu0 0
        %424 = vmatmul.mubr.bf16.gmra.mxu0 %v386
        %v425 = vpop.f32.mrf.mxu0
        %v426 = vadd.f32 0.0, %v425
        %v427 = vpop.f32.mrf.mxu0
        %v428 = vpop.f32.mrf.mxu0
        %v429 = vadd.f32 0.0, %v428
        %v430 = vpop.f32.mrf.mxu0
        %431 = vdwg.mxu0
        %vm432 = vcmask 130048
        %v433 = vsel %vm432, %v426, -inf
        %434 = vmax.xlane.f32.xlu0 %v433
        %v435 = vpop.xlane.xlu0 %434
        %v436 = vsel %vm432, %v429, -inf
        %437 = vmax.xlane.f32.xlu0 %v436
        %v438 = vpop.xlane.xlu0 %437
        %v439 = vsub.f32 %v426, %v435
        %v440 = vsub.f32 %v429, %v438
        %v441 = vmul.f32 %v439, 1.442695
        %v442 = vpow.pop %v441
        %v443 = vmul.f32 %v440, 1.442695
        %v444 = vpow.pop %v443
        %v445 = vsel %vm432, %v442, 0.0
        %446 = vadd.xlane.f32.xlu0 %v445
        %v447 = vpop.xlane.xlu0 %446
        %v448 = vsel %vm432, %v444, 0.0
        %449 = vadd.xlane.f32.xlu0 %v448
        %v450 = vpop.xlane.xlu0 %449
        %v451 = vrcp.pop %v447
        %v452 = vrcp.pop %v450
        %v453 = vmul.f32 %v442, %v451
        %v454 = vmul.f32 %v444, %v452
        %v455 = vpack.c.bf16 %v454, %v453
        %v458 = vunpack.c.l.b16 %v370
        %v459 = vunpack.c.l.b16 %v371
        %v460 = vpack.c.b16 %v459, %v458
        %v463 = vsel %vm432, %v455, 0
        %465 = vmatprep.subr.bf16.mxu0 0
        %466 = vmatpush1.bf16.msra.mxu0 0
        %467 = vmatprep.subr.bf16.mxu0 0
        %468 = vmatpush1.bf16.msra.mxu0 0
        %469 = vmatprep.subr.bf16.mxu0 0
        %470 = vmatpush1.bf16.msra.mxu0 0
        %471 = vmatprep.subr.bf16.mxu0 0
        %472 = vmatpush1.bf16.msra.mxu0 0
        %473 = vmatprep.subr.bf16.mxu0 0
        %474 = vmatpush1.bf16.msra.mxu0 0
        %475 = vmatprep.subr.bf16.mxu0 0
        %476 = vmatpush1.bf16.msra.mxu0 0
        %477 = vmatprep.subr.bf16.mxu0 0
        %478 = vmatpush1.bf16.msra.mxu0 0
        %479 = vmatprep.subr.bf16.mxu0 0
        %480 = vmatpush1.bf16.msra.mxu0 %v460
        %481 = vmatprep.subr.bf16.mxu0 0
        %482 = vmatpush2.bf16.msra.mxu0 0
        %483 = vmatprep.subr.bf16.mxu0 0
        %484 = vmatpush2.bf16.msra.mxu0 0
        %485 = vmatprep.subr.bf16.mxu0 0
        %486 = vmatpush2.bf16.msra.mxu0 0
        %487 = vmatprep.subr.bf16.mxu0 0
        %488 = vmatpush2.bf16.msra.mxu0 0
        %489 = vmatprep.subr.bf16.mxu0 0
        %490 = vmatpush2.bf16.msra.mxu0 0
        %491 = vmatprep.subr.bf16.mxu0 0
        %492 = vmatpush2.bf16.msra.mxu0 0
        %493 = vmatprep.subr.bf16.mxu0 0
        %494 = vmatpush2.bf16.msra.mxu0 0
        %495 = vmatprep.subr.bf16.mxu0 0
        %496 = vmatpush2.bf16.msra.mxu0 0
        %497 = vmatprep.mubr.bf16.mxu0 0
        %498 = vmatmul.mubr.bf16.gmra.mxu0 %v463
        %v499 = vpop.f32.mrf.mxu0
        %v500 = vadd.f32 0.0, %v499
        %v501 = vpop.f32.mrf.mxu0
        %v502 = vpop.f32.mrf.mxu0
        %v503 = vadd.f32 0.0, %v502
        %v504 = vpop.f32.mrf.mxu0
        %505 = vdwg.mxu0
        %506 = vrot.lane.b32.xlu0 %v378, 96
        %v507 = vpop.permute.xlu0 %506
        %508 = vrot.lane.b32.xlu0 %v383, 96
        %v509 = vpop.permute.xlu0 %508
        %v511 = vsel %vm384, %v507, 0
        %v514 = vsel %vm384, %v509, 0
        %516 = vmatprep.subr.bf16.mxu0 0
        %517 = vmatpush1.bf16.xpose.msra.mxu0 0
        %518 = vmatprep.subr.bf16.mxu0 0
        %519 = vmatpush1.bf16.xpose.msra.mxu0 0
        %520 = vmatprep.subr.bf16.mxu0 0
        %521 = vmatpush1.bf16.xpose.msra.mxu0 0
        %522 = vmatprep.subr.bf16.mxu0 0
        %523 = vmatpush1.bf16.xpose.msra.mxu0 0
        %524 = vmatprep.subr.bf16.mxu0 0
        %525 = vmatpush1.bf16.xpose.msra.mxu0 0
        %526 = vmatprep.subr.bf16.mxu0 0
        %527 = vmatpush1.bf16.xpose.msra.mxu0 0
        %528 = vmatprep.subr.bf16.mxu0 0
        %529 = vmatpush1.bf16.xpose.msra.mxu0 0
        %530 = vmatprep.subr.bf16.mxu0 0
        %531 = vmatpush1.bf16.xpose.msra.mxu0 %v514
        %532 = vmatprep.subr.bf16.mxu0 0
        %533 = vmatpush2.bf16.xpose.msra.mxu0 0
        %534 = vmatprep.subr.bf16.mxu0 0
        %535 = vmatpush2.bf16.xpose.msra.mxu0 0
        %536 = vmatprep.subr.bf16.mxu0 0
        %537 = vmatpush2.bf16.xpose.msra.mxu0 0
        %538 = vmatprep.subr.bf16.mxu0 0
        %539 = vmatpush2.bf16.xpose.msra.mxu0 0
        %540 = vmatprep.subr.bf16.mxu0 0
        %541 = vmatpush2.bf16.xpose.msra.mxu0 0
        %542 = vmatprep.subr.bf16.mxu0 0
        %543 = vmatpush2.bf16.xpose.msra.mxu0 0
        %544 = vmatprep.subr.bf16.mxu0 0
        %545 = vmatpush2.bf16.xpose.msra.mxu0 0
        %546 = vmatprep.subr.bf16.mxu0 0
        %547 = vmatpush2.bf16.xpose.msra.mxu0 0
        %548 = vmatprep.mubr.bf16.mxu0 0
        %549 = vmatmul.mubr.bf16.gmra.mxu0 %v511
        %v550 = vpop.f32.mrf.mxu0
        %v551 = vadd.f32 0.0, %v550
        %v552 = vpop.f32.mrf.mxu0
        %v553 = vpop.f32.mrf.mxu0
        %v554 = vadd.f32 0.0, %v553
        %v555 = vpop.f32.mrf.mxu0
        %556 = vdwg.mxu0
        %v557 = vsel %vm432, %v551, -inf
        %558 = vmax.xlane.f32.xlu0 %v557
        %v559 = vpop.xlane.xlu0 %558
        %v560 = vsel %vm432, %v554, -inf
        %561 = vmax.xlane.f32.xlu0 %v560
        %v562 = vpop.xlane.xlu0 %561
        %v563 = vsub.f32 %v551, %v559
        %v564 = vsub.f32 %v554, %v562
        %v565 = vmul.f32 %v563, 1.442695
        %v566 = vpow.pop %v565
        %v567 = vmul.f32 %v564, 1.442695
        %v568 = vpow.pop %v567
        %v569 = vsel %vm432, %v566, 0.0
        %570 = vadd.xlane.f32.xlu0 %v569
        %v571 = vpop.xlane.xlu0 %570
        %v572 = vsel %vm432, %v568, 0.0
        %573 = vadd.xlane.f32.xlu0 %v572
        %v574 = vpop.xlane.xlu0 %573
        %v575 = vrcp.pop %v571
        %v576 = vrcp.pop %v574
        %v577 = vmul.f32 %v566, %v575
        %v578 = vmul.f32 %v568, %v576
        %v579 = vpack.c.bf16 %v578, %v577
        %580 = vrot.lane.b32.xlu0 %v460, 96
        %v581 = vpop.permute.xlu0 %580
        %v584 = vsel %vm432, %v579, 0
        %586 = vmatprep.subr.bf16.mxu0 0
        %587 = vmatpush1.bf16.msra.mxu0 0
        %588 = vmatprep.subr.bf16.mxu0 0
        %589 = vmatpush1.bf16.msra.mxu0 0
        %590 = vmatprep.subr.bf16.mxu0 0
        %591 = vmatpush1.bf16.msra.mxu0 0
        %592 = vmatprep.subr.bf16.mxu0 0
        %593 = vmatpush1.bf16.msra.mxu0 0
        %594 = vmatprep.subr.bf16.mxu0 0
        %595 = vmatpush1.bf16.msra.mxu0 0
        %596 = vmatprep.subr.bf16.mxu0 0
        %597 = vmatpush1.bf16.msra.mxu0 0
        %598 = vmatprep.subr.bf16.mxu0 0
        %599 = vmatpush1.bf16.msra.mxu0 0
        %600 = vmatprep.subr.bf16.mxu0 0
        %601 = vmatpush1.bf16.msra.mxu0 %v581
        %602 = vmatprep.subr.bf16.mxu0 0
        %603 = vmatpush2.bf16.msra.mxu0 0
        %604 = vmatprep.subr.bf16.mxu0 0
        %605 = vmatpush2.bf16.msra.mxu0 0
        %606 = vmatprep.subr.bf16.mxu0 0
        %607 = vmatpush2.bf16.msra.mxu0 0
        %608 = vmatprep.subr.bf16.mxu0 0
        %609 = vmatpush2.bf16.msra.mxu0 0
        %610 = vmatprep.subr.bf16.mxu0 0
        %611 = vmatpush2.bf16.msra.mxu0 0
        %612 = vmatprep.subr.bf16.mxu0 0
        %613 = vmatpush2.bf16.msra.mxu0 0
        %614 = vmatprep.subr.bf16.mxu0 0
        %615 = vmatpush2.bf16.msra.mxu0 0
        %616 = vmatprep.subr.bf16.mxu0 0
        %617 = vmatpush2.bf16.msra.mxu0 0
        %618 = vmatprep.mubr.bf16.mxu0 0
        %619 = vmatmul.mubr.bf16.gmra.mxu0 %v584
        %v620 = vpop.f32.mrf.mxu0
        %v621 = vadd.f32 0.0, %v620
        %v622 = vpop.f32.mrf.mxu0
        %v623 = vpop.f32.mrf.mxu0
        %v624 = vadd.f32 0.0, %v623
        %v625 = vpop.f32.mrf.mxu0
        %626 = vdwg.mxu0
        %627 = vrot.lane.b32.xlu0 %v378, 64
        %v628 = vpop.permute.xlu0 %627
        %629 = vrot.lane.b32.xlu0 %v383, 64
        %v630 = vpop.permute.xlu0 %629
        %v632 = vsel %vm384, %v628, 0
        %v635 = vsel %vm384, %v630, 0
        %637 = vmatprep.subr.bf16.mxu0 0
        %638 = vmatpush1.bf16.xpose.msra.mxu0 0
        %639 = vmatprep.subr.bf16.mxu0 0
        %640 = vmatpush1.bf16.xpose.msra.mxu0 0
        %641 = vmatprep.subr.bf16.mxu0 0
        %642 = vmatpush1.bf16.xpose.msra.mxu0 0
        %643 = vmatprep.subr.bf16.mxu0 0
        %644 = vmatpush1.bf16.xpose.msra.mxu0 0
        %645 = vmatprep.subr.bf16.mxu0 0
        %646 = vmatpush1.bf16.xpose.msra.mxu0 0
        %647 = vmatprep.subr.bf16.mxu0 0
        %648 = vmatpush1.bf16.xpose.msra.mxu0 0
        %649 = vmatprep.subr.bf16.mxu0 0
        %650 = vmatpush1.bf16.xpose.msra.mxu0 0
        %651 = vmatprep.subr.bf16.mxu0 0
        %652 = vmatpush1.bf16.xpose.msra.mxu0 %v635
        %653 = vmatprep.subr.bf16.mxu0 0
        %654 = vmatpush2.bf16.xpose.msra.mxu0 0
        %655 = vmatprep.subr.bf16.mxu0 0
        %656 = vmatpush2.bf16.xpose.msra.mxu0 0
        %657 = vmatprep.subr.bf16.mxu0 0
        %658 = vmatpush2.bf16.xpose.msra.mxu0 0
        %659 = vmatprep.subr.bf16.mxu0 0
        %660 = vmatpush2.bf16.xpose.msra.mxu0 0
        %661 = vmatprep.subr.bf16.mxu0 0
        %662 = vmatpush2.bf16.xpose.msra.mxu0 0
        %663 = vmatprep.subr.bf16.mxu0 0
        %664 = vmatpush2.bf16.xpose.msra.mxu0 0
        %665 = vmatprep.subr.bf16.mxu0 0
        %666 = vmatpush2.bf16.xpose.msra.mxu0 0
        %667 = vmatprep.subr.bf16.mxu0 0
        %668 = vmatpush2.bf16.xpose.msra.mxu0 0
        %669 = vmatprep.mubr.bf16.mxu0 0
        %670 = vmatmul.mubr.bf16.gmra.mxu0 %v632
        %v671 = vpop.f32.mrf.mxu0
        %v672 = vadd.f32 0.0, %v671
        %v673 = vpop.f32.mrf.mxu0
        %v674 = vpop.f32.mrf.mxu0
        %v675 = vadd.f32 0.0, %v674
        %v676 = vpop.f32.mrf.mxu0
        %677 = vdwg.mxu0
        %v678 = vsel %vm432, %v672, -inf
        %679 = vmax.xlane.f32.xlu0 %v678
        %v680 = vpop.xlane.xlu0 %679
        %v681 = vsel %vm432, %v675, -inf
        %682 = vmax.xlane.f32.xlu0 %v681
        %v683 = vpop.xlane.xlu0 %682
        %v684 = vsub.f32 %v672, %v680
        %v685 = vsub.f32 %v675, %v683
        %v686 = vmul.f32 %v684, 1.442695
        %v687 = vpow.pop %v686
        %v688 = vmul.f32 %v685, 1.442695
        %v689 = vpow.pop %v688
        %v690 = vsel %vm432, %v687, 0.0
        %691 = vadd.xlane.f32.xlu0 %v690
        %v692 = vpop.xlane.xlu0 %691
        %v693 = vsel %vm432, %v689, 0.0
        %694 = vadd.xlane.f32.xlu0 %v693
        %v695 = vpop.xlane.xlu0 %694
        %v696 = vrcp.pop %v692
        %v697 = vrcp.pop %v695
        %v698 = vmul.f32 %v687, %v696
        %v699 = vmul.f32 %v689, %v697
        %v700 = vpack.c.bf16 %v699, %v698
        %701 = vrot.lane.b32.xlu0 %v460, 64
        %v702 = vpop.permute.xlu0 %701
        %v705 = vsel %vm432, %v700, 0
        %707 = vmatprep.subr.bf16.mxu0 0
        %708 = vmatpush1.bf16.msra.mxu0 0
        %709 = vmatprep.subr.bf16.mxu0 0
        %710 = vmatpush1.bf16.msra.mxu0 0
        %711 = vmatprep.subr.bf16.mxu0 0
        %712 = vmatpush1.bf16.msra.mxu0 0
        %713 = vmatprep.subr.bf16.mxu0 0
        %714 = vmatpush1.bf16.msra.mxu0 0
        %715 = vmatprep.subr.bf16.mxu0 0
        %716 = vmatpush1.bf16.msra.mxu0 0
        %717 = vmatprep.subr.bf16.mxu0 0
        %718 = vmatpush1.bf16.msra.mxu0 0
        %719 = vmatprep.subr.bf16.mxu0 0
        %720 = vmatpush1.bf16.msra.mxu0 0
        %721 = vmatprep.subr.bf16.mxu0 0
        %722 = vmatpush1.bf16.msra.mxu0 %v702
        %723 = vmatprep.subr.bf16.mxu0 0
        %724 = vmatpush2.bf16.msra.mxu0 0
        %725 = vmatprep.subr.bf16.mxu0 0
        %726 = vmatpush2.bf16.msra.mxu0 0
        %727 = vmatprep.subr.bf16.mxu0 0
        %728 = vmatpush2.bf16.msra.mxu0 0
        %729 = vmatprep.subr.bf16.mxu0 0
        %730 = vmatpush2.bf16.msra.mxu0 0
        %731 = vmatprep.subr.bf16.mxu0 0
        %732 = vmatpush2.bf16.msra.mxu0 0
        %733 = vmatprep.subr.bf16.mxu0 0
        %734 = vmatpush2.bf16.msra.mxu0 0
        %735 = vmatprep.subr.bf16.mxu0 0
        %736 = vmatpush2.bf16.msra.mxu0 0
        %737 = vmatprep.subr.bf16.mxu0 0
        %738 = vmatpush2.bf16.msra.mxu0 0
        %739 = vmatprep.mubr.bf16.mxu0 0
        %740 = vmatmul.mubr.bf16.gmra.mxu0 %v705
        %v741 = vpop.f32.mrf.mxu0
        %v742 = vadd.f32 0.0, %v741
        %v743 = vpop.f32.mrf.mxu0
        %v744 = vpop.f32.mrf.mxu0
        %v745 = vadd.f32 0.0, %v744
        %v746 = vpop.f32.mrf.mxu0
        %747 = vdwg.mxu0
        %748 = vrot.lane.b32.xlu0 %v378, 32
        %v749 = vpop.permute.xlu0 %748
        %750 = vrot.lane.b32.xlu0 %v383, 32
        %v751 = vpop.permute.xlu0 %750
        %v753 = vsel %vm384, %v749, 0
        %v756 = vsel %vm384, %v751, 0
        %758 = vmatprep.subr.bf16.mxu0 0
        %759 = vmatpush1.bf16.xpose.msra.mxu0 0
        %760 = vmatprep.subr.bf16.mxu0 0
        %761 = vmatpush1.bf16.xpose.msra.mxu0 0
        %762 = vmatprep.subr.bf16.mxu0 0
        %763 = vmatpush1.bf16.xpose.msra.mxu0 0
        %764 = vmatprep.subr.bf16.mxu0 0
        %765 = vmatpush1.bf16.xpose.msra.mxu0 0
        %766 = vmatprep.subr.bf16.mxu0 0
        %767 = vmatpush1.bf16.xpose.msra.mxu0 0
        %768 = vmatprep.subr.bf16.mxu0 0
        %769 = vmatpush1.bf16.xpose.msra.mxu0 0
        %770 = vmatprep.subr.bf16.mxu0 0
        %771 = vmatpush1.bf16.xpose.msra.mxu0 0
        %772 = vmatprep.subr.bf16.mxu0 0
        %773 = vmatpush1.bf16.xpose.msra.mxu0 %v756
        %774 = vmatprep.subr.bf16.mxu0 0
        %775 = vmatpush2.bf16.xpose.msra.mxu0 0
        %776 = vmatprep.subr.bf16.mxu0 0
        %777 = vmatpush2.bf16.xpose.msra.mxu0 0
        %778 = vmatprep.subr.bf16.mxu0 0
        %779 = vmatpush2.bf16.xpose.msra.mxu0 0
        %780 = vmatprep.subr.bf16.mxu0 0
        %781 = vmatpush2.bf16.xpose.msra.mxu0 0
        %782 = vmatprep.subr.bf16.mxu0 0
        %783 = vmatpush2.bf16.xpose.msra.mxu0 0
        %784 = vmatprep.subr.bf16.mxu0 0
        %785 = vmatpush2.bf16.xpose.msra.mxu0 0
        %786 = vmatprep.subr.bf16.mxu0 0
        %787 = vmatpush2.bf16.xpose.msra.mxu0 0
        %788 = vmatprep.subr.bf16.mxu0 0
        %789 = vmatpush2.bf16.xpose.msra.mxu0 0
        %790 = vmatprep.mubr.bf16.mxu0 0
        %791 = vmatmul.mubr.bf16.gmra.mxu0 %v753
        %v792 = vpop.f32.mrf.mxu0
        %v793 = vadd.f32 0.0, %v792
        %v794 = vpop.f32.mrf.mxu0
        %v795 = vpop.f32.mrf.mxu0
        %v796 = vadd.f32 0.0, %v795
        %v797 = vpop.f32.mrf.mxu0
        %798 = vdwg.mxu0
        %v799 = vsel %vm432, %v793, -inf
        %800 = vmax.xlane.f32.xlu0 %v799
        %v801 = vpop.xlane.xlu0 %800
        %v802 = vsel %vm432, %v796, -inf
        %803 = vmax.xlane.f32.xlu0 %v802
        %v804 = vpop.xlane.xlu0 %803
        %v805 = vsub.f32 %v793, %v801
        %v806 = vsub.f32 %v796, %v804
        %v807 = vmul.f32 %v805, 1.442695
        %v808 = vpow.pop %v807
        %v809 = vmul.f32 %v806, 1.442695
        %v810 = vpow.pop %v809
        %v811 = vsel %vm432, %v808, 0.0
        %812 = vadd.xlane.f32.xlu0 %v811
        %v813 = vpop.xlane.xlu0 %812
        %v814 = vsel %vm432, %v810, 0.0
        %815 = vadd.xlane.f32.xlu0 %v814
        %v816 = vpop.xlane.xlu0 %815
        %v817 = vrcp.pop %v813
        %v818 = vrcp.pop %v816
        %v819 = vmul.f32 %v808, %v817
        %v820 = vmul.f32 %v810, %v818
        %v821 = vpack.c.bf16 %v820, %v819
        %822 = vrot.lane.b32.xlu0 %v460, 32
        %v823 = vpop.permute.xlu0 %822
        %v826 = vsel %vm432, %v821, 0
        %828 = vmatprep.subr.bf16.mxu0 0
        %829 = vmatpush1.bf16.msra.mxu0 0
        %830 = vmatprep.subr.bf16.mxu0 0
        %831 = vmatpush1.bf16.msra.mxu0 0
        %832 = vmatprep.subr.bf16.mxu0 0
        %833 = vmatpush1.bf16.msra.mxu0 0
        %834 = vmatprep.subr.bf16.mxu0 0
        %835 = vmatpush1.bf16.msra.mxu0 0
        %836 = vmatprep.subr.bf16.mxu0 0
        %837 = vmatpush1.bf16.msra.mxu0 0
        %838 = vmatprep.subr.bf16.mxu0 0
        %839 = vmatpush1.bf16.msra.mxu0 0
        %840 = vmatprep.subr.bf16.mxu0 0
        %841 = vmatpush1.bf16.msra.mxu0 0
        %842 = vmatprep.subr.bf16.mxu0 0
        %843 = vmatpush1.bf16.msra.mxu0 %v823
        %844 = vmatprep.subr.bf16.mxu0 0
        %845 = vmatpush2.bf16.msra.mxu0 0
        %846 = vmatprep.subr.bf16.mxu0 0
        %847 = vmatpush2.bf16.msra.mxu0 0
        %848 = vmatprep.subr.bf16.mxu0 0
        %849 = vmatpush2.bf16.msra.mxu0 0
        %850 = vmatprep.subr.bf16.mxu0 0
        %851 = vmatpush2.bf16.msra.mxu0 0
        %852 = vmatprep.subr.bf16.mxu0 0
        %853 = vmatpush2.bf16.msra.mxu0 0
        %854 = vmatprep.subr.bf16.mxu0 0
        %855 = vmatpush2.bf16.msra.mxu0 0
        %856 = vmatprep.subr.bf16.mxu0 0
        %857 = vmatpush2.bf16.msra.mxu0 0
        %858 = vmatprep.subr.bf16.mxu0 0
        %859 = vmatpush2.bf16.msra.mxu0 0
        %860 = vmatprep.mubr.bf16.mxu0 0
        %861 = vmatmul.mubr.bf16.gmra.mxu0 %v826
        %v862 = vpop.f32.mrf.mxu0
        %v863 = vadd.f32 0.0, %v862
        %v864 = vpop.f32.mrf.mxu0
        %v865 = vpop.f32.mrf.mxu0
        %v866 = vadd.f32 0.0, %v865
        %v867 = vpop.f32.mrf.mxu0
        %868 = vdwg.mxu0
        %871 = vrot.lane.b32.xlu0 %v621, 32
        %v872 = vpop.permute.xlu0 %871
        %873 = vrot.lane.b32.xlu0 %v624, 32
        %v874 = vpop.permute.xlu0 %873
        %879 = vrot.lane.b32.xlu0 %v742, 64
        %v880 = vpop.permute.xlu0 %879
        %881 = vrot.lane.b32.xlu0 %v745, 64
        %v882 = vpop.permute.xlu0 %881
        %887 = vrot.lane.b32.xlu0 %v863, 96
        %v888 = vpop.permute.xlu0 %887
        %889 = vrot.lane.b32.xlu0 %v866, 96
        %v890 = vpop.permute.xlu0 %889
        %v893 = vsel %vm384, %v500, %v872
        %v894 = vsel %vm384, %v503, %v874
        %vm895 = vcmask 523264
        %v896 = vsel %vm895, %v893, %v880
        %v897 = vsel %vm895, %v894, %v882
        %vm898 = vcmask 785408
        %v899 = vsel %vm898, %v896, %v888
        %v900 = vsel %vm898, %v897, %v890
        %v901 = vpack.c.bf16 %v900, %v899
        %v903 = vunpack.c.l.b16 %v901
        %v904 = vunpack.c.h.b16 %v901
        %v905 = vpack.c.b16 %v903, %v903
        %v906 = vpack.c.b16 %v904, %v904
        %909 = vst [vmem:[%s362] sm:$0xf] %v905
        %910 = vst [vmem:[%s362 + $0x4] sm:$0xf] %v906
        %s911 = smul.u32 2, %s14
        %p912 = scmp.lt.s32.totalorder %s911, 3
        %s913 = scalar_select %p912, %s911, 3
        %s914 = smul.addr %s913, 4
        %s915 = scalar_lea.vmem %s3, %s914
        // Predicated region
        $region156: #{transformer_forward.30} parent=142 // pred_check
          %p916 = pneg %p110
        $region157: #{transformer_forward.30} parent=142 // pred_check_branch
          %918 = sbr.rel (%p916) target = $region159
        $region158: #{transformer_forward.30} parent=142 // pred_region
          %s919 = smul.u32 2, %s14
        $region159: #{transformer_forward.30} parent=142 // pred_fallthru
          _
      $region143: #{transformer_forward.30} parent=5 // pred_fallthru
        _
      %p920 = scmp.le.s32.totalorder 2, %s9
      // Predicated region
      $region160: #{transformer_forward.30} parent=5 // pred_check
        %p921 = pneg %p920
      $region161: #{transformer_forward.30} parent=5 // pred_check_branch
        %923 = sbr.rel (%p921) target = $region163
      $region162: #{transformer_forward.30} parent=5 // pred_region
        %s924 = ssub.s32 %s9, 2
        // Predicated region
        $region164: #{transformer_forward.30} parent=162 // pred_check
          %p925 = pneg %p116
        $region165: #{transformer_forward.30} parent=162 // pred_check_branch
          %927 = sbr.rel (%p925) target = $region167
        $region166: #{transformer_forward.30} parent=162 // pred_region
          %s928 = smul.u32 2, %s15
          %p929 = scmp.lt.s32.totalorder %s928, 3
          %s930 = scalar_select %p929, %s928, 3
          %s931 = smul.addr %s930, 4
          %s932 = scalar_lea.vmem %s3, %s931
        $region167: #{transformer_forward.30} parent=162 // pred_fallthru
          _
      $region163: #{transformer_forward.30} parent=5 // pred_fallthru
        _
    $region6: #{transformer_forward.30} parent=1 // loop_footer
      %s13 = sadd.s32 1, %s9
    $region7: #{transformer_forward.30} parent=1 // loop_footer_branch
      %8 = sbr.rel target = $region3
    $region8: #{transformer_forward.30} parent=1 // loop_exit
      _

// kernel: transformer_forward.32
$region0: #{transformer_forward.32}
  #allocation0 [shape = 'u32[]', space=smem, size = 0x4, offset = 0x4, fixed_abs, tag = 'smem constant byte address 0x4 - core index']
  #allocation1 [shape = 'u32[144,128]{1,0:T(1,128)}', space=vmem, size = 0x12000, scoped, tag = 'internal scratch']
  #allocation2 [shape = 'f32[16,512]{1,0:T(8,128)}', space=vmem, size = 0x8000, scoped, tag = 'scratch operand']
  %s0 = inlined_call_operand.vmem [shape: bf16[32,128], index: 0, kind: input, shape index: {}]
  %s1 = inlined_call_operand.vmem [shape: bf16[128,512], index: 1, kind: input, shape index: {}]
  %s2 = inlined_call_operand.vmem [shape: f32[1,512], index: 2, kind: input, shape index: {}]
  %s3 = inlined_call_operand.vmem [shape: bf16[32,512], index: 3, kind: output, shape index: {}]
  %s4 = sld [smem:[#allocation0]]
  $region57: #{transformer_forward.32} parent=0
    _
  %s6 = ssub.s32 1, %s4
  %s7 = scalar_select 0, %s6, %s4
  loop: start=0, step=1, limit=4
  $region2: #{transformer_forward.32} parent=0 // loop_pre_header
    _
  $region3: #{transformer_forward.32} parent=0 // loop_header
    %s9 = sphi 0, %s13
    %p10 = scmp.ge.s32.totalorder %s9, 4
    %s16 = sphi 0, %s35
    %s17 = sphi 0, %s31
    %s18 = sphi 0, %s27
    %s19 = sphi 0, %s16
    %s20 = sphi 0, %s17
    %s21 = sphi 0, %s18
    %s22 = sphi 0, %s19
    %s23 = sphi 0, %s20
    %s24 = sphi 0, %s21
    %s40 = sphi 0, %s42
    %s43 = sphi 0, %s40
    %s44 = sphi 0, %s43
    %s60 = sphi 0, %s44
    %s68 = sphi 0, %s70
    %s71 = sphi 0, %s68
    %s72 = sphi 0, %s71
    %s88 = sphi 0, %s72
    %s94 = sphi 0, %s96
    %s97 = sphi 0, %s94
    %s98 = sphi 0, %s97
    %s114 = sphi 0, %s98
    %s122 = sphi 0, %s124
    %s125 = sphi 0, %s122
    %s126 = sphi 0, %s125
    %s142 = sphi 0, %s126
  $region4: #{transformer_forward.32} parent=0 // loop_header_branch
    %12 = sbr.rel (%p10) target = $region8
  $region5: #{transformer_forward.32} parent=0 // loop_body
    %s14 = ssub.s32 %s9, 1
    %s15 = ssub.s32 %s9, 2
    %s25 = sadd.s32 1, %s18
    %p26 = scmp.ge.s32.totalorder %s25, 1
    %s27 = scalar_select %p26, 0, %s25
    %s28 = sadd.s32 1, %s17
    %s29 = scalar_select %p26, %s28, %s17
    %p30 = scmp.ge.s32.totalorder %s29, 1
    %s31 = scalar_select %p30, 0, %s29
    %s32 = sadd.s32 1, %s16
    %s33 = scalar_select %p30, %s32, %s16
    %p34 = scmp.ge.s32.totalorder %s33, 2
    %s35 = scalar_select %p34, 0, %s33
    %s36 = ssub.s32 %s16, %s35
    %s37 = ssub.s32 %s18, %s27
    %s38 = sor.u32 %s36, %s37
    %p39 = scmp.eq.s32.totalorder %s38, 0
    %s41 = sadd.s32 %s40, 1
    %s42 = scalar_select %p39, %s40, %s41
    %p45 = pneg %p39
    %p46 = scmp.eq.s32.totalorder %s9, 1
    %p47 = por %p45, %p46
    %p48 = scmp.ne.s32.totalorder %s40, %s43
    %p49 = scmp.eq.s32.totalorder %s9, 0
    %p50 = por %p48, %p49
    %p51 = scmp.ne.s32.totalorder %s40, %s43
    %p52 = scmp.eq.s32.totalorder %s14, 1
    %p53 = por %p51, %p52
    %p54 = scmp.ne.s32.totalorder %s43, %s44
    %p55 = scmp.eq.s32.totalorder %s14, 0
    %p56 = por %p54, %p55
    %p57 = scmp.ne.s32.totalorder %s43, %s44
    %p58 = scmp.eq.s32.totalorder %s15, 1
    %p59 = por %p57, %p58
    %p61 = scmp.ne.s32.totalorder %s44, %s60
    %p62 = scmp.eq.s32.totalorder %s15, 0
    %p63 = por %p61, %p62
    %s64 = ssub.s32 %s18, %s27
    %s65 = ssub.s32 %s17, %s31
    %s66 = sor.u32 %s64, %s65
    %p67 = scmp.eq.s32.totalorder %s66, 0
    %s69 = sadd.s32 %s68, 1
    %s70 = scalar_select %p67, %s68, %s69
    %p73 = pneg %p67
    %p74 = scmp.eq.s32.totalorder %s9, 1
    %p75 = por %p73, %p74
    %p76 = scmp.ne.s32.totalorder %s68, %s71
    %p77 = scmp.eq.s32.totalorder %s9, 0
    %p78 = por %p76, %p77
    %p79 = scmp.ne.s32.totalorder %s68, %s71
    %p80 = scmp.eq.s32.totalorder %s14, 1
    %p81 = por %p79, %p80
    %p82 = scmp.ne.s32.totalorder %s71, %s72
    %p83 = scmp.eq.s32.totalorder %s14, 0
    %p84 = por %p82, %p83
    %p85 = scmp.ne.s32.totalorder %s71, %s72
    %p86 = scmp.eq.s32.totalorder %s15, 1
    %p87 = por %p85, %p86
    %p89 = scmp.ne.s32.totalorder %s72, %s88
    %p90 = scmp.eq.s32.totalorder %s15, 0
    %p91 = por %p89, %p90
    %s92 = ssub.s32 %s17, %s31
    %p93 = scmp.eq.s32.totalorder %s92, 0
    %s95 = sadd.s32 %s94, 1
    %s96 = scalar_select %p93, %s94, %s95
    %p99 = pneg %p93
    %p100 = scmp.eq.s32.totalorder %s9, 1
    %p101 = por %p99, %p100
    %p102 = scmp.ne.s32.totalorder %s94, %s97
    %p103 = scmp.eq.s32.totalorder %s9, 0
    %p104 = por %p102, %p103
    %p105 = scmp.ne.s32.totalorder %s94, %s97
    %p106 = scmp.eq.s32.totalorder %s14, 1
    %p107 = por %p105, %p106
    %p108 = scmp.ne.s32.totalorder %s97, %s98
    %p109 = scmp.eq.s32.totalorder %s14, 0
    %p110 = por %p108, %p109
    %p111 = scmp.ne.s32.totalorder %s97, %s98
    %p112 = scmp.eq.s32.totalorder %s15, 1
    %p113 = por %p111, %p112
    %p115 = scmp.ne.s32.totalorder %s98, %s114
    %p116 = scmp.eq.s32.totalorder %s15, 0
    %p117 = por %p115, %p116
    %s118 = ssub.s32 %s16, %s35
    %s119 = ssub.s32 %s17, %s31
    %s120 = sor.u32 %s118, %s119
    %p121 = scmp.eq.s32.totalorder %s120, 0
    %s123 = sadd.s32 %s122, 1
    %s124 = scalar_select %p121, %s122, %s123
    %p127 = pneg %p121
    %p128 = scmp.eq.s32.totalorder %s9, 1
    %p129 = por %p127, %p128
    %p130 = scmp.ne.s32.totalorder %s122, %s125
    %p131 = scmp.eq.s32.totalorder %s9, 0
    %p132 = por %p130, %p131
    %p133 = scmp.ne.s32.totalorder %s122, %s125
    %p134 = scmp.eq.s32.totalorder %s14, 1
    %p135 = por %p133, %p134
    %p136 = scmp.ne.s32.totalorder %s125, %s126
    %p137 = scmp.eq.s32.totalorder %s14, 0
    %p138 = por %p136, %p137
    %p139 = scmp.ne.s32.totalorder %s125, %s126
    %p140 = scmp.eq.s32.totalorder %s15, 1
    %p141 = por %p139, %p140
    %p143 = scmp.ne.s32.totalorder %s126, %s142
    %p144 = scmp.eq.s32.totalorder %s15, 0
    %p145 = por %p143, %p144
    %p146 = scmp.le.s32.totalorder 1, %s9
    %p147 = scmp.lt.s32.totalorder %s9, 3
    %p148 = pnand %p146, %p147
    %p149 = pneg %p148
    // Predicated region
    $region9: #{transformer_forward.32} parent=5 // pred_check
      _
    $region10: #{transformer_forward.32} parent=5 // pred_check_branch
      %151 = sbr.rel (%p148) target = $region12
    $region11: #{transformer_forward.32} parent=5 // pred_region
      %s152 = ssub.s32 %s9, 1
      // Predicated region
      $region13: #{transformer_forward.32} parent=11 // pred_check
        %p153 = pneg %p84
      $region14: #{transformer_forward.32} parent=11 // pred_check_branch
        %155 = sbr.rel (%p153) target = $region16
      $region15: #{transformer_forward.32} parent=11 // pred_region
        %s156 = smul.u32 16, %s21
        %s157 = smul.u32 4, %s20
        %p158 = scmp.lt.s32.totalorder %s156, 15
        %s159 = scalar_select %p158, %s156, 15
        %p160 = scmp.lt.s32.totalorder %s157, 3
        %s161 = scalar_select %p160, %s157, 3
        %s162 = smul.addr %s159, 4
        %s163 = sadd.s32 %s161, %s162
        %s164 = smul.addr %s163, 4
        %s165 = scalar_lea.vmem %s1, %s164
        %s166 = smul.u32 16, %s21
        %s167 = smul.u32 4, %s20
      $region16: #{transformer_forward.32} parent=11 // pred_fallthru
        _
      // Predicated region
      $region17: #{transformer_forward.32} parent=11 // pred_check
        %p168 = pneg %p110
      $region18: #{transformer_forward.32} parent=11 // pred_check_branch
        %170 = sbr.rel (%p168) target = $region20
      $region19: #{transformer_forward.32} parent=11 // pred_region
        %s171 = smul.u32 4, %s20
        %p172 = scmp.lt.s32.totalorder %s171, 3
        %s173 = scalar_select %p172, %s171, 3
        %s174 = scalar_lea.vmem %s2, %s173
        %s175 = smul.u32 4, %s20
      $region20: #{transformer_forward.32} parent=11 // pred_fallthru
        _
    $region12: #{transformer_forward.32} parent=5 // pred_fallthru
      _
    %p176 = scmp.lt.s32.totalorder %s9, 2
    // Predicated region
    $region21: #{transformer_forward.32} parent=5 // pred_check
      %p177 = pneg %p176
    $region22: #{transformer_forward.32} parent=5 // pred_check_branch
      %179 = sbr.rel (%p177) target = $region24
    $region23: #{transformer_forward.32} parent=5 // pred_region
      // Predicated region
      $region25: #{transformer_forward.32} parent=23 // pred_check
        %p180 = pneg %p50
      $region26: #{transformer_forward.32} parent=23 // pred_check_branch
        %182 = sbr.rel (%p180) target = $region28
      $region27: #{transformer_forward.32} parent=23 // pred_region
        %s183 = smul.u32 2, %s16
        %p184 = scmp.lt.s32.totalorder %s183, 3
        %s185 = scalar_select %p184, %s183, 3
        %p186 = scmp.lt.s32.totalorder %s18, 0
        %s187 = scalar_select %p186, %s18, 0
        %s188 = sadd.s32 %s187, %s185
        %s189 = smul.addr %s188, 4
        %s190 = scalar_lea.vmem %s0, %s189
        %s191 = smul.u32 2, %s16
      $region28: #{transformer_forward.32} parent=23 // pred_fallthru
        _
    $region24: #{transformer_forward.32} parent=5 // pred_fallthru
      _
    %p192 = scmp.le.s32.totalorder 1, %s9
    %p193 = scmp.lt.s32.totalorder %s9, 3
    %p194 = pnand %p192, %p193
    %p195 = pneg %p194
    // Predicated region
    $region29: #{transformer_forward.32} parent=5 // pred_check
      _
    $region30: #{transformer_forward.32} parent=5 // pred_check_branch
      %197 = sbr.rel (%p194) target = $region32
    $region31: #{transformer_forward.32} parent=5 // pred_region
      %s198 = ssub.s32 %s9, 1
      %s199 = smul.u32 2, %s19
      %p200 = scmp.lt.s32.totalorder %s199, 3
      %s201 = scalar_select %p200, %s199, 3
      %p202 = scmp.lt.s32.totalorder %s21, 0
      %s203 = scalar_select %p202, %s21, 0
      %s204 = sadd.s32 %s203, %s201
      %s205 = smul.addr %s204, 4
      %s206 = scalar_lea.vmem %s0, %s205
      %p207 = pneg %p56
      %p208 = pneg %p53
      %s209 = smul.u32 16, %s21
      %s210 = smul.u32 4, %s20
      %p211 = scmp.lt.s32.totalorder %s209, 15
      %s212 = scalar_select %p211, %s209, 15
      %p213 = scmp.lt.s32.totalorder %s210, 3
      %s214 = scalar_select %p213, %s210, 3
      %s215 = smul.addr %s212, 4
      %s216 = sadd.s32 %s214, %s215
      %s217 = smul.addr %s216, 4
      %s218 = scalar_lea.vmem %s1, %s217
      %p219 = pneg %p84
      %p220 = pneg %p81
      %s221 = smul.u32 4, %s20
      %p222 = scmp.lt.s32.totalorder %s221, 3
      %s223 = scalar_select %p222, %s221, 3
      %s224 = scalar_lea.vmem %s2, %s223
      %p225 = pneg %p110
      %p226 = pneg %p107
      %p227 = pneg %p138
      %p228 = pneg %p135
      %s229 = smul.u32 2, %s19
      %s230 = smul.u32 4, %s20
      %p231 = scmp.lt.s32.totalorder %s229, 3
      %s232 = scalar_select %p231, %s229, 3
      %p233 = scmp.lt.s32.totalorder %s230, 3
      %s234 = scalar_select %p233, %s230, 3
      %s235 = smul.addr %s232, 4
      %s236 = sadd.s32 %s234, %s235
      %s237 = smul.addr %s236, 4
      %s238 = scalar_lea.vmem %s3, %s237
      %s239 = smul.u32 2, %s19
      %p240 = scmp.lt.s32.totalorder %s239, 3
      %s241 = scalar_select %p240, %s239, 3
      %p242 = scmp.lt.s32.totalorder %s21, 0
      %s243 = scalar_select %p242, %s21, 0
      %s244 = sadd.s32 %s243, %s241
      %s245 = smul.addr %s244, 4
      %s246 = scalar_lea.vmem %s0, %s245
      %s247 = smul.u32 2, %s19
      %s248 = smul.u32 16, %s21
      %s249 = smul.u32 4, %s20
      %p250 = scmp.lt.s32.totalorder %s248, 15
      %s251 = scalar_select %p250, %s248, 15
      %p252 = scmp.lt.s32.totalorder %s249, 3
      %s253 = scalar_select %p252, %s249, 3
      %s254 = smul.addr %s251, 4
      %s255 = sadd.s32 %s253, %s254
      %s256 = smul.addr %s255, 4
      %s257 = scalar_lea.vmem %s1, %s256
      %s258 = smul.u32 16, %s21
      %s259 = smul.u32 4, %s20
      %s260 = smul.u32 4, %s20
      %p261 = scmp.lt.s32.totalorder %s260, 3
      %s262 = scalar_select %p261, %s260, 3
      %s263 = scalar_lea.vmem %s2, %s262
      %s264 = smul.u32 4, %s20
      %s265 = smul.u32 2, %s19
      %s266 = smul.u32 4, %s20
      %p267 = scmp.lt.s32.totalorder %s265, 3
      %s268 = scalar_select %p267, %s265, 3
      %p269 = scmp.lt.s32.totalorder %s266, 3
      %s270 = scalar_select %p269, %s266, 3
      %s271 = smul.addr %s268, 4
      %s272 = sadd.s32 %s270, %s271
      %s273 = smul.addr %s272, 4
      %s274 = scalar_lea.vmem %s3, %s273
      %s275 = smul.u32 2, %s19
      %s276 = smul.u32 4, %s20
      %v278 = vld [vmem:[%s246] sm:$0xf]
      %v279 = vld [vmem:[%s246 + $0x4] sm:$0xf]
      %v280 = vld [vmem:[%s257] sm:$0xff]
      %v281 = vld [vmem:[%s257 + $0x8] sm:$0xff]
      %v282 = vld [vmem:[%s257 + $0x10] sm:$0xff]
      %v283 = vld [vmem:[%s257 + $0x18] sm:$0xff]
      %v284 = vld [vmem:[%s257 + $0x20] sm:$0xff]
      %v285 = vld [vmem:[%s257 + $0x28] sm:$0xff]
      %v286 = vld [vmem:[%s257 + $0x30] sm:$0xff]
      %v287 = vld [vmem:[%s257 + $0x38] sm:$0xff]
      %v288 = vld [vmem:[%s257 + $0x40] sm:$0xff]
      %v289 = vld [vmem:[%s257 + $0x48] sm:$0xff]
      %v290 = vld [vmem:[%s257 + $0x50] sm:$0xff]
      %v291 = vld [vmem:[%s257 + $0x58] sm:$0xff]
      %v292 = vld [vmem:[%s257 + $0x60] sm:$0xff]
      %v293 = vld [vmem:[%s257 + $0x68] sm:$0xff]
      %v294 = vld [vmem:[%s257 + $0x70] sm:$0xff]
      %v295 = vld [vmem:[%s257 + $0x78] sm:$0xff]
      %v296 = vld [vmem:[%s257 + $0x80] sm:$0xff]
      %v297 = vld [vmem:[%s257 + $0x88] sm:$0xff]
      %v298 = vld [vmem:[%s257 + $0x90] sm:$0xff]
      %v299 = vld [vmem:[%s257 + $0x98] sm:$0xff]
      %v300 = vld [vmem:[%s257 + $0xa0] sm:$0xff]
      %v301 = vld [vmem:[%s257 + $0xa8] sm:$0xff]
      %v302 = vld [vmem:[%s257 + $0xb0] sm:$0xff]
      %v303 = vld [vmem:[%s257 + $0xb8] sm:$0xff]
      %v304 = vld [vmem:[%s257 + $0xc0] sm:$0xff]
      %v305 = vld [vmem:[%s257 + $0xc8] sm:$0xff]
      %v306 = vld [vmem:[%s257 + $0xd0] sm:$0xff]
      %v307 = vld [vmem:[%s257 + $0xd8] sm:$0xff]
      %v308 = vld [vmem:[%s257 + $0xe0] sm:$0xff]
      %v309 = vld [vmem:[%s257 + $0xe8] sm:$0xff]
      %v310 = vld [vmem:[%s257 + $0xf0] sm:$0xff]
      %v311 = vld [vmem:[%s257 + $0xf8] sm:$0xff]
      %v314 = vunpack.c.l.b16 %v278
      %v315 = vunpack.c.l.b16 %v279
      %v316 = vpack.c.b16 %v315, %v314
      %v350 = vunpack.c.l.b16 %v280
      %v351 = vunpack.c.h.b16 %v280
      %v352 = vunpack.c.l.b16 %v281
      %v353 = vunpack.c.h.b16 %v281
      %v354 = vunpack.c.l.b16 %v282
      %v355 = vunpack.c.h.b16 %v282
      %v356 = vunpack.c.l.b16 %v283
      %v357 = vunpack.c.h.b16 %v283
      %v358 = vunpack.c.l.b16 %v284
      %v359 = vunpack.c.h.b16 %v284
      %v360 = vunpack.c.l.b16 %v285
      %v361 = vunpack.c.h.b16 %v285
      %v362 = vunpack.c.l.b16 %v286
      %v363 = vunpack.c.h.b16 %v286
      %v364 = vunpack.c.l.b16 %v287
      %v365 = vunpack.c.h.b16 %v287
      %v366 = vunpack.c.l.b16 %v288
      %v367 = vunpack.c.h.b16 %v288
      %v368 = vunpack.c.l.b16 %v289
      %v369 = vunpack.c.h.b16 %v289
      %v370 = vunpack.c.l.b16 %v290
      %v371 = vunpack.c.h.b16 %v290
      %v372 = vunpack.c.l.b16 %v291
      %v373 = vunpack.c.h.b16 %v291
      %v374 = vunpack.c.l.b16 %v292
      %v375 = vunpack.c.h.b16 %v292
      %v376 = vunpack.c.l.b16 %v293
      %v377 = vunpack.c.h.b16 %v293
      %v378 = vunpack.c.l.b16 %v294
      %v379 = vunpack.c.h.b16 %v294
      %v380 = vunpack.c.l.b16 %v295
      %v381 = vunpack.c.h.b16 %v295
      %v382 = vunpack.c.l.b16 %v296
      %v383 = vunpack.c.h.b16 %v296
      %v384 = vunpack.c.l.b16 %v297
      %v385 = vunpack.c.h.b16 %v297
      %v386 = vunpack.c.l.b16 %v298
      %v387 = vunpack.c.h.b16 %v298
      %v388 = vunpack.c.l.b16 %v299
      %v389 = vunpack.c.h.b16 %v299
      %v390 = vunpack.c.l.b16 %v300
      %v391 = vunpack.c.h.b16 %v300
      %v392 = vunpack.c.l.b16 %v301
      %v393 = vunpack.c.h.b16 %v301
      %v394 = vunpack.c.l.b16 %v302
      %v395 = vunpack.c.h.b16 %v302
      %v396 = vunpack.c.l.b16 %v303
      %v397 = vunpack.c.h.b16 %v303
      %v398 = vunpack.c.l.b16 %v304
      %v399 = vunpack.c.h.b16 %v304
      %v400 = vunpack.c.l.b16 %v305
      %v401 = vunpack.c.h.b16 %v305
      %v402 = vunpack.c.l.b16 %v306
      %v403 = vunpack.c.h.b16 %v306
      %v404 = vunpack.c.l.b16 %v307
      %v405 = vunpack.c.h.b16 %v307
      %v406 = vunpack.c.l.b16 %v308
      %v407 = vunpack.c.h.b16 %v308
      %v408 = vunpack.c.l.b16 %v309
      %v409 = vunpack.c.h.b16 %v309
      %v410 = vunpack.c.l.b16 %v310
      %v411 = vunpack.c.h.b16 %v310
      %v412 = vunpack.c.l.b16 %v311
      %v413 = vunpack.c.h.b16 %v311
      %v414 = vpack.c.b16 %v354, %v350
      %v415 = vpack.c.b16 %v355, %v351
      %v416 = vpack.c.b16 %v356, %v352
      %v417 = vpack.c.b16 %v357, %v353
      %v418 = vpack.c.b16 %v362, %v358
      %v419 = vpack.c.b16 %v363, %v359
      %v420 = vpack.c.b16 %v364, %v360
      %v421 = vpack.c.b16 %v365, %v361
      %v422 = vpack.c.b16 %v370, %v366
      %v423 = vpack.c.b16 %v371, %v367
      %v424 = vpack.c.b16 %v372, %v368
      %v425 = vpack.c.b16 %v373, %v369
      %v426 = vpack.c.b16 %v378, %v374
      %v427 = vpack.c.b16 %v379, %v375
      %v428 = vpack.c.b16 %v380, %v376
      %v429 = vpack.c.b16 %v381, %v377
      %v430 = vpack.c.b16 %v386, %v382
      %v431 = vpack.c.b16 %v387, %v383
      %v432 = vpack.c.b16 %v388, %v384
      %v433 = vpack.c.b16 %v389, %v385
      %v434 = vpack.c.b16 %v394, %v390
      %v435 = vpack.c.b16 %v395, %v391
      %v436 = vpack.c.b16 %v396, %v392
      %v437 = vpack.c.b16 %v397, %v393
      %v438 = vpack.c.b16 %v402, %v398
      %v439 = vpack.c.b16 %v403, %v399
      %v440 = vpack.c.b16 %v404, %v400
      %v441 = vpack.c.b16 %v405, %v401
      %v442 = vpack.c.b16 %v410, %v406
      %v443 = vpack.c.b16 %v411, %v407
      %v444 = vpack.c.b16 %v412, %v408
      %v445 = vpack.c.b16 %v413, %v409
      %478 = vmatprep.subr.bf16.mxu0 %v443
      %479 = vmatpush1.bf16.msra.mxu0 %v442
      %480 = vmatprep.subr.bf16.mxu0 %v439
      %481 = vmatpush1.bf16.msra.mxu0 %v438
      %482 = vmatprep.subr.bf16.mxu0 %v435
      %483 = vmatpush1.bf16.msra.mxu0 %v434
      %484 = vmatprep.subr.bf16.mxu0 %v431
      %485 = vmatpush1.bf16.msra.mxu0 %v430
      %486 = vmatprep.subr.bf16.mxu0 %v427
      %487 = vmatpush1.bf16.msra.mxu0 %v426
      %488 = vmatprep.subr.bf16.mxu0 %v423
      %489 = vmatpush1.bf16.msra.mxu0 %v422
      %490 = vmatprep.subr.bf16.mxu0 %v419
      %491 = vmatpush1.bf16.msra.mxu0 %v418
      %492 = vmatprep.subr.bf16.mxu0 %v415
      %493 = vmatpush1.bf16.msra.mxu0 %v414
      %494 = vmatprep.subr.bf16.mxu0 0
      %495 = vmatpush2.bf16.msra.mxu0 0
      %496 = vmatprep.subr.bf16.mxu0 0
      %497 = vmatpush2.bf16.msra.mxu0 0
      %498 = vmatprep.subr.bf16.mxu0 0
      %499 = vmatpush2.bf16.msra.mxu0 0
      %500 = vmatprep.subr.bf16.mxu0 0
      %501 = vmatpush2.bf16.msra.mxu0 0
      %502 = vmatprep.subr.bf16.mxu0 0
      %503 = vmatpush2.bf16.msra.mxu0 0
      %504 = vmatprep.subr.bf16.mxu0 0
      %505 = vmatpush2.bf16.msra.mxu0 0
      %506 = vmatprep.subr.bf16.mxu0 0
      %507 = vmatpush2.bf16.msra.mxu0 0
      %508 = vmatprep.subr.bf16.mxu0 0
      %509 = vmatpush2.bf16.msra.mxu0 0
      %510 = vmatprep.mubr.bf16.mxu0 0
      %511 = vmatmul.mubr.bf16.gmra.mxu0 %v316
      %v512 = vpop.f32.mrf.mxu0
      %v513 = vadd.f32 0.0, %v512
      %v514 = vpop.f32.mrf.mxu0
      %v515 = vadd.f32 0.0, %v514
      %v516 = vpop.f32.mrf.mxu0
      %v517 = vadd.f32 0.0, %v516
      %v518 = vpop.f32.mrf.mxu0
      %v519 = vadd.f32 0.0, %v518
      %520 = vdwg.mxu0
      %521 = vmatprep.subr.bf16.mxu0 %v445
      %522 = vmatpush1.bf16.msra.mxu0 %v444
      %523 = vmatprep.subr.bf16.mxu0 %v441
      %524 = vmatpush1.bf16.msra.mxu0 %v440
      %525 = vmatprep.subr.bf16.mxu0 %v437
      %526 = vmatpush1.bf16.msra.mxu0 %v436
      %527 = vmatprep.subr.bf16.mxu0 %v433
      %528 = vmatpush1.bf16.msra.mxu0 %v432
      %529 = vmatprep.subr.bf16.mxu0 %v429
      %530 = vmatpush1.bf16.msra.mxu0 %v428
      %531 = vmatprep.subr.bf16.mxu0 %v425
      %532 = vmatpush1.bf16.msra.mxu0 %v424
      %533 = vmatprep.subr.bf16.mxu0 %v421
      %534 = vmatpush1.bf16.msra.mxu0 %v420
      %535 = vmatprep.subr.bf16.mxu0 %v417
      %536 = vmatpush1.bf16.msra.mxu0 %v416
      %537 = vmatprep.subr.bf16.mxu0 0
      %538 = vmatpush2.bf16.msra.mxu0 0
      %539 = vmatprep.subr.bf16.mxu0 0
      %540 = vmatpush2.bf16.msra.mxu0 0
      %541 = vmatprep.subr.bf16.mxu0 0
      %542 = vmatpush2.bf16.msra.mxu0 0
      %543 = vmatprep.subr.bf16.mxu0 0
      %544 = vmatpush2.bf16.msra.mxu0 0
      %545 = vmatprep.subr.bf16.mxu0 0
      %546 = vmatpush2.bf16.msra.mxu0 0
      %547 = vmatprep.subr.bf16.mxu0 0
      %548 = vmatpush2.bf16.msra.mxu0 0
      %549 = vmatprep.subr.bf16.mxu0 0
      %550 = vmatpush2.bf16.msra.mxu0 0
      %551 = vmatprep.subr.bf16.mxu0 0
      %552 = vmatpush2.bf16.msra.mxu0 0
      %553 = vmatprep.mubr.bf16.mxu0 0
      %554 = vmatmul.mubr.bf16.gmra.mxu0 %v316
      %v555 = vpop.f32.mrf.mxu0
      %v556 = vadd.f32 0.0, %v555
      %v557 = vpop.f32.mrf.mxu0
      %v558 = vadd.f32 0.0, %v557
      %v559 = vpop.f32.mrf.mxu0
      %v560 = vadd.f32 0.0, %v559
      %v561 = vpop.f32.mrf.mxu0
      %v562 = vadd.f32 0.0, %v561
      %563 = vdwg.mxu0
      %p564 = scmp.eq.s32.totalorder %s21, 0
      // Predicated region
      $region33: #{transformer_forward.32} parent=31 // pred_check
        %p565 = pneg %p564
      $region34: #{transformer_forward.32} parent=31 // pred_check_branch
        %567 = sbr.rel (%p565) target = $region36
      $region35: #{transformer_forward.32} parent=31 // pred_region
        %568 = vst [vmem:[#allocation2] sm:$0xff] %v513
        %569 = vst [vmem:[#allocation2 + $0x8] sm:$0xff] %v515
        %570 = vst [vmem:[#allocation2 + $0x10] sm:$0xff] %v556
        %571 = vst [vmem:[#allocation2 + $0x18] sm:$0xff] %v558
        %572 = vst [vmem:[#allocation2 + $0x20] sm:$0xff] %v517
        %573 = vst [vmem:[#allocation2 + $0x28] sm:$0xff] %v519
        %574 = vst [vmem:[#allocation2 + $0x30] sm:$0xff] %v560
        %575 = vst [vmem:[#allocation2 + $0x38] sm:$0xff] %v562
      $region36: #{transformer_forward.32} parent=31 // pred_fallthru
        _
      %p576 = scmp.gt.s32.totalorder %s21, 0
      // Predicated region
      $region37: #{transformer_forward.32} parent=31 // pred_check
        %p577 = pneg %p576
      $region38: #{transformer_forward.32} parent=31 // pred_check_branch
        %579 = sbr.rel (%p577) target = $region40
      $region39: #{transformer_forward.32} parent=31 // pred_region
        %v580 = vld [vmem:[#allocation2] sm:$0xff]
        %v581 = vld [vmem:[#allocation2 + $0x8] sm:$0xff]
        %v582 = vld [vmem:[#allocation2 + $0x10] sm:$0xff]
        %v583 = vld [vmem:[#allocation2 + $0x18] sm:$0xff]
        %v584 = vld [vmem:[#allocation2 + $0x20] sm:$0xff]
        %v585 = vld [vmem:[#allocation2 + $0x28] sm:$0xff]
        %v586 = vld [vmem:[#allocation2 + $0x30] sm:$0xff]
        %v587 = vld [vmem:[#allocation2 + $0x38] sm:$0xff]
        %v588 = vadd.f32 %v580, %v513
        %v589 = vadd.f32 %v581, %v515
        %v590 = vadd.f32 %v582, %v556
        %v591 = vadd.f32 %v583, %v558
        %v592 = vadd.f32 %v584, %v517
        %v593 = vadd.f32 %v585, %v519
        %v594 = vadd.f32 %v586, %v560
        %v595 = vadd.f32 %v587, %v562
        %596 = vst [vmem:[#allocation2] sm:$0xff] %v588
        %597 = vst [vmem:[#allocation2 + $0x8] sm:$0xff] %v589
        %598 = vst [vmem:[#allocation2 + $0x10] sm:$0xff] %v590
        %599 = vst [vmem:[#allocation2 + $0x18] sm:$0xff] %v591
        %600 = vst [vmem:[#allocation2 + $0x20] sm:$0xff] %v592
        %601 = vst [vmem:[#allocation2 + $0x28] sm:$0xff] %v593
        %602 = vst [vmem:[#allocation2 + $0x30] sm:$0xff] %v594
        %603 = vst [vmem:[#allocation2 + $0x38] sm:$0xff] %v595
      $region40: #{transformer_forward.32} parent=31 // pred_fallthru
        _
      // Predicated region
      $region41: #{transformer_forward.32} parent=31 // pred_check
        %p604 = pneg %p564
      $region42: #{transformer_forward.32} parent=31 // pred_check_branch
        %606 = sbr.rel (%p604) target = $region44
      $region43: #{transformer_forward.32} parent=31 // pred_region
        %v607 = vld [vmem:[#allocation2] sm:$0xff]
        %v608 = vld [vmem:[#allocation2 + $0x8] sm:$0xff]
        %v609 = vld [vmem:[#allocation2 + $0x10] sm:$0xff]
        %v610 = vld [vmem:[#allocation2 + $0x18] sm:$0xff]
        %v611 = vld [vmem:[#allocation2 + $0x20] sm:$0xff]
        %v612 = vld [vmem:[#allocation2 + $0x28] sm:$0xff]
        %v613 = vld [vmem:[#allocation2 + $0x30] sm:$0xff]
        %v614 = vld [vmem:[#allocation2 + $0x38] sm:$0xff]
        %v615 = vld [vmem:[%s263] sm:$0xf]
        %v617 = vlaneseq
        %v618 = vshrl.u32 %v617, 7
        %v619 = vsub.s32 0, %v618
        %v620 = vrot.slane %v615, %v619
        %v621 = vlaneseq
        %v622 = vshrl.u32 %v621, 7
        %v623 = vsub.s32 1, %v622
        %v624 = vrot.slane %v615, %v623
        %v625 = vlaneseq
        %v626 = vshrl.u32 %v625, 7
        %v627 = vsub.s32 2, %v626
        %v628 = vrot.slane %v615, %v627
        %v629 = vlaneseq
        %v630 = vshrl.u32 %v629, 7
        %v631 = vsub.s32 3, %v630
        %v632 = vrot.slane %v615, %v631
        %v637 = vadd.f32 %v607, %v620
        %v638 = vadd.f32 %v608, %v624
        %v639 = vadd.f32 %v609, %v628
        %v640 = vadd.f32 %v610, %v632
        %v641 = vadd.f32 %v611, %v620
        %v642 = vadd.f32 %v612, %v624
        %v643 = vadd.f32 %v613, %v628
        %v644 = vadd.f32 %v614, %v632
        %v645 = vmax.f32 %v637, 0.0
        %v646 = vmax.f32 %v638, 0.0
        %v647 = vmax.f32 %v639, 0.0
        %v648 = vmax.f32 %v640, 0.0
        %v649 = vmax.f32 %v641, 0.0
        %v650 = vmax.f32 %v642, 0.0
        %v651 = vmax.f32 %v643, 0.0
        %v652 = vmax.f32 %v644, 0.0
        %v653 = vpack.c.bf16 %v649, %v645
        %v654 = vpack.c.bf16 %v650, %v646
        %v655 = vpack.c.bf16 %v651, %v647
        %v656 = vpack.c.bf16 %v652, %v648
        %v661 = vunpack.c.l.b16 %v653
        %v662 = vunpack.c.l.b16 %v654
        %v663 = vunpack.c.l.b16 %v655
        %v664 = vunpack.c.l.b16 %v656
        %v665 = vunpack.c.h.b16 %v653
        %v666 = vunpack.c.h.b16 %v654
        %v667 = vunpack.c.h.b16 %v655
        %v668 = vunpack.c.h.b16 %v656
        %v669 = vpack.c.b16 %v662, %v661
        %v670 = vpack.c.b16 %v664, %v663
        %v671 = vpack.c.b16 %v666, %v665
        %v672 = vpack.c.b16 %v668, %v667
        %677 = vst [vmem:[%s274] sm:$0xff] %v669
        %678 = vst [vmem:[%s274 + $0x8] sm:$0xff] %v670
        %679 = vst [vmem:[%s274 + $0x10] sm:$0xff] %v671
        %680 = vst [vmem:[%s274 + $0x18] sm:$0xff] %v672
      $region44: #{transformer_forward.32} parent=31 // pred_fallthru
        _
      %s681 = smul.u32 2, %s19
      %s682 = smul.u32 4, %s20
      %p683 = scmp.lt.s32.totalorder %s681, 3
      %s684 = scalar_select %p683, %s681, 3
      %p685 = scmp.lt.s32.totalorder %s682, 3
      %s686 = scalar_select %p685, %s682, 3
      %s687 = smul.addr %s684, 4
      %s688 = sadd.s32 %s686, %s687
      %s689 = smul.addr %s688, 4
      %s690 = scalar_lea.vmem %s3, %s689
      // Predicated region
      $region45: #{transformer_forward.32} parent=31 // pred_check
        %p691 = pneg %p135
      $region46: #{transformer_forward.32} parent=31 // pred_check_branch
        %693 = sbr.rel (%p691) target = $region48
      $region47: #{transformer_forward.32} parent=31 // pred_region
        %s694 = smul.u32 2, %s19
        %s695 = smul.u32 4, %s20
      $region48: #{transformer_forward.32} parent=31 // pred_fallthru
        _
    $region32: #{transformer_forward.32} parent=5 // pred_fallthru
      _
    %p696 = scmp.le.s32.totalorder 2, %s9
    // Predicated region
    $region49: #{transformer_forward.32} parent=5 // pred_check
      %p697 = pneg %p696
    $region50: #{transformer_forward.32} parent=5 // pred_check_branch
      %699 = sbr.rel (%p697) target = $region52
    $region51: #{transformer_forward.32} parent=5 // pred_region
      %s700 = ssub.s32 %s9, 2
      // Predicated region
      $region53: #{transformer_forward.32} parent=51 // pred_check
        %p701 = pneg %p141
      $region54: #{transformer_forward.32} parent=51 // pred_check_branch
        %703 = sbr.rel (%p701) target = $region56
      $region55: #{transformer_forward.32} parent=51 // pred_region
        %s704 = smul.u32 2, %s22
        %s705 = smul.u32 4, %s23
        %p706 = scmp.lt.s32.totalorder %s704, 3
        %s707 = scalar_select %p706, %s704, 3
        %p708 = scmp.lt.s32.totalorder %s705, 3
        %s709 = scalar_select %p708, %s705, 3
        %s710 = smul.addr %s707, 4
        %s711 = sadd.s32 %s709, %s710
        %s712 = smul.addr %s711, 4
        %s713 = scalar_lea.vmem %s3, %s712
      $region56: #{transformer_forward.32} parent=51 // pred_fallthru
        _
    $region52: #{transformer_forward.32} parent=5 // pred_fallthru
      _
  $region6: #{transformer_forward.32} parent=0 // loop_footer
    %s13 = sadd.s32 1, %s9
  $region7: #{transformer_forward.32} parent=0 // loop_footer_branch
    %8 = sbr.rel target = $region3
  $region8: #{transformer_forward.32} parent=0 // loop_exit
    _

// kernel: transformer_forward.43
$region0: #{transformer_forward.43}
  #allocation0 [shape = 'u32[]', space=smem, size = 0x4, offset = 0x4, fixed_abs, tag = 'smem constant byte address 0x4 - core index']
  #allocation1 [shape = 'u32[144,128]{1,0:T(1,128)}', space=vmem, size = 0x12000, scoped, tag = 'internal scratch']
  #allocation2 [shape = 'f32[16,256]{1,0:T(8,128)}', space=vmem, size = 0x4000, scoped, tag = 'scratch operand']
  %s0 = inlined_call_operand.vmem [shape: bf16[32,128], index: 0, kind: input, shape index: {}]
  %s1 = inlined_call_operand.vmem [shape: bf16[128,256], index: 1, kind: input, shape index: {}]
  %s2 = inlined_call_operand.vmem [shape: f32[1,256], index: 2, kind: input, shape index: {}]
  %s3 = inlined_call_operand.vmem [shape: bf16[32,256], index: 3, kind: output, shape index: {}]
  %s4 = sld [smem:[#allocation0]]
  $region57: #{transformer_forward.43} parent=0
    _
  %s6 = ssub.s32 1, %s4
  %s7 = scalar_select 0, %s6, %s4
  loop: start=0, step=1, limit=4
  $region2: #{transformer_forward.43} parent=0 // loop_pre_header
    _
  $region3: #{transformer_forward.43} parent=0 // loop_header
    %s9 = sphi 0, %s13
    %p10 = scmp.ge.s32.totalorder %s9, 4
    %s16 = sphi 0, %s35
    %s17 = sphi 0, %s31
    %s18 = sphi 0, %s27
    %s19 = sphi 0, %s16
    %s20 = sphi 0, %s17
    %s21 = sphi 0, %s18
    %s22 = sphi 0, %s19
    %s23 = sphi 0, %s20
    %s24 = sphi 0, %s21
    %s40 = sphi 0, %s42
    %s43 = sphi 0, %s40
    %s44 = sphi 0, %s43
    %s60 = sphi 0, %s44
    %s68 = sphi 0, %s70
    %s71 = sphi 0, %s68
    %s72 = sphi 0, %s71
    %s88 = sphi 0, %s72
    %s94 = sphi 0, %s96
    %s97 = sphi 0, %s94
    %s98 = sphi 0, %s97
    %s114 = sphi 0, %s98
    %s122 = sphi 0, %s124
    %s125 = sphi 0, %s122
    %s126 = sphi 0, %s125
    %s142 = sphi 0, %s126
  $region4: #{transformer_forward.43} parent=0 // loop_header_branch
    %12 = sbr.rel (%p10) target = $region8
  $region5: #{transformer_forward.43} parent=0 // loop_body
    %s14 = ssub.s32 %s9, 1
    %s15 = ssub.s32 %s9, 2
    %s25 = sadd.s32 1, %s18
    %p26 = scmp.ge.s32.totalorder %s25, 1
    %s27 = scalar_select %p26, 0, %s25
    %s28 = sadd.s32 1, %s17
    %s29 = scalar_select %p26, %s28, %s17
    %p30 = scmp.ge.s32.totalorder %s29, 1
    %s31 = scalar_select %p30, 0, %s29
    %s32 = sadd.s32 1, %s16
    %s33 = scalar_select %p30, %s32, %s16
    %p34 = scmp.ge.s32.totalorder %s33, 2
    %s35 = scalar_select %p34, 0, %s33
    %s36 = ssub.s32 %s16, %s35
    %s37 = ssub.s32 %s18, %s27
    %s38 = sor.u32 %s36, %s37
    %p39 = scmp.eq.s32.totalorder %s38, 0
    %s41 = sadd.s32 %s40, 1
    %s42 = scalar_select %p39, %s40, %s41
    %p45 = pneg %p39
    %p46 = scmp.eq.s32.totalorder %s9, 1
    %p47 = por %p45, %p46
    %p48 = scmp.ne.s32.totalorder %s40, %s43
    %p49 = scmp.eq.s32.totalorder %s9, 0
    %p50 = por %p48, %p49
    %p51 = scmp.ne.s32.totalorder %s40, %s43
    %p52 = scmp.eq.s32.totalorder %s14, 1
    %p53 = por %p51, %p52
    %p54 = scmp.ne.s32.totalorder %s43, %s44
    %p55 = scmp.eq.s32.totalorder %s14, 0
    %p56 = por %p54, %p55
    %p57 = scmp.ne.s32.totalorder %s43, %s44
    %p58 = scmp.eq.s32.totalorder %s15, 1
    %p59 = por %p57, %p58
    %p61 = scmp.ne.s32.totalorder %s44, %s60
    %p62 = scmp.eq.s32.totalorder %s15, 0
    %p63 = por %p61, %p62
    %s64 = ssub.s32 %s18, %s27
    %s65 = ssub.s32 %s17, %s31
    %s66 = sor.u32 %s64, %s65
    %p67 = scmp.eq.s32.totalorder %s66, 0
    %s69 = sadd.s32 %s68, 1
    %s70 = scalar_select %p67, %s68, %s69
    %p73 = pneg %p67
    %p74 = scmp.eq.s32.totalorder %s9, 1
    %p75 = por %p73, %p74
    %p76 = scmp.ne.s32.totalorder %s68, %s71
    %p77 = scmp.eq.s32.totalorder %s9, 0
    %p78 = por %p76, %p77
    %p79 = scmp.ne.s32.totalorder %s68, %s71
    %p80 = scmp.eq.s32.totalorder %s14, 1
    %p81 = por %p79, %p80
    %p82 = scmp.ne.s32.totalorder %s71, %s72
    %p83 = scmp.eq.s32.totalorder %s14, 0
    %p84 = por %p82, %p83
    %p85 = scmp.ne.s32.totalorder %s71, %s72
    %p86 = scmp.eq.s32.totalorder %s15, 1
    %p87 = por %p85, %p86
    %p89 = scmp.ne.s32.totalorder %s72, %s88
    %p90 = scmp.eq.s32.totalorder %s15, 0
    %p91 = por %p89, %p90
    %s92 = ssub.s32 %s17, %s31
    %p93 = scmp.eq.s32.totalorder %s92, 0
    %s95 = sadd.s32 %s94, 1
    %s96 = scalar_select %p93, %s94, %s95
    %p99 = pneg %p93
    %p100 = scmp.eq.s32.totalorder %s9, 1
    %p101 = por %p99, %p100
    %p102 = scmp.ne.s32.totalorder %s94, %s97
    %p103 = scmp.eq.s32.totalorder %s9, 0
    %p104 = por %p102, %p103
    %p105 = scmp.ne.s32.totalorder %s94, %s97
    %p106 = scmp.eq.s32.totalorder %s14, 1
    %p107 = por %p105, %p106
    %p108 = scmp.ne.s32.totalorder %s97, %s98
    %p109 = scmp.eq.s32.totalorder %s14, 0
    %p110 = por %p108, %p109
    %p111 = scmp.ne.s32.totalorder %s97, %s98
    %p112 = scmp.eq.s32.totalorder %s15, 1
    %p113 = por %p111, %p112
    %p115 = scmp.ne.s32.totalorder %s98, %s114
    %p116 = scmp.eq.s32.totalorder %s15, 0
    %p117 = por %p115, %p116
    %s118 = ssub.s32 %s16, %s35
    %s119 = ssub.s32 %s17, %s31
    %s120 = sor.u32 %s118, %s119
    %p121 = scmp.eq.s32.totalorder %s120, 0
    %s123 = sadd.s32 %s122, 1
    %s124 = scalar_select %p121, %s122, %s123
    %p127 = pneg %p121
    %p128 = scmp.eq.s32.totalorder %s9, 1
    %p129 = por %p127, %p128
    %p130 = scmp.ne.s32.totalorder %s122, %s125
    %p131 = scmp.eq.s32.totalorder %s9, 0
    %p132 = por %p130, %p131
    %p133 = scmp.ne.s32.totalorder %s122, %s125
    %p134 = scmp.eq.s32.totalorder %s14, 1
    %p135 = por %p133, %p134
    %p136 = scmp.ne.s32.totalorder %s125, %s126
    %p137 = scmp.eq.s32.totalorder %s14, 0
    %p138 = por %p136, %p137
    %p139 = scmp.ne.s32.totalorder %s125, %s126
    %p140 = scmp.eq.s32.totalorder %s15, 1
    %p141 = por %p139, %p140
    %p143 = scmp.ne.s32.totalorder %s126, %s142
    %p144 = scmp.eq.s32.totalorder %s15, 0
    %p145 = por %p143, %p144
    %p146 = scmp.le.s32.totalorder 1, %s9
    %p147 = scmp.lt.s32.totalorder %s9, 3
    %p148 = pnand %p146, %p147
    %p149 = pneg %p148
    // Predicated region
    $region9: #{transformer_forward.43} parent=5 // pred_check
      _
    $region10: #{transformer_forward.43} parent=5 // pred_check_branch
      %151 = sbr.rel (%p148) target = $region12
    $region11: #{transformer_forward.43} parent=5 // pred_region
      %s152 = ssub.s32 %s9, 1
      // Predicated region
      $region13: #{transformer_forward.43} parent=11 // pred_check
        %p153 = pneg %p84
      $region14: #{transformer_forward.43} parent=11 // pred_check_branch
        %155 = sbr.rel (%p153) target = $region16
      $region15: #{transformer_forward.43} parent=11 // pred_region
        %s156 = smul.u32 16, %s21
        %s157 = smul.u32 2, %s20
        %p158 = scmp.lt.s32.totalorder %s156, 15
        %s159 = scalar_select %p158, %s156, 15
        %p160 = scmp.lt.s32.totalorder %s157, 1
        %s161 = scalar_select %p160, %s157, 1
        %s162 = smul.addr %s159, 2
        %s163 = sadd.s32 %s161, %s162
        %s164 = smul.addr %s163, 4
        %s165 = scalar_lea.vmem %s1, %s164
        %s166 = smul.u32 16, %s21
        %s167 = smul.u32 2, %s20
      $region16: #{transformer_forward.43} parent=11 // pred_fallthru
        _
      // Predicated region
      $region17: #{transformer_forward.43} parent=11 // pred_check
        %p168 = pneg %p110
      $region18: #{transformer_forward.43} parent=11 // pred_check_branch
        %170 = sbr.rel (%p168) target = $region20
      $region19: #{transformer_forward.43} parent=11 // pred_region
        %s171 = smul.u32 2, %s20
        %p172 = scmp.lt.s32.totalorder %s171, 1
        %s173 = scalar_select %p172, %s171, 1
        %s174 = scalar_lea.vmem %s2, %s173
        %s175 = smul.u32 2, %s20
      $region20: #{transformer_forward.43} parent=11 // pred_fallthru
        _
    $region12: #{transformer_forward.43} parent=5 // pred_fallthru
      _
    %p176 = scmp.lt.s32.totalorder %s9, 2
    // Predicated region
    $region21: #{transformer_forward.43} parent=5 // pred_check
      %p177 = pneg %p176
    $region22: #{transformer_forward.43} parent=5 // pred_check_branch
      %179 = sbr.rel (%p177) target = $region24
    $region23: #{transformer_forward.43} parent=5 // pred_region
      // Predicated region
      $region25: #{transformer_forward.43} parent=23 // pred_check
        %p180 = pneg %p50
      $region26: #{transformer_forward.43} parent=23 // pred_check_branch
        %182 = sbr.rel (%p180) target = $region28
      $region27: #{transformer_forward.43} parent=23 // pred_region
        %s183 = smul.u32 2, %s16
        %p184 = scmp.lt.s32.totalorder %s183, 3
        %s185 = scalar_select %p184, %s183, 3
        %p186 = scmp.lt.s32.totalorder %s18, 0
        %s187 = scalar_select %p186, %s18, 0
        %s188 = sadd.s32 %s187, %s185
        %s189 = smul.addr %s188, 4
        %s190 = scalar_lea.vmem %s0, %s189
        %s191 = smul.u32 2, %s16
      $region28: #{transformer_forward.43} parent=23 // pred_fallthru
        _
    $region24: #{transformer_forward.43} parent=5 // pred_fallthru
      _
    %p192 = scmp.le.s32.totalorder 1, %s9
    %p193 = scmp.lt.s32.totalorder %s9, 3
    %p194 = pnand %p192, %p193
    %p195 = pneg %p194
    // Predicated region
    $region29: #{transformer_forward.43} parent=5 // pred_check
      _
    $region30: #{transformer_forward.43} parent=5 // pred_check_branch
      %197 = sbr.rel (%p194) target = $region32
    $region31: #{transformer_forward.43} parent=5 // pred_region
      %s198 = ssub.s32 %s9, 1
      %s199 = smul.u32 2, %s19
      %p200 = scmp.lt.s32.totalorder %s199, 3
      %s201 = scalar_select %p200, %s199, 3
      %p202 = scmp.lt.s32.totalorder %s21, 0
      %s203 = scalar_select %p202, %s21, 0
      %s204 = sadd.s32 %s203, %s201
      %s205 = smul.addr %s204, 4
      %s206 = scalar_lea.vmem %s0, %s205
      %p207 = pneg %p56
      %p208 = pneg %p53
      %s209 = smul.u32 16, %s21
      %s210 = smul.u32 2, %s20
      %p211 = scmp.lt.s32.totalorder %s209, 15
      %s212 = scalar_select %p211, %s209, 15
      %p213 = scmp.lt.s32.totalorder %s210, 1
      %s214 = scalar_select %p213, %s210, 1
      %s215 = smul.addr %s212, 2
      %s216 = sadd.s32 %s214, %s215
      %s217 = smul.addr %s216, 4
      %s218 = scalar_lea.vmem %s1, %s217
      %p219 = pneg %p84
      %p220 = pneg %p81
      %s221 = smul.u32 2, %s20
      %p222 = scmp.lt.s32.totalorder %s221, 1
      %s223 = scalar_select %p222, %s221, 1
      %s224 = scalar_lea.vmem %s2, %s223
      %p225 = pneg %p110
      %p226 = pneg %p107
      %p227 = pneg %p138
      %p228 = pneg %p135
      %s229 = smul.u32 2, %s19
      %s230 = smul.u32 2, %s20
      %p231 = scmp.lt.s32.totalorder %s229, 3
      %s232 = scalar_select %p231, %s229, 3
      %p233 = scmp.lt.s32.totalorder %s230, 1
      %s234 = scalar_select %p233, %s230, 1
      %s235 = smul.addr %s232, 2
      %s236 = sadd.s32 %s234, %s235
      %s237 = smul.addr %s236, 4
      %s238 = scalar_lea.vmem %s3, %s237
      %s239 = smul.u32 2, %s19
      %p240 = scmp.lt.s32.totalorder %s239, 3
      %s241 = scalar_select %p240, %s239, 3
      %p242 = scmp.lt.s32.totalorder %s21, 0
      %s243 = scalar_select %p242, %s21, 0
      %s244 = sadd.s32 %s243, %s241
      %s245 = smul.addr %s244, 4
      %s246 = scalar_lea.vmem %s0, %s245
      %s247 = smul.u32 2, %s19
      %s248 = smul.u32 16, %s21
      %s249 = smul.u32 2, %s20
      %p250 = scmp.lt.s32.totalorder %s248, 15
      %s251 = scalar_select %p250, %s248, 15
      %p252 = scmp.lt.s32.totalorder %s249, 1
      %s253 = scalar_select %p252, %s249, 1
      %s254 = smul.addr %s251, 2
      %s255 = sadd.s32 %s253, %s254
      %s256 = smul.addr %s255, 4
      %s257 = scalar_lea.vmem %s1, %s256
      %s258 = smul.u32 16, %s21
      %s259 = smul.u32 2, %s20
      %s260 = smul.u32 2, %s20
      %p261 = scmp.lt.s32.totalorder %s260, 1
      %s262 = scalar_select %p261, %s260, 1
      %s263 = scalar_lea.vmem %s2, %s262
      %s264 = smul.u32 2, %s20
      %s265 = smul.u32 2, %s19
      %s266 = smul.u32 2, %s20
      %p267 = scmp.lt.s32.totalorder %s265, 3
      %s268 = scalar_select %p267, %s265, 3
      %p269 = scmp.lt.s32.totalorder %s266, 1
      %s270 = scalar_select %p269, %s266, 1
      %s271 = smul.addr %s268, 2
      %s272 = sadd.s32 %s270, %s271
      %s273 = smul.addr %s272, 4
      %s274 = scalar_lea.vmem %s3, %s273
      %s275 = smul.u32 2, %s19
      %s276 = smul.u32 2, %s20
      %v278 = vld [vmem:[%s246] sm:$0xf]
      %v279 = vld [vmem:[%s246 + $0x4] sm:$0xf]
      %v280 = vld [vmem:[%s257] sm:$0xff]
      %v281 = vld [vmem:[%s257 + $0x8] sm:$0xff]
      %v282 = vld [vmem:[%s257 + $0x10] sm:$0xff]
      %v283 = vld [vmem:[%s257 + $0x18] sm:$0xff]
      %v284 = vld [vmem:[%s257 + $0x20] sm:$0xff]
      %v285 = vld [vmem:[%s257 + $0x28] sm:$0xff]
      %v286 = vld [vmem:[%s257 + $0x30] sm:$0xff]
      %v287 = vld [vmem:[%s257 + $0x38] sm:$0xff]
      %v288 = vld [vmem:[%s257 + $0x40] sm:$0xff]
      %v289 = vld [vmem:[%s257 + $0x48] sm:$0xff]
      %v290 = vld [vmem:[%s257 + $0x50] sm:$0xff]
      %v291 = vld [vmem:[%s257 + $0x58] sm:$0xff]
      %v292 = vld [vmem:[%s257 + $0x60] sm:$0xff]
      %v293 = vld [vmem:[%s257 + $0x68] sm:$0xff]
      %v294 = vld [vmem:[%s257 + $0x70] sm:$0xff]
      %v295 = vld [vmem:[%s257 + $0x78] sm:$0xff]
      %v298 = vunpack.c.l.b16 %v278
      %v299 = vunpack.c.l.b16 %v279
      %v300 = vpack.c.b16 %v299, %v298
      %v318 = vunpack.c.l.b16 %v280
      %v319 = vunpack.c.h.b16 %v280
      %v320 = vunpack.c.l.b16 %v281
      %v321 = vunpack.c.h.b16 %v281
      %v322 = vunpack.c.l.b16 %v282
      %v323 = vunpack.c.h.b16 %v282
      %v324 = vunpack.c.l.b16 %v283
      %v325 = vunpack.c.h.b16 %v283
      %v326 = vunpack.c.l.b16 %v284
      %v327 = vunpack.c.h.b16 %v284
      %v328 = vunpack.c.l.b16 %v285
      %v329 = vunpack.c.h.b16 %v285
      %v330 = vunpack.c.l.b16 %v286
      %v331 = vunpack.c.h.b16 %v286
      %v332 = vunpack.c.l.b16 %v287
      %v333 = vunpack.c.h.b16 %v287
      %v334 = vunpack.c.l.b16 %v288
      %v335 = vunpack.c.h.b16 %v288
      %v336 = vunpack.c.l.b16 %v289
      %v337 = vunpack.c.h.b16 %v289
      %v338 = vunpack.c.l.b16 %v290
      %v339 = vunpack.c.h.b16 %v290
      %v340 = vunpack.c.l.b16 %v291
      %v341 = vunpack.c.h.b16 %v291
      %v342 = vunpack.c.l.b16 %v292
      %v343 = vunpack.c.h.b16 %v292
      %v344 = vunpack.c.l.b16 %v293
      %v345 = vunpack.c.h.b16 %v293
      %v346 = vunpack.c.l.b16 %v294
      %v347 = vunpack.c.h.b16 %v294
      %v348 = vunpack.c.l.b16 %v295
      %v349 = vunpack.c.h.b16 %v295
      %v350 = vpack.c.b16 %v320, %v318
      %v351 = vpack.c.b16 %v321, %v319
      %v352 = vpack.c.b16 %v324, %v322
      %v353 = vpack.c.b16 %v325, %v323
      %v354 = vpack.c.b16 %v328, %v326
      %v355 = vpack.c.b16 %v329, %v327
      %v356 = vpack.c.b16 %v332, %v330
      %v357 = vpack.c.b16 %v333, %v331
      %v358 = vpack.c.b16 %v336, %v334
      %v359 = vpack.c.b16 %v337, %v335
      %v360 = vpack.c.b16 %v340, %v338
      %v361 = vpack.c.b16 %v341, %v339
      %v362 = vpack.c.b16 %v344, %v342
      %v363 = vpack.c.b16 %v345, %v343
      %v364 = vpack.c.b16 %v348, %v346
      %v365 = vpack.c.b16 %v349, %v347
      %382 = vmatprep.subr.bf16.mxu0 %v365
      %383 = vmatpush1.bf16.msra.mxu0 %v364
      %384 = vmatprep.subr.bf16.mxu0 %v363
      %385 = vmatpush1.bf16.msra.mxu0 %v362
      %386 = vmatprep.subr.bf16.mxu0 %v361
      %387 = vmatpush1.bf16.msra.mxu0 %v360
      %388 = vmatprep.subr.bf16.mxu0 %v359
      %389 = vmatpush1.bf16.msra.mxu0 %v358
      %390 = vmatprep.subr.bf16.mxu0 %v357
      %391 = vmatpush1.bf16.msra.mxu0 %v356
      %392 = vmatprep.subr.bf16.mxu0 %v355
      %393 = vmatpush1.bf16.msra.mxu0 %v354
      %394 = vmatprep.subr.bf16.mxu0 %v353
      %395 = vmatpush1.bf16.msra.mxu0 %v352
      %396 = vmatprep.subr.bf16.mxu0 %v351
      %397 = vmatpush1.bf16.msra.mxu0 %v350
      %398 = vmatprep.subr.bf16.mxu0 0
      %399 = vmatpush2.bf16.msra.mxu0 0
      %400 = vmatprep.subr.bf16.mxu0 0
      %401 = vmatpush2.bf16.msra.mxu0 0
      %402 = vmatprep.subr.bf16.mxu0 0
      %403 = vmatpush2.bf16.msra.mxu0 0
      %404 = vmatprep.subr.bf16.mxu0 0
      %405 = vmatpush2.bf16.msra.mxu0 0
      %406 = vmatprep.subr.bf16.mxu0 0
      %407 = vmatpush2.bf16.msra.mxu0 0
      %408 = vmatprep.subr.bf16.mxu0 0
      %409 = vmatpush2.bf16.msra.mxu0 0
      %410 = vmatprep.subr.bf16.mxu0 0
      %411 = vmatpush2.bf16.msra.mxu0 0
      %412 = vmatprep.subr.bf16.mxu0 0
      %413 = vmatpush2.bf16.msra.mxu0 0
      %414 = vmatprep.mubr.bf16.mxu0 0
      %415 = vmatmul.mubr.bf16.gmra.mxu0 %v300
      %v416 = vpop.f32.mrf.mxu0
      %v417 = vadd.f32 0.0, %v416
      %v418 = vpop.f32.mrf.mxu0
      %v419 = vadd.f32 0.0, %v418
      %v420 = vpop.f32.mrf.mxu0
      %v421 = vadd.f32 0.0, %v420
      %v422 = vpop.f32.mrf.mxu0
      %v423 = vadd.f32 0.0, %v422
      %424 = vdwg.mxu0
      %p425 = scmp.eq.s32.totalorder %s21, 0
      // Predicated region
      $region33: #{transformer_forward.43} parent=31 // pred_check
        %p426 = pneg %p425
      $region34: #{transformer_forward.43} parent=31 // pred_check_branch
        %428 = sbr.rel (%p426) target = $region36
      $region35: #{transformer_forward.43} parent=31 // pred_region
        %429 = vst [vmem:[#allocation2] sm:$0xff] %v417
        %430 = vst [vmem:[#allocation2 + $0x8] sm:$0xff] %v419
        %431 = vst [vmem:[#allocation2 + $0x10] sm:$0xff] %v421
        %432 = vst [vmem:[#allocation2 + $0x18] sm:$0xff] %v423
      $region36: #{transformer_forward.43} parent=31 // pred_fallthru
        _
      %p433 = scmp.gt.s32.totalorder %s21, 0
      // Predicated region
      $region37: #{transformer_forward.43} parent=31 // pred_check
        %p434 = pneg %p433
      $region38: #{transformer_forward.43} parent=31 // pred_check_branch
        %436 = sbr.rel (%p434) target = $region40
      $region39: #{transformer_forward.43} parent=31 // pred_region
        %v437 = vld [vmem:[#allocation2] sm:$0xff]
        %v438 = vld [vmem:[#allocation2 + $0x8] sm:$0xff]
        %v439 = vld [vmem:[#allocation2 + $0x10] sm:$0xff]
        %v440 = vld [vmem:[#allocation2 + $0x18] sm:$0xff]
        %v441 = vadd.f32 %v437, %v417
        %v442 = vadd.f32 %v438, %v419
        %v443 = vadd.f32 %v439, %v421
        %v444 = vadd.f32 %v440, %v423
        %445 = vst [vmem:[#allocation2] sm:$0xff] %v441
        %446 = vst [vmem:[#allocation2 + $0x8] sm:$0xff] %v442
        %447 = vst [vmem:[#allocation2 + $0x10] sm:$0xff] %v443
        %448 = vst [vmem:[#allocation2 + $0x18] sm:$0xff] %v444
      $region40: #{transformer_forward.43} parent=31 // pred_fallthru
        _
      // Predicated region
      $region41: #{transformer_forward.43} parent=31 // pred_check
        %p449 = pneg %p425
      $region42: #{transformer_forward.43} parent=31 // pred_check_branch
        %451 = sbr.rel (%p449) target = $region44
      $region43: #{transformer_forward.43} parent=31 // pred_region
        %v452 = vld [vmem:[#allocation2] sm:$0xff]
        %v453 = vld [vmem:[#allocation2 + $0x8] sm:$0xff]
        %v454 = vld [vmem:[#allocation2 + $0x10] sm:$0xff]
        %v455 = vld [vmem:[#allocation2 + $0x18] sm:$0xff]
        %v456 = vld [vmem:[%s263] sm:$0x3]
        %v458 = vlaneseq
        %v459 = vshrl.u32 %v458, 7
        %v460 = vsub.s32 0, %v459
        %v461 = vrot.slane %v456, %v460
        %v462 = vlaneseq
        %v463 = vshrl.u32 %v462, 7
        %v464 = vsub.s32 1, %v463
        %v465 = vrot.slane %v456, %v464
        %v468 = vadd.f32 %v452, %v461
        %v469 = vadd.f32 %v453, %v465
        %v470 = vadd.f32 %v454, %v461
        %v471 = vadd.f32 %v455, %v465
        %v472 = vpack.c.bf16 %v470, %v468
        %v473 = vpack.c.bf16 %v471, %v469
        %v476 = vunpack.c.l.b16 %v472
        %v477 = vunpack.c.l.b16 %v473
        %v478 = vunpack.c.h.b16 %v472
        %v479 = vunpack.c.h.b16 %v473
        %v480 = vpack.c.b16 %v477, %v476
        %v481 = vpack.c.b16 %v479, %v478
        %484 = vst [vmem:[%s274] sm:$0xff] %v480
        %485 = vst [vmem:[%s274 + $0x8] sm:$0xff] %v481
      $region44: #{transformer_forward.43} parent=31 // pred_fallthru
        _
      %s486 = smul.u32 2, %s19
      %s487 = smul.u32 2, %s20
      %p488 = scmp.lt.s32.totalorder %s486, 3
      %s489 = scalar_select %p488, %s486, 3
      %p490 = scmp.lt.s32.totalorder %s487, 1
      %s491 = scalar_select %p490, %s487, 1
      %s492 = smul.addr %s489, 2
      %s493 = sadd.s32 %s491, %s492
      %s494 = smul.addr %s493, 4
      %s495 = scalar_lea.vmem %s3, %s494
      // Predicated region
      $region45: #{transformer_forward.43} parent=31 // pred_check
        %p496 = pneg %p135
      $region46: #{transformer_forward.43} parent=31 // pred_check_branch
        %498 = sbr.rel (%p496) target = $region48
      $region47: #{transformer_forward.43} parent=31 // pred_region
        %s499 = smul.u32 2, %s19
        %s500 = smul.u32 2, %s20
      $region48: #{transformer_forward.43} parent=31 // pred_fallthru
        _
    $region32: #{transformer_forward.43} parent=5 // pred_fallthru
      _
    %p501 = scmp.le.s32.totalorder 2, %s9
    // Predicated region
    $region49: #{transformer_forward.43} parent=5 // pred_check
      %p502 = pneg %p501
    $region50: #{transformer_forward.43} parent=5 // pred_check_branch
      %504 = sbr.rel (%p502) target = $region52
    $region51: #{transformer_forward.43} parent=5 // pred_region
      %s505 = ssub.s32 %s9, 2
      // Predicated region
      $region53: #{transformer_forward.43} parent=51 // pred_check
        %p506 = pneg %p141
      $region54: #{transformer_forward.43} parent=51 // pred_check_branch
        %508 = sbr.rel (%p506) target = $region56
      $region55: #{transformer_forward.43} parent=51 // pred_region
        %s509 = smul.u32 2, %s22
        %s510 = smul.u32 2, %s23
        %p511 = scmp.lt.s32.totalorder %s509, 3
        %s512 = scalar_select %p511, %s509, 3
        %p513 = scmp.lt.s32.totalorder %s510, 1
        %s514 = scalar_select %p513, %s510, 1
        %s515 = smul.addr %s512, 2
        %s516 = sadd.s32 %s514, %s515
        %s517 = smul.addr %s516, 4
        %s518 = scalar_lea.vmem %s3, %s517
      $region56: #{transformer_forward.43} parent=51 // pred_fallthru
        _
    $region52: #{transformer_forward.43} parent=5 // pred_fallthru
      _
  $region6: #{transformer_forward.43} parent=0 // loop_footer
    %s13 = sadd.s32 1, %s9
  $region7: #{transformer_forward.43} parent=0 // loop_footer_branch
    %8 = sbr.rel target = $region3
  $region8: #{transformer_forward.43} parent=0 // loop_exit
    _

// kernel: transformer_forward.42
$region0: #{transformer_forward.42}
  #allocation0 [shape = 'u32[]', space=smem, size = 0x4, offset = 0x4, fixed_abs, tag = 'smem constant byte address 0x4 - core index']
  #allocation1 [shape = 'u32[144,128]{1,0:T(1,128)}', space=vmem, size = 0x12000, scoped, tag = 'internal scratch']
  #allocation2 [shape = 'f32[16,128]{1,0:T(8,128)}', space=vmem, size = 0x2000, scoped, tag = 'scratch operand']
  %s0 = inlined_call_operand.vmem [shape: bf16[32,128], index: 0, kind: input, shape index: {}]
  %s1 = inlined_call_operand.vmem [shape: bf16[128,128], index: 1, kind: input, shape index: {}]
  %s2 = inlined_call_operand.vmem [shape: f32[1,128], index: 2, kind: input, shape index: {}]
  %s3 = inlined_call_operand.vmem [shape: bf16[32,128], index: 3, kind: output, shape index: {}]
  %s4 = sld [smem:[#allocation0]]
  $region57: #{transformer_forward.42} parent=0
    _
  %s6 = ssub.s32 1, %s4
  %s7 = scalar_select 0, %s6, %s4
  loop: start=0, step=1, limit=4
  $region2: #{transformer_forward.42} parent=0 // loop_pre_header
    _
  $region3: #{transformer_forward.42} parent=0 // loop_header
    %s9 = sphi 0, %s13
    %p10 = scmp.ge.s32.totalorder %s9, 4
    %s16 = sphi 0, %s35
    %s17 = sphi 0, %s31
    %s18 = sphi 0, %s27
    %s19 = sphi 0, %s16
    %s20 = sphi 0, %s17
    %s21 = sphi 0, %s18
    %s22 = sphi 0, %s19
    %s23 = sphi 0, %s20
    %s24 = sphi 0, %s21
    %s40 = sphi 0, %s42
    %s43 = sphi 0, %s40
    %s44 = sphi 0, %s43
    %s60 = sphi 0, %s44
    %s68 = sphi 0, %s70
    %s71 = sphi 0, %s68
    %s72 = sphi 0, %s71
    %s88 = sphi 0, %s72
    %s94 = sphi 0, %s96
    %s97 = sphi 0, %s94
    %s98 = sphi 0, %s97
    %s114 = sphi 0, %s98
    %s122 = sphi 0, %s124
    %s125 = sphi 0, %s122
    %s126 = sphi 0, %s125
    %s142 = sphi 0, %s126
  $region4: #{transformer_forward.42} parent=0 // loop_header_branch
    %12 = sbr.rel (%p10) target = $region8
  $region5: #{transformer_forward.42} parent=0 // loop_body
    %s14 = ssub.s32 %s9, 1
    %s15 = ssub.s32 %s9, 2
    %s25 = sadd.s32 1, %s18
    %p26 = scmp.ge.s32.totalorder %s25, 1
    %s27 = scalar_select %p26, 0, %s25
    %s28 = sadd.s32 1, %s17
    %s29 = scalar_select %p26, %s28, %s17
    %p30 = scmp.ge.s32.totalorder %s29, 1
    %s31 = scalar_select %p30, 0, %s29
    %s32 = sadd.s32 1, %s16
    %s33 = scalar_select %p30, %s32, %s16
    %p34 = scmp.ge.s32.totalorder %s33, 2
    %s35 = scalar_select %p34, 0, %s33
    %s36 = ssub.s32 %s16, %s35
    %s37 = ssub.s32 %s18, %s27
    %s38 = sor.u32 %s36, %s37
    %p39 = scmp.eq.s32.totalorder %s38, 0
    %s41 = sadd.s32 %s40, 1
    %s42 = scalar_select %p39, %s40, %s41
    %p45 = pneg %p39
    %p46 = scmp.eq.s32.totalorder %s9, 1
    %p47 = por %p45, %p46
    %p48 = scmp.ne.s32.totalorder %s40, %s43
    %p49 = scmp.eq.s32.totalorder %s9, 0
    %p50 = por %p48, %p49
    %p51 = scmp.ne.s32.totalorder %s40, %s43
    %p52 = scmp.eq.s32.totalorder %s14, 1
    %p53 = por %p51, %p52
    %p54 = scmp.ne.s32.totalorder %s43, %s44
    %p55 = scmp.eq.s32.totalorder %s14, 0
    %p56 = por %p54, %p55
    %p57 = scmp.ne.s32.totalorder %s43, %s44
    %p58 = scmp.eq.s32.totalorder %s15, 1
    %p59 = por %p57, %p58
    %p61 = scmp.ne.s32.totalorder %s44, %s60
    %p62 = scmp.eq.s32.totalorder %s15, 0
    %p63 = por %p61, %p62
    %s64 = ssub.s32 %s18, %s27
    %s65 = ssub.s32 %s17, %s31
    %s66 = sor.u32 %s64, %s65
    %p67 = scmp.eq.s32.totalorder %s66, 0
    %s69 = sadd.s32 %s68, 1
    %s70 = scalar_select %p67, %s68, %s69
    %p73 = pneg %p67
    %p74 = scmp.eq.s32.totalorder %s9, 1
    %p75 = por %p73, %p74
    %p76 = scmp.ne.s32.totalorder %s68, %s71
    %p77 = scmp.eq.s32.totalorder %s9, 0
    %p78 = por %p76, %p77
    %p79 = scmp.ne.s32.totalorder %s68, %s71
    %p80 = scmp.eq.s32.totalorder %s14, 1
    %p81 = por %p79, %p80
    %p82 = scmp.ne.s32.totalorder %s71, %s72
    %p83 = scmp.eq.s32.totalorder %s14, 0
    %p84 = por %p82, %p83
    %p85 = scmp.ne.s32.totalorder %s71, %s72
    %p86 = scmp.eq.s32.totalorder %s15, 1
    %p87 = por %p85, %p86
    %p89 = scmp.ne.s32.totalorder %s72, %s88
    %p90 = scmp.eq.s32.totalorder %s15, 0
    %p91 = por %p89, %p90
    %s92 = ssub.s32 %s17, %s31
    %p93 = scmp.eq.s32.totalorder %s92, 0
    %s95 = sadd.s32 %s94, 1
    %s96 = scalar_select %p93, %s94, %s95
    %p99 = pneg %p93
    %p100 = scmp.eq.s32.totalorder %s9, 1
    %p101 = por %p99, %p100
    %p102 = scmp.ne.s32.totalorder %s94, %s97
    %p103 = scmp.eq.s32.totalorder %s9, 0
    %p104 = por %p102, %p103
    %p105 = scmp.ne.s32.totalorder %s94, %s97
    %p106 = scmp.eq.s32.totalorder %s14, 1
    %p107 = por %p105, %p106
    %p108 = scmp.ne.s32.totalorder %s97, %s98
    %p109 = scmp.eq.s32.totalorder %s14, 0
    %p110 = por %p108, %p109
    %p111 = scmp.ne.s32.totalorder %s97, %s98
    %p112 = scmp.eq.s32.totalorder %s15, 1
    %p113 = por %p111, %p112
    %p115 = scmp.ne.s32.totalorder %s98, %s114
    %p116 = scmp.eq.s32.totalorder %s15, 0
    %p117 = por %p115, %p116
    %s118 = ssub.s32 %s16, %s35
    %s119 = ssub.s32 %s17, %s31
    %s120 = sor.u32 %s118, %s119
    %p121 = scmp.eq.s32.totalorder %s120, 0
    %s123 = sadd.s32 %s122, 1
    %s124 = scalar_select %p121, %s122, %s123
    %p127 = pneg %p121
    %p128 = scmp.eq.s32.totalorder %s9, 1
    %p129 = por %p127, %p128
    %p130 = scmp.ne.s32.totalorder %s122, %s125
    %p131 = scmp.eq.s32.totalorder %s9, 0
    %p132 = por %p130, %p131
    %p133 = scmp.ne.s32.totalorder %s122, %s125
    %p134 = scmp.eq.s32.totalorder %s14, 1
    %p135 = por %p133, %p134
    %p136 = scmp.ne.s32.totalorder %s125, %s126
    %p137 = scmp.eq.s32.totalorder %s14, 0
    %p138 = por %p136, %p137
    %p139 = scmp.ne.s32.totalorder %s125, %s126
    %p140 = scmp.eq.s32.totalorder %s15, 1
    %p141 = por %p139, %p140
    %p143 = scmp.ne.s32.totalorder %s126, %s142
    %p144 = scmp.eq.s32.totalorder %s15, 0
    %p145 = por %p143, %p144
    %p146 = scmp.le.s32.totalorder 1, %s9
    %p147 = scmp.lt.s32.totalorder %s9, 3
    %p148 = pnand %p146, %p147
    %p149 = pneg %p148
    // Predicated region
    $region9: #{transformer_forward.42} parent=5 // pred_check
      _
    $region10: #{transformer_forward.42} parent=5 // pred_check_branch
      %151 = sbr.rel (%p148) target = $region12
    $region11: #{transformer_forward.42} parent=5 // pred_region
      %s152 = ssub.s32 %s9, 1
      // Predicated region
      $region13: #{transformer_forward.42} parent=11 // pred_check
        %p153 = pneg %p84
      $region14: #{transformer_forward.42} parent=11 // pred_check_branch
        %155 = sbr.rel (%p153) target = $region16
      $region15: #{transformer_forward.42} parent=11 // pred_region
        %s156 = smul.u32 16, %s21
        %p157 = scmp.lt.s32.totalorder %s156, 15
        %s158 = scalar_select %p157, %s156, 15
        %p159 = scmp.lt.s32.totalorder %s20, 0
        %s160 = scalar_select %p159, %s20, 0
        %s161 = sadd.s32 %s160, %s158
        %s162 = smul.addr %s161, 4
        %s163 = scalar_lea.vmem %s1, %s162
        %s164 = smul.u32 16, %s21
      $region16: #{transformer_forward.42} parent=11 // pred_fallthru
        _
      // Predicated region
      $region17: #{transformer_forward.42} parent=11 // pred_check
        %p165 = pneg %p110
      $region18: #{transformer_forward.42} parent=11 // pred_check_branch
        %167 = sbr.rel (%p165) target = $region20
      $region19: #{transformer_forward.42} parent=11 // pred_region
        %p168 = scmp.lt.s32.totalorder %s20, 0
        %s169 = scalar_select %p168, %s20, 0
        %s170 = scalar_lea.vmem %s2, %s169
      $region20: #{transformer_forward.42} parent=11 // pred_fallthru
        _
    $region12: #{transformer_forward.42} parent=5 // pred_fallthru
      _
    %p171 = scmp.lt.s32.totalorder %s9, 2
    // Predicated region
    $region21: #{transformer_forward.42} parent=5 // pred_check
      %p172 = pneg %p171
    $region22: #{transformer_forward.42} parent=5 // pred_check_branch
      %174 = sbr.rel (%p172) target = $region24
    $region23: #{transformer_forward.42} parent=5 // pred_region
      // Predicated region
      $region25: #{transformer_forward.42} parent=23 // pred_check
        %p175 = pneg %p50
      $region26: #{transformer_forward.42} parent=23 // pred_check_branch
        %177 = sbr.rel (%p175) target = $region28
      $region27: #{transformer_forward.42} parent=23 // pred_region
        %s178 = smul.u32 2, %s16
        %p179 = scmp.lt.s32.totalorder %s178, 3
        %s180 = scalar_select %p179, %s178, 3
        %p181 = scmp.lt.s32.totalorder %s18, 0
        %s182 = scalar_select %p181, %s18, 0
        %s183 = sadd.s32 %s182, %s180
        %s184 = smul.addr %s183, 4
        %s185 = scalar_lea.vmem %s0, %s184
        %s186 = smul.u32 2, %s16
      $region28: #{transformer_forward.42} parent=23 // pred_fallthru
        _
    $region24: #{transformer_forward.42} parent=5 // pred_fallthru
      _
    %p187 = scmp.le.s32.totalorder 1, %s9
    %p188 = scmp.lt.s32.totalorder %s9, 3
    %p189 = pnand %p187, %p188
    %p190 = pneg %p189
    // Predicated region
    $region29: #{transformer_forward.42} parent=5 // pred_check
      _
    $region30: #{transformer_forward.42} parent=5 // pred_check_branch
      %192 = sbr.rel (%p189) target = $region32
    $region31: #{transformer_forward.42} parent=5 // pred_region
      %s193 = ssub.s32 %s9, 1
      %s194 = smul.u32 2, %s19
      %p195 = scmp.lt.s32.totalorder %s194, 3
      %s196 = scalar_select %p195, %s194, 3
      %p197 = scmp.lt.s32.totalorder %s21, 0
      %s198 = scalar_select %p197, %s21, 0
      %s199 = sadd.s32 %s198, %s196
      %s200 = smul.addr %s199, 4
      %s201 = scalar_lea.vmem %s0, %s200
      %p202 = pneg %p56
      %p203 = pneg %p53
      %s204 = smul.u32 16, %s21
      %p205 = scmp.lt.s32.totalorder %s204, 15
      %s206 = scalar_select %p205, %s204, 15
      %p207 = scmp.lt.s32.totalorder %s20, 0
      %s208 = scalar_select %p207, %s20, 0
      %s209 = sadd.s32 %s208, %s206
      %s210 = smul.addr %s209, 4
      %s211 = scalar_lea.vmem %s1, %s210
      %p212 = pneg %p84
      %p213 = pneg %p81
      %p214 = scmp.lt.s32.totalorder %s20, 0
      %s215 = scalar_select %p214, %s20, 0
      %s216 = scalar_lea.vmem %s2, %s215
      %p217 = pneg %p110
      %p218 = pneg %p107
      %p219 = pneg %p138
      %p220 = pneg %p135
      %s221 = smul.u32 2, %s19
      %p222 = scmp.lt.s32.totalorder %s221, 3
      %s223 = scalar_select %p222, %s221, 3
      %p224 = scmp.lt.s32.totalorder %s20, 0
      %s225 = scalar_select %p224, %s20, 0
      %s226 = sadd.s32 %s225, %s223
      %s227 = smul.addr %s226, 4
      %s228 = scalar_lea.vmem %s3, %s227
      %s229 = smul.u32 2, %s19
      %p230 = scmp.lt.s32.totalorder %s229, 3
      %s231 = scalar_select %p230, %s229, 3
      %p232 = scmp.lt.s32.totalorder %s21, 0
      %s233 = scalar_select %p232, %s21, 0
      %s234 = sadd.s32 %s233, %s231
      %s235 = smul.addr %s234, 4
      %s236 = scalar_lea.vmem %s0, %s235
      %s237 = smul.u32 2, %s19
      %s238 = smul.u32 16, %s21
      %p239 = scmp.lt.s32.totalorder %s238, 15
      %s240 = scalar_select %p239, %s238, 15
      %p241 = scmp.lt.s32.totalorder %s20, 0
      %s242 = scalar_select %p241, %s20, 0
      %s243 = sadd.s32 %s242, %s240
      %s244 = smul.addr %s243, 4
      %s245 = scalar_lea.vmem %s1, %s244
      %s246 = smul.u32 16, %s21
      %p247 = scmp.lt.s32.totalorder %s20, 0
      %s248 = scalar_select %p247, %s20, 0
      %s249 = scalar_lea.vmem %s2, %s248
      %s250 = smul.u32 2, %s19
      %p251 = scmp.lt.s32.totalorder %s250, 3
      %s252 = scalar_select %p251, %s250, 3
      %p253 = scmp.lt.s32.totalorder %s20, 0
      %s254 = scalar_select %p253, %s20, 0
      %s255 = sadd.s32 %s254, %s252
      %s256 = smul.addr %s255, 4
      %s257 = scalar_lea.vmem %s3, %s256
      %s258 = smul.u32 2, %s19
      %v260 = vld [vmem:[%s236] sm:$0xf]
      %v261 = vld [vmem:[%s236 + $0x4] sm:$0xf]
      %v262 = vld [vmem:[%s245] sm:$0xf]
      %v263 = vld [vmem:[%s245 + $0x4] sm:$0xf]
      %v264 = vld [vmem:[%s245 + $0x8] sm:$0xf]
      %v265 = vld [vmem:[%s245 + $0xc] sm:$0xf]
      %v266 = vld [vmem:[%s245 + $0x10] sm:$0xf]
      %v267 = vld [vmem:[%s245 + $0x14] sm:$0xf]
      %v268 = vld [vmem:[%s245 + $0x18] sm:$0xf]
      %v269 = vld [vmem:[%s245 + $0x1c] sm:$0xf]
      %v270 = vld [vmem:[%s245 + $0x20] sm:$0xf]
      %v271 = vld [vmem:[%s245 + $0x24] sm:$0xf]
      %v272 = vld [vmem:[%s245 + $0x28] sm:$0xf]
      %v273 = vld [vmem:[%s245 + $0x2c] sm:$0xf]
      %v274 = vld [vmem:[%s245 + $0x30] sm:$0xf]
      %v275 = vld [vmem:[%s245 + $0x34] sm:$0xf]
      %v276 = vld [vmem:[%s245 + $0x38] sm:$0xf]
      %v277 = vld [vmem:[%s245 + $0x3c] sm:$0xf]
      %v280 = vunpack.c.l.b16 %v260
      %v281 = vunpack.c.l.b16 %v261
      %v282 = vpack.c.b16 %v281, %v280
      %v300 = vunpack.c.l.b16 %v262
      %v301 = vunpack.c.l.b16 %v263
      %v302 = vunpack.c.l.b16 %v264
      %v303 = vunpack.c.l.b16 %v265
      %v304 = vunpack.c.l.b16 %v266
      %v305 = vunpack.c.l.b16 %v267
      %v306 = vunpack.c.l.b16 %v268
      %v307 = vunpack.c.l.b16 %v269
      %v308 = vunpack.c.l.b16 %v270
      %v309 = vunpack.c.l.b16 %v271
      %v310 = vunpack.c.l.b16 %v272
      %v311 = vunpack.c.l.b16 %v273
      %v312 = vunpack.c.l.b16 %v274
      %v313 = vunpack.c.l.b16 %v275
      %v314 = vunpack.c.l.b16 %v276
      %v315 = vunpack.c.l.b16 %v277
      %v316 = vpack.c.b16 %v301, %v300
      %v317 = vpack.c.b16 %v303, %v302
      %v318 = vpack.c.b16 %v305, %v304
      %v319 = vpack.c.b16 %v307, %v306
      %v320 = vpack.c.b16 %v309, %v308
      %v321 = vpack.c.b16 %v311, %v310
      %v322 = vpack.c.b16 %v313, %v312
      %v323 = vpack.c.b16 %v315, %v314
      %332 = vmatprep.subr.bf16.mxu0 0
      %333 = vmatpush1.bf16.msra.mxu0 %v323
      %334 = vmatprep.subr.bf16.mxu0 0
      %335 = vmatpush1.bf16.msra.mxu0 %v322
      %336 = vmatprep.subr.bf16.mxu0 0
      %337 = vmatpush1.bf16.msra.mxu0 %v321
      %338 = vmatprep.subr.bf16.mxu0 0
      %339 = vmatpush1.bf16.msra.mxu0 %v320
      %340 = vmatprep.subr.bf16.mxu0 0
      %341 = vmatpush1.bf16.msra.mxu0 %v319
      %342 = vmatprep.subr.bf16.mxu0 0
      %343 = vmatpush1.bf16.msra.mxu0 %v318
      %344 = vmatprep.subr.bf16.mxu0 0
      %345 = vmatpush1.bf16.msra.mxu0 %v317
      %346 = vmatprep.subr.bf16.mxu0 0
      %347 = vmatpush1.bf16.msra.mxu0 %v316
      %348 = vmatprep.subr.bf16.mxu0 0
      %349 = vmatpush2.bf16.msra.mxu0 0
      %350 = vmatprep.subr.bf16.mxu0 0
      %351 = vmatpush2.bf16.msra.mxu0 0
      %352 = vmatprep.subr.bf16.mxu0 0
      %353 = vmatpush2.bf16.msra.mxu0 0
      %354 = vmatprep.subr.bf16.mxu0 0
      %355 = vmatpush2.bf16.msra.mxu0 0
      %356 = vmatprep.subr.bf16.mxu0 0
      %357 = vmatpush2.bf16.msra.mxu0 0
      %358 = vmatprep.subr.bf16.mxu0 0
      %359 = vmatpush2.bf16.msra.mxu0 0
      %360 = vmatprep.subr.bf16.mxu0 0
      %361 = vmatpush2.bf16.msra.mxu0 0
      %362 = vmatprep.subr.bf16.mxu0 0
      %363 = vmatpush2.bf16.msra.mxu0 0
      %364 = vmatprep.mubr.bf16.mxu0 0
      %365 = vmatmul.mubr.bf16.gmra.mxu0 %v282
      %v366 = vpop.f32.mrf.mxu0
      %v367 = vadd.f32 0.0, %v366
      %v368 = vpop.f32.mrf.mxu0
      %v369 = vpop.f32.mrf.mxu0
      %v370 = vadd.f32 0.0, %v369
      %v371 = vpop.f32.mrf.mxu0
      %372 = vdwg.mxu0
      %p373 = scmp.eq.s32.totalorder %s21, 0
      // Predicated region
      $region33: #{transformer_forward.42} parent=31 // pred_check
        %p374 = pneg %p373
      $region34: #{transformer_forward.42} parent=31 // pred_check_branch
        %376 = sbr.rel (%p374) target = $region36
      $region35: #{transformer_forward.42} parent=31 // pred_region
        %377 = vst [vmem:[#allocation2] sm:$0xff] %v367
        %378 = vst [vmem:[#allocation2 + $0x8] sm:$0xff] %v370
      $region36: #{transformer_forward.42} parent=31 // pred_fallthru
        _
      %p379 = scmp.gt.s32.totalorder %s21, 0
      // Predicated region
      $region37: #{transformer_forward.42} parent=31 // pred_check
        %p380 = pneg %p379
      $region38: #{transformer_forward.42} parent=31 // pred_check_branch
        %382 = sbr.rel (%p380) target = $region40
      $region39: #{transformer_forward.42} parent=31 // pred_region
        %v383 = vld [vmem:[#allocation2] sm:$0xff]
        %v384 = vld [vmem:[#allocation2 + $0x8] sm:$0xff]
        %v385 = vadd.f32 %v383, %v367
        %v386 = vadd.f32 %v384, %v370
        %387 = vst [vmem:[#allocation2] sm:$0xff] %v385
        %388 = vst [vmem:[#allocation2 + $0x8] sm:$0xff] %v386
      $region40: #{transformer_forward.42} parent=31 // pred_fallthru
        _
      // Predicated region
      $region41: #{transformer_forward.42} parent=31 // pred_check
        %p389 = pneg %p373
      $region42: #{transformer_forward.42} parent=31 // pred_check_branch
        %391 = sbr.rel (%p389) target = $region44
      $region43: #{transformer_forward.42} parent=31 // pred_region
        %v392 = vld [vmem:[#allocation2] sm:$0xff]
        %v393 = vld [vmem:[#allocation2 + $0x8] sm:$0xff]
        %v394 = vld [vmem:[%s249] sm:$0x1]
        %v396 = vlaneseq
        %v397 = vshrl.u32 %v396, 7
        %v398 = vsub.s32 0, %v397
        %v399 = vrot.slane %v394, %v398
        %v401 = vadd.f32 %v392, %v399
        %v402 = vadd.f32 %v393, %v399
        %v403 = vpack.c.bf16 %v402, %v401
        %v405 = vunpack.c.l.b16 %v403
        %v406 = vunpack.c.h.b16 %v403
        %v407 = vpack.c.b16 %v405, %v405
        %v408 = vpack.c.b16 %v406, %v406
        %411 = vst [vmem:[%s257] sm:$0xf] %v407
        %412 = vst [vmem:[%s257 + $0x4] sm:$0xf] %v408
      $region44: #{transformer_forward.42} parent=31 // pred_fallthru
        _
      %s413 = smul.u32 2, %s19
      %p414 = scmp.lt.s32.totalorder %s413, 3
      %s415 = scalar_select %p414, %s413, 3
      %p416 = scmp.lt.s32.totalorder %s20, 0
      %s417 = scalar_select %p416, %s20, 0
      %s418 = sadd.s32 %s417, %s415
      %s419 = smul.addr %s418, 4
      %s420 = scalar_lea.vmem %s3, %s419
      // Predicated region
      $region45: #{transformer_forward.42} parent=31 // pred_check
        %p421 = pneg %p135
      $region46: #{transformer_forward.42} parent=31 // pred_check_branch
        %423 = sbr.rel (%p421) target = $region48
      $region47: #{transformer_forward.42} parent=31 // pred_region
        %s424 = smul.u32 2, %s19
      $region48: #{transformer_forward.42} parent=31 // pred_fallthru
        _
    $region32: #{transformer_forward.42} parent=5 // pred_fallthru
      _
    %p425 = scmp.le.s32.totalorder 2, %s9
    // Predicated region
    $region49: #{transformer_forward.42} parent=5 // pred_check
      %p426 = pneg %p425
    $region50: #{transformer_forward.42} parent=5 // pred_check_branch
      %428 = sbr.rel (%p426) target = $region52
    $region51: #{transformer_forward.42} parent=5 // pred_region
      %s429 = ssub.s32 %s9, 2
      // Predicated region
      $region53: #{transformer_forward.42} parent=51 // pred_check
        %p430 = pneg %p141
      $region54: #{transformer_forward.42} parent=51 // pred_check_branch
        %432 = sbr.rel (%p430) target = $region56
      $region55: #{transformer_forward.42} parent=51 // pred_region
        %s433 = smul.u32 2, %s22
        %p434 = scmp.lt.s32.totalorder %s433, 3
        %s435 = scalar_select %p434, %s433, 3
        %p436 = scmp.lt.s32.totalorder %s23, 0
        %s437 = scalar_select %p436, %s23, 0
        %s438 = sadd.s32 %s437, %s435
        %s439 = smul.addr %s438, 4
        %s440 = scalar_lea.vmem %s3, %s439
      $region56: #{transformer_forward.42} parent=51 // pred_fallthru
        _
    $region52: #{transformer_forward.42} parent=5 // pred_fallthru
      _
  $region6: #{transformer_forward.42} parent=0 // loop_footer
    %s13 = sadd.s32 1, %s9
  $region7: #{transformer_forward.42} parent=0 // loop_footer_branch
    %8 = sbr.rel target = $region3
  $region8: #{transformer_forward.42} parent=0 // loop_exit
    _

// kernel: transformer_forward.33
$region0: #{transformer_forward.33}
  #allocation0 [shape = 'u32[]', space=smem, size = 0x4, offset = 0x4, fixed_abs, tag = 'smem constant byte address 0x4 - core index']
  #allocation1 [shape = 'u32[144,128]{1,0:T(1,128)}', space=vmem, size = 0x12000, scoped, tag = 'internal scratch']
  #allocation2 [shape = 'f32[16,128]{1,0:T(8,128)}', space=vmem, size = 0x2000, scoped, tag = 'scratch operand']
  %s0 = inlined_call_operand.vmem [shape: bf16[32,512], index: 0, kind: input, shape index: {}]
  %s1 = inlined_call_operand.vmem [shape: bf16[512,128], index: 1, kind: input, shape index: {}]
  %s2 = inlined_call_operand.vmem [shape: f32[1,128], index: 2, kind: input, shape index: {}]
  %s3 = inlined_call_operand.vmem [shape: bf16[32,128], index: 3, kind: input, shape index: {}]
  %s4 = inlined_call_operand.vmem [shape: f32[1,128], index: 4, kind: input, shape index: {}]
  %s5 = inlined_call_operand.vmem [shape: f32[1,128], index: 5, kind: input, shape index: {}]
  %s6 = inlined_call_operand.vmem [shape: bf16[32,128], index: 6, kind: output, shape index: {}]
  %s7 = sld [smem:[#allocation0]]
  $region69: #{transformer_forward.33} parent=0
    _
  %s9 = ssub.s32 1, %s7
  %s10 = scalar_select 0, %s9, %s7
  loop: start=0, step=1, limit=4
  $region2: #{transformer_forward.33} parent=0 // loop_pre_header
    _
  $region3: #{transformer_forward.33} parent=0 // loop_header
    %s12 = sphi 0, %s16
    %p13 = scmp.ge.s32.totalorder %s12, 4
    %s19 = sphi 0, %s31
    %s20 = sphi 0, %s27
    %s21 = sphi 0, %s19
    %s22 = sphi 0, %s20
    %s23 = sphi 0, %s21
    %s24 = sphi 0, %s22
    %s36 = sphi 0, %s38
    %s39 = sphi 0, %s36
    %s40 = sphi 0, %s39
    %s56 = sphi 0, %s40
    %s62 = sphi 0, %s64
    %s65 = sphi 0, %s62
    %s66 = sphi 0, %s65
    %s82 = sphi 0, %s66
    %s86 = sphi 0, %s86
    %s88 = sphi 0, %s86
    %s89 = sphi 0, %s88
    %s103 = sphi 0, %s89
    %s109 = sphi 0, %s111
    %s112 = sphi 0, %s109
    %s113 = sphi 0, %s112
    %s129 = sphi 0, %s113
    %s133 = sphi 0, %s133
    %s135 = sphi 0, %s133
    %s136 = sphi 0, %s135
    %s150 = sphi 0, %s136
    %s154 = sphi 0, %s154
    %s156 = sphi 0, %s154
    %s157 = sphi 0, %s156
    %s171 = sphi 0, %s157
    %s177 = sphi 0, %s179
    %s180 = sphi 0, %s177
    %s181 = sphi 0, %s180
    %s197 = sphi 0, %s181
  $region4: #{transformer_forward.33} parent=0 // loop_header_branch
    %15 = sbr.rel (%p13) target = $region8
  $region5: #{transformer_forward.33} parent=0 // loop_body
    %s17 = ssub.s32 %s12, 1
    %s18 = ssub.s32 %s12, 2
    %s25 = sadd.s32 1, %s20
    %p26 = scmp.ge.s32.totalorder %s25, 1
    %s27 = scalar_select %p26, 0, %s25
    %s28 = sadd.s32 1, %s19
    %s29 = scalar_select %p26, %s28, %s19
    %p30 = scmp.ge.s32.totalorder %s29, 2
    %s31 = scalar_select %p30, 0, %s29
    %s32 = ssub.s32 %s19, %s31
    %s33 = ssub.s32 %s20, %s27
    %s34 = sor.u32 %s32, %s33
    %p35 = scmp.eq.s32.totalorder %s34, 0
    %s37 = sadd.s32 %s36, 1
    %s38 = scalar_select %p35, %s36, %s37
    %p41 = pneg %p35
    %p42 = scmp.eq.s32.totalorder %s12, 1
    %p43 = por %p41, %p42
    %p44 = scmp.ne.s32.totalorder %s36, %s39
    %p45 = scmp.eq.s32.totalorder %s12, 0
    %p46 = por %p44, %p45
    %p47 = scmp.ne.s32.totalorder %s36, %s39
    %p48 = scmp.eq.s32.totalorder %s17, 1
    %p49 = por %p47, %p48
    %p50 = scmp.ne.s32.totalorder %s39, %s40
    %p51 = scmp.eq.s32.totalorder %s17, 0
    %p52 = por %p50, %p51
    %p53 = scmp.ne.s32.totalorder %s39, %s40
    %p54 = scmp.eq.s32.totalorder %s18, 1
    %p55 = por %p53, %p54
    %p57 = scmp.ne.s32.totalorder %s40, %s56
    %p58 = scmp.eq.s32.totalorder %s18, 0
    %p59 = por %p57, %p58
    %s60 = ssub.s32 %s20, %s27
    %p61 = scmp.eq.s32.totalorder %s60, 0
    %s63 = sadd.s32 %s62, 1
    %s64 = scalar_select %p61, %s62, %s63
    %p67 = pneg %p61
    %p68 = scmp.eq.s32.totalorder %s12, 1
    %p69 = por %p67, %p68
    %p70 = scmp.ne.s32.totalorder %s62, %s65
    %p71 = scmp.eq.s32.totalorder %s12, 0
    %p72 = por %p70, %p71
    %p73 = scmp.ne.s32.totalorder %s62, %s65
    %p74 = scmp.eq.s32.totalorder %s17, 1
    %p75 = por %p73, %p74
    %p76 = scmp.ne.s32.totalorder %s65, %s66
    %p77 = scmp.eq.s32.totalorder %s17, 0
    %p78 = por %p76, %p77
    %p79 = scmp.ne.s32.totalorder %s65, %s66
    %p80 = scmp.eq.s32.totalorder %s18, 1
    %p81 = por %p79, %p80
    %p83 = scmp.ne.s32.totalorder %s66, %s82
    %p84 = scmp.eq.s32.totalorder %s18, 0
    %p85 = por %p83, %p84
    %s87 = sadd.s32 %s86, 1
    %p90 = scmp.eq.s32.totalorder %s12, 1
    %p91 = scmp.ne.s32.totalorder %s86, %s88
    %p92 = scmp.eq.s32.totalorder %s12, 0
    %p93 = por %p91, %p92
    %p94 = scmp.ne.s32.totalorder %s86, %s88
    %p95 = scmp.eq.s32.totalorder %s17, 1
    %p96 = por %p94, %p95
    %p97 = scmp.ne.s32.totalorder %s88, %s89
    %p98 = scmp.eq.s32.totalorder %s17, 0
    %p99 = por %p97, %p98
    %p100 = scmp.ne.s32.totalorder %s88, %s89
    %p101 = scmp.eq.s32.totalorder %s18, 1
    %p102 = por %p100, %p101
    %p104 = scmp.ne.s32.totalorder %s89, %s103
    %p105 = scmp.eq.s32.totalorder %s18, 0
    %p106 = por %p104, %p105
    %s107 = ssub.s32 %s19, %s31
    %p108 = scmp.eq.s32.totalorder %s107, 0
    %s110 = sadd.s32 %s109, 1
    %s111 = scalar_select %p108, %s109, %s110
    %p114 = pneg %p108
    %p115 = scmp.eq.s32.totalorder %s12, 1
    %p116 = por %p114, %p115
    %p117 = scmp.ne.s32.totalorder %s109, %s112
    %p118 = scmp.eq.s32.totalorder %s12, 0
    %p119 = por %p117, %p118
    %p120 = scmp.ne.s32.totalorder %s109, %s112
    %p121 = scmp.eq.s32.totalorder %s17, 1
    %p122 = por %p120, %p121
    %p123 = scmp.ne.s32.totalorder %s112, %s113
    %p124 = scmp.eq.s32.totalorder %s17, 0
    %p125 = por %p123, %p124
    %p126 = scmp.ne.s32.totalorder %s112, %s113
    %p127 = scmp.eq.s32.totalorder %s18, 1
    %p128 = por %p126, %p127
    %p130 = scmp.ne.s32.totalorder %s113, %s129
    %p131 = scmp.eq.s32.totalorder %s18, 0
    %p132 = por %p130, %p131
    %s134 = sadd.s32 %s133, 1
    %p137 = scmp.eq.s32.totalorder %s12, 1
    %p138 = scmp.ne.s32.totalorder %s133, %s135
    %p139 = scmp.eq.s32.totalorder %s12, 0
    %p140 = por %p138, %p139
    %p141 = scmp.ne.s32.totalorder %s133, %s135
    %p142 = scmp.eq.s32.totalorder %s17, 1
    %p143 = por %p141, %p142
    %p144 = scmp.ne.s32.totalorder %s135, %s136
    %p145 = scmp.eq.s32.totalorder %s17, 0
    %p146 = por %p144, %p145
    %p147 = scmp.ne.s32.totalorder %s135, %s136
    %p148 = scmp.eq.s32.totalorder %s18, 1
    %p149 = por %p147, %p148
    %p151 = scmp.ne.s32.totalorder %s136, %s150
    %p152 = scmp.eq.s32.totalorder %s18, 0
    %p153 = por %p151, %p152
    %s155 = sadd.s32 %s154, 1
    %p158 = scmp.eq.s32.totalorder %s12, 1
    %p159 = scmp.ne.s32.totalorder %s154, %s156
    %p160 = scmp.eq.s32.totalorder %s12, 0
    %p161 = por %p159, %p160
    %p162 = scmp.ne.s32.totalorder %s154, %s156
    %p163 = scmp.eq.s32.totalorder %s17, 1
    %p164 = por %p162, %p163
    %p165 = scmp.ne.s32.totalorder %s156, %s157
    %p166 = scmp.eq.s32.totalorder %s17, 0
    %p167 = por %p165, %p166
    %p168 = scmp.ne.s32.totalorder %s156, %s157
    %p169 = scmp.eq.s32.totalorder %s18, 1
    %p170 = por %p168, %p169
    %p172 = scmp.ne.s32.totalorder %s157, %s171
    %p173 = scmp.eq.s32.totalorder %s18, 0
    %p174 = por %p172, %p173
    %s175 = ssub.s32 %s19, %s31
    %p176 = scmp.eq.s32.totalorder %s175, 0
    %s178 = sadd.s32 %s177, 1
    %s179 = scalar_select %p176, %s177, %s178
    %p182 = pneg %p176
    %p183 = scmp.eq.s32.totalorder %s12, 1
    %p184 = por %p182, %p183
    %p185 = scmp.ne.s32.totalorder %s177, %s180
    %p186 = scmp.eq.s32.totalorder %s12, 0
    %p187 = por %p185, %p186
    %p188 = scmp.ne.s32.totalorder %s177, %s180
    %p189 = scmp.eq.s32.totalorder %s17, 1
    %p190 = por %p188, %p189
    %p191 = scmp.ne.s32.totalorder %s180, %s181
    %p192 = scmp.eq.s32.totalorder %s17, 0
    %p193 = por %p191, %p192
    %p194 = scmp.ne.s32.totalorder %s180, %s181
    %p195 = scmp.eq.s32.totalorder %s18, 1
    %p196 = por %p194, %p195
    %p198 = scmp.ne.s32.totalorder %s181, %s197
    %p199 = scmp.eq.s32.totalorder %s18, 0
    %p200 = por %p198, %p199
    %p201 = scmp.le.s32.totalorder 1, %s12
    %p202 = scmp.lt.s32.totalorder %s12, 3
    %p203 = pnand %p201, %p202
    %p204 = pneg %p203
    // Predicated region
    $region9: #{transformer_forward.33} parent=5 // pred_check
      _
    $region10: #{transformer_forward.33} parent=5 // pred_check_branch
      %206 = sbr.rel (%p203) target = $region12
    $region11: #{transformer_forward.33} parent=5 // pred_region
      %s207 = ssub.s32 %s12, 1
      // Predicated region
      $region13: #{transformer_forward.33} parent=11 // pred_check
        %p208 = pneg %p78
      $region14: #{transformer_forward.33} parent=11 // pred_check_branch
        %210 = sbr.rel (%p208) target = $region16
      $region15: #{transformer_forward.33} parent=11 // pred_region
        %s211 = smul.u32 64, %s22
        %p212 = scmp.lt.s32.totalorder %s211, 63
        %s213 = scalar_select %p212, %s211, 63
        %s214 = smul.addr %s213, 4
        %s215 = scalar_lea.vmem %s1, %s214
        %s216 = smul.u32 64, %s22
      $region16: #{transformer_forward.33} parent=11 // pred_fallthru
        _
      // Predicated region
      $region17: #{transformer_forward.33} parent=11 // pred_check
        %p217 = pneg %p99
      $region18: #{transformer_forward.33} parent=11 // pred_check_branch
        %219 = sbr.rel (%p217) target = $region20
      $region19: #{transformer_forward.33} parent=11 // pred_region
        _
      $region20: #{transformer_forward.33} parent=11 // pred_fallthru
        _
      // Predicated region
      $region21: #{transformer_forward.33} parent=11 // pred_check
        %p220 = pneg %p146
      $region22: #{transformer_forward.33} parent=11 // pred_check_branch
        %222 = sbr.rel (%p220) target = $region24
      $region23: #{transformer_forward.33} parent=11 // pred_region
        _
      $region24: #{transformer_forward.33} parent=11 // pred_fallthru
        _
      // Predicated region
      $region25: #{transformer_forward.33} parent=11 // pred_check
        %p223 = pneg %p167
      $region26: #{transformer_forward.33} parent=11 // pred_check_branch
        %225 = sbr.rel (%p223) target = $region28
      $region27: #{transformer_forward.33} parent=11 // pred_region
        _
      $region28: #{transformer_forward.33} parent=11 // pred_fallthru
        _
    $region12: #{transformer_forward.33} parent=5 // pred_fallthru
      _
    %p226 = scmp.lt.s32.totalorder %s12, 2
    // Predicated region
    $region29: #{transformer_forward.33} parent=5 // pred_check
      %p227 = pneg %p226
    $region30: #{transformer_forward.33} parent=5 // pred_check_branch
      %229 = sbr.rel (%p227) target = $region32
    $region31: #{transformer_forward.33} parent=5 // pred_region
      // Predicated region
      $region33: #{transformer_forward.33} parent=31 // pred_check
        %p230 = pneg %p46
      $region34: #{transformer_forward.33} parent=31 // pred_check_branch
        %232 = sbr.rel (%p230) target = $region36
      $region35: #{transformer_forward.33} parent=31 // pred_region
        %s233 = smul.u32 2, %s19
        %s234 = smul.u32 4, %s20
        %p235 = scmp.lt.s32.totalorder %s233, 3
        %s236 = scalar_select %p235, %s233, 3
        %p237 = scmp.lt.s32.totalorder %s234, 3
        %s238 = scalar_select %p237, %s234, 3
        %s239 = smul.addr %s236, 4
        %s240 = sadd.s32 %s238, %s239
        %s241 = smul.addr %s240, 4
        %s242 = scalar_lea.vmem %s0, %s241
        %s243 = smul.u32 2, %s19
        %s244 = smul.u32 4, %s20
      $region36: #{transformer_forward.33} parent=31 // pred_fallthru
        _
      // Predicated region
      $region37: #{transformer_forward.33} parent=31 // pred_check
        %p245 = pneg %p119
      $region38: #{transformer_forward.33} parent=31 // pred_check_branch
        %247 = sbr.rel (%p245) target = $region40
      $region39: #{transformer_forward.33} parent=31 // pred_region
        %s248 = smul.u32 2, %s19
        %p249 = scmp.lt.s32.totalorder %s248, 3
        %s250 = scalar_select %p249, %s248, 3
        %s251 = smul.addr %s250, 4
        %s252 = scalar_lea.vmem %s3, %s251
        %s253 = smul.u32 2, %s19
      $region40: #{transformer_forward.33} parent=31 // pred_fallthru
        _
    $region32: #{transformer_forward.33} parent=5 // pred_fallthru
      _
    %p254 = scmp.le.s32.totalorder 1, %s12
    %p255 = scmp.lt.s32.totalorder %s12, 3
    %p256 = pnand %p254, %p255
    %p257 = pneg %p256
    // Predicated region
    $region41: #{transformer_forward.33} parent=5 // pred_check
      _
    $region42: #{transformer_forward.33} parent=5 // pred_check_branch
      %259 = sbr.rel (%p256) target = $region44
    $region43: #{transformer_forward.33} parent=5 // pred_region
      %s260 = ssub.s32 %s12, 1
      %s261 = smul.u32 2, %s21
      %s262 = smul.u32 4, %s22
      %p263 = scmp.lt.s32.totalorder %s261, 3
      %s264 = scalar_select %p263, %s261, 3
      %p265 = scmp.lt.s32.totalorder %s262, 3
      %s266 = scalar_select %p265, %s262, 3
      %s267 = smul.addr %s264, 4
      %s268 = sadd.s32 %s266, %s267
      %s269 = smul.addr %s268, 4
      %s270 = scalar_lea.vmem %s0, %s269
      %p271 = pneg %p52
      %p272 = pneg %p49
      %s273 = smul.u32 64, %s22
      %p274 = scmp.lt.s32.totalorder %s273, 63
      %s275 = scalar_select %p274, %s273, 63
      %s276 = smul.addr %s275, 4
      %s277 = scalar_lea.vmem %s1, %s276
      %p278 = pneg %p78
      %p279 = pneg %p75
      %p280 = pneg %p99
      %p281 = pneg %p96
      %s282 = smul.u32 2, %s21
      %p283 = scmp.lt.s32.totalorder %s282, 3
      %s284 = scalar_select %p283, %s282, 3
      %s285 = smul.addr %s284, 4
      %s286 = scalar_lea.vmem %s3, %s285
      %p287 = pneg %p125
      %p288 = pneg %p122
      %p289 = pneg %p146
      %p290 = pneg %p143
      %p291 = pneg %p167
      %p292 = pneg %p164
      %p293 = pneg %p193
      %p294 = pneg %p190
      %s295 = smul.u32 2, %s21
      %p296 = scmp.lt.s32.totalorder %s295, 3
      %s297 = scalar_select %p296, %s295, 3
      %s298 = smul.addr %s297, 4
      %s299 = scalar_lea.vmem %s6, %s298
      %s300 = smul.u32 2, %s21
      %s301 = smul.u32 4, %s22
      %p302 = scmp.lt.s32.totalorder %s300, 3
      %s303 = scalar_select %p302, %s300, 3
      %p304 = scmp.lt.s32.totalorder %s301, 3
      %s305 = scalar_select %p304, %s301, 3
      %s306 = smul.addr %s303, 4
      %s307 = sadd.s32 %s305, %s306
      %s308 = smul.addr %s307, 4
      %s309 = scalar_lea.vmem %s0, %s308
      %s310 = smul.u32 2, %s21
      %s311 = smul.u32 4, %s22
      %s312 = smul.u32 64, %s22
      %p313 = scmp.lt.s32.totalorder %s312, 63
      %s314 = scalar_select %p313, %s312, 63
      %s315 = smul.addr %s314, 4
      %s316 = scalar_lea.vmem %s1, %s315
      %s317 = smul.u32 64, %s22
      %s318 = smul.u32 2, %s21
      %p319 = scmp.lt.s32.totalorder %s318, 3
      %s320 = scalar_select %p319, %s318, 3
      %s321 = smul.addr %s320, 4
      %s322 = scalar_lea.vmem %s3, %s321
      %s323 = smul.u32 2, %s21
      %s324 = smul.u32 2, %s21
      %p325 = scmp.lt.s32.totalorder %s324, 3
      %s326 = scalar_select %p325, %s324, 3
      %s327 = smul.addr %s326, 4
      %s328 = scalar_lea.vmem %s6, %s327
      %s329 = smul.u32 2, %s21
      %v331 = vld [vmem:[%s309] sm:$0xff]
      %v332 = vld [vmem:[%s309 + $0x8] sm:$0xff]
      %v333 = vld [vmem:[%s309 + $0x10] sm:$0xff]
      %v334 = vld [vmem:[%s309 + $0x18] sm:$0xff]
      %v335 = vld [vmem:[%s316] sm:$0xf]
      %v336 = vld [vmem:[%s316 + $0x4] sm:$0xf]
      %v337 = vld [vmem:[%s316 + $0x8] sm:$0xf]
      %v338 = vld [vmem:[%s316 + $0xc] sm:$0xf]
      %v339 = vld [vmem:[%s316 + $0x10] sm:$0xf]
      %v340 = vld [vmem:[%s316 + $0x14] sm:$0xf]
      %v341 = vld [vmem:[%s316 + $0x18] sm:$0xf]
      %v342 = vld [vmem:[%s316 + $0x1c] sm:$0xf]
      %v343 = vld [vmem:[%s316 + $0x20] sm:$0xf]
      %v344 = vld [vmem:[%s316 + $0x24] sm:$0xf]
      %v345 = vld [vmem:[%s316 + $0x28] sm:$0xf]
      %v346 = vld [vmem:[%s316 + $0x2c] sm:$0xf]
      %v347 = vld [vmem:[%s316 + $0x30] sm:$0xf]
      %v348 = vld [vmem:[%s316 + $0x34] sm:$0xf]
      %v349 = vld [vmem:[%s316 + $0x38] sm:$0xf]
      %v350 = vld [vmem:[%s316 + $0x3c] sm:$0xf]
      %v351 = vld [vmem:[%s316 + $0x40] sm:$0xf]
      %v352 = vld [vmem:[%s316 + $0x44] sm:$0xf]
      %v353 = vld [vmem:[%s316 + $0x48] sm:$0xf]
      %v354 = vld [vmem:[%s316 + $0x4c] sm:$0xf]
      %v355 = vld [vmem:[%s316 + $0x50] sm:$0xf]
      %v356 = vld [vmem:[%s316 + $0x54] sm:$0xf]
      %v357 = vld [vmem:[%s316 + $0x58] sm:$0xf]
      %v358 = vld [vmem:[%s316 + $0x5c] sm:$0xf]
      %v359 = vld [vmem:[%s316 + $0x60] sm:$0xf]
      %v360 = vld [vmem:[%s316 + $0x64] sm:$0xf]
      %v361 = vld [vmem:[%s316 + $0x68] sm:$0xf]
      %v362 = vld [vmem:[%s316 + $0x6c] sm:$0xf]
      %v363 = vld [vmem:[%s316 + $0x70] sm:$0xf]
      %v364 = vld [vmem:[%s316 + $0x74] sm:$0xf]
      %v365 = vld [vmem:[%s316 + $0x78] sm:$0xf]
      %v366 = vld [vmem:[%s316 + $0x7c] sm:$0xf]
      %v367 = vld [vmem:[%s316 + $0x80] sm:$0xf]
      %v368 = vld [vmem:[%s316 + $0x84] sm:$0xf]
      %v369 = vld [vmem:[%s316 + $0x88] sm:$0xf]
      %v370 = vld [vmem:[%s316 + $0x8c] sm:$0xf]
      %v371 = vld [vmem:[%s316 + $0x90] sm:$0xf]
      %v372 = vld [vmem:[%s316 + $0x94] sm:$0xf]
      %v373 = vld [vmem:[%s316 + $0x98] sm:$0xf]
      %v374 = vld [vmem:[%s316 + $0x9c] sm:$0xf]
      %v375 = vld [vmem:[%s316 + $0xa0] sm:$0xf]
      %v376 = vld [vmem:[%s316 + $0xa4] sm:$0xf]
      %v377 = vld [vmem:[%s316 + $0xa8] sm:$0xf]
      %v378 = vld [vmem:[%s316 + $0xac] sm:$0xf]
      %v379 = vld [vmem:[%s316 + $0xb0] sm:$0xf]
      %v380 = vld [vmem:[%s316 + $0xb4] sm:$0xf]
      %v381 = vld [vmem:[%s316 + $0xb8] sm:$0xf]
      %v382 = vld [vmem:[%s316 + $0xbc] sm:$0xf]
      %v383 = vld [vmem:[%s316 + $0xc0] sm:$0xf]
      %v384 = vld [vmem:[%s316 + $0xc4] sm:$0xf]
      %v385 = vld [vmem:[%s316 + $0xc8] sm:$0xf]
      %v386 = vld [vmem:[%s316 + $0xcc] sm:$0xf]
      %v387 = vld [vmem:[%s316 + $0xd0] sm:$0xf]
      %v388 = vld [vmem:[%s316 + $0xd4] sm:$0xf]
      %v389 = vld [vmem:[%s316 + $0xd8] sm:$0xf]
      %v390 = vld [vmem:[%s316 + $0xdc] sm:$0xf]
      %v391 = vld [vmem:[%s316 + $0xe0] sm:$0xf]
      %v392 = vld [vmem:[%s316 + $0xe4] sm:$0xf]
      %v393 = vld [vmem:[%s316 + $0xe8] sm:$0xf]
      %v394 = vld [vmem:[%s316 + $0xec] sm:$0xf]
      %v395 = vld [vmem:[%s316 + $0xf0] sm:$0xf]
      %v396 = vld [vmem:[%s316 + $0xf4] sm:$0xf]
      %v397 = vld [vmem:[%s316 + $0xf8] sm:$0xf]
      %v398 = vld [vmem:[%s316 + $0xfc] sm:$0xf]
      %v403 = vunpack.c.l.b16 %v331
      %v404 = vunpack.c.h.b16 %v331
      %v405 = vunpack.c.l.b16 %v332
      %v406 = vunpack.c.h.b16 %v332
      %v407 = vunpack.c.l.b16 %v333
      %v408 = vunpack.c.h.b16 %v333
      %v409 = vunpack.c.l.b16 %v334
      %v410 = vunpack.c.h.b16 %v334
      %v411 = vpack.c.b16 %v407, %v403
      %v412 = vpack.c.b16 %v408, %v404
      %v413 = vpack.c.b16 %v409, %v405
      %v414 = vpack.c.b16 %v410, %v406
      %v483 = vunpack.c.l.b16 %v335
      %v484 = vunpack.c.l.b16 %v336
      %v485 = vunpack.c.l.b16 %v337
      %v486 = vunpack.c.l.b16 %v338
      %v487 = vunpack.c.l.b16 %v339
      %v488 = vunpack.c.l.b16 %v340
      %v489 = vunpack.c.l.b16 %v341
      %v490 = vunpack.c.l.b16 %v342
      %v491 = vunpack.c.l.b16 %v343
      %v492 = vunpack.c.l.b16 %v344
      %v493 = vunpack.c.l.b16 %v345
      %v494 = vunpack.c.l.b16 %v346
      %v495 = vunpack.c.l.b16 %v347
      %v496 = vunpack.c.l.b16 %v348
      %v497 = vunpack.c.l.b16 %v349
      %v498 = vunpack.c.l.b16 %v350
      %v499 = vunpack.c.l.b16 %v351
      %v500 = vunpack.c.l.b16 %v352
      %v501 = vunpack.c.l.b16 %v353
      %v502 = vunpack.c.l.b16 %v354
      %v503 = vunpack.c.l.b16 %v355
      %v504 = vunpack.c.l.b16 %v356
      %v505 = vunpack.c.l.b16 %v357
      %v506 = vunpack.c.l.b16 %v358
      %v507 = vunpack.c.l.b16 %v359
      %v508 = vunpack.c.l.b16 %v360
      %v509 = vunpack.c.l.b16 %v361
      %v510 = vunpack.c.l.b16 %v362
      %v511 = vunpack.c.l.b16 %v363
      %v512 = vunpack.c.l.b16 %v364
      %v513 = vunpack.c.l.b16 %v365
      %v514 = vunpack.c.l.b16 %v366
      %v515 = vunpack.c.l.b16 %v367
      %v516 = vunpack.c.l.b16 %v368
      %v517 = vunpack.c.l.b16 %v369
      %v518 = vunpack.c.l.b16 %v370
      %v519 = vunpack.c.l.b16 %v371
      %v520 = vunpack.c.l.b16 %v372
      %v521 = vunpack.c.l.b16 %v373
      %v522 = vunpack.c.l.b16 %v374
      %v523 = vunpack.c.l.b16 %v375
      %v524 = vunpack.c.l.b16 %v376
      %v525 = vunpack.c.l.b16 %v377
      %v526 = vunpack.c.l.b16 %v378
      %v527 = vunpack.c.l.b16 %v379
      %v528 = vunpack.c.l.b16 %v380
      %v529 = vunpack.c.l.b16 %v381
      %v530 = vunpack.c.l.b16 %v382
      %v531 = vunpack.c.l.b16 %v383
      %v532 = vunpack.c.l.b16 %v384
      %v533 = vunpack.c.l.b16 %v385
      %v534 = vunpack.c.l.b16 %v386
      %v535 = vunpack.c.l.b16 %v387
      %v536 = vunpack.c.l.b16 %v388
      %v537 = vunpack.c.l.b16 %v389
      %v538 = vunpack.c.l.b16 %v390
      %v539 = vunpack.c.l.b16 %v391
      %v540 = vunpack.c.l.b16 %v392
      %v541 = vunpack.c.l.b16 %v393
      %v542 = vunpack.c.l.b16 %v394
      %v543 = vunpack.c.l.b16 %v395
      %v544 = vunpack.c.l.b16 %v396
      %v545 = vunpack.c.l.b16 %v397
      %v546 = vunpack.c.l.b16 %v398
      %v547 = vpack.c.b16 %v484, %v483
      %v548 = vpack.c.b16 %v486, %v485
      %v549 = vpack.c.b16 %v488, %v487
      %v550 = vpack.c.b16 %v490, %v489
      %v551 = vpack.c.b16 %v492, %v491
      %v552 = vpack.c.b16 %v494, %v493
      %v553 = vpack.c.b16 %v496, %v495
      %v554 = vpack.c.b16 %v498, %v497
      %v555 = vpack.c.b16 %v500, %v499
      %v556 = vpack.c.b16 %v502, %v501
      %v557 = vpack.c.b16 %v504, %v503
      %v558 = vpack.c.b16 %v506, %v505
      %v559 = vpack.c.b16 %v508, %v507
      %v560 = vpack.c.b16 %v510, %v509
      %v561 = vpack.c.b16 %v512, %v511
      %v562 = vpack.c.b16 %v514, %v513
      %v563 = vpack.c.b16 %v516, %v515
      %v564 = vpack.c.b16 %v518, %v517
      %v565 = vpack.c.b16 %v520, %v519
      %v566 = vpack.c.b16 %v522, %v521
      %v567 = vpack.c.b16 %v524, %v523
      %v568 = vpack.c.b16 %v526, %v525
      %v569 = vpack.c.b16 %v528, %v527
      %v570 = vpack.c.b16 %v530, %v529
      %v571 = vpack.c.b16 %v532, %v531
      %v572 = vpack.c.b16 %v534, %v533
      %v573 = vpack.c.b16 %v536, %v535
      %v574 = vpack.c.b16 %v538, %v537
      %v575 = vpack.c.b16 %v540, %v539
      %v576 = vpack.c.b16 %v542, %v541
      %v577 = vpack.c.b16 %v544, %v543
      %v578 = vpack.c.b16 %v546, %v545
      %611 = vmatprep.subr.bf16.mxu0 0
      %612 = vmatpush1.bf16.msra.mxu0 %v554
      %613 = vmatprep.subr.bf16.mxu0 0
      %614 = vmatpush1.bf16.msra.mxu0 %v553
      %615 = vmatprep.subr.bf16.mxu0 0
      %616 = vmatpush1.bf16.msra.mxu0 %v552
      %617 = vmatprep.subr.bf16.mxu0 0
      %618 = vmatpush1.bf16.msra.mxu0 %v551
      %619 = vmatprep.subr.bf16.mxu0 0
      %620 = vmatpush1.bf16.msra.mxu0 %v550
      %621 = vmatprep.subr.bf16.mxu0 0
      %622 = vmatpush1.bf16.msra.mxu0 %v549
      %623 = vmatprep.subr.bf16.mxu0 0
      %624 = vmatpush1.bf16.msra.mxu0 %v548
      %625 = vmatprep.subr.bf16.mxu0 0
      %626 = vmatpush1.bf16.msra.mxu0 %v547
      %627 = vmatprep.subr.bf16.mxu0 0
      %628 = vmatpush2.bf16.msra.mxu0 %v562
      %629 = vmatprep.subr.bf16.mxu0 0
      %630 = vmatpush2.bf16.msra.mxu0 %v561
      %631 = vmatprep.subr.bf16.mxu0 0
      %632 = vmatpush2.bf16.msra.mxu0 %v560
      %633 = vmatprep.subr.bf16.mxu0 0
      %634 = vmatpush2.bf16.msra.mxu0 %v559
      %635 = vmatprep.subr.bf16.mxu0 0
      %636 = vmatpush2.bf16.msra.mxu0 %v558
      %637 = vmatprep.subr.bf16.mxu0 0
      %638 = vmatpush2.bf16.msra.mxu0 %v557
      %639 = vmatprep.subr.bf16.mxu0 0
      %640 = vmatpush2.bf16.msra.mxu0 %v556
      %641 = vmatprep.subr.bf16.mxu0 0
      %642 = vmatpush2.bf16.msra.mxu0 %v555
      %643 = vmatprep.mubr.bf16.mxu0 %v412
      %644 = vmatmul.mubr.bf16.gmra.mxu0 %v411
      %v645 = vpop.f32.mrf.mxu0
      %v646 = vadd.f32 0.0, %v645
      %v647 = vpop.f32.mrf.mxu0
      %v648 = vpop.f32.mrf.mxu0
      %v649 = vadd.f32 0.0, %v648
      %v650 = vpop.f32.mrf.mxu0
      %651 = vdwg.mxu0
      %652 = vmatprep.subr.bf16.mxu0 0
      %653 = vmatpush1.bf16.msra.mxu0 %v570
      %654 = vmatprep.subr.bf16.mxu0 0
      %655 = vmatpush1.bf16.msra.mxu0 %v569
      %656 = vmatprep.subr.bf16.mxu0 0
      %657 = vmatpush1.bf16.msra.mxu0 %v568
      %658 = vmatprep.subr.bf16.mxu0 0
      %659 = vmatpush1.bf16.msra.mxu0 %v567
      %660 = vmatprep.subr.bf16.mxu0 0
      %661 = vmatpush1.bf16.msra.mxu0 %v566
      %662 = vmatprep.subr.bf16.mxu0 0
      %663 = vmatpush1.bf16.msra.mxu0 %v565
      %664 = vmatprep.subr.bf16.mxu0 0
      %665 = vmatpush1.bf16.msra.mxu0 %v564
      %666 = vmatprep.subr.bf16.mxu0 0
      %667 = vmatpush1.bf16.msra.mxu0 %v563
      %668 = vmatprep.subr.bf16.mxu0 0
      %669 = vmatpush2.bf16.msra.mxu0 %v578
      %670 = vmatprep.subr.bf16.mxu0 0
      %671 = vmatpush2.bf16.msra.mxu0 %v577
      %672 = vmatprep.subr.bf16.mxu0 0
      %673 = vmatpush2.bf16.msra.mxu0 %v576
      %674 = vmatprep.subr.bf16.mxu0 0
      %675 = vmatpush2.bf16.msra.mxu0 %v575
      %676 = vmatprep.subr.bf16.mxu0 0
      %677 = vmatpush2.bf16.msra.mxu0 %v574
      %678 = vmatprep.subr.bf16.mxu0 0
      %679 = vmatpush2.bf16.msra.mxu0 %v573
      %680 = vmatprep.subr.bf16.mxu0 0
      %681 = vmatpush2.bf16.msra.mxu0 %v572
      %682 = vmatprep.subr.bf16.mxu0 0
      %683 = vmatpush2.bf16.msra.mxu0 %v571
      %684 = vmatprep.mubr.bf16.mxu0 %v414
      %685 = vmatmul.mubr.bf16.gmra.mxu0 %v413
      %v686 = vpop.f32.mrf.mxu0
      %v687 = vadd.f32 %v646, %v686
      %v688 = vpop.f32.mrf.mxu0
      %v689 = vpop.f32.mrf.mxu0
      %v690 = vadd.f32 %v649, %v689
      %v691 = vpop.f32.mrf.mxu0
      %692 = vdwg.mxu0
      %p693 = scmp.eq.s32.totalorder %s22, 0
      // Predicated region
      $region45: #{transformer_forward.33} parent=43 // pred_check
        %p694 = pneg %p693
      $region46: #{transformer_forward.33} parent=43 // pred_check_branch
        %696 = sbr.rel (%p694) target = $region48
      $region47: #{transformer_forward.33} parent=43 // pred_region
        %697 = vst [vmem:[#allocation2] sm:$0xff] %v687
        %698 = vst [vmem:[#allocation2 + $0x8] sm:$0xff] %v690
      $region48: #{transformer_forward.33} parent=43 // pred_fallthru
        _
      %p699 = scmp.gt.s32.totalorder %s22, 0
      // Predicated region
      $region49: #{transformer_forward.33} parent=43 // pred_check
        %p700 = pneg %p699
      $region50: #{transformer_forward.33} parent=43 // pred_check_branch
        %702 = sbr.rel (%p700) target = $region52
      $region51: #{transformer_forward.33} parent=43 // pred_region
        %v703 = vld [vmem:[#allocation2] sm:$0xff]
        %v704 = vld [vmem:[#allocation2 + $0x8] sm:$0xff]
        %v705 = vadd.f32 %v703, %v687
        %v706 = vadd.f32 %v704, %v690
        %707 = vst [vmem:[#allocation2] sm:$0xff] %v705
        %708 = vst [vmem:[#allocation2 + $0x8] sm:$0xff] %v706
      $region52: #{transformer_forward.33} parent=43 // pred_fallthru
        _
      // Predicated region
      $region53: #{transformer_forward.33} parent=43 // pred_check
        %p709 = pneg %p693
      $region54: #{transformer_forward.33} parent=43 // pred_check_branch
        %711 = sbr.rel (%p709) target = $region56
      $region55: #{transformer_forward.33} parent=43 // pred_region
        %v712 = vld [vmem:[#allocation2] sm:$0xff]
        %v713 = vld [vmem:[#allocation2 + $0x8] sm:$0xff]
        %v714 = vld [vmem:[%s2] sm:$0x1]
        %v716 = vlaneseq
        %v717 = vshrl.u32 %v716, 7
        %v718 = vsub.s32 0, %v717
        %v719 = vrot.slane %v714, %v718
        %v721 = vadd.f32 %v712, %v719
        %v722 = vadd.f32 %v713, %v719
        %v723 = vld [vmem:[%s322] sm:$0xf]
        %v724 = vld [vmem:[%s322 + $0x4] sm:$0xf]
        %v725 = vunpack.c.l.bf16 %v723
        %v726 = vunpack.c.l.bf16 %v724
        %v727 = vadd.f32 %v721, %v725
        %v728 = vadd.f32 %v722, %v726
        %729 = vadd.xlane.f32.xlu0 %v727
        %v730 = vpop.xlane.xlu0 %729
        %731 = vadd.xlane.f32.xlu0 %v728
        %v732 = vpop.xlane.xlu0 %731
        %v733 = vrcp.pop 128.0
        %v734 = vmul.f32 %v730, %v733
        %v735 = vmul.f32 %v732, %v733
        %v736 = vsub.f32 %v727, %v734
        %v737 = vsub.f32 %v728, %v735
        %v738 = vmul.f32 %v736, %v736
        %v739 = vmul.f32 %v737, %v737
        %740 = vadd.xlane.f32.xlu0 %v738
        %v741 = vpop.xlane.xlu0 %740
        %742 = vadd.xlane.f32.xlu0 %v739
        %v743 = vpop.xlane.xlu0 %742
        %v744 = vmul.f32 %v741, %v733
        %v745 = vmul.f32 %v743, %v733
        %v746 = vadd.f32 %v744, 1e-05
        %v747 = vadd.f32 %v745, 1e-05
        %v748 = vrsqrt.pop %v746
        %v749 = vrsqrt.pop %v747
        %v750 = vmul.f32 %v736, %v748
        %v751 = vmul.f32 %v737, %v749
        %v752 = vld [vmem:[%s4] sm:$0x1]
        %v754 = vlaneseq
        %v755 = vshrl.u32 %v754, 7
        %v756 = vsub.s32 0, %v755
        %v757 = vrot.slane %v752, %v756
        %v759 = vmul.f32 %v750, %v757
        %v760 = vmul.f32 %v751, %v757
        %v761 = vld [vmem:[%s5] sm:$0x1]
        %v763 = vlaneseq
        %v764 = vshrl.u32 %v763, 7
        %v765 = vsub.s32 0, %v764
        %v766 = vrot.slane %v761, %v765
        %v768 = vadd.f32 %v759, %v766
        %v769 = vadd.f32 %v760, %v766
        %v770 = vpack.c.bf16 %v769, %v768
        %v772 = vunpack.c.l.b16 %v770
        %v773 = vunpack.c.h.b16 %v770
        %v774 = vpack.c.b16 %v772, %v772
        %v775 = vpack.c.b16 %v773, %v773
        %778 = vst [vmem:[%s328] sm:$0xf] %v774
        %779 = vst [vmem:[%s328 + $0x4] sm:$0xf] %v775
      $region56: #{transformer_forward.33} parent=43 // pred_fallthru
        _
      %s780 = smul.u32 2, %s21
      %p781 = scmp.lt.s32.totalorder %s780, 3
      %s782 = scalar_select %p781, %s780, 3
      %s783 = smul.addr %s782, 4
      %s784 = scalar_lea.vmem %s6, %s783
      // Predicated region
      $region57: #{transformer_forward.33} parent=43 // pred_check
        %p785 = pneg %p190
      $region58: #{transformer_forward.33} parent=43 // pred_check_branch
        %787 = sbr.rel (%p785) target = $region60
      $region59: #{transformer_forward.33} parent=43 // pred_region
        %s788 = smul.u32 2, %s21
      $region60: #{transformer_forward.33} parent=43 // pred_fallthru
        _
    $region44: #{transformer_forward.33} parent=5 // pred_fallthru
      _
    %p789 = scmp.le.s32.totalorder 2, %s12
    // Predicated region
    $region61: #{transformer_forward.33} parent=5 // pred_check
      %p790 = pneg %p789
    $region62: #{transformer_forward.33} parent=5 // pred_check_branch
      %792 = sbr.rel (%p790) target = $region64
    $region63: #{transformer_forward.33} parent=5 // pred_region
      %s793 = ssub.s32 %s12, 2
      // Predicated region
      $region65: #{transformer_forward.33} parent=63 // pred_check
        %p794 = pneg %p196
      $region66: #{transformer_forward.33} parent=63 // pred_check_branch
        %796 = sbr.rel (%p794) target = $region68
      $region67: #{transformer_forward.33} parent=63 // pred_region
        %s797 = smul.u32 2, %s23
        %p798 = scmp.lt.s32.totalorder %s797, 3
        %s799 = scalar_select %p798, %s797, 3
        %s800 = smul.addr %s799, 4
        %s801 = scalar_lea.vmem %s6, %s800
      $region68: #{transformer_forward.33} parent=63 // pred_fallthru
        _
    $region64: #{transformer_forward.33} parent=5 // pred_fallthru
      _
  $region6: #{transformer_forward.33} parent=0 // loop_footer
    %s16 = sadd.s32 1, %s12
  $region7: #{transformer_forward.33} parent=0 // loop_footer_branch
    %11 = sbr.rel target = $region3
  $region8: #{transformer_forward.33} parent=0 // loop_exit
    _

// kernel: transformer_forward.40
$region0: #{transformer_forward.40}
  #allocation0 [shape = 'u32[]', space=smem, size = 0x4, offset = 0x4, fixed_abs, tag = 'smem constant byte address 0x4 - core index']
  #allocation1 [shape = 'u32[144,128]{1,0:T(1,128)}', space=vmem, size = 0x12000, scoped, tag = 'internal scratch']
  %s0 = inlined_call_operand.vmem [shape: bf16[32,384], index: 0, kind: input, shape index: {}, may-alias: {0,1,2}]
  %s1 = inlined_call_operand.vmem [shape: bf16[32,384], index: 1, kind: input, shape index: {}, may-alias: {0,1,2}]
  %s2 = inlined_call_operand.vmem [shape: bf16[32,384], index: 2, kind: input, shape index: {}, may-alias: {0,1,2}]
  %s3 = inlined_call_operand.vmem [shape: bf16[32,128], index: 3, kind: output, shape index: {}]
  %s4 = sld [smem:[#allocation0]]
  $region168: #{transformer_forward.40} parent=0
    _
  %s6 = ssub.s32 1, %s4
  %s7 = scalar_select 0, %s6, %s4
  $region1: #{transformer_forward.40} parent=0
    #allocation2 [shape = 'u8[8192]{0}', space=vmem, size = 0x2000, scoped, tag = 'input window, operand 0']
    #allocation3 [shape = 'u8[8192]{0}', space=vmem, size = 0x2000, scoped, tag = 'input window, operand 1']
    #allocation4 [shape = 'u8[8192]{0}', space=vmem, size = 0x2000, scoped, tag = 'input window, operand 2']
    loop: start=0, step=1, limit=4
    $region2: #{transformer_forward.40} parent=1 // loop_pre_header
      _
    $region3: #{transformer_forward.40} parent=1 // loop_header
      %s9 = sphi 0, %s13
      %p10 = scmp.ge.s32.totalorder %s9, 4
      %s19 = sphi 0, %s21
      %s22 = sphi 0, %s19
      %s23 = sphi 0, %s22
      %s39 = sphi 0, %s23
      %s45 = sphi 0, %s47
      %s48 = sphi 0, %s45
      %s49 = sphi 0, %s48
      %s65 = sphi 0, %s49
      %s71 = sphi 0, %s73
      %s74 = sphi 0, %s71
      %s75 = sphi 0, %s74
      %s91 = sphi 0, %s75
      %s97 = sphi 0, %s99
      %s100 = sphi 0, %s97
      %s101 = sphi 0, %s100
      %s117 = sphi 0, %s101
    $region4: #{transformer_forward.40} parent=1 // loop_header_branch
      %12 = sbr.rel (%p10) target = $region8
    $region5: #{transformer_forward.40} parent=1 // loop_body
      %s14 = ssub.s32 %s9, 1
      %s15 = ssub.s32 %s9, 2
      %s16 = sadd.s32 %s9, 1
      %s17 = ssub.s32 %s9, %s16
      %p18 = scmp.eq.s32.totalorder %s17, 0
      %s20 = sadd.s32 %s19, 1
      %s21 = scalar_select %p18, %s19, %s20
      %p24 = pneg %p18
      %p25 = scmp.eq.s32.totalorder %s9, 1
      %p26 = por %p24, %p25
      %p27 = scmp.ne.s32.totalorder %s19, %s22
      %p28 = scmp.eq.s32.totalorder %s9, 0
      %p29 = por %p27, %p28
      %p30 = scmp.ne.s32.totalorder %s19, %s22
      %p31 = scmp.eq.s32.totalorder %s14, 1
      %p32 = por %p30, %p31
      %p33 = scmp.ne.s32.totalorder %s22, %s23
      %p34 = scmp.eq.s32.totalorder %s14, 0
      %p35 = por %p33, %p34
      %p36 = scmp.ne.s32.totalorder %s22, %s23
      %p37 = scmp.eq.s32.totalorder %s15, 1
      %p38 = por %p36, %p37
      %p40 = scmp.ne.s32.totalorder %s23, %s39
      %p41 = scmp.eq.s32.totalorder %s15, 0
      %p42 = por %p40, %p41
      %s43 = ssub.s32 %s9, %s16
      %p44 = scmp.eq.s32.totalorder %s43, 0
      %s46 = sadd.s32 %s45, 1
      %s47 = scalar_select %p44, %s45, %s46
      %p50 = pneg %p44
      %p51 = scmp.eq.s32.totalorder %s9, 1
      %p52 = por %p50, %p51
      %p53 = scmp.ne.s32.totalorder %s45, %s48
      %p54 = scmp.eq.s32.totalorder %s9, 0
      %p55 = por %p53, %p54
      %p56 = scmp.ne.s32.totalorder %s45, %s48
      %p57 = scmp.eq.s32.totalorder %s14, 1
      %p58 = por %p56, %p57
      %p59 = scmp.ne.s32.totalorder %s48, %s49
      %p60 = scmp.eq.s32.totalorder %s14, 0
      %p61 = por %p59, %p60
      %p62 = scmp.ne.s32.totalorder %s48, %s49
      %p63 = scmp.eq.s32.totalorder %s15, 1
      %p64 = por %p62, %p63
      %p66 = scmp.ne.s32.totalorder %s49, %s65
      %p67 = scmp.eq.s32.totalorder %s15, 0
      %p68 = por %p66, %p67
      %s69 = ssub.s32 %s9, %s16
      %p70 = scmp.eq.s32.totalorder %s69, 0
      %s72 = sadd.s32 %s71, 1
      %s73 = scalar_select %p70, %s71, %s72
      %p76 = pneg %p70
      %p77 = scmp.eq.s32.totalorder %s9, 1
      %p78 = por %p76, %p77
      %p79 = scmp.ne.s32.totalorder %s71, %s74
      %p80 = scmp.eq.s32.totalorder %s9, 0
      %p81 = por %p79, %p80
      %p82 = scmp.ne.s32.totalorder %s71, %s74
      %p83 = scmp.eq.s32.totalorder %s14, 1
      %p84 = por %p82, %p83
      %p85 = scmp.ne.s32.totalorder %s74, %s75
      %p86 = scmp.eq.s32.totalorder %s14, 0
      %p87 = por %p85, %p86
      %p88 = scmp.ne.s32.totalorder %s74, %s75
      %p89 = scmp.eq.s32.totalorder %s15, 1
      %p90 = por %p88, %p89
      %p92 = scmp.ne.s32.totalorder %s75, %s91
      %p93 = scmp.eq.s32.totalorder %s15, 0
      %p94 = por %p92, %p93
      %s95 = ssub.s32 %s9, %s16
      %p96 = scmp.eq.s32.totalorder %s95, 0
      %s98 = sadd.s32 %s97, 1
      %s99 = scalar_select %p96, %s97, %s98
      %p102 = pneg %p96
      %p103 = scmp.eq.s32.totalorder %s9, 1
      %p104 = por %p102, %p103
      %p105 = scmp.ne.s32.totalorder %s97, %s100
      %p106 = scmp.eq.s32.totalorder %s9, 0
      %p107 = por %p105, %p106
      %p108 = scmp.ne.s32.totalorder %s97, %s100
      %p109 = scmp.eq.s32.totalorder %s14, 1
      %p110 = por %p108, %p109
      %p111 = scmp.ne.s32.totalorder %s100, %s101
      %p112 = scmp.eq.s32.totalorder %s14, 0
      %p113 = por %p111, %p112
      %p114 = scmp.ne.s32.totalorder %s100, %s101
      %p115 = scmp.eq.s32.totalorder %s15, 1
      %p116 = por %p114, %p115
      %p118 = scmp.ne.s32.totalorder %s101, %s117
      %p119 = scmp.eq.s32.totalorder %s15, 0
      %p120 = por %p118, %p119
      %p121 = scmp.le.s32.totalorder 1, %s9
      %p122 = scmp.lt.s32.totalorder %s9, 3
      %p123 = pnand %p121, %p122
      %p124 = pneg %p123
      // Predicated region
      $region9: #{transformer_forward.40} parent=5 // pred_check
        _
      $region10: #{transformer_forward.40} parent=5 // pred_check_branch
        %126 = sbr.rel (%p123) target = $region12
      $region11: #{transformer_forward.40} parent=5 // pred_region
        %s127 = ssub.s32 %s9, 1
      $region12: #{transformer_forward.40} parent=5 // pred_fallthru
        _
      %p128 = scmp.lt.s32.totalorder %s9, 2
      // Predicated region
      $region13: #{transformer_forward.40} parent=5 // pred_check
        %p129 = pneg %p128
      $region14: #{transformer_forward.40} parent=5 // pred_check_branch
        %131 = sbr.rel (%p129) target = $region16
      $region15: #{transformer_forward.40} parent=5 // pred_region
        // Predicated region
        $region17: #{transformer_forward.40} parent=15 // pred_check
          %p132 = pneg %p29
        $region18: #{transformer_forward.40} parent=15 // pred_check_branch
          %134 = sbr.rel (%p132) target = $region20
        $region19: #{transformer_forward.40} parent=15 // pred_region
          %s135 = sand.u32 %s19, 1
          %s136 = sand.u32 %s19, 1
          %s137 = smul.addr %s136, 8
          %s138 = scalar_lea.vmem [#allocation2], %s137
          %s139 = smul.u32 2, %s9
          %s140 = smul.addr %s139, 3
          %s141 = smul.addr %s140, 4
          %s142 = scalar_lea.vmem %s0, %s141
          // Predicated region
          $region21: #{transformer_forward.40} parent=19 // pred_check
            _
          $region22: #{transformer_forward.40} parent=19 // pred_check_branch
            %144 = sbr.rel (0) target = $region24
          $region23: #{transformer_forward.40} parent=19 // pred_region
            // Predicated region
            $region25: #{transformer_forward.40} parent=23 // pred_check
              _
            $region26: #{transformer_forward.40} parent=23 // pred_check_branch
              %146 = sbr.rel target = $region28
            $region27: #{transformer_forward.40} parent=23 // pred_region
              // Predicated region
              $region40: #{transformer_forward.40} parent=27 // pred_check
                _
              $region41: #{transformer_forward.40} parent=27 // pred_check_branch
                %164 = sbr.rel (0) target = $region43
              $region42: #{transformer_forward.40} parent=27 // pred_region
                loop: start=0, step=1, limit=1
                $region44: #{transformer_forward.40} parent=42 // loop_pre_header
                  _
                $region45: #{transformer_forward.40} parent=42 // loop_header
                  %s166 = sphi 0, %s170
                  %p167 = scmp.ge.s32.totalorder %s166, 1
                  %s171 = sphi %s142, %s142
                  %s172 = sphi %s138, %s138
                $region46: #{transformer_forward.40} parent=42 // loop_header_branch
                  %169 = sbr.rel (%p167) target = $region50
                $region47: #{transformer_forward.40} parent=42 // loop_body
                  _
                $region48: #{transformer_forward.40} parent=42 // loop_footer
                  %s170 = sadd.s32 1, %s166
                $region49: #{transformer_forward.40} parent=42 // loop_footer_branch
                  %165 = sbr.rel target = $region45
                $region50: #{transformer_forward.40} parent=42 // loop_exit
                  _
                %s174 = ssub.s32 16, 1
                loop: start=0, step=1, limit=1
                $region51: #{transformer_forward.40} parent=42 // loop_pre_header
                  _
                $region52: #{transformer_forward.40} parent=42 // loop_header
                  %s176 = sphi 0, %s180
                  %p177 = scmp.ge.s32.totalorder %s176, 1
                  %s181 = sphi %s142, %s142
                  %s182 = sphi %s138, %s138
                $region53: #{transformer_forward.40} parent=42 // loop_header_branch
                  %179 = sbr.rel (%p177) target = $region57
                $region54: #{transformer_forward.40} parent=42 // loop_body
                  %v183 = vld [vmem:[%s181] sm:%s174]
                  %184 = vst [vmem:[%s182] sm:%s174] %v183
                  %v185 = vld [vmem:[%s181 + $0xc] sm:%s174]
                  %186 = vst [vmem:[%s182 + $0x4] sm:%s174] %v185
                $region55: #{transformer_forward.40} parent=42 // loop_footer
                  %s180 = sadd.s32 1, %s176
                $region56: #{transformer_forward.40} parent=42 // loop_footer_branch
                  %175 = sbr.rel target = $region52
                $region57: #{transformer_forward.40} parent=42 // loop_exit
                  _
              $region43: #{transformer_forward.40} parent=27 // pred_fallthru
                _
            $region28: #{transformer_forward.40} parent=23 // pred_fallthru
              _
            // Predicated region
            $region29: #{transformer_forward.40} parent=23 // pred_check
              _
            $region30: #{transformer_forward.40} parent=23 // pred_check_branch
              %148 = sbr.rel (0) target = $region32
            $region31: #{transformer_forward.40} parent=23 // pred_region
              %s150 = ssub.s32 16, 1
              loop: start=0, step=1, limit=1
              $region33: #{transformer_forward.40} parent=31 // loop_pre_header
                _
              $region34: #{transformer_forward.40} parent=31 // loop_header
                %s152 = sphi 0, %s156
                %p153 = scmp.ge.s32.totalorder %s152, 1
                %s157 = sphi %s142, %s142
                %s158 = sphi %s138, %s138
              $region35: #{transformer_forward.40} parent=31 // loop_header_branch
                %155 = sbr.rel (%p153) target = $region39
              $region36: #{transformer_forward.40} parent=31 // loop_body
                %v159 = vld [vmem:[%s157] sm:%s150]
                %160 = vst [vmem:[%s158] sm:%s150] %v159
                %v161 = vld [vmem:[%s157 + $0xc] sm:%s150]
                %162 = vst [vmem:[%s158 + $0x4] sm:%s150] %v161
              $region37: #{transformer_forward.40} parent=31 // loop_footer
                %s156 = sadd.s32 1, %s152
              $region38: #{transformer_forward.40} parent=31 // loop_footer_branch
                %151 = sbr.rel target = $region34
              $region39: #{transformer_forward.40} parent=31 // loop_exit
                _
            $region32: #{transformer_forward.40} parent=23 // pred_fallthru
              _
          $region24: #{transformer_forward.40} parent=19 // pred_fallthru
            _
          %187 = vnop
        $region20: #{transformer_forward.40} parent=15 // pred_fallthru
          _
        // Predicated region
        $region58: #{transformer_forward.40} parent=15 // pred_check
          %p188 = pneg %p55
        $region59: #{transformer_forward.40} parent=15 // pred_check_branch
          %190 = sbr.rel (%p188) target = $region61
        $region60: #{transformer_forward.40} parent=15 // pred_region
          %s191 = sand.u32 %s45, 1
          %s192 = sand.u32 %s45, 1
          %s193 = smul.addr %s192, 8
          %s194 = scalar_lea.vmem [#allocation3], %s193
          %s195 = smul.u32 2, %s9
          %s196 = smul.addr %s195, 3
          %s197 = sadd.s32 1, %s196
          %s198 = smul.addr %s197, 4
          %s199 = scalar_lea.vmem %s1, %s198
          // Predicated region
          $region62: #{transformer_forward.40} parent=60 // pred_check
            _
          $region63: #{transformer_forward.40} parent=60 // pred_check_branch
            %201 = sbr.rel (0) target = $region65
          $region64: #{transformer_forward.40} parent=60 // pred_region
            // Predicated region
            $region66: #{transformer_forward.40} parent=64 // pred_check
              _
            $region67: #{transformer_forward.40} parent=64 // pred_check_branch
              %203 = sbr.rel target = $region69
            $region68: #{transformer_forward.40} parent=64 // pred_region
              // Predicated region
              $region81: #{transformer_forward.40} parent=68 // pred_check
                _
              $region82: #{transformer_forward.40} parent=68 // pred_check_branch
                %221 = sbr.rel (0) target = $region84
              $region83: #{transformer_forward.40} parent=68 // pred_region
                loop: start=0, step=1, limit=1
                $region85: #{transformer_forward.40} parent=83 // loop_pre_header
                  _
                $region86: #{transformer_forward.40} parent=83 // loop_header
                  %s223 = sphi 0, %s227
                  %p224 = scmp.ge.s32.totalorder %s223, 1
                  %s228 = sphi %s199, %s199
                  %s229 = sphi %s194, %s194
                $region87: #{transformer_forward.40} parent=83 // loop_header_branch
                  %226 = sbr.rel (%p224) target = $region91
                $region88: #{transformer_forward.40} parent=83 // loop_body
                  _
                $region89: #{transformer_forward.40} parent=83 // loop_footer
                  %s227 = sadd.s32 1, %s223
                $region90: #{transformer_forward.40} parent=83 // loop_footer_branch
                  %222 = sbr.rel target = $region86
                $region91: #{transformer_forward.40} parent=83 // loop_exit
                  _
                %s231 = ssub.s32 16, 1
                loop: start=0, step=1, limit=1
                $region92: #{transformer_forward.40} parent=83 // loop_pre_header
                  _
                $region93: #{transformer_forward.40} parent=83 // loop_header
                  %s233 = sphi 0, %s237
                  %p234 = scmp.ge.s32.totalorder %s233, 1
                  %s238 = sphi %s199, %s199
                  %s239 = sphi %s194, %s194
                $region94: #{transformer_forward.40} parent=83 // loop_header_branch
                  %236 = sbr.rel (%p234) target = $region98
                $region95: #{transformer_forward.40} parent=83 // loop_body
                  %v240 = vld [vmem:[%s238] sm:%s231]
                  %241 = vst [vmem:[%s239] sm:%s231] %v240
                  %v242 = vld [vmem:[%s238 + $0xc] sm:%s231]
                  %243 = vst [vmem:[%s239 + $0x4] sm:%s231] %v242
                $region96: #{transformer_forward.40} parent=83 // loop_footer
                  %s237 = sadd.s32 1, %s233
                $region97: #{transformer_forward.40} parent=83 // loop_footer_branch
                  %232 = sbr.rel target = $region93
                $region98: #{transformer_forward.40} parent=83 // loop_exit
                  _
              $region84: #{transformer_forward.40} parent=68 // pred_fallthru
                _
            $region69: #{transformer_forward.40} parent=64 // pred_fallthru
              _
            // Predicated region
            $region70: #{transformer_forward.40} parent=64 // pred_check
              _
            $region71: #{transformer_forward.40} parent=64 // pred_check_branch
              %205 = sbr.rel (0) target = $region73
            $region72: #{transformer_forward.40} parent=64 // pred_region
              %s207 = ssub.s32 16, 1
              loop: start=0, step=1, limit=1
              $region74: #{transformer_forward.40} parent=72 // loop_pre_header
                _
              $region75: #{transformer_forward.40} parent=72 // loop_header
                %s209 = sphi 0, %s213
                %p210 = scmp.ge.s32.totalorder %s209, 1
                %s214 = sphi %s199, %s199
                %s215 = sphi %s194, %s194
              $region76: #{transformer_forward.40} parent=72 // loop_header_branch
                %212 = sbr.rel (%p210) target = $region80
              $region77: #{transformer_forward.40} parent=72 // loop_body
                %v216 = vld [vmem:[%s214] sm:%s207]
                %217 = vst [vmem:[%s215] sm:%s207] %v216
                %v218 = vld [vmem:[%s214 + $0xc] sm:%s207]
                %219 = vst [vmem:[%s215 + $0x4] sm:%s207] %v218
              $region78: #{transformer_forward.40} parent=72 // loop_footer
                %s213 = sadd.s32 1, %s209
              $region79: #{transformer_forward.40} parent=72 // loop_footer_branch
                %208 = sbr.rel target = $region75
              $region80: #{transformer_forward.40} parent=72 // loop_exit
                _
            $region73: #{transformer_forward.40} parent=64 // pred_fallthru
              _
          $region65: #{transformer_forward.40} parent=60 // pred_fallthru
            _
          %244 = vnop
        $region61: #{transformer_forward.40} parent=15 // pred_fallthru
          _
        // Predicated region
        $region99: #{transformer_forward.40} parent=15 // pred_check
          %p245 = pneg %p81
        $region100: #{transformer_forward.40} parent=15 // pred_check_branch
          %247 = sbr.rel (%p245) target = $region102
        $region101: #{transformer_forward.40} parent=15 // pred_region
          %s248 = sand.u32 %s71, 1
          %s249 = sand.u32 %s71, 1
          %s250 = smul.addr %s249, 8
          %s251 = scalar_lea.vmem [#allocation4], %s250
          %s252 = smul.u32 2, %s9
          %s253 = smul.addr %s252, 3
          %s254 = sadd.s32 2, %s253
          %s255 = smul.addr %s254, 4
          %s256 = scalar_lea.vmem %s2, %s255
          // Predicated region
          $region103: #{transformer_forward.40} parent=101 // pred_check
            _
          $region104: #{transformer_forward.40} parent=101 // pred_check_branch
            %258 = sbr.rel (0) target = $region106
          $region105: #{transformer_forward.40} parent=101 // pred_region
            // Predicated region
            $region107: #{transformer_forward.40} parent=105 // pred_check
              _
            $region108: #{transformer_forward.40} parent=105 // pred_check_branch
              %260 = sbr.rel target = $region110
            $region109: #{transformer_forward.40} parent=105 // pred_region
              // Predicated region
              $region122: #{transformer_forward.40} parent=109 // pred_check
                _
              $region123: #{transformer_forward.40} parent=109 // pred_check_branch
                %278 = sbr.rel (0) target = $region125
              $region124: #{transformer_forward.40} parent=109 // pred_region
                loop: start=0, step=1, limit=1
                $region126: #{transformer_forward.40} parent=124 // loop_pre_header
                  _
                $region127: #{transformer_forward.40} parent=124 // loop_header
                  %s280 = sphi 0, %s284
                  %p281 = scmp.ge.s32.totalorder %s280, 1
                  %s285 = sphi %s256, %s256
                  %s286 = sphi %s251, %s251
                $region128: #{transformer_forward.40} parent=124 // loop_header_branch
                  %283 = sbr.rel (%p281) target = $region132
                $region129: #{transformer_forward.40} parent=124 // loop_body
                  _
                $region130: #{transformer_forward.40} parent=124 // loop_footer
                  %s284 = sadd.s32 1, %s280
                $region131: #{transformer_forward.40} parent=124 // loop_footer_branch
                  %279 = sbr.rel target = $region127
                $region132: #{transformer_forward.40} parent=124 // loop_exit
                  _
                %s288 = ssub.s32 16, 1
                loop: start=0, step=1, limit=1
                $region133: #{transformer_forward.40} parent=124 // loop_pre_header
                  _
                $region134: #{transformer_forward.40} parent=124 // loop_header
                  %s290 = sphi 0, %s294
                  %p291 = scmp.ge.s32.totalorder %s290, 1
                  %s295 = sphi %s256, %s256
                  %s296 = sphi %s251, %s251
                $region135: #{transformer_forward.40} parent=124 // loop_header_branch
                  %293 = sbr.rel (%p291) target = $region139
                $region136: #{transformer_forward.40} parent=124 // loop_body
                  %v297 = vld [vmem:[%s295] sm:%s288]
                  %298 = vst [vmem:[%s296] sm:%s288] %v297
                  %v299 = vld [vmem:[%s295 + $0xc] sm:%s288]
                  %300 = vst [vmem:[%s296 + $0x4] sm:%s288] %v299
                $region137: #{transformer_forward.40} parent=124 // loop_footer
                  %s294 = sadd.s32 1, %s290
                $region138: #{transformer_forward.40} parent=124 // loop_footer_branch
                  %289 = sbr.rel target = $region134
                $region139: #{transformer_forward.40} parent=124 // loop_exit
                  _
              $region125: #{transformer_forward.40} parent=109 // pred_fallthru
                _
            $region110: #{transformer_forward.40} parent=105 // pred_fallthru
              _
            // Predicated region
            $region111: #{transformer_forward.40} parent=105 // pred_check
              _
            $region112: #{transformer_forward.40} parent=105 // pred_check_branch
              %262 = sbr.rel (0) target = $region114
            $region113: #{transformer_forward.40} parent=105 // pred_region
              %s264 = ssub.s32 16, 1
              loop: start=0, step=1, limit=1
              $region115: #{transformer_forward.40} parent=113 // loop_pre_header
                _
              $region116: #{transformer_forward.40} parent=113 // loop_header
                %s266 = sphi 0, %s270
                %p267 = scmp.ge.s32.totalorder %s266, 1
                %s271 = sphi %s256, %s256
                %s272 = sphi %s251, %s251
              $region117: #{transformer_forward.40} parent=113 // loop_header_branch
                %269 = sbr.rel (%p267) target = $region121
              $region118: #{transformer_forward.40} parent=113 // loop_body
                %v273 = vld [vmem:[%s271] sm:%s264]
                %274 = vst [vmem:[%s272] sm:%s264] %v273
                %v275 = vld [vmem:[%s271 + $0xc] sm:%s264]
                %276 = vst [vmem:[%s272 + $0x4] sm:%s264] %v275
              $region119: #{transformer_forward.40} parent=113 // loop_footer
                %s270 = sadd.s32 1, %s266
              $region120: #{transformer_forward.40} parent=113 // loop_footer_branch
                %265 = sbr.rel target = $region116
              $region121: #{transformer_forward.40} parent=113 // loop_exit
                _
            $region114: #{transformer_forward.40} parent=105 // pred_fallthru
              _
          $region106: #{transformer_forward.40} parent=101 // pred_fallthru
            _
          %301 = vnop
        $region102: #{transformer_forward.40} parent=15 // pred_fallthru
          _
      $region16: #{transformer_forward.40} parent=5 // pred_fallthru
        _
      %p302 = scmp.le.s32.totalorder 1, %s9
      %p303 = scmp.lt.s32.totalorder %s9, 3
      %p304 = pnand %p302, %p303
      %p305 = pneg %p304
      // Predicated region
      $region140: #{transformer_forward.40} parent=5 // pred_check
        _
      $region141: #{transformer_forward.40} parent=5 // pred_check_branch
        %307 = sbr.rel (%p304) target = $region143
      $region142: #{transformer_forward.40} parent=5 // pred_region
        %s308 = ssub.s32 %s9, 1
        %s309 = sand.u32 %s22, 1
        %s310 = sand.u32 %s22, 1
        %s311 = smul.addr %s310, 8
        %s312 = scalar_lea.vmem [#allocation2], %s311
        // Predicated region
        $region144: #{transformer_forward.40} parent=142 // pred_check
          %p313 = pneg %p35
        $region145: #{transformer_forward.40} parent=142 // pred_check_branch
          %315 = sbr.rel (%p313) target = $region147
        $region146: #{transformer_forward.40} parent=142 // pred_region
          _
        $region147: #{transformer_forward.40} parent=142 // pred_fallthru
          _
        %s316 = sand.u32 %s48, 1
        %s317 = sand.u32 %s48, 1
        %s318 = smul.addr %s317, 8
        %s319 = scalar_lea.vmem [#allocation3], %s318
        // Predicated region
        $region148: #{transformer_forward.40} parent=142 // pred_check
          %p320 = pneg %p61
        $region149: #{transformer_forward.40} parent=142 // pred_check_branch
          %322 = sbr.rel (%p320) target = $region151
        $region150: #{transformer_forward.40} parent=142 // pred_region
          _
        $region151: #{transformer_forward.40} parent=142 // pred_fallthru
          _
        %s323 = sand.u32 %s74, 1
        %s324 = sand.u32 %s74, 1
        %s325 = smul.addr %s324, 8
        %s326 = scalar_lea.vmem [#allocation4], %s325
        // Predicated region
        $region152: #{transformer_forward.40} parent=142 // pred_check
          %p327 = pneg %p87
        $region153: #{transformer_forward.40} parent=142 // pred_check_branch
          %329 = sbr.rel (%p327) target = $region155
        $region154: #{transformer_forward.40} parent=142 // pred_region
          _
        $region155: #{transformer_forward.40} parent=142 // pred_fallthru
          _
        %s330 = sand.u32 %s22, 1
        %s331 = sand.u32 %s22, 1
        %s332 = smul.addr %s331, 8
        %s333 = scalar_lea.vmem [#allocation2], %s332
        %p334 = pneg %p35
        %p335 = pneg %p32
        %s336 = sand.u32 %s48, 1
        %s337 = sand.u32 %s48, 1
        %s338 = smul.addr %s337, 8
        %s339 = scalar_lea.vmem [#allocation3], %s338
        %p340 = pneg %p61
        %p341 = pneg %p58
        %s342 = sand.u32 %s74, 1
        %s343 = sand.u32 %s74, 1
        %s344 = smul.addr %s343, 8
        %s345 = scalar_lea.vmem [#allocation4], %s344
        %p346 = pneg %p87
        %p347 = pneg %p84
        %p348 = pneg %p113
        %p349 = pneg %p110
        %s350 = smul.u32 2, %s14
        %p351 = scmp.lt.s32.totalorder %s350, 3
        %s352 = scalar_select %p351, %s350, 3
        %s353 = smul.addr %s352, 4
        %s354 = scalar_lea.vmem %s3, %s353
        %s355 = smul.u32 2, %s14
        %s356 = smul.u32 2, %s14
        %s357 = smul.u32 2, %s14
        %s358 = smul.u32 2, %s14
        %p359 = scmp.lt.s32.totalorder %s358, 3
        %s360 = scalar_select %p359, %s358, 3
        %s361 = smul.addr %s360, 4
        %s362 = scalar_lea.vmem %s3, %s361
        %s363 = smul.u32 2, %s14
        %v366 = vld [vmem:[%s312] sm:$0xf]
        %v367 = vld [vmem:[%s312 + $0x4] sm:$0xf]
        %v368 = vld [vmem:[%s319] sm:$0xf]
        %v369 = vld [vmem:[%s319 + $0x4] sm:$0xf]
        %v370 = vld [vmem:[%s326] sm:$0xf]
        %v371 = vld [vmem:[%s326 + $0x4] sm:$0xf]
        %v372 = vlaneseq
        %v373 = vshrl.u32 %v372, 7
        %v374 = vadd.s32 %v373, 8
        %v375 = vlaneseq
        %v376 = vand.u32 %v375, 127
        %vm377 = vcmp.gt.s32.totalorder %v376, %v373
        %vm378 = vcmp.gt.s32.totalorder %v376, %v374
        %v379 = vmul.bf16 %v366, 1043676725
        %v380 = vmul.bf16 %v367, 1043676725
        %v383 = vunpack.c.l.b16 %v379
        %v384 = vunpack.c.l.b16 %v380
        %v385 = vpack.c.b16 %v384, %v383
        %v388 = vunpack.c.l.b16 %v368
        %v389 = vunpack.c.l.b16 %v369
        %v390 = vpack.c.b16 %v389, %v388
        %vm391 = vcmask 261120
        %v393 = vsel %vm391, %v385, 0
        %v396 = vsel %vm391, %v390, 0
        %398 = vmatprep.subr.bf16.mxu0 0
        %399 = vmatpush1.bf16.xpose.msra.mxu0 0
        %400 = vmatprep.subr.bf16.mxu0 0
        %401 = vmatpush1.bf16.xpose.msra.mxu0 0
        %402 = vmatprep.subr.bf16.mxu0 0
        %403 = vmatpush1.bf16.xpose.msra.mxu0 0
        %404 = vmatprep.subr.bf16.mxu0 0
        %405 = vmatpush1.bf16.xpose.msra.mxu0 0
        %406 = vmatprep.subr.bf16.mxu0 0
        %407 = vmatpush1.bf16.xpose.msra.mxu0 0
        %408 = vmatprep.subr.bf16.mxu0 0
        %409 = vmatpush1.bf16.xpose.msra.mxu0 0
        %410 = vmatprep.subr.bf16.mxu0 0
        %411 = vmatpush1.bf16.xpose.msra.mxu0 0
        %412 = vmatprep.subr.bf16.mxu0 0
        %413 = vmatpush1.bf16.xpose.msra.mxu0 %v396
        %414 = vmatprep.subr.bf16.mxu0 0
        %415 = vmatpush2.bf16.xpose.msra.mxu0 0
        %416 = vmatprep.subr.bf16.mxu0 0
        %417 = vmatpush2.bf16.xpose.msra.mxu0 0
        %418 = vmatprep.subr.bf16.mxu0 0
        %419 = vmatpush2.bf16.xpose.msra.mxu0 0
        %420 = vmatprep.subr.bf16.mxu0 0
        %421 = vmatpush2.bf16.xpose.msra.mxu0 0
        %422 = vmatprep.subr.bf16.mxu0 0
        %423 = vmatpush2.bf16.xpose.msra.mxu0 0
        %424 = vmatprep.subr.bf16.mxu0 0
        %425 = vmatpush2.bf16.xpose.msra.mxu0 0
        %426 = vmatprep.subr.bf16.mxu0 0
        %427 = vmatpush2.bf16.xpose.msra.mxu0 0
        %428 = vmatprep.subr.bf16.mxu0 0
        %429 = vmatpush2.bf16.xpose.msra.mxu0 0
        %430 = vmatprep.mubr.bf16.mxu0 0
        %431 = vmatmul.mubr.bf16.gmra.mxu0 %v393
        %v432 = vpop.f32.mrf.mxu0
        %v433 = vadd.f32 0.0, %v432
        %v434 = vpop.f32.mrf.mxu0
        %v435 = vpop.f32.mrf.mxu0
        %v436 = vadd.f32 0.0, %v435
        %v437 = vpop.f32.mrf.mxu0
        %438 = vdwg.mxu0
        %v439 = vsel %vm377, -1e+30, %v433
        %v440 = vsel %vm378, -1e+30, %v436
        %vm441 = vcmask 130048
        %v442 = vsel %vm441, %v439, -inf
        %443 = vmax.xlane.f32.xlu0 %v442
        %v444 = vpop.xlane.xlu0 %443
        %v445 = vsel %vm441, %v440, -inf
        %446 = vmax.xlane.f32.xlu0 %v445
        %v447 = vpop.xlane.xlu0 %446
        %v448 = vsub.f32 %v439, %v444
        %v449 = vsub.f32 %v440, %v447
        %v450 = vmul.f32 %v448, 1.442695
        %v451 = vpow.pop %v450
        %v452 = vmul.f32 %v449, 1.442695
        %v453 = vpow.pop %v452
        %v454 = vsel %vm441, %v451, 0.0
        %455 = vadd.xlane.f32.xlu0 %v454
        %v456 = vpop.xlane.xlu0 %455
        %v457 = vsel %vm441, %v453, 0.0
        %458 = vadd.xlane.f32.xlu0 %v457
        %v459 = vpop.xlane.xlu0 %458
        %v460 = vrcp.pop %v456
        %v461 = vrcp.pop %v459
        %v462 = vmul.f32 %v451, %v460
        %v463 = vmul.f32 %v453, %v461
        %v464 = vpack.c.bf16 %v463, %v462
        %v467 = vunpack.c.l.b16 %v370
        %v468 = vunpack.c.l.b16 %v371
        %v469 = vpack.c.b16 %v468, %v467
        %v472 = vsel %vm441, %v464, 0
        %474 = vmatprep.subr.bf16.mxu0 0
        %475 = vmatpush1.bf16.msra.mxu0 0
        %476 = vmatprep.subr.bf16.mxu0 0
        %477 = vmatpush1.bf16.msra.mxu0 0
        %478 = vmatprep.subr.bf16.mxu0 0
        %479 = vmatpush1.bf16.msra.mxu0 0
        %480 = vmatprep.subr.bf16.mxu0 0
        %481 = vmatpush1.bf16.msra.mxu0 0
        %482 = vmatprep.subr.bf16.mxu0 0
        %483 = vmatpush1.bf16.msra.mxu0 0
        %484 = vmatprep.subr.bf16.mxu0 0
        %485 = vmatpush1.bf16.msra.mxu0 0
        %486 = vmatprep.subr.bf16.mxu0 0
        %487 = vmatpush1.bf16.msra.mxu0 0
        %488 = vmatprep.subr.bf16.mxu0 0
        %489 = vmatpush1.bf16.msra.mxu0 %v469
        %490 = vmatprep.subr.bf16.mxu0 0
        %491 = vmatpush2.bf16.msra.mxu0 0
        %492 = vmatprep.subr.bf16.mxu0 0
        %493 = vmatpush2.bf16.msra.mxu0 0
        %494 = vmatprep.subr.bf16.mxu0 0
        %495 = vmatpush2.bf16.msra.mxu0 0
        %496 = vmatprep.subr.bf16.mxu0 0
        %497 = vmatpush2.bf16.msra.mxu0 0
        %498 = vmatprep.subr.bf16.mxu0 0
        %499 = vmatpush2.bf16.msra.mxu0 0
        %500 = vmatprep.subr.bf16.mxu0 0
        %501 = vmatpush2.bf16.msra.mxu0 0
        %502 = vmatprep.subr.bf16.mxu0 0
        %503 = vmatpush2.bf16.msra.mxu0 0
        %504 = vmatprep.subr.bf16.mxu0 0
        %505 = vmatpush2.bf16.msra.mxu0 0
        %506 = vmatprep.mubr.bf16.mxu0 0
        %507 = vmatmul.mubr.bf16.gmra.mxu0 %v472
        %v508 = vpop.f32.mrf.mxu0
        %v509 = vadd.f32 0.0, %v508
        %v510 = vpop.f32.mrf.mxu0
        %v511 = vpop.f32.mrf.mxu0
        %v512 = vadd.f32 0.0, %v511
        %v513 = vpop.f32.mrf.mxu0
        %514 = vdwg.mxu0
        %515 = vrot.lane.b32.xlu0 %v385, 96
        %v516 = vpop.permute.xlu0 %515
        %517 = vrot.lane.b32.xlu0 %v390, 96
        %v518 = vpop.permute.xlu0 %517
        %v520 = vsel %vm391, %v516, 0
        %v523 = vsel %vm391, %v518, 0
        %525 = vmatprep.subr.bf16.mxu0 0
        %526 = vmatpush1.bf16.xpose.msra.mxu0 0
        %527 = vmatprep.subr.bf16.mxu0 0
        %528 = vmatpush1.bf16.xpose.msra.mxu0 0
        %529 = vmatprep.subr.bf16.mxu0 0
        %530 = vmatpush1.bf16.xpose.msra.mxu0 0
        %531 = vmatprep.subr.bf16.mxu0 0
        %532 = vmatpush1.bf16.xpose.msra.mxu0 0
        %533 = vmatprep.subr.bf16.mxu0 0
        %534 = vmatpush1.bf16.xpose.msra.mxu0 0
        %535 = vmatprep.subr.bf16.mxu0 0
        %536 = vmatpush1.bf16.xpose.msra.mxu0 0
        %537 = vmatprep.subr.bf16.mxu0 0
        %538 = vmatpush1.bf16.xpose.msra.mxu0 0
        %539 = vmatprep.subr.bf16.mxu0 0
        %540 = vmatpush1.bf16.xpose.msra.mxu0 %v523
        %541 = vmatprep.subr.bf16.mxu0 0
        %542 = vmatpush2.bf16.xpose.msra.mxu0 0
        %543 = vmatprep.subr.bf16.mxu0 0
        %544 = vmatpush2.bf16.xpose.msra.mxu0 0
        %545 = vmatprep.subr.bf16.mxu0 0
        %546 = vmatpush2.bf16.xpose.msra.mxu0 0
        %547 = vmatprep.subr.bf16.mxu0 0
        %548 = vmatpush2.bf16.xpose.msra.mxu0 0
        %549 = vmatprep.subr.bf16.mxu0 0
        %550 = vmatpush2.bf16.xpose.msra.mxu0 0
        %551 = vmatprep.subr.bf16.mxu0 0
        %552 = vmatpush2.bf16.xpose.msra.mxu0 0
        %553 = vmatprep.subr.bf16.mxu0 0
        %554 = vmatpush2.bf16.xpose.msra.mxu0 0
        %555 = vmatprep.subr.bf16.mxu0 0
        %556 = vmatpush2.bf16.xpose.msra.mxu0 0
        %557 = vmatprep.mubr.bf16.mxu0 0
        %558 = vmatmul.mubr.bf16.gmra.mxu0 %v520
        %v559 = vpop.f32.mrf.mxu0
        %v560 = vadd.f32 0.0, %v559
        %v561 = vpop.f32.mrf.mxu0
        %v562 = vpop.f32.mrf.mxu0
        %v563 = vadd.f32 0.0, %v562
        %v564 = vpop.f32.mrf.mxu0
        %565 = vdwg.mxu0
        %v566 = vsel %vm377, -1e+30, %v560
        %v567 = vsel %vm378, -1e+30, %v563
        %v568 = vsel %vm441, %v566, -inf
        %569 = vmax.xlane.f32.xlu0 %v568
        %v570 = vpop.xlane.xlu0 %569
        %v571 = vsel %vm441, %v567, -inf
        %572 = vmax.xlane.f32.xlu0 %v571
        %v573 = vpop.xlane.xlu0 %572
        %v574 = vsub.f32 %v566, %v570
        %v575 = vsub.f32 %v567, %v573
        %v576 = vmul.f32 %v574, 1.442695
        %v577 = vpow.pop %v576
        %v578 = vmul.f32 %v575, 1.442695
        %v579 = vpow.pop %v578
        %v580 = vsel %vm441, %v577, 0.0
        %581 = vadd.xlane.f32.xlu0 %v580
        %v582 = vpop.xlane.xlu0 %581
        %v583 = vsel %vm441, %v579, 0.0
        %584 = vadd.xlane.f32.xlu0 %v583
        %v585 = vpop.xlane.xlu0 %584
        %v586 = vrcp.pop %v582
        %v587 = vrcp.pop %v585
        %v588 = vmul.f32 %v577, %v586
        %v589 = vmul.f32 %v579, %v587
        %v590 = vpack.c.bf16 %v589, %v588
        %591 = vrot.lane.b32.xlu0 %v469, 96
        %v592 = vpop.permute.xlu0 %591
        %v595 = vsel %vm441, %v590, 0
        %597 = vmatprep.subr.bf16.mxu0 0
        %598 = vmatpush1.bf16.msra.mxu0 0
        %599 = vmatprep.subr.bf16.mxu0 0
        %600 = vmatpush1.bf16.msra.mxu0 0
        %601 = vmatprep.subr.bf16.mxu0 0
        %602 = vmatpush1.bf16.msra.mxu0 0
        %603 = vmatprep.subr.bf16.mxu0 0
        %604 = vmatpush1.bf16.msra.mxu0 0
        %605 = vmatprep.subr.bf16.mxu0 0
        %606 = vmatpush1.bf16.msra.mxu0 0
        %607 = vmatprep.subr.bf16.mxu0 0
        %608 = vmatpush1.bf16.msra.mxu0 0
        %609 = vmatprep.subr.bf16.mxu0 0
        %610 = vmatpush1.bf16.msra.mxu0 0
        %611 = vmatprep.subr.bf16.mxu0 0
        %612 = vmatpush1.bf16.msra.mxu0 %v592
        %613 = vmatprep.subr.bf16.mxu0 0
        %614 = vmatpush2.bf16.msra.mxu0 0
        %615 = vmatprep.subr.bf16.mxu0 0
        %616 = vmatpush2.bf16.msra.mxu0 0
        %617 = vmatprep.subr.bf16.mxu0 0
        %618 = vmatpush2.bf16.msra.mxu0 0
        %619 = vmatprep.subr.bf16.mxu0 0
        %620 = vmatpush2.bf16.msra.mxu0 0
        %621 = vmatprep.subr.bf16.mxu0 0
        %622 = vmatpush2.bf16.msra.mxu0 0
        %623 = vmatprep.subr.bf16.mxu0 0
        %624 = vmatpush2.bf16.msra.mxu0 0
        %625 = vmatprep.subr.bf16.mxu0 0
        %626 = vmatpush2.bf16.msra.mxu0 0
        %627 = vmatprep.subr.bf16.mxu0 0
        %628 = vmatpush2.bf16.msra.mxu0 0
        %629 = vmatprep.mubr.bf16.mxu0 0
        %630 = vmatmul.mubr.bf16.gmra.mxu0 %v595
        %v631 = vpop.f32.mrf.mxu0
        %v632 = vadd.f32 0.0, %v631
        %v633 = vpop.f32.mrf.mxu0
        %v634 = vpop.f32.mrf.mxu0
        %v635 = vadd.f32 0.0, %v634
        %v636 = vpop.f32.mrf.mxu0
        %637 = vdwg.mxu0
        %638 = vrot.lane.b32.xlu0 %v385, 64
        %v639 = vpop.permute.xlu0 %638
        %640 = vrot.lane.b32.xlu0 %v390, 64
        %v641 = vpop.permute.xlu0 %640
        %v643 = vsel %vm391, %v639, 0
        %v646 = vsel %vm391, %v641, 0
        %648 = vmatprep.subr.bf16.mxu0 0
        %649 = vmatpush1.bf16.xpose.msra.mxu0 0
        %650 = vmatprep.subr.bf16.mxu0 0
        %651 = vmatpush1.bf16.xpose.msra.mxu0 0
        %652 = vmatprep.subr.bf16.mxu0 0
        %653 = vmatpush1.bf16.xpose.msra.mxu0 0
        %654 = vmatprep.subr.bf16.mxu0 0
        %655 = vmatpush1.bf16.xpose.msra.mxu0 0
        %656 = vmatprep.subr.bf16.mxu0 0
        %657 = vmatpush1.bf16.xpose.msra.mxu0 0
        %658 = vmatprep.subr.bf16.mxu0 0
        %659 = vmatpush1.bf16.xpose.msra.mxu0 0
        %660 = vmatprep.subr.bf16.mxu0 0
        %661 = vmatpush1.bf16.xpose.msra.mxu0 0
        %662 = vmatprep.subr.bf16.mxu0 0
        %663 = vmatpush1.bf16.xpose.msra.mxu0 %v646
        %664 = vmatprep.subr.bf16.mxu0 0
        %665 = vmatpush2.bf16.xpose.msra.mxu0 0
        %666 = vmatprep.subr.bf16.mxu0 0
        %667 = vmatpush2.bf16.xpose.msra.mxu0 0
        %668 = vmatprep.subr.bf16.mxu0 0
        %669 = vmatpush2.bf16.xpose.msra.mxu0 0
        %670 = vmatprep.subr.bf16.mxu0 0
        %671 = vmatpush2.bf16.xpose.msra.mxu0 0
        %672 = vmatprep.subr.bf16.mxu0 0
        %673 = vmatpush2.bf16.xpose.msra.mxu0 0
        %674 = vmatprep.subr.bf16.mxu0 0
        %675 = vmatpush2.bf16.xpose.msra.mxu0 0
        %676 = vmatprep.subr.bf16.mxu0 0
        %677 = vmatpush2.bf16.xpose.msra.mxu0 0
        %678 = vmatprep.subr.bf16.mxu0 0
        %679 = vmatpush2.bf16.xpose.msra.mxu0 0
        %680 = vmatprep.mubr.bf16.mxu0 0
        %681 = vmatmul.mubr.bf16.gmra.mxu0 %v643
        %v682 = vpop.f32.mrf.mxu0
        %v683 = vadd.f32 0.0, %v682
        %v684 = vpop.f32.mrf.mxu0
        %v685 = vpop.f32.mrf.mxu0
        %v686 = vadd.f32 0.0, %v685
        %v687 = vpop.f32.mrf.mxu0
        %688 = vdwg.mxu0
        %v689 = vsel %vm377, -1e+30, %v683
        %v690 = vsel %vm378, -1e+30, %v686
        %v691 = vsel %vm441, %v689, -inf
        %692 = vmax.xlane.f32.xlu0 %v691
        %v693 = vpop.xlane.xlu0 %692
        %v694 = vsel %vm441, %v690, -inf
        %695 = vmax.xlane.f32.xlu0 %v694
        %v696 = vpop.xlane.xlu0 %695
        %v697 = vsub.f32 %v689, %v693
        %v698 = vsub.f32 %v690, %v696
        %v699 = vmul.f32 %v697, 1.442695
        %v700 = vpow.pop %v699
        %v701 = vmul.f32 %v698, 1.442695
        %v702 = vpow.pop %v701
        %v703 = vsel %vm441, %v700, 0.0
        %704 = vadd.xlane.f32.xlu0 %v703
        %v705 = vpop.xlane.xlu0 %704
        %v706 = vsel %vm441, %v702, 0.0
        %707 = vadd.xlane.f32.xlu0 %v706
        %v708 = vpop.xlane.xlu0 %707
        %v709 = vrcp.pop %v705
        %v710 = vrcp.pop %v708
        %v711 = vmul.f32 %v700, %v709
        %v712 = vmul.f32 %v702, %v710
        %v713 = vpack.c.bf16 %v712, %v711
        %714 = vrot.lane.b32.xlu0 %v469, 64
        %v715 = vpop.permute.xlu0 %714
        %v718 = vsel %vm441, %v713, 0
        %720 = vmatprep.subr.bf16.mxu0 0
        %721 = vmatpush1.bf16.msra.mxu0 0
        %722 = vmatprep.subr.bf16.mxu0 0
        %723 = vmatpush1.bf16.msra.mxu0 0
        %724 = vmatprep.subr.bf16.mxu0 0
        %725 = vmatpush1.bf16.msra.mxu0 0
        %726 = vmatprep.subr.bf16.mxu0 0
        %727 = vmatpush1.bf16.msra.mxu0 0
        %728 = vmatprep.subr.bf16.mxu0 0
        %729 = vmatpush1.bf16.msra.mxu0 0
        %730 = vmatprep.subr.bf16.mxu0 0
        %731 = vmatpush1.bf16.msra.mxu0 0
        %732 = vmatprep.subr.bf16.mxu0 0
        %733 = vmatpush1.bf16.msra.mxu0 0
        %734 = vmatprep.subr.bf16.mxu0 0
        %735 = vmatpush1.bf16.msra.mxu0 %v715
        %736 = vmatprep.subr.bf16.mxu0 0
        %737 = vmatpush2.bf16.msra.mxu0 0
        %738 = vmatprep.subr.bf16.mxu0 0
        %739 = vmatpush2.bf16.msra.mxu0 0
        %740 = vmatprep.subr.bf16.mxu0 0
        %741 = vmatpush2.bf16.msra.mxu0 0
        %742 = vmatprep.subr.bf16.mxu0 0
        %743 = vmatpush2.bf16.msra.mxu0 0
        %744 = vmatprep.subr.bf16.mxu0 0
        %745 = vmatpush2.bf16.msra.mxu0 0
        %746 = vmatprep.subr.bf16.mxu0 0
        %747 = vmatpush2.bf16.msra.mxu0 0
        %748 = vmatprep.subr.bf16.mxu0 0
        %749 = vmatpush2.bf16.msra.mxu0 0
        %750 = vmatprep.subr.bf16.mxu0 0
        %751 = vmatpush2.bf16.msra.mxu0 0
        %752 = vmatprep.mubr.bf16.mxu0 0
        %753 = vmatmul.mubr.bf16.gmra.mxu0 %v718
        %v754 = vpop.f32.mrf.mxu0
        %v755 = vadd.f32 0.0, %v754
        %v756 = vpop.f32.mrf.mxu0
        %v757 = vpop.f32.mrf.mxu0
        %v758 = vadd.f32 0.0, %v757
        %v759 = vpop.f32.mrf.mxu0
        %760 = vdwg.mxu0
        %761 = vrot.lane.b32.xlu0 %v385, 32
        %v762 = vpop.permute.xlu0 %761
        %763 = vrot.lane.b32.xlu0 %v390, 32
        %v764 = vpop.permute.xlu0 %763
        %v766 = vsel %vm391, %v762, 0
        %v769 = vsel %vm391, %v764, 0
        %771 = vmatprep.subr.bf16.mxu0 0
        %772 = vmatpush1.bf16.xpose.msra.mxu0 0
        %773 = vmatprep.subr.bf16.mxu0 0
        %774 = vmatpush1.bf16.xpose.msra.mxu0 0
        %775 = vmatprep.subr.bf16.mxu0 0
        %776 = vmatpush1.bf16.xpose.msra.mxu0 0
        %777 = vmatprep.subr.bf16.mxu0 0
        %778 = vmatpush1.bf16.xpose.msra.mxu0 0
        %779 = vmatprep.subr.bf16.mxu0 0
        %780 = vmatpush1.bf16.xpose.msra.mxu0 0
        %781 = vmatprep.subr.bf16.mxu0 0
        %782 = vmatpush1.bf16.xpose.msra.mxu0 0
        %783 = vmatprep.subr.bf16.mxu0 0
        %784 = vmatpush1.bf16.xpose.msra.mxu0 0
        %785 = vmatprep.subr.bf16.mxu0 0
        %786 = vmatpush1.bf16.xpose.msra.mxu0 %v769
        %787 = vmatprep.subr.bf16.mxu0 0
        %788 = vmatpush2.bf16.xpose.msra.mxu0 0
        %789 = vmatprep.subr.bf16.mxu0 0
        %790 = vmatpush2.bf16.xpose.msra.mxu0 0
        %791 = vmatprep.subr.bf16.mxu0 0
        %792 = vmatpush2.bf16.xpose.msra.mxu0 0
        %793 = vmatprep.subr.bf16.mxu0 0
        %794 = vmatpush2.bf16.xpose.msra.mxu0 0
        %795 = vmatprep.subr.bf16.mxu0 0
        %796 = vmatpush2.bf16.xpose.msra.mxu0 0
        %797 = vmatprep.subr.bf16.mxu0 0
        %798 = vmatpush2.bf16.xpose.msra.mxu0 0
        %799 = vmatprep.subr.bf16.mxu0 0
        %800 = vmatpush2.bf16.xpose.msra.mxu0 0
        %801 = vmatprep.subr.bf16.mxu0 0
        %802 = vmatpush2.bf16.xpose.msra.mxu0 0
        %803 = vmatprep.mubr.bf16.mxu0 0
        %804 = vmatmul.mubr.bf16.gmra.mxu0 %v766
        %v805 = vpop.f32.mrf.mxu0
        %v806 = vadd.f32 0.0, %v805
        %v807 = vpop.f32.mrf.mxu0
        %v808 = vpop.f32.mrf.mxu0
        %v809 = vadd.f32 0.0, %v808
        %v810 = vpop.f32.mrf.mxu0
        %811 = vdwg.mxu0
        %v812 = vsel %vm377, -1e+30, %v806
        %v813 = vsel %vm378, -1e+30, %v809
        %v814 = vsel %vm441, %v812, -inf
        %815 = vmax.xlane.f32.xlu0 %v814
        %v816 = vpop.xlane.xlu0 %815
        %v817 = vsel %vm441, %v813, -inf
        %818 = vmax.xlane.f32.xlu0 %v817
        %v819 = vpop.xlane.xlu0 %818
        %v820 = vsub.f32 %v812, %v816
        %v821 = vsub.f32 %v813, %v819
        %v822 = vmul.f32 %v820, 1.442695
        %v823 = vpow.pop %v822
        %v824 = vmul.f32 %v821, 1.442695
        %v825 = vpow.pop %v824
        %v826 = vsel %vm441, %v823, 0.0
        %827 = vadd.xlane.f32.xlu0 %v826
        %v828 = vpop.xlane.xlu0 %827
        %v829 = vsel %vm441, %v825, 0.0
        %830 = vadd.xlane.f32.xlu0 %v829
        %v831 = vpop.xlane.xlu0 %830
        %v832 = vrcp.pop %v828
        %v833 = vrcp.pop %v831
        %v834 = vmul.f32 %v823, %v832
        %v835 = vmul.f32 %v825, %v833
        %v836 = vpack.c.bf16 %v835, %v834
        %837 = vrot.lane.b32.xlu0 %v469, 32
        %v838 = vpop.permute.xlu0 %837
        %v841 = vsel %vm441, %v836, 0
        %843 = vmatprep.subr.bf16.mxu0 0
        %844 = vmatpush1.bf16.msra.mxu0 0
        %845 = vmatprep.subr.bf16.mxu0 0
        %846 = vmatpush1.bf16.msra.mxu0 0
        %847 = vmatprep.subr.bf16.mxu0 0
        %848 = vmatpush1.bf16.msra.mxu0 0
        %849 = vmatprep.subr.bf16.mxu0 0
        %850 = vmatpush1.bf16.msra.mxu0 0
        %851 = vmatprep.subr.bf16.mxu0 0
        %852 = vmatpush1.bf16.msra.mxu0 0
        %853 = vmatprep.subr.bf16.mxu0 0
        %854 = vmatpush1.bf16.msra.mxu0 0
        %855 = vmatprep.subr.bf16.mxu0 0
        %856 = vmatpush1.bf16.msra.mxu0 0
        %857 = vmatprep.subr.bf16.mxu0 0
        %858 = vmatpush1.bf16.msra.mxu0 %v838
        %859 = vmatprep.subr.bf16.mxu0 0
        %860 = vmatpush2.bf16.msra.mxu0 0
        %861 = vmatprep.subr.bf16.mxu0 0
        %862 = vmatpush2.bf16.msra.mxu0 0
        %863 = vmatprep.subr.bf16.mxu0 0
        %864 = vmatpush2.bf16.msra.mxu0 0
        %865 = vmatprep.subr.bf16.mxu0 0
        %866 = vmatpush2.bf16.msra.mxu0 0
        %867 = vmatprep.subr.bf16.mxu0 0
        %868 = vmatpush2.bf16.msra.mxu0 0
        %869 = vmatprep.subr.bf16.mxu0 0
        %870 = vmatpush2.bf16.msra.mxu0 0
        %871 = vmatprep.subr.bf16.mxu0 0
        %872 = vmatpush2.bf16.msra.mxu0 0
        %873 = vmatprep.subr.bf16.mxu0 0
        %874 = vmatpush2.bf16.msra.mxu0 0
        %875 = vmatprep.mubr.bf16.mxu0 0
        %876 = vmatmul.mubr.bf16.gmra.mxu0 %v841
        %v877 = vpop.f32.mrf.mxu0
        %v878 = vadd.f32 0.0, %v877
        %v879 = vpop.f32.mrf.mxu0
        %v880 = vpop.f32.mrf.mxu0
        %v881 = vadd.f32 0.0, %v880
        %v882 = vpop.f32.mrf.mxu0
        %883 = vdwg.mxu0
        %886 = vrot.lane.b32.xlu0 %v632, 32
        %v887 = vpop.permute.xlu0 %886
        %888 = vrot.lane.b32.xlu0 %v635, 32
        %v889 = vpop.permute.xlu0 %888
        %894 = vrot.lane.b32.xlu0 %v755, 64
        %v895 = vpop.permute.xlu0 %894
        %896 = vrot.lane.b32.xlu0 %v758, 64
        %v897 = vpop.permute.xlu0 %896
        %902 = vrot.lane.b32.xlu0 %v878, 96
        %v903 = vpop.permute.xlu0 %902
        %904 = vrot.lane.b32.xlu0 %v881, 96
        %v905 = vpop.permute.xlu0 %904
        %v908 = vsel %vm391, %v509, %v887
        %v909 = vsel %vm391, %v512, %v889
        %vm910 = vcmask 523264
        %v911 = vsel %vm910, %v908, %v895
        %v912 = vsel %vm910, %v909, %v897
        %vm913 = vcmask 785408
        %v914 = vsel %vm913, %v911, %v903
        %v915 = vsel %vm913, %v912, %v905
        %v916 = vpack.c.bf16 %v915, %v914
        %v918 = vunpack.c.l.b16 %v916
        %v919 = vunpack.c.h.b16 %v916
        %v920 = vpack.c.b16 %v918, %v918
        %v921 = vpack.c.b16 %v919, %v919
        %924 = vst [vmem:[%s362] sm:$0xf] %v920
        %925 = vst [vmem:[%s362 + $0x4] sm:$0xf] %v921
        %s926 = smul.u32 2, %s14
        %p927 = scmp.lt.s32.totalorder %s926, 3
        %s928 = scalar_select %p927, %s926, 3
        %s929 = smul.addr %s928, 4
        %s930 = scalar_lea.vmem %s3, %s929
        // Predicated region
        $region156: #{transformer_forward.40} parent=142 // pred_check
          %p931 = pneg %p110
        $region157: #{transformer_forward.40} parent=142 // pred_check_branch
          %933 = sbr.rel (%p931) target = $region159
        $region158: #{transformer_forward.40} parent=142 // pred_region
          %s934 = smul.u32 2, %s14
        $region159: #{transformer_forward.40} parent=142 // pred_fallthru
          _
      $region143: #{transformer_forward.40} parent=5 // pred_fallthru
        _
      %p935 = scmp.le.s32.totalorder 2, %s9
      // Predicated region
      $region160: #{transformer_forward.40} parent=5 // pred_check
        %p936 = pneg %p935
      $region161: #{transformer_forward.40} parent=5 // pred_check_branch
        %938 = sbr.rel (%p936) target = $region163
      $region162: #{transformer_forward.40} parent=5 // pred_region
        %s939 = ssub.s32 %s9, 2
        // Predicated region
        $region164: #{transformer_forward.40} parent=162 // pred_check
          %p940 = pneg %p116
        $region165: #{transformer_forward.40} parent=162 // pred_check_branch
          %942 = sbr.rel (%p940) target = $region167
        $region166: #{transformer_forward.40} parent=162 // pred_region
          %s943 = smul.u32 2, %s15
          %p944 = scmp.lt.s32.totalorder %s943, 3
          %s945 = scalar_select %p944, %s943, 3
          %s946 = smul.addr %s945, 4
          %s947 = scalar_lea.vmem %s3, %s946
        $region167: #{transformer_forward.40} parent=162 // pred_fallthru
          _
      $region163: #{transformer_forward.40} parent=5 // pred_fallthru
        _
    $region6: #{transformer_forward.40} parent=1 // loop_footer
      %s13 = sadd.s32 1, %s9
    $region7: #{transformer_forward.40} parent=1 // loop_footer_branch
      %8 = sbr.rel target = $region3
    $region8: #{transformer_forward.40} parent=1 // loop_exit
      _

// kernel: transformer_forward.57
$region0: #{transformer_forward.57}
  #allocation0 [shape = 'u32[]', space=smem, size = 0x4, offset = 0x4, fixed_abs, tag = 'smem constant byte address 0x4 - core index']
  #allocation1 [shape = 'u32[144,128]{1,0:T(1,128)}', space=vmem, size = 0x12000, scoped, tag = 'internal scratch']
  #allocation2 [shape = 'f32[16,256]{1,0:T(8,128)}', space=vmem, size = 0x4000, scoped, tag = 'scratch operand']
  %s0 = inlined_call_operand.vmem [shape: bf16[32,128], index: 0, kind: input, shape index: {}]
  %s1 = inlined_call_operand.vmem [shape: bf16[128,256], index: 1, kind: input, shape index: {}]
  %s2 = inlined_call_operand.vmem [shape: f32[1,256], index: 2, kind: input, shape index: {}]
  %s3 = inlined_call_operand.vmem [shape: f32[32,256], index: 3, kind: output, shape index: {}]
  %s4 = sld [smem:[#allocation0]]
  $region57: #{transformer_forward.57} parent=0
    _
  %s6 = ssub.s32 1, %s4
  %s7 = scalar_select 0, %s6, %s4
  loop: start=0, step=1, limit=4
  $region2: #{transformer_forward.57} parent=0 // loop_pre_header
    _
  $region3: #{transformer_forward.57} parent=0 // loop_header
    %s9 = sphi 0, %s13
    %p10 = scmp.ge.s32.totalorder %s9, 4
    %s16 = sphi 0, %s35
    %s17 = sphi 0, %s31
    %s18 = sphi 0, %s27
    %s19 = sphi 0, %s16
    %s20 = sphi 0, %s17
    %s21 = sphi 0, %s18
    %s22 = sphi 0, %s19
    %s23 = sphi 0, %s20
    %s24 = sphi 0, %s21
    %s40 = sphi 0, %s42
    %s43 = sphi 0, %s40
    %s44 = sphi 0, %s43
    %s60 = sphi 0, %s44
    %s68 = sphi 0, %s70
    %s71 = sphi 0, %s68
    %s72 = sphi 0, %s71
    %s88 = sphi 0, %s72
    %s94 = sphi 0, %s96
    %s97 = sphi 0, %s94
    %s98 = sphi 0, %s97
    %s114 = sphi 0, %s98
    %s122 = sphi 0, %s124
    %s125 = sphi 0, %s122
    %s126 = sphi 0, %s125
    %s142 = sphi 0, %s126
  $region4: #{transformer_forward.57} parent=0 // loop_header_branch
    %12 = sbr.rel (%p10) target = $region8
  $region5: #{transformer_forward.57} parent=0 // loop_body
    %s14 = ssub.s32 %s9, 1
    %s15 = ssub.s32 %s9, 2
    %s25 = sadd.s32 1, %s18
    %p26 = scmp.ge.s32.totalorder %s25, 1
    %s27 = scalar_select %p26, 0, %s25
    %s28 = sadd.s32 1, %s17
    %s29 = scalar_select %p26, %s28, %s17
    %p30 = scmp.ge.s32.totalorder %s29, 1
    %s31 = scalar_select %p30, 0, %s29
    %s32 = sadd.s32 1, %s16
    %s33 = scalar_select %p30, %s32, %s16
    %p34 = scmp.ge.s32.totalorder %s33, 2
    %s35 = scalar_select %p34, 0, %s33
    %s36 = ssub.s32 %s16, %s35
    %s37 = ssub.s32 %s18, %s27
    %s38 = sor.u32 %s36, %s37
    %p39 = scmp.eq.s32.totalorder %s38, 0
    %s41 = sadd.s32 %s40, 1
    %s42 = scalar_select %p39, %s40, %s41
    %p45 = pneg %p39
    %p46 = scmp.eq.s32.totalorder %s9, 1
    %p47 = por %p45, %p46
    %p48 = scmp.ne.s32.totalorder %s40, %s43
    %p49 = scmp.eq.s32.totalorder %s9, 0
    %p50 = por %p48, %p49
    %p51 = scmp.ne.s32.totalorder %s40, %s43
    %p52 = scmp.eq.s32.totalorder %s14, 1
    %p53 = por %p51, %p52
    %p54 = scmp.ne.s32.totalorder %s43, %s44
    %p55 = scmp.eq.s32.totalorder %s14, 0
    %p56 = por %p54, %p55
    %p57 = scmp.ne.s32.totalorder %s43, %s44
    %p58 = scmp.eq.s32.totalorder %s15, 1
    %p59 = por %p57, %p58
    %p61 = scmp.ne.s32.totalorder %s44, %s60
    %p62 = scmp.eq.s32.totalorder %s15, 0
    %p63 = por %p61, %p62
    %s64 = ssub.s32 %s18, %s27
    %s65 = ssub.s32 %s17, %s31
    %s66 = sor.u32 %s64, %s65
    %p67 = scmp.eq.s32.totalorder %s66, 0
    %s69 = sadd.s32 %s68, 1
    %s70 = scalar_select %p67, %s68, %s69
    %p73 = pneg %p67
    %p74 = scmp.eq.s32.totalorder %s9, 1
    %p75 = por %p73, %p74
    %p76 = scmp.ne.s32.totalorder %s68, %s71
    %p77 = scmp.eq.s32.totalorder %s9, 0
    %p78 = por %p76, %p77
    %p79 = scmp.ne.s32.totalorder %s68, %s71
    %p80 = scmp.eq.s32.totalorder %s14, 1
    %p81 = por %p79, %p80
    %p82 = scmp.ne.s32.totalorder %s71, %s72
    %p83 = scmp.eq.s32.totalorder %s14, 0
    %p84 = por %p82, %p83
    %p85 = scmp.ne.s32.totalorder %s71, %s72
    %p86 = scmp.eq.s32.totalorder %s15, 1
    %p87 = por %p85, %p86
    %p89 = scmp.ne.s32.totalorder %s72, %s88
    %p90 = scmp.eq.s32.totalorder %s15, 0
    %p91 = por %p89, %p90
    %s92 = ssub.s32 %s17, %s31
    %p93 = scmp.eq.s32.totalorder %s92, 0
    %s95 = sadd.s32 %s94, 1
    %s96 = scalar_select %p93, %s94, %s95
    %p99 = pneg %p93
    %p100 = scmp.eq.s32.totalorder %s9, 1
    %p101 = por %p99, %p100
    %p102 = scmp.ne.s32.totalorder %s94, %s97
    %p103 = scmp.eq.s32.totalorder %s9, 0
    %p104 = por %p102, %p103
    %p105 = scmp.ne.s32.totalorder %s94, %s97
    %p106 = scmp.eq.s32.totalorder %s14, 1
    %p107 = por %p105, %p106
    %p108 = scmp.ne.s32.totalorder %s97, %s98
    %p109 = scmp.eq.s32.totalorder %s14, 0
    %p110 = por %p108, %p109
    %p111 = scmp.ne.s32.totalorder %s97, %s98
    %p112 = scmp.eq.s32.totalorder %s15, 1
    %p113 = por %p111, %p112
    %p115 = scmp.ne.s32.totalorder %s98, %s114
    %p116 = scmp.eq.s32.totalorder %s15, 0
    %p117 = por %p115, %p116
    %s118 = ssub.s32 %s16, %s35
    %s119 = ssub.s32 %s17, %s31
    %s120 = sor.u32 %s118, %s119
    %p121 = scmp.eq.s32.totalorder %s120, 0
    %s123 = sadd.s32 %s122, 1
    %s124 = scalar_select %p121, %s122, %s123
    %p127 = pneg %p121
    %p128 = scmp.eq.s32.totalorder %s9, 1
    %p129 = por %p127, %p128
    %p130 = scmp.ne.s32.totalorder %s122, %s125
    %p131 = scmp.eq.s32.totalorder %s9, 0
    %p132 = por %p130, %p131
    %p133 = scmp.ne.s32.totalorder %s122, %s125
    %p134 = scmp.eq.s32.totalorder %s14, 1
    %p135 = por %p133, %p134
    %p136 = scmp.ne.s32.totalorder %s125, %s126
    %p137 = scmp.eq.s32.totalorder %s14, 0
    %p138 = por %p136, %p137
    %p139 = scmp.ne.s32.totalorder %s125, %s126
    %p140 = scmp.eq.s32.totalorder %s15, 1
    %p141 = por %p139, %p140
    %p143 = scmp.ne.s32.totalorder %s126, %s142
    %p144 = scmp.eq.s32.totalorder %s15, 0
    %p145 = por %p143, %p144
    %p146 = scmp.le.s32.totalorder 1, %s9
    %p147 = scmp.lt.s32.totalorder %s9, 3
    %p148 = pnand %p146, %p147
    %p149 = pneg %p148
    // Predicated region
    $region9: #{transformer_forward.57} parent=5 // pred_check
      _
    $region10: #{transformer_forward.57} parent=5 // pred_check_branch
      %151 = sbr.rel (%p148) target = $region12
    $region11: #{transformer_forward.57} parent=5 // pred_region
      %s152 = ssub.s32 %s9, 1
      // Predicated region
      $region13: #{transformer_forward.57} parent=11 // pred_check
        %p153 = pneg %p84
      $region14: #{transformer_forward.57} parent=11 // pred_check_branch
        %155 = sbr.rel (%p153) target = $region16
      $region15: #{transformer_forward.57} parent=11 // pred_region
        %s156 = smul.u32 16, %s21
        %s157 = smul.u32 2, %s20
        %p158 = scmp.lt.s32.totalorder %s156, 15
        %s159 = scalar_select %p158, %s156, 15
        %p160 = scmp.lt.s32.totalorder %s157, 1
        %s161 = scalar_select %p160, %s157, 1
        %s162 = smul.addr %s159, 2
        %s163 = sadd.s32 %s161, %s162
        %s164 = smul.addr %s163, 4
        %s165 = scalar_lea.vmem %s1, %s164
        %s166 = smul.u32 16, %s21
        %s167 = smul.u32 2, %s20
      $region16: #{transformer_forward.57} parent=11 // pred_fallthru
        _
      // Predicated region
      $region17: #{transformer_forward.57} parent=11 // pred_check
        %p168 = pneg %p110
      $region18: #{transformer_forward.57} parent=11 // pred_check_branch
        %170 = sbr.rel (%p168) target = $region20
      $region19: #{transformer_forward.57} parent=11 // pred_region
        %s171 = smul.u32 2, %s20
        %p172 = scmp.lt.s32.totalorder %s171, 1
        %s173 = scalar_select %p172, %s171, 1
        %s174 = scalar_lea.vmem %s2, %s173
        %s175 = smul.u32 2, %s20
      $region20: #{transformer_forward.57} parent=11 // pred_fallthru
        _
    $region12: #{transformer_forward.57} parent=5 // pred_fallthru
      _
    %p176 = scmp.lt.s32.totalorder %s9, 2
    // Predicated region
    $region21: #{transformer_forward.57} parent=5 // pred_check
      %p177 = pneg %p176
    $region22: #{transformer_forward.57} parent=5 // pred_check_branch
      %179 = sbr.rel (%p177) target = $region24
    $region23: #{transformer_forward.57} parent=5 // pred_region
      // Predicated region
      $region25: #{transformer_forward.57} parent=23 // pred_check
        %p180 = pneg %p50
      $region26: #{transformer_forward.57} parent=23 // pred_check_branch
        %182 = sbr.rel (%p180) target = $region28
      $region27: #{transformer_forward.57} parent=23 // pred_region
        %s183 = smul.u32 2, %s16
        %p184 = scmp.lt.s32.totalorder %s183, 3
        %s185 = scalar_select %p184, %s183, 3
        %p186 = scmp.lt.s32.totalorder %s18, 0
        %s187 = scalar_select %p186, %s18, 0
        %s188 = sadd.s32 %s187, %s185
        %s189 = smul.addr %s188, 4
        %s190 = scalar_lea.vmem %s0, %s189
        %s191 = smul.u32 2, %s16
      $region28: #{transformer_forward.57} parent=23 // pred_fallthru
        _
    $region24: #{transformer_forward.57} parent=5 // pred_fallthru
      _
    %p192 = scmp.le.s32.totalorder 1, %s9
    %p193 = scmp.lt.s32.totalorder %s9, 3
    %p194 = pnand %p192, %p193
    %p195 = pneg %p194
    // Predicated region
    $region29: #{transformer_forward.57} parent=5 // pred_check
      _
    $region30: #{transformer_forward.57} parent=5 // pred_check_branch
      %197 = sbr.rel (%p194) target = $region32
    $region31: #{transformer_forward.57} parent=5 // pred_region
      %s198 = ssub.s32 %s9, 1
      %s199 = smul.u32 2, %s19
      %p200 = scmp.lt.s32.totalorder %s199, 3
      %s201 = scalar_select %p200, %s199, 3
      %p202 = scmp.lt.s32.totalorder %s21, 0
      %s203 = scalar_select %p202, %s21, 0
      %s204 = sadd.s32 %s203, %s201
      %s205 = smul.addr %s204, 4
      %s206 = scalar_lea.vmem %s0, %s205
      %p207 = pneg %p56
      %p208 = pneg %p53
      %s209 = smul.u32 16, %s21
      %s210 = smul.u32 2, %s20
      %p211 = scmp.lt.s32.totalorder %s209, 15
      %s212 = scalar_select %p211, %s209, 15
      %p213 = scmp.lt.s32.totalorder %s210, 1
      %s214 = scalar_select %p213, %s210, 1
      %s215 = smul.addr %s212, 2
      %s216 = sadd.s32 %s214, %s215
      %s217 = smul.addr %s216, 4
      %s218 = scalar_lea.vmem %s1, %s217
      %p219 = pneg %p84
      %p220 = pneg %p81
      %s221 = smul.u32 2, %s20
      %p222 = scmp.lt.s32.totalorder %s221, 1
      %s223 = scalar_select %p222, %s221, 1
      %s224 = scalar_lea.vmem %s2, %s223
      %p225 = pneg %p110
      %p226 = pneg %p107
      %p227 = pneg %p138
      %p228 = pneg %p135
      %s229 = smul.u32 2, %s19
      %s230 = smul.u32 2, %s20
      %p231 = scmp.lt.s32.totalorder %s229, 3
      %s232 = scalar_select %p231, %s229, 3
      %p233 = scmp.lt.s32.totalorder %s230, 1
      %s234 = scalar_select %p233, %s230, 1
      %s235 = smul.addr %s232, 2
      %s236 = sadd.s32 %s234, %s235
      %s237 = smul.addr %s236, 8
      %s238 = scalar_lea.vmem %s3, %s237
      %s239 = smul.u32 2, %s19
      %p240 = scmp.lt.s32.totalorder %s239, 3
      %s241 = scalar_select %p240, %s239, 3
      %p242 = scmp.lt.s32.totalorder %s21, 0
      %s243 = scalar_select %p242, %s21, 0
      %s244 = sadd.s32 %s243, %s241
      %s245 = smul.addr %s244, 4
      %s246 = scalar_lea.vmem %s0, %s245
      %s247 = smul.u32 2, %s19
      %s248 = smul.u32 16, %s21
      %s249 = smul.u32 2, %s20
      %p250 = scmp.lt.s32.totalorder %s248, 15
      %s251 = scalar_select %p250, %s248, 15
      %p252 = scmp.lt.s32.totalorder %s249, 1
      %s253 = scalar_select %p252, %s249, 1
      %s254 = smul.addr %s251, 2
      %s255 = sadd.s32 %s253, %s254
      %s256 = smul.addr %s255, 4
      %s257 = scalar_lea.vmem %s1, %s256
      %s258 = smul.u32 16, %s21
      %s259 = smul.u32 2, %s20
      %s260 = smul.u32 2, %s20
      %p261 = scmp.lt.s32.totalorder %s260, 1
      %s262 = scalar_select %p261, %s260, 1
      %s263 = scalar_lea.vmem %s2, %s262
      %s264 = smul.u32 2, %s20
      %s265 = smul.u32 2, %s19
      %s266 = smul.u32 2, %s20
      %p267 = scmp.lt.s32.totalorder %s265, 3
      %s268 = scalar_select %p267, %s265, 3
      %p269 = scmp.lt.s32.totalorder %s266, 1
      %s270 = scalar_select %p269, %s266, 1
      %s271 = smul.addr %s268, 2
      %s272 = sadd.s32 %s270, %s271
      %s273 = smul.addr %s272, 8
      %s274 = scalar_lea.vmem %s3, %s273
      %s275 = smul.u32 2, %s19
      %s276 = smul.u32 2, %s20
      %v278 = vld [vmem:[%s246] sm:$0xf]
      %v279 = vld [vmem:[%s246 + $0x4] sm:$0xf]
      %v280 = vld [vmem:[%s257] sm:$0xff]
      %v281 = vld [vmem:[%s257 + $0x8] sm:$0xff]
      %v282 = vld [vmem:[%s257 + $0x10] sm:$0xff]
      %v283 = vld [vmem:[%s257 + $0x18] sm:$0xff]
      %v284 = vld [vmem:[%s257 + $0x20] sm:$0xff]
      %v285 = vld [vmem:[%s257 + $0x28] sm:$0xff]
      %v286 = vld [vmem:[%s257 + $0x30] sm:$0xff]
      %v287 = vld [vmem:[%s257 + $0x38] sm:$0xff]
      %v288 = vld [vmem:[%s257 + $0x40] sm:$0xff]
      %v289 = vld [vmem:[%s257 + $0x48] sm:$0xff]
      %v290 = vld [vmem:[%s257 + $0x50] sm:$0xff]
      %v291 = vld [vmem:[%s257 + $0x58] sm:$0xff]
      %v292 = vld [vmem:[%s257 + $0x60] sm:$0xff]
      %v293 = vld [vmem:[%s257 + $0x68] sm:$0xff]
      %v294 = vld [vmem:[%s257 + $0x70] sm:$0xff]
      %v295 = vld [vmem:[%s257 + $0x78] sm:$0xff]
      %v298 = vunpack.c.l.b16 %v278
      %v299 = vunpack.c.l.b16 %v279
      %v300 = vpack.c.b16 %v299, %v298
      %v318 = vunpack.c.l.b16 %v280
      %v319 = vunpack.c.h.b16 %v280
      %v320 = vunpack.c.l.b16 %v281
      %v321 = vunpack.c.h.b16 %v281
      %v322 = vunpack.c.l.b16 %v282
      %v323 = vunpack.c.h.b16 %v282
      %v324 = vunpack.c.l.b16 %v283
      %v325 = vunpack.c.h.b16 %v283
      %v326 = vunpack.c.l.b16 %v284
      %v327 = vunpack.c.h.b16 %v284
      %v328 = vunpack.c.l.b16 %v285
      %v329 = vunpack.c.h.b16 %v285
      %v330 = vunpack.c.l.b16 %v286
      %v331 = vunpack.c.h.b16 %v286
      %v332 = vunpack.c.l.b16 %v287
      %v333 = vunpack.c.h.b16 %v287
      %v334 = vunpack.c.l.b16 %v288
      %v335 = vunpack.c.h.b16 %v288
      %v336 = vunpack.c.l.b16 %v289
      %v337 = vunpack.c.h.b16 %v289
      %v338 = vunpack.c.l.b16 %v290
      %v339 = vunpack.c.h.b16 %v290
      %v340 = vunpack.c.l.b16 %v291
      %v341 = vunpack.c.h.b16 %v291
      %v342 = vunpack.c.l.b16 %v292
      %v343 = vunpack.c.h.b16 %v292
      %v344 = vunpack.c.l.b16 %v293
      %v345 = vunpack.c.h.b16 %v293
      %v346 = vunpack.c.l.b16 %v294
      %v347 = vunpack.c.h.b16 %v294
      %v348 = vunpack.c.l.b16 %v295
      %v349 = vunpack.c.h.b16 %v295
      %v350 = vpack.c.b16 %v320, %v318
      %v351 = vpack.c.b16 %v321, %v319
      %v352 = vpack.c.b16 %v324, %v322
      %v353 = vpack.c.b16 %v325, %v323
      %v354 = vpack.c.b16 %v328, %v326
      %v355 = vpack.c.b16 %v329, %v327
      %v356 = vpack.c.b16 %v332, %v330
      %v357 = vpack.c.b16 %v333, %v331
      %v358 = vpack.c.b16 %v336, %v334
      %v359 = vpack.c.b16 %v337, %v335
      %v360 = vpack.c.b16 %v340, %v338
      %v361 = vpack.c.b16 %v341, %v339
      %v362 = vpack.c.b16 %v344, %v342
      %v363 = vpack.c.b16 %v345, %v343
      %v364 = vpack.c.b16 %v348, %v346
      %v365 = vpack.c.b16 %v349, %v347
      %382 = vmatprep.subr.bf16.mxu0 %v365
      %383 = vmatpush1.bf16.msra.mxu0 %v364
      %384 = vmatprep.subr.bf16.mxu0 %v363
      %385 = vmatpush1.bf16.msra.mxu0 %v362
      %386 = vmatprep.subr.bf16.mxu0 %v361
      %387 = vmatpush1.bf16.msra.mxu0 %v360
      %388 = vmatprep.subr.bf16.mxu0 %v359
      %389 = vmatpush1.bf16.msra.mxu0 %v358
      %390 = vmatprep.subr.bf16.mxu0 %v357
      %391 = vmatpush1.bf16.msra.mxu0 %v356
      %392 = vmatprep.subr.bf16.mxu0 %v355
      %393 = vmatpush1.bf16.msra.mxu0 %v354
      %394 = vmatprep.subr.bf16.mxu0 %v353
      %395 = vmatpush1.bf16.msra.mxu0 %v352
      %396 = vmatprep.subr.bf16.mxu0 %v351
      %397 = vmatpush1.bf16.msra.mxu0 %v350
      %398 = vmatprep.subr.bf16.mxu0 0
      %399 = vmatpush2.bf16.msra.mxu0 0
      %400 = vmatprep.subr.bf16.mxu0 0
      %401 = vmatpush2.bf16.msra.mxu0 0
      %402 = vmatprep.subr.bf16.mxu0 0
      %403 = vmatpush2.bf16.msra.mxu0 0
      %404 = vmatprep.subr.bf16.mxu0 0
      %405 = vmatpush2.bf16.msra.mxu0 0
      %406 = vmatprep.subr.bf16.mxu0 0
      %407 = vmatpush2.bf16.msra.mxu0 0
      %408 = vmatprep.subr.bf16.mxu0 0
      %409 = vmatpush2.bf16.msra.mxu0 0
      %410 = vmatprep.subr.bf16.mxu0 0
      %411 = vmatpush2.bf16.msra.mxu0 0
      %412 = vmatprep.subr.bf16.mxu0 0
      %413 = vmatpush2.bf16.msra.mxu0 0
      %414 = vmatprep.mubr.bf16.mxu0 0
      %415 = vmatmul.mubr.bf16.gmra.mxu0 %v300
      %v416 = vpop.f32.mrf.mxu0
      %v417 = vadd.f32 0.0, %v416
      %v418 = vpop.f32.mrf.mxu0
      %v419 = vadd.f32 0.0, %v418
      %v420 = vpop.f32.mrf.mxu0
      %v421 = vadd.f32 0.0, %v420
      %v422 = vpop.f32.mrf.mxu0
      %v423 = vadd.f32 0.0, %v422
      %424 = vdwg.mxu0
      %p425 = scmp.eq.s32.totalorder %s21, 0
      // Predicated region
      $region33: #{transformer_forward.57} parent=31 // pred_check
        %p426 = pneg %p425
      $region34: #{transformer_forward.57} parent=31 // pred_check_branch
        %428 = sbr.rel (%p426) target = $region36
      $region35: #{transformer_forward.57} parent=31 // pred_region
        %429 = vst [vmem:[#allocation2] sm:$0xff] %v417
        %430 = vst [vmem:[#allocation2 + $0x8] sm:$0xff] %v419
        %431 = vst [vmem:[#allocation2 + $0x10] sm:$0xff] %v421
        %432 = vst [vmem:[#allocation2 + $0x18] sm:$0xff] %v423
      $region36: #{transformer_forward.57} parent=31 // pred_fallthru
        _
      %p433 = scmp.gt.s32.totalorder %s21, 0
      // Predicated region
      $region37: #{transformer_forward.57} parent=31 // pred_check
        %p434 = pneg %p433
      $region38: #{transformer_forward.57} parent=31 // pred_check_branch
        %436 = sbr.rel (%p434) target = $region40
      $region39: #{transformer_forward.57} parent=31 // pred_region
        %v437 = vld [vmem:[#allocation2] sm:$0xff]
        %v438 = vld [vmem:[#allocation2 + $0x8] sm:$0xff]
        %v439 = vld [vmem:[#allocation2 + $0x10] sm:$0xff]
        %v440 = vld [vmem:[#allocation2 + $0x18] sm:$0xff]
        %v441 = vadd.f32 %v437, %v417
        %v442 = vadd.f32 %v438, %v419
        %v443 = vadd.f32 %v439, %v421
        %v444 = vadd.f32 %v440, %v423
        %445 = vst [vmem:[#allocation2] sm:$0xff] %v441
        %446 = vst [vmem:[#allocation2 + $0x8] sm:$0xff] %v442
        %447 = vst [vmem:[#allocation2 + $0x10] sm:$0xff] %v443
        %448 = vst [vmem:[#allocation2 + $0x18] sm:$0xff] %v444
      $region40: #{transformer_forward.57} parent=31 // pred_fallthru
        _
      // Predicated region
      $region41: #{transformer_forward.57} parent=31 // pred_check
        %p449 = pneg %p425
      $region42: #{transformer_forward.57} parent=31 // pred_check_branch
        %451 = sbr.rel (%p449) target = $region44
      $region43: #{transformer_forward.57} parent=31 // pred_region
        %v452 = vld [vmem:[#allocation2] sm:$0xff]
        %v453 = vld [vmem:[#allocation2 + $0x8] sm:$0xff]
        %v454 = vld [vmem:[#allocation2 + $0x10] sm:$0xff]
        %v455 = vld [vmem:[#allocation2 + $0x18] sm:$0xff]
        %v456 = vld [vmem:[%s263] sm:$0x3]
        %v458 = vlaneseq
        %v459 = vshrl.u32 %v458, 7
        %v460 = vsub.s32 0, %v459
        %v461 = vrot.slane %v456, %v460
        %v462 = vlaneseq
        %v463 = vshrl.u32 %v462, 7
        %v464 = vsub.s32 1, %v463
        %v465 = vrot.slane %v456, %v464
        %v468 = vadd.f32 %v452, %v461
        %v469 = vadd.f32 %v453, %v465
        %v470 = vadd.f32 %v454, %v461
        %v471 = vadd.f32 %v455, %v465
        %472 = vst [vmem:[%s274] sm:$0xff] %v468
        %473 = vst [vmem:[%s274 + $0x8] sm:$0xff] %v469
        %474 = vst [vmem:[%s274 + $0x10] sm:$0xff] %v470
        %475 = vst [vmem:[%s274 + $0x18] sm:$0xff] %v471
      $region44: #{transformer_forward.57} parent=31 // pred_fallthru
        _
      %s476 = smul.u32 2, %s19
      %s477 = smul.u32 2, %s20
      %p478 = scmp.lt.s32.totalorder %s476, 3
      %s479 = scalar_select %p478, %s476, 3
      %p480 = scmp.lt.s32.totalorder %s477, 1
      %s481 = scalar_select %p480, %s477, 1
      %s482 = smul.addr %s479, 2
      %s483 = sadd.s32 %s481, %s482
      %s484 = smul.addr %s483, 8
      %s485 = scalar_lea.vmem %s3, %s484
      // Predicated region
      $region45: #{transformer_forward.57} parent=31 // pred_check
        %p486 = pneg %p135
      $region46: #{transformer_forward.57} parent=31 // pred_check_branch
        %488 = sbr.rel (%p486) target = $region48
      $region47: #{transformer_forward.57} parent=31 // pred_region
        %s489 = smul.u32 2, %s19
        %s490 = smul.u32 2, %s20
      $region48: #{transformer_forward.57} parent=31 // pred_fallthru
        _
    $region32: #{transformer_forward.57} parent=5 // pred_fallthru
      _
    %p491 = scmp.le.s32.totalorder 2, %s9
    // Predicated region
    $region49: #{transformer_forward.57} parent=5 // pred_check
      %p492 = pneg %p491
    $region50: #{transformer_forward.57} parent=5 // pred_check_branch
      %494 = sbr.rel (%p492) target = $region52
    $region51: #{transformer_forward.57} parent=5 // pred_region
      %s495 = ssub.s32 %s9, 2
      // Predicated region
      $region53: #{transformer_forward.57} parent=51 // pred_check
        %p496 = pneg %p141
      $region54: #{transformer_forward.57} parent=51 // pred_check_branch
        %498 = sbr.rel (%p496) target = $region56
      $region55: #{transformer_forward.57} parent=51 // pred_region
        %s499 = smul.u32 2, %s22
        %s500 = smul.u32 2, %s23
        %p501 = scmp.lt.s32.totalorder %s499, 3
        %s502 = scalar_select %p501, %s499, 3
        %p503 = scmp.lt.s32.totalorder %s500, 1
        %s504 = scalar_select %p503, %s500, 1
        %s505 = smul.addr %s502, 2
        %s506 = sadd.s32 %s504, %s505
        %s507 = smul.addr %s506, 8
        %s508 = scalar_lea.vmem %s3, %s507
      $region56: #{transformer_forward.57} parent=51 // pred_fallthru
        _
    $region52: #{transformer_forward.57} parent=5 // pred_fallthru
      _
  $region6: #{transformer_forward.57} parent=0 // loop_footer
    %s13 = sadd.s32 1, %s9
  $region7: #{transformer_forward.57} parent=0 // loop_footer_branch
    %8 = sbr.rel target = $region3
  $region8: #{transformer_forward.57} parent=0 // loop_exit
    _

// kernel: transformer_forward.44
$region0: #{transformer_forward.44}
  #allocation0 [shape = 'u32[]', space=smem, size = 0x4, offset = 0x4, fixed_abs, tag = 'smem constant byte address 0x4 - core index']
  #allocation1 [shape = 'u32[144,128]{1,0:T(1,128)}', space=vmem, size = 0x12000, scoped, tag = 'internal scratch']
  %s0 = inlined_call_operand.vmem [shape: bf16[32,128], index: 0, kind: input, shape index: {}]
  %s1 = inlined_call_operand.vmem [shape: bf16[32,256], index: 1, kind: input, shape index: {}, may-alias: {1,2}]
  %s2 = inlined_call_operand.vmem [shape: bf16[32,256], index: 2, kind: input, shape index: {}, may-alias: {1,2}]
  %s3 = inlined_call_operand.vmem [shape: bf16[32,128], index: 3, kind: output, shape index: {}]
  %s4 = sld [smem:[#allocation0]]
  $region127: #{transformer_forward.44} parent=0
    _
  %s6 = ssub.s32 1, %s4
  %s7 = scalar_select 0, %s6, %s4
  $region1: #{transformer_forward.44} parent=0
    #allocation2 [shape = 'u8[8192]{0}', space=vmem, size = 0x2000, scoped, tag = 'input window, operand 1']
    #allocation3 [shape = 'u8[8192]{0}', space=vmem, size = 0x2000, scoped, tag = 'input window, operand 2']
    loop: start=0, step=1, limit=4
    $region2: #{transformer_forward.44} parent=1 // loop_pre_header
      _
    $region3: #{transformer_forward.44} parent=1 // loop_header
      %s9 = sphi 0, %s13
      %p10 = scmp.ge.s32.totalorder %s9, 4
      %s19 = sphi 0, %s21
      %s22 = sphi 0, %s19
      %s23 = sphi 0, %s22
      %s39 = sphi 0, %s23
      %s45 = sphi 0, %s47
      %s48 = sphi 0, %s45
      %s49 = sphi 0, %s48
      %s65 = sphi 0, %s49
      %s71 = sphi 0, %s73
      %s74 = sphi 0, %s71
      %s75 = sphi 0, %s74
      %s91 = sphi 0, %s75
      %s97 = sphi 0, %s99
      %s100 = sphi 0, %s97
      %s101 = sphi 0, %s100
      %s117 = sphi 0, %s101
    $region4: #{transformer_forward.44} parent=1 // loop_header_branch
      %12 = sbr.rel (%p10) target = $region8
    $region5: #{transformer_forward.44} parent=1 // loop_body
      %s14 = ssub.s32 %s9, 1
      %s15 = ssub.s32 %s9, 2
      %s16 = sadd.s32 %s9, 1
      %s17 = ssub.s32 %s9, %s16
      %p18 = scmp.eq.s32.totalorder %s17, 0
      %s20 = sadd.s32 %s19, 1
      %s21 = scalar_select %p18, %s19, %s20
      %p24 = pneg %p18
      %p25 = scmp.eq.s32.totalorder %s9, 1
      %p26 = por %p24, %p25
      %p27 = scmp.ne.s32.totalorder %s19, %s22
      %p28 = scmp.eq.s32.totalorder %s9, 0
      %p29 = por %p27, %p28
      %p30 = scmp.ne.s32.totalorder %s19, %s22
      %p31 = scmp.eq.s32.totalorder %s14, 1
      %p32 = por %p30, %p31
      %p33 = scmp.ne.s32.totalorder %s22, %s23
      %p34 = scmp.eq.s32.totalorder %s14, 0
      %p35 = por %p33, %p34
      %p36 = scmp.ne.s32.totalorder %s22, %s23
      %p37 = scmp.eq.s32.totalorder %s15, 1
      %p38 = por %p36, %p37
      %p40 = scmp.ne.s32.totalorder %s23, %s39
      %p41 = scmp.eq.s32.totalorder %s15, 0
      %p42 = por %p40, %p41
      %s43 = ssub.s32 %s9, %s16
      %p44 = scmp.eq.s32.totalorder %s43, 0
      %s46 = sadd.s32 %s45, 1
      %s47 = scalar_select %p44, %s45, %s46
      %p50 = pneg %p44
      %p51 = scmp.eq.s32.totalorder %s9, 1
      %p52 = por %p50, %p51
      %p53 = scmp.ne.s32.totalorder %s45, %s48
      %p54 = scmp.eq.s32.totalorder %s9, 0
      %p55 = por %p53, %p54
      %p56 = scmp.ne.s32.totalorder %s45, %s48
      %p57 = scmp.eq.s32.totalorder %s14, 1
      %p58 = por %p56, %p57
      %p59 = scmp.ne.s32.totalorder %s48, %s49
      %p60 = scmp.eq.s32.totalorder %s14, 0
      %p61 = por %p59, %p60
      %p62 = scmp.ne.s32.totalorder %s48, %s49
      %p63 = scmp.eq.s32.totalorder %s15, 1
      %p64 = por %p62, %p63
      %p66 = scmp.ne.s32.totalorder %s49, %s65
      %p67 = scmp.eq.s32.totalorder %s15, 0
      %p68 = por %p66, %p67
      %s69 = ssub.s32 %s9, %s16
      %p70 = scmp.eq.s32.totalorder %s69, 0
      %s72 = sadd.s32 %s71, 1
      %s73 = scalar_select %p70, %s71, %s72
      %p76 = pneg %p70
      %p77 = scmp.eq.s32.totalorder %s9, 1
      %p78 = por %p76, %p77
      %p79 = scmp.ne.s32.totalorder %s71, %s74
      %p80 = scmp.eq.s32.totalorder %s9, 0
      %p81 = por %p79, %p80
      %p82 = scmp.ne.s32.totalorder %s71, %s74
      %p83 = scmp.eq.s32.totalorder %s14, 1
      %p84 = por %p82, %p83
      %p85 = scmp.ne.s32.totalorder %s74, %s75
      %p86 = scmp.eq.s32.totalorder %s14, 0
      %p87 = por %p85, %p86
      %p88 = scmp.ne.s32.totalorder %s74, %s75
      %p89 = scmp.eq.s32.totalorder %s15, 1
      %p90 = por %p88, %p89
      %p92 = scmp.ne.s32.totalorder %s75, %s91
      %p93 = scmp.eq.s32.totalorder %s15, 0
      %p94 = por %p92, %p93
      %s95 = ssub.s32 %s9, %s16
      %p96 = scmp.eq.s32.totalorder %s95, 0
      %s98 = sadd.s32 %s97, 1
      %s99 = scalar_select %p96, %s97, %s98
      %p102 = pneg %p96
      %p103 = scmp.eq.s32.totalorder %s9, 1
      %p104 = por %p102, %p103
      %p105 = scmp.ne.s32.totalorder %s97, %s100
      %p106 = scmp.eq.s32.totalorder %s9, 0
      %p107 = por %p105, %p106
      %p108 = scmp.ne.s32.totalorder %s97, %s100
      %p109 = scmp.eq.s32.totalorder %s14, 1
      %p110 = por %p108, %p109
      %p111 = scmp.ne.s32.totalorder %s100, %s101
      %p112 = scmp.eq.s32.totalorder %s14, 0
      %p113 = por %p111, %p112
      %p114 = scmp.ne.s32.totalorder %s100, %s101
      %p115 = scmp.eq.s32.totalorder %s15, 1
      %p116 = por %p114, %p115
      %p118 = scmp.ne.s32.totalorder %s101, %s117
      %p119 = scmp.eq.s32.totalorder %s15, 0
      %p120 = por %p118, %p119
      %p121 = scmp.le.s32.totalorder 1, %s9
      %p122 = scmp.lt.s32.totalorder %s9, 3
      %p123 = pnand %p121, %p122
      %p124 = pneg %p123
      // Predicated region
      $region9: #{transformer_forward.44} parent=5 // pred_check
        _
      $region10: #{transformer_forward.44} parent=5 // pred_check_branch
        %126 = sbr.rel (%p123) target = $region12
      $region11: #{transformer_forward.44} parent=5 // pred_region
        %s127 = ssub.s32 %s9, 1
      $region12: #{transformer_forward.44} parent=5 // pred_fallthru
        _
      %p128 = scmp.lt.s32.totalorder %s9, 2
      // Predicated region
      $region13: #{transformer_forward.44} parent=5 // pred_check
        %p129 = pneg %p128
      $region14: #{transformer_forward.44} parent=5 // pred_check_branch
        %131 = sbr.rel (%p129) target = $region16
      $region15: #{transformer_forward.44} parent=5 // pred_region
        // Predicated region
        $region17: #{transformer_forward.44} parent=15 // pred_check
          %p132 = pneg %p29
        $region18: #{transformer_forward.44} parent=15 // pred_check_branch
          %134 = sbr.rel (%p132) target = $region20
        $region19: #{transformer_forward.44} parent=15 // pred_region
          %s135 = smul.u32 2, %s9
          %p136 = scmp.lt.s32.totalorder %s135, 3
          %s137 = scalar_select %p136, %s135, 3
          %s138 = smul.addr %s137, 4
          %s139 = scalar_lea.vmem %s0, %s138
          %s140 = smul.u32 2, %s9
        $region20: #{transformer_forward.44} parent=15 // pred_fallthru
          _
        // Predicated region
        $region21: #{transformer_forward.44} parent=15 // pred_check
          %p141 = pneg %p55
        $region22: #{transformer_forward.44} parent=15 // pred_check_branch
          %143 = sbr.rel (%p141) target = $region24
        $region23: #{transformer_forward.44} parent=15 // pred_region
          %s144 = sand.u32 %s45, 1
          %s145 = sand.u32 %s45, 1
          %s146 = smul.addr %s145, 8
          %s147 = scalar_lea.vmem [#allocation2], %s146
          %s148 = smul.u32 2, %s9
          %s149 = smul.addr %s148, 2
          %s150 = smul.addr %s149, 4
          %s151 = scalar_lea.vmem %s1, %s150
          // Predicated region
          $region25: #{transformer_forward.44} parent=23 // pred_check
            _
          $region26: #{transformer_forward.44} parent=23 // pred_check_branch
            %153 = sbr.rel (0) target = $region28
          $region27: #{transformer_forward.44} parent=23 // pred_region
            // Predicated region
            $region29: #{transformer_forward.44} parent=27 // pred_check
              _
            $region30: #{transformer_forward.44} parent=27 // pred_check_branch
              %155 = sbr.rel target = $region32
            $region31: #{transformer_forward.44} parent=27 // pred_region
              // Predicated region
              $region44: #{transformer_forward.44} parent=31 // pred_check
                _
              $region45: #{transformer_forward.44} parent=31 // pred_check_branch
                %173 = sbr.rel (0) target = $region47
              $region46: #{transformer_forward.44} parent=31 // pred_region
                loop: start=0, step=1, limit=1
                $region48: #{transformer_forward.44} parent=46 // loop_pre_header
                  _
                $region49: #{transformer_forward.44} parent=46 // loop_header
                  %s175 = sphi 0, %s179
                  %p176 = scmp.ge.s32.totalorder %s175, 1
                  %s180 = sphi %s151, %s151
                  %s181 = sphi %s147, %s147
                $region50: #{transformer_forward.44} parent=46 // loop_header_branch
                  %178 = sbr.rel (%p176) target = $region54
                $region51: #{transformer_forward.44} parent=46 // loop_body
                  _
                $region52: #{transformer_forward.44} parent=46 // loop_footer
                  %s179 = sadd.s32 1, %s175
                $region53: #{transformer_forward.44} parent=46 // loop_footer_branch
                  %174 = sbr.rel target = $region49
                $region54: #{transformer_forward.44} parent=46 // loop_exit
                  _
                %s183 = ssub.s32 16, 1
                loop: start=0, step=1, limit=1
                $region55: #{transformer_forward.44} parent=46 // loop_pre_header
                  _
                $region56: #{transformer_forward.44} parent=46 // loop_header
                  %s185 = sphi 0, %s189
                  %p186 = scmp.ge.s32.totalorder %s185, 1
                  %s190 = sphi %s151, %s151
                  %s191 = sphi %s147, %s147
                $region57: #{transformer_forward.44} parent=46 // loop_header_branch
                  %188 = sbr.rel (%p186) target = $region61
                $region58: #{transformer_forward.44} parent=46 // loop_body
                  %v192 = vld [vmem:[%s190] sm:%s183]
                  %193 = vst [vmem:[%s191] sm:%s183] %v192
                  %v194 = vld [vmem:[%s190 + $0x8] sm:%s183]
                  %195 = vst [vmem:[%s191 + $0x4] sm:%s183] %v194
                $region59: #{transformer_forward.44} parent=46 // loop_footer
                  %s189 = sadd.s32 1, %s185
                $region60: #{transformer_forward.44} parent=46 // loop_footer_branch
                  %184 = sbr.rel target = $region56
                $region61: #{transformer_forward.44} parent=46 // loop_exit
                  _
              $region47: #{transformer_forward.44} parent=31 // pred_fallthru
                _
            $region32: #{transformer_forward.44} parent=27 // pred_fallthru
              _
            // Predicated region
            $region33: #{transformer_forward.44} parent=27 // pred_check
              _
            $region34: #{transformer_forward.44} parent=27 // pred_check_branch
              %157 = sbr.rel (0) target = $region36
            $region35: #{transformer_forward.44} parent=27 // pred_region
              %s159 = ssub.s32 16, 1
              loop: start=0, step=1, limit=1
              $region37: #{transformer_forward.44} parent=35 // loop_pre_header
                _
              $region38: #{transformer_forward.44} parent=35 // loop_header
                %s161 = sphi 0, %s165
                %p162 = scmp.ge.s32.totalorder %s161, 1
                %s166 = sphi %s151, %s151
                %s167 = sphi %s147, %s147
              $region39: #{transformer_forward.44} parent=35 // loop_header_branch
                %164 = sbr.rel (%p162) target = $region43
              $region40: #{transformer_forward.44} parent=35 // loop_body
                %v168 = vld [vmem:[%s166] sm:%s159]
                %169 = vst [vmem:[%s167] sm:%s159] %v168
                %v170 = vld [vmem:[%s166 + $0x8] sm:%s159]
                %171 = vst [vmem:[%s167 + $0x4] sm:%s159] %v170
              $region41: #{transformer_forward.44} parent=35 // loop_footer
                %s165 = sadd.s32 1, %s161
              $region42: #{transformer_forward.44} parent=35 // loop_footer_branch
                %160 = sbr.rel target = $region38
              $region43: #{transformer_forward.44} parent=35 // loop_exit
                _
            $region36: #{transformer_forward.44} parent=27 // pred_fallthru
              _
          $region28: #{transformer_forward.44} parent=23 // pred_fallthru
            _
          %196 = vnop
        $region24: #{transformer_forward.44} parent=15 // pred_fallthru
          _
        // Predicated region
        $region62: #{transformer_forward.44} parent=15 // pred_check
          %p197 = pneg %p81
        $region63: #{transformer_forward.44} parent=15 // pred_check_branch
          %199 = sbr.rel (%p197) target = $region65
        $region64: #{transformer_forward.44} parent=15 // pred_region
          %s200 = sand.u32 %s71, 1
          %s201 = sand.u32 %s71, 1
          %s202 = smul.addr %s201, 8
          %s203 = scalar_lea.vmem [#allocation3], %s202
          %s204 = smul.u32 2, %s9
          %s205 = smul.addr %s204, 2
          %s206 = sadd.s32 1, %s205
          %s207 = smul.addr %s206, 4
          %s208 = scalar_lea.vmem %s2, %s207
          // Predicated region
          $region66: #{transformer_forward.44} parent=64 // pred_check
            _
          $region67: #{transformer_forward.44} parent=64 // pred_check_branch
            %210 = sbr.rel (0) target = $region69
          $region68: #{transformer_forward.44} parent=64 // pred_region
            // Predicated region
            $region70: #{transformer_forward.44} parent=68 // pred_check
              _
            $region71: #{transformer_forward.44} parent=68 // pred_check_branch
              %212 = sbr.rel target = $region73
            $region72: #{transformer_forward.44} parent=68 // pred_region
              // Predicated region
              $region85: #{transformer_forward.44} parent=72 // pred_check
                _
              $region86: #{transformer_forward.44} parent=72 // pred_check_branch
                %230 = sbr.rel (0) target = $region88
              $region87: #{transformer_forward.44} parent=72 // pred_region
                loop: start=0, step=1, limit=1
                $region89: #{transformer_forward.44} parent=87 // loop_pre_header
                  _
                $region90: #{transformer_forward.44} parent=87 // loop_header
                  %s232 = sphi 0, %s236
                  %p233 = scmp.ge.s32.totalorder %s232, 1
                  %s237 = sphi %s208, %s208
                  %s238 = sphi %s203, %s203
                $region91: #{transformer_forward.44} parent=87 // loop_header_branch
                  %235 = sbr.rel (%p233) target = $region95
                $region92: #{transformer_forward.44} parent=87 // loop_body
                  _
                $region93: #{transformer_forward.44} parent=87 // loop_footer
                  %s236 = sadd.s32 1, %s232
                $region94: #{transformer_forward.44} parent=87 // loop_footer_branch
                  %231 = sbr.rel target = $region90
                $region95: #{transformer_forward.44} parent=87 // loop_exit
                  _
                %s240 = ssub.s32 16, 1
                loop: start=0, step=1, limit=1
                $region96: #{transformer_forward.44} parent=87 // loop_pre_header
                  _
                $region97: #{transformer_forward.44} parent=87 // loop_header
                  %s242 = sphi 0, %s246
                  %p243 = scmp.ge.s32.totalorder %s242, 1
                  %s247 = sphi %s208, %s208
                  %s248 = sphi %s203, %s203
                $region98: #{transformer_forward.44} parent=87 // loop_header_branch
                  %245 = sbr.rel (%p243) target = $region102
                $region99: #{transformer_forward.44} parent=87 // loop_body
                  %v249 = vld [vmem:[%s247] sm:%s240]
                  %250 = vst [vmem:[%s248] sm:%s240] %v249
                  %v251 = vld [vmem:[%s247 + $0x8] sm:%s240]
                  %252 = vst [vmem:[%s248 + $0x4] sm:%s240] %v251
                $region100: #{transformer_forward.44} parent=87 // loop_footer
                  %s246 = sadd.s32 1, %s242
                $region101: #{transformer_forward.44} parent=87 // loop_footer_branch
                  %241 = sbr.rel target = $region97
                $region102: #{transformer_forward.44} parent=87 // loop_exit
                  _
              $region88: #{transformer_forward.44} parent=72 // pred_fallthru
                _
            $region73: #{transformer_forward.44} parent=68 // pred_fallthru
              _
            // Predicated region
            $region74: #{transformer_forward.44} parent=68 // pred_check
              _
            $region75: #{transformer_forward.44} parent=68 // pred_check_branch
              %214 = sbr.rel (0) target = $region77
            $region76: #{transformer_forward.44} parent=68 // pred_region
              %s216 = ssub.s32 16, 1
              loop: start=0, step=1, limit=1
              $region78: #{transformer_forward.44} parent=76 // loop_pre_header
                _
              $region79: #{transformer_forward.44} parent=76 // loop_header
                %s218 = sphi 0, %s222
                %p219 = scmp.ge.s32.totalorder %s218, 1
                %s223 = sphi %s208, %s208
                %s224 = sphi %s203, %s203
              $region80: #{transformer_forward.44} parent=76 // loop_header_branch
                %221 = sbr.rel (%p219) target = $region84
              $region81: #{transformer_forward.44} parent=76 // loop_body
                %v225 = vld [vmem:[%s223] sm:%s216]
                %226 = vst [vmem:[%s224] sm:%s216] %v225
                %v227 = vld [vmem:[%s223 + $0x8] sm:%s216]
                %228 = vst [vmem:[%s224 + $0x4] sm:%s216] %v227
              $region82: #{transformer_forward.44} parent=76 // loop_footer
                %s222 = sadd.s32 1, %s218
              $region83: #{transformer_forward.44} parent=76 // loop_footer_branch
                %217 = sbr.rel target = $region79
              $region84: #{transformer_forward.44} parent=76 // loop_exit
                _
            $region77: #{transformer_forward.44} parent=68 // pred_fallthru
              _
          $region69: #{transformer_forward.44} parent=64 // pred_fallthru
            _
          %253 = vnop
        $region65: #{transformer_forward.44} parent=15 // pred_fallthru
          _
      $region16: #{transformer_forward.44} parent=5 // pred_fallthru
        _
      %p254 = scmp.le.s32.totalorder 1, %s9
      %p255 = scmp.lt.s32.totalorder %s9, 3
      %p256 = pnand %p254, %p255
      %p257 = pneg %p256
      // Predicated region
      $region103: #{transformer_forward.44} parent=5 // pred_check
        _
      $region104: #{transformer_forward.44} parent=5 // pred_check_branch
        %259 = sbr.rel (%p256) target = $region106
      $region105: #{transformer_forward.44} parent=5 // pred_region
        %s260 = ssub.s32 %s9, 1
        %s261 = sand.u32 %s48, 1
        %s262 = sand.u32 %s48, 1
        %s263 = smul.addr %s262, 8
        %s264 = scalar_lea.vmem [#allocation2], %s263
        // Predicated region
        $region107: #{transformer_forward.44} parent=105 // pred_check
          %p265 = pneg %p61
        $region108: #{transformer_forward.44} parent=105 // pred_check_branch
          %267 = sbr.rel (%p265) target = $region110
        $region109: #{transformer_forward.44} parent=105 // pred_region
          _
        $region110: #{transformer_forward.44} parent=105 // pred_fallthru
          _
        %s268 = sand.u32 %s74, 1
        %s269 = sand.u32 %s74, 1
        %s270 = smul.addr %s269, 8
        %s271 = scalar_lea.vmem [#allocation3], %s270
        // Predicated region
        $region111: #{transformer_forward.44} parent=105 // pred_check
          %p272 = pneg %p87
        $region112: #{transformer_forward.44} parent=105 // pred_check_branch
          %274 = sbr.rel (%p272) target = $region114
        $region113: #{transformer_forward.44} parent=105 // pred_region
          _
        $region114: #{transformer_forward.44} parent=105 // pred_fallthru
          _
        %s275 = smul.u32 2, %s14
        %p276 = scmp.lt.s32.totalorder %s275, 3
        %s277 = scalar_select %p276, %s275, 3
        %s278 = smul.addr %s277, 4
        %s279 = scalar_lea.vmem %s0, %s278
        %p280 = pneg %p35
        %p281 = pneg %p32
        %s282 = sand.u32 %s48, 1
        %s283 = sand.u32 %s48, 1
        %s284 = smul.addr %s283, 8
        %s285 = scalar_lea.vmem [#allocation2], %s284
        %p286 = pneg %p61
        %p287 = pneg %p58
        %s288 = sand.u32 %s74, 1
        %s289 = sand.u32 %s74, 1
        %s290 = smul.addr %s289, 8
        %s291 = scalar_lea.vmem [#allocation3], %s290
        %p292 = pneg %p87
        %p293 = pneg %p84
        %p294 = pneg %p113
        %p295 = pneg %p110
        %s296 = smul.u32 2, %s14
        %p297 = scmp.lt.s32.totalorder %s296, 3
        %s298 = scalar_select %p297, %s296, 3
        %s299 = smul.addr %s298, 4
        %s300 = scalar_lea.vmem %s3, %s299
        %s301 = smul.u32 2, %s14
        %p302 = scmp.lt.s32.totalorder %s301, 3
        %s303 = scalar_select %p302, %s301, 3
        %s304 = smul.addr %s303, 4
        %s305 = scalar_lea.vmem %s0, %s304
        %s306 = smul.u32 2, %s14
        %s307 = smul.u32 2, %s14
        %s308 = smul.u32 2, %s14
        %s309 = smul.u32 2, %s14
        %p310 = scmp.lt.s32.totalorder %s309, 3
        %s311 = scalar_select %p310, %s309, 3
        %s312 = smul.addr %s311, 4
        %s313 = scalar_lea.vmem %s3, %s312
        %s314 = smul.u32 2, %s14
        %v317 = vld [vmem:[%s305] sm:$0xf]
        %v318 = vld [vmem:[%s305 + $0x4] sm:$0xf]
        %v319 = vld [vmem:[%s264] sm:$0xf]
        %v320 = vld [vmem:[%s264 + $0x4] sm:$0xf]
        %v321 = vld [vmem:[%s271] sm:$0xf]
        %v322 = vld [vmem:[%s271 + $0x4] sm:$0xf]
        %v323 = vmul.bf16 %v317, 1043676725
        %v324 = vmul.bf16 %v318, 1043676725
        %v327 = vunpack.c.l.b16 %v323
        %v328 = vunpack.c.l.b16 %v324
        %v329 = vpack.c.b16 %v328, %v327
        %v332 = vunpack.c.l.b16 %v319
        %v333 = vunpack.c.l.b16 %v320
        %v334 = vpack.c.b16 %v333, %v332
        %vm335 = vcmask 261120
        %v337 = vsel %vm335, %v329, 0
        %v340 = vsel %vm335, %v334, 0
        %342 = vmatprep.subr.bf16.mxu0 0
        %343 = vmatpush1.bf16.xpose.msra.mxu0 0
        %344 = vmatprep.subr.bf16.mxu0 0
        %345 = vmatpush1.bf16.xpose.msra.mxu0 0
        %346 = vmatprep.subr.bf16.mxu0 0
        %347 = vmatpush1.bf16.xpose.msra.mxu0 0
        %348 = vmatprep.subr.bf16.mxu0 0
        %349 = vmatpush1.bf16.xpose.msra.mxu0 0
        %350 = vmatprep.subr.bf16.mxu0 0
        %351 = vmatpush1.bf16.xpose.msra.mxu0 0
        %352 = vmatprep.subr.bf16.mxu0 0
        %353 = vmatpush1.bf16.xpose.msra.mxu0 0
        %354 = vmatprep.subr.bf16.mxu0 0
        %355 = vmatpush1.bf16.xpose.msra.mxu0 0
        %356 = vmatprep.subr.bf16.mxu0 0
        %357 = vmatpush1.bf16.xpose.msra.mxu0 %v340
        %358 = vmatprep.subr.bf16.mxu0 0
        %359 = vmatpush2.bf16.xpose.msra.mxu0 0
        %360 = vmatprep.subr.bf16.mxu0 0
        %361 = vmatpush2.bf16.xpose.msra.mxu0 0
        %362 = vmatprep.subr.bf16.mxu0 0
        %363 = vmatpush2.bf16.xpose.msra.mxu0 0
        %364 = vmatprep.subr.bf16.mxu0 0
        %365 = vmatpush2.bf16.xpose.msra.mxu0 0
        %366 = vmatprep.subr.bf16.mxu0 0
        %367 = vmatpush2.bf16.xpose.msra.mxu0 0
        %368 = vmatprep.subr.bf16.mxu0 0
        %369 = vmatpush2.bf16.xpose.msra.mxu0 0
        %370 = vmatprep.subr.bf16.mxu0 0
        %371 = vmatpush2.bf16.xpose.msra.mxu0 0
        %372 = vmatprep.subr.bf16.mxu0 0
        %373 = vmatpush2.bf16.xpose.msra.mxu0 0
        %374 = vmatprep.mubr.bf16.mxu0 0
        %375 = vmatmul.mubr.bf16.gmra.mxu0 %v337
        %v376 = vpop.f32.mrf.mxu0
        %v377 = vadd.f32 0.0, %v376
        %v378 = vpop.f32.mrf.mxu0
        %v379 = vpop.f32.mrf.mxu0
        %v380 = vadd.f32 0.0, %v379
        %v381 = vpop.f32.mrf.mxu0
        %382 = vdwg.mxu0
        %vm383 = vcmask 130048
        %v384 = vsel %vm383, %v377, -inf
        %385 = vmax.xlane.f32.xlu0 %v384
        %v386 = vpop.xlane.xlu0 %385
        %v387 = vsel %vm383, %v380, -inf
        %388 = vmax.xlane.f32.xlu0 %v387
        %v389 = vpop.xlane.xlu0 %388
        %v390 = vsub.f32 %v377, %v386
        %v391 = vsub.f32 %v380, %v389
        %v392 = vmul.f32 %v390, 1.442695
        %v393 = vpow.pop %v392
        %v394 = vmul.f32 %v391, 1.442695
        %v395 = vpow.pop %v394
        %v396 = vsel %vm383, %v393, 0.0
        %397 = vadd.xlane.f32.xlu0 %v396
        %v398 = vpop.xlane.xlu0 %397
        %v399 = vsel %vm383, %v395, 0.0
        %400 = vadd.xlane.f32.xlu0 %v399
        %v401 = vpop.xlane.xlu0 %400
        %v402 = vrcp.pop %v398
        %v403 = vrcp.pop %v401
        %v404 = vmul.f32 %v393, %v402
        %v405 = vmul.f32 %v395, %v403
        %v406 = vpack.c.bf16 %v405, %v404
        %v409 = vunpack.c.l.b16 %v321
        %v410 = vunpack.c.l.b16 %v322
        %v411 = vpack.c.b16 %v410, %v409
        %v414 = vsel %vm383, %v406, 0
        %416 = vmatprep.subr.bf16.mxu0 0
        %417 = vmatpush1.bf16.msra.mxu0 0
        %418 = vmatprep.subr.bf16.mxu0 0
        %419 = vmatpush1.bf16.msra.mxu0 0
        %420 = vmatprep.subr.bf16.mxu0 0
        %421 = vmatpush1.bf16.msra.mxu0 0
        %422 = vmatprep.subr.bf16.mxu0 0
        %423 = vmatpush1.bf16.msra.mxu0 0
        %424 = vmatprep.subr.bf16.mxu0 0
        %425 = vmatpush1.bf16.msra.mxu0 0
        %426 = vmatprep.subr.bf16.mxu0 0
        %427 = vmatpush1.bf16.msra.mxu0 0
        %428 = vmatprep.subr.bf16.mxu0 0
        %429 = vmatpush1.bf16.msra.mxu0 0
        %430 = vmatprep.subr.bf16.mxu0 0
        %431 = vmatpush1.bf16.msra.mxu0 %v411
        %432 = vmatprep.subr.bf16.mxu0 0
        %433 = vmatpush2.bf16.msra.mxu0 0
        %434 = vmatprep.subr.bf16.mxu0 0
        %435 = vmatpush2.bf16.msra.mxu0 0
        %436 = vmatprep.subr.bf16.mxu0 0
        %437 = vmatpush2.bf16.msra.mxu0 0
        %438 = vmatprep.subr.bf16.mxu0 0
        %439 = vmatpush2.bf16.msra.mxu0 0
        %440 = vmatprep.subr.bf16.mxu0 0
        %441 = vmatpush2.bf16.msra.mxu0 0
        %442 = vmatprep.subr.bf16.mxu0 0
        %443 = vmatpush2.bf16.msra.mxu0 0
        %444 = vmatprep.subr.bf16.mxu0 0
        %445 = vmatpush2.bf16.msra.mxu0 0
        %446 = vmatprep.subr.bf16.mxu0 0
        %447 = vmatpush2.bf16.msra.mxu0 0
        %448 = vmatprep.mubr.bf16.mxu0 0
        %449 = vmatmul.mubr.bf16.gmra.mxu0 %v414
        %v450 = vpop.f32.mrf.mxu0
        %v451 = vadd.f32 0.0, %v450
        %v452 = vpop.f32.mrf.mxu0
        %v453 = vpop.f32.mrf.mxu0
        %v454 = vadd.f32 0.0, %v453
        %v455 = vpop.f32.mrf.mxu0
        %456 = vdwg.mxu0
        %457 = vrot.lane.b32.xlu0 %v329, 96
        %v458 = vpop.permute.xlu0 %457
        %459 = vrot.lane.b32.xlu0 %v334, 96
        %v460 = vpop.permute.xlu0 %459
        %v462 = vsel %vm335, %v458, 0
        %v465 = vsel %vm335, %v460, 0
        %467 = vmatprep.subr.bf16.mxu0 0
        %468 = vmatpush1.bf16.xpose.msra.mxu0 0
        %469 = vmatprep.subr.bf16.mxu0 0
        %470 = vmatpush1.bf16.xpose.msra.mxu0 0
        %471 = vmatprep.subr.bf16.mxu0 0
        %472 = vmatpush1.bf16.xpose.msra.mxu0 0
        %473 = vmatprep.subr.bf16.mxu0 0
        %474 = vmatpush1.bf16.xpose.msra.mxu0 0
        %475 = vmatprep.subr.bf16.mxu0 0
        %476 = vmatpush1.bf16.xpose.msra.mxu0 0
        %477 = vmatprep.subr.bf16.mxu0 0
        %478 = vmatpush1.bf16.xpose.msra.mxu0 0
        %479 = vmatprep.subr.bf16.mxu0 0
        %480 = vmatpush1.bf16.xpose.msra.mxu0 0
        %481 = vmatprep.subr.bf16.mxu0 0
        %482 = vmatpush1.bf16.xpose.msra.mxu0 %v465
        %483 = vmatprep.subr.bf16.mxu0 0
        %484 = vmatpush2.bf16.xpose.msra.mxu0 0
        %485 = vmatprep.subr.bf16.mxu0 0
        %486 = vmatpush2.bf16.xpose.msra.mxu0 0
        %487 = vmatprep.subr.bf16.mxu0 0
        %488 = vmatpush2.bf16.xpose.msra.mxu0 0
        %489 = vmatprep.subr.bf16.mxu0 0
        %490 = vmatpush2.bf16.xpose.msra.mxu0 0
        %491 = vmatprep.subr.bf16.mxu0 0
        %492 = vmatpush2.bf16.xpose.msra.mxu0 0
        %493 = vmatprep.subr.bf16.mxu0 0
        %494 = vmatpush2.bf16.xpose.msra.mxu0 0
        %495 = vmatprep.subr.bf16.mxu0 0
        %496 = vmatpush2.bf16.xpose.msra.mxu0 0
        %497 = vmatprep.subr.bf16.mxu0 0
        %498 = vmatpush2.bf16.xpose.msra.mxu0 0
        %499 = vmatprep.mubr.bf16.mxu0 0
        %500 = vmatmul.mubr.bf16.gmra.mxu0 %v462
        %v501 = vpop.f32.mrf.mxu0
        %v502 = vadd.f32 0.0, %v501
        %v503 = vpop.f32.mrf.mxu0
        %v504 = vpop.f32.mrf.mxu0
        %v505 = vadd.f32 0.0, %v504
        %v506 = vpop.f32.mrf.mxu0
        %507 = vdwg.mxu0
        %v508 = vsel %vm383, %v502, -inf
        %509 = vmax.xlane.f32.xlu0 %v508
        %v510 = vpop.xlane.xlu0 %509
        %v511 = vsel %vm383, %v505, -inf
        %512 = vmax.xlane.f32.xlu0 %v511
        %v513 = vpop.xlane.xlu0 %512
        %v514 = vsub.f32 %v502, %v510
        %v515 = vsub.f32 %v505, %v513
        %v516 = vmul.f32 %v514, 1.442695
        %v517 = vpow.pop %v516
        %v518 = vmul.f32 %v515, 1.442695
        %v519 = vpow.pop %v518
        %v520 = vsel %vm383, %v517, 0.0
        %521 = vadd.xlane.f32.xlu0 %v520
        %v522 = vpop.xlane.xlu0 %521
        %v523 = vsel %vm383, %v519, 0.0
        %524 = vadd.xlane.f32.xlu0 %v523
        %v525 = vpop.xlane.xlu0 %524
        %v526 = vrcp.pop %v522
        %v527 = vrcp.pop %v525
        %v528 = vmul.f32 %v517, %v526
        %v529 = vmul.f32 %v519, %v527
        %v530 = vpack.c.bf16 %v529, %v528
        %531 = vrot.lane.b32.xlu0 %v411, 96
        %v532 = vpop.permute.xlu0 %531
        %v535 = vsel %vm383, %v530, 0
        %537 = vmatprep.subr.bf16.mxu0 0
        %538 = vmatpush1.bf16.msra.mxu0 0
        %539 = vmatprep.subr.bf16.mxu0 0
        %540 = vmatpush1.bf16.msra.mxu0 0
        %541 = vmatprep.subr.bf16.mxu0 0
        %542 = vmatpush1.bf16.msra.mxu0 0
        %543 = vmatprep.subr.bf16.mxu0 0
        %544 = vmatpush1.bf16.msra.mxu0 0
        %545 = vmatprep.subr.bf16.mxu0 0
        %546 = vmatpush1.bf16.msra.mxu0 0
        %547 = vmatprep.subr.bf16.mxu0 0
        %548 = vmatpush1.bf16.msra.mxu0 0
        %549 = vmatprep.subr.bf16.mxu0 0
        %550 = vmatpush1.bf16.msra.mxu0 0
        %551 = vmatprep.subr.bf16.mxu0 0
        %552 = vmatpush1.bf16.msra.mxu0 %v532
        %553 = vmatprep.subr.bf16.mxu0 0
        %554 = vmatpush2.bf16.msra.mxu0 0
        %555 = vmatprep.subr.bf16.mxu0 0
        %556 = vmatpush2.bf16.msra.mxu0 0
        %557 = vmatprep.subr.bf16.mxu0 0
        %558 = vmatpush2.bf16.msra.mxu0 0
        %559 = vmatprep.subr.bf16.mxu0 0
        %560 = vmatpush2.bf16.msra.mxu0 0
        %561 = vmatprep.subr.bf16.mxu0 0
        %562 = vmatpush2.bf16.msra.mxu0 0
        %563 = vmatprep.subr.bf16.mxu0 0
        %564 = vmatpush2.bf16.msra.mxu0 0
        %565 = vmatprep.subr.bf16.mxu0 0
        %566 = vmatpush2.bf16.msra.mxu0 0
        %567 = vmatprep.subr.bf16.mxu0 0
        %568 = vmatpush2.bf16.msra.mxu0 0
        %569 = vmatprep.mubr.bf16.mxu0 0
        %570 = vmatmul.mubr.bf16.gmra.mxu0 %v535
        %v571 = vpop.f32.mrf.mxu0
        %v572 = vadd.f32 0.0, %v571
        %v573 = vpop.f32.mrf.mxu0
        %v574 = vpop.f32.mrf.mxu0
        %v575 = vadd.f32 0.0, %v574
        %v576 = vpop.f32.mrf.mxu0
        %577 = vdwg.mxu0
        %578 = vrot.lane.b32.xlu0 %v329, 64
        %v579 = vpop.permute.xlu0 %578
        %580 = vrot.lane.b32.xlu0 %v334, 64
        %v581 = vpop.permute.xlu0 %580
        %v583 = vsel %vm335, %v579, 0
        %v586 = vsel %vm335, %v581, 0
        %588 = vmatprep.subr.bf16.mxu0 0
        %589 = vmatpush1.bf16.xpose.msra.mxu0 0
        %590 = vmatprep.subr.bf16.mxu0 0
        %591 = vmatpush1.bf16.xpose.msra.mxu0 0
        %592 = vmatprep.subr.bf16.mxu0 0
        %593 = vmatpush1.bf16.xpose.msra.mxu0 0
        %594 = vmatprep.subr.bf16.mxu0 0
        %595 = vmatpush1.bf16.xpose.msra.mxu0 0
        %596 = vmatprep.subr.bf16.mxu0 0
        %597 = vmatpush1.bf16.xpose.msra.mxu0 0
        %598 = vmatprep.subr.bf16.mxu0 0
        %599 = vmatpush1.bf16.xpose.msra.mxu0 0
        %600 = vmatprep.subr.bf16.mxu0 0
        %601 = vmatpush1.bf16.xpose.msra.mxu0 0
        %602 = vmatprep.subr.bf16.mxu0 0
        %603 = vmatpush1.bf16.xpose.msra.mxu0 %v586
        %604 = vmatprep.subr.bf16.mxu0 0
        %605 = vmatpush2.bf16.xpose.msra.mxu0 0
        %606 = vmatprep.subr.bf16.mxu0 0
        %607 = vmatpush2.bf16.xpose.msra.mxu0 0
        %608 = vmatprep.subr.bf16.mxu0 0
        %609 = vmatpush2.bf16.xpose.msra.mxu0 0
        %610 = vmatprep.subr.bf16.mxu0 0
        %611 = vmatpush2.bf16.xpose.msra.mxu0 0
        %612 = vmatprep.subr.bf16.mxu0 0
        %613 = vmatpush2.bf16.xpose.msra.mxu0 0
        %614 = vmatprep.subr.bf16.mxu0 0
        %615 = vmatpush2.bf16.xpose.msra.mxu0 0
        %616 = vmatprep.subr.bf16.mxu0 0
        %617 = vmatpush2.bf16.xpose.msra.mxu0 0
        %618 = vmatprep.subr.bf16.mxu0 0
        %619 = vmatpush2.bf16.xpose.msra.mxu0 0
        %620 = vmatprep.mubr.bf16.mxu0 0
        %621 = vmatmul.mubr.bf16.gmra.mxu0 %v583
        %v622 = vpop.f32.mrf.mxu0
        %v623 = vadd.f32 0.0, %v622
        %v624 = vpop.f32.mrf.mxu0
        %v625 = vpop.f32.mrf.mxu0
        %v626 = vadd.f32 0.0, %v625
        %v627 = vpop.f32.mrf.mxu0
        %628 = vdwg.mxu0
        %v629 = vsel %vm383, %v623, -inf
        %630 = vmax.xlane.f32.xlu0 %v629
        %v631 = vpop.xlane.xlu0 %630
        %v632 = vsel %vm383, %v626, -inf
        %633 = vmax.xlane.f32.xlu0 %v632
        %v634 = vpop.xlane.xlu0 %633
        %v635 = vsub.f32 %v623, %v631
        %v636 = vsub.f32 %v626, %v634
        %v637 = vmul.f32 %v635, 1.442695
        %v638 = vpow.pop %v637
        %v639 = vmul.f32 %v636, 1.442695
        %v640 = vpow.pop %v639
        %v641 = vsel %vm383, %v638, 0.0
        %642 = vadd.xlane.f32.xlu0 %v641
        %v643 = vpop.xlane.xlu0 %642
        %v644 = vsel %vm383, %v640, 0.0
        %645 = vadd.xlane.f32.xlu0 %v644
        %v646 = vpop.xlane.xlu0 %645
        %v647 = vrcp.pop %v643
        %v648 = vrcp.pop %v646
        %v649 = vmul.f32 %v638, %v647
        %v650 = vmul.f32 %v640, %v648
        %v651 = vpack.c.bf16 %v650, %v649
        %652 = vrot.lane.b32.xlu0 %v411, 64
        %v653 = vpop.permute.xlu0 %652
        %v656 = vsel %vm383, %v651, 0
        %658 = vmatprep.subr.bf16.mxu0 0
        %659 = vmatpush1.bf16.msra.mxu0 0
        %660 = vmatprep.subr.bf16.mxu0 0
        %661 = vmatpush1.bf16.msra.mxu0 0
        %662 = vmatprep.subr.bf16.mxu0 0
        %663 = vmatpush1.bf16.msra.mxu0 0
        %664 = vmatprep.subr.bf16.mxu0 0
        %665 = vmatpush1.bf16.msra.mxu0 0
        %666 = vmatprep.subr.bf16.mxu0 0
        %667 = vmatpush1.bf16.msra.mxu0 0
        %668 = vmatprep.subr.bf16.mxu0 0
        %669 = vmatpush1.bf16.msra.mxu0 0
        %670 = vmatprep.subr.bf16.mxu0 0
        %671 = vmatpush1.bf16.msra.mxu0 0
        %672 = vmatprep.subr.bf16.mxu0 0
        %673 = vmatpush1.bf16.msra.mxu0 %v653
        %674 = vmatprep.subr.bf16.mxu0 0
        %675 = vmatpush2.bf16.msra.mxu0 0
        %676 = vmatprep.subr.bf16.mxu0 0
        %677 = vmatpush2.bf16.msra.mxu0 0
        %678 = vmatprep.subr.bf16.mxu0 0
        %679 = vmatpush2.bf16.msra.mxu0 0
        %680 = vmatprep.subr.bf16.mxu0 0
        %681 = vmatpush2.bf16.msra.mxu0 0
        %682 = vmatprep.subr.bf16.mxu0 0
        %683 = vmatpush2.bf16.msra.mxu0 0
        %684 = vmatprep.subr.bf16.mxu0 0
        %685 = vmatpush2.bf16.msra.mxu0 0
        %686 = vmatprep.subr.bf16.mxu0 0
        %687 = vmatpush2.bf16.msra.mxu0 0
        %688 = vmatprep.subr.bf16.mxu0 0
        %689 = vmatpush2.bf16.msra.mxu0 0
        %690 = vmatprep.mubr.bf16.mxu0 0
        %691 = vmatmul.mubr.bf16.gmra.mxu0 %v656
        %v692 = vpop.f32.mrf.mxu0
        %v693 = vadd.f32 0.0, %v692
        %v694 = vpop.f32.mrf.mxu0
        %v695 = vpop.f32.mrf.mxu0
        %v696 = vadd.f32 0.0, %v695
        %v697 = vpop.f32.mrf.mxu0
        %698 = vdwg.mxu0
        %699 = vrot.lane.b32.xlu0 %v329, 32
        %v700 = vpop.permute.xlu0 %699
        %701 = vrot.lane.b32.xlu0 %v334, 32
        %v702 = vpop.permute.xlu0 %701
        %v704 = vsel %vm335, %v700, 0
        %v707 = vsel %vm335, %v702, 0
        %709 = vmatprep.subr.bf16.mxu0 0
        %710 = vmatpush1.bf16.xpose.msra.mxu0 0
        %711 = vmatprep.subr.bf16.mxu0 0
        %712 = vmatpush1.bf16.xpose.msra.mxu0 0
        %713 = vmatprep.subr.bf16.mxu0 0
        %714 = vmatpush1.bf16.xpose.msra.mxu0 0
        %715 = vmatprep.subr.bf16.mxu0 0
        %716 = vmatpush1.bf16.xpose.msra.mxu0 0
        %717 = vmatprep.subr.bf16.mxu0 0
        %718 = vmatpush1.bf16.xpose.msra.mxu0 0
        %719 = vmatprep.subr.bf16.mxu0 0
        %720 = vmatpush1.bf16.xpose.msra.mxu0 0
        %721 = vmatprep.subr.bf16.mxu0 0
        %722 = vmatpush1.bf16.xpose.msra.mxu0 0
        %723 = vmatprep.subr.bf16.mxu0 0
        %724 = vmatpush1.bf16.xpose.msra.mxu0 %v707
        %725 = vmatprep.subr.bf16.mxu0 0
        %726 = vmatpush2.bf16.xpose.msra.mxu0 0
        %727 = vmatprep.subr.bf16.mxu0 0
        %728 = vmatpush2.bf16.xpose.msra.mxu0 0
        %729 = vmatprep.subr.bf16.mxu0 0
        %730 = vmatpush2.bf16.xpose.msra.mxu0 0
        %731 = vmatprep.subr.bf16.mxu0 0
        %732 = vmatpush2.bf16.xpose.msra.mxu0 0
        %733 = vmatprep.subr.bf16.mxu0 0
        %734 = vmatpush2.bf16.xpose.msra.mxu0 0
        %735 = vmatprep.subr.bf16.mxu0 0
        %736 = vmatpush2.bf16.xpose.msra.mxu0 0
        %737 = vmatprep.subr.bf16.mxu0 0
        %738 = vmatpush2.bf16.xpose.msra.mxu0 0
        %739 = vmatprep.subr.bf16.mxu0 0
        %740 = vmatpush2.bf16.xpose.msra.mxu0 0
        %741 = vmatprep.mubr.bf16.mxu0 0
        %742 = vmatmul.mubr.bf16.gmra.mxu0 %v704
        %v743 = vpop.f32.mrf.mxu0
        %v744 = vadd.f32 0.0, %v743
        %v745 = vpop.f32.mrf.mxu0
        %v746 = vpop.f32.mrf.mxu0
        %v747 = vadd.f32 0.0, %v746
        %v748 = vpop.f32.mrf.mxu0
        %749 = vdwg.mxu0
        %v750 = vsel %vm383, %v744, -inf
        %751 = vmax.xlane.f32.xlu0 %v750
        %v752 = vpop.xlane.xlu0 %751
        %v753 = vsel %vm383, %v747, -inf
        %754 = vmax.xlane.f32.xlu0 %v753
        %v755 = vpop.xlane.xlu0 %754
        %v756 = vsub.f32 %v744, %v752
        %v757 = vsub.f32 %v747, %v755
        %v758 = vmul.f32 %v756, 1.442695
        %v759 = vpow.pop %v758
        %v760 = vmul.f32 %v757, 1.442695
        %v761 = vpow.pop %v760
        %v762 = vsel %vm383, %v759, 0.0
        %763 = vadd.xlane.f32.xlu0 %v762
        %v764 = vpop.xlane.xlu0 %763
        %v765 = vsel %vm383, %v761, 0.0
        %766 = vadd.xlane.f32.xlu0 %v765
        %v767 = vpop.xlane.xlu0 %766
        %v768 = vrcp.pop %v764
        %v769 = vrcp.pop %v767
        %v770 = vmul.f32 %v759, %v768
        %v771 = vmul.f32 %v761, %v769
        %v772 = vpack.c.bf16 %v771, %v770
        %773 = vrot.lane.b32.xlu0 %v411, 32
        %v774 = vpop.permute.xlu0 %773
        %v777 = vsel %vm383, %v772, 0
        %779 = vmatprep.subr.bf16.mxu0 0
        %780 = vmatpush1.bf16.msra.mxu0 0
        %781 = vmatprep.subr.bf16.mxu0 0
        %782 = vmatpush1.bf16.msra.mxu0 0
        %783 = vmatprep.subr.bf16.mxu0 0
        %784 = vmatpush1.bf16.msra.mxu0 0
        %785 = vmatprep.subr.bf16.mxu0 0
        %786 = vmatpush1.bf16.msra.mxu0 0
        %787 = vmatprep.subr.bf16.mxu0 0
        %788 = vmatpush1.bf16.msra.mxu0 0
        %789 = vmatprep.subr.bf16.mxu0 0
        %790 = vmatpush1.bf16.msra.mxu0 0
        %791 = vmatprep.subr.bf16.mxu0 0
        %792 = vmatpush1.bf16.msra.mxu0 0
        %793 = vmatprep.subr.bf16.mxu0 0
        %794 = vmatpush1.bf16.msra.mxu0 %v774
        %795 = vmatprep.subr.bf16.mxu0 0
        %796 = vmatpush2.bf16.msra.mxu0 0
        %797 = vmatprep.subr.bf16.mxu0 0
        %798 = vmatpush2.bf16.msra.mxu0 0
        %799 = vmatprep.subr.bf16.mxu0 0
        %800 = vmatpush2.bf16.msra.mxu0 0
        %801 = vmatprep.subr.bf16.mxu0 0
        %802 = vmatpush2.bf16.msra.mxu0 0
        %803 = vmatprep.subr.bf16.mxu0 0
        %804 = vmatpush2.bf16.msra.mxu0 0
        %805 = vmatprep.subr.bf16.mxu0 0
        %806 = vmatpush2.bf16.msra.mxu0 0
        %807 = vmatprep.subr.bf16.mxu0 0
        %808 = vmatpush2.bf16.msra.mxu0 0
        %809 = vmatprep.subr.bf16.mxu0 0
        %810 = vmatpush2.bf16.msra.mxu0 0
        %811 = vmatprep.mubr.bf16.mxu0 0
        %812 = vmatmul.mubr.bf16.gmra.mxu0 %v777
        %v813 = vpop.f32.mrf.mxu0
        %v814 = vadd.f32 0.0, %v813
        %v815 = vpop.f32.mrf.mxu0
        %v816 = vpop.f32.mrf.mxu0
        %v817 = vadd.f32 0.0, %v816
        %v818 = vpop.f32.mrf.mxu0
        %819 = vdwg.mxu0
        %822 = vrot.lane.b32.xlu0 %v572, 32
        %v823 = vpop.permute.xlu0 %822
        %824 = vrot.lane.b32.xlu0 %v575, 32
        %v825 = vpop.permute.xlu0 %824
        %830 = vrot.lane.b32.xlu0 %v693, 64
        %v831 = vpop.permute.xlu0 %830
        %832 = vrot.lane.b32.xlu0 %v696, 64
        %v833 = vpop.permute.xlu0 %832
        %838 = vrot.lane.b32.xlu0 %v814, 96
        %v839 = vpop.permute.xlu0 %838
        %840 = vrot.lane.b32.xlu0 %v817, 96
        %v841 = vpop.permute.xlu0 %840
        %v844 = vsel %vm335, %v451, %v823
        %v845 = vsel %vm335, %v454, %v825
        %vm846 = vcmask 523264
        %v847 = vsel %vm846, %v844, %v831
        %v848 = vsel %vm846, %v845, %v833
        %vm849 = vcmask 785408
        %v850 = vsel %vm849, %v847, %v839
        %v851 = vsel %vm849, %v848, %v841
        %v852 = vpack.c.bf16 %v851, %v850
        %v854 = vunpack.c.l.b16 %v852
        %v855 = vunpack.c.h.b16 %v852
        %v856 = vpack.c.b16 %v854, %v854
        %v857 = vpack.c.b16 %v855, %v855
        %860 = vst [vmem:[%s313] sm:$0xf] %v856
        %861 = vst [vmem:[%s313 + $0x4] sm:$0xf] %v857
        %s862 = smul.u32 2, %s14
        %p863 = scmp.lt.s32.totalorder %s862, 3
        %s864 = scalar_select %p863, %s862, 3
        %s865 = smul.addr %s864, 4
        %s866 = scalar_lea.vmem %s3, %s865
        // Predicated region
        $region115: #{transformer_forward.44} parent=105 // pred_check
          %p867 = pneg %p110
        $region116: #{transformer_forward.44} parent=105 // pred_check_branch
          %869 = sbr.rel (%p867) target = $region118
        $region117: #{transformer_forward.44} parent=105 // pred_region
          %s870 = smul.u32 2, %s14
        $region118: #{transformer_forward.44} parent=105 // pred_fallthru
          _
      $region106: #{transformer_forward.44} parent=5 // pred_fallthru
        _
      %p871 = scmp.le.s32.totalorder 2, %s9
      // Predicated region
      $region119: #{transformer_forward.44} parent=5 // pred_check
        %p872 = pneg %p871
      $region120: #{transformer_forward.44} parent=5 // pred_check_branch
        %874 = sbr.rel (%p872) target = $region122
      $region121: #{transformer_forward.44} parent=5 // pred_region
        %s875 = ssub.s32 %s9, 2
        // Predicated region
        $region123: #{transformer_forward.44} parent=121 // pred_check
          %p876 = pneg %p116
        $region124: #{transformer_forward.44} parent=121 // pred_check_branch
          %878 = sbr.rel (%p876) target = $region126
        $region125: #{transformer_forward.44} parent=121 // pred_region
          %s879 = smul.u32 2, %s15
          %p880 = scmp.lt.s32.totalorder %s879, 3
          %s881 = scalar_select %p880, %s879, 3
          %s882 = smul.addr %s881, 4
          %s883 = scalar_lea.vmem %s3, %s882
        $region126: #{transformer_forward.44} parent=121 // pred_fallthru
          _
      $region122: #{transformer_forward.44} parent=5 // pred_fallthru
        _
    $region6: #{transformer_forward.44} parent=1 // loop_footer
      %s13 = sadd.s32 1, %s9
    $region7: #{transformer_forward.44} parent=1 // loop_footer_branch
      %8 = sbr.rel target = $region3
    $region8: #{transformer_forward.44} parent=1 // loop_exit
      _

</llo_original>
